<compile_context>
chip_gen: v6e
topology: v6e:2x2x1
jax: 0.10.0
libtpu: 0.0.40
codegen_flags: <defaults>
</compile_context>

<pallas_src>
import functools

import numpy as np
import jax
import jax.numpy as jnp
from jax.experimental import pallas as pl
from jax.experimental.pallas import tpu as pltpu


_VMEM = pl.BlockSpec(memory_space=pltpu.MemorySpace.VMEM)
_SMEM = pl.BlockSpec(memory_space=pltpu.MemorySpace.SMEM)


# ---------------------------------------------------------------- kernel ----

def _conv_relu(a, scal_ref, w_off, b_off, cin, cout, kh, kw):
    """VALID conv + bias + ReLU on an NCHW activation.

    a: (N, cin, H, W).  Weights (PyTorch OIHW flatten order starting at w_off)
    and biases (at b_off) are read as scalars from the flat SMEM buffer: each
    tap is a vector*scalar MAC on the (H, W) tile, spatial shifts are static
    sublane/lane slices shared across output channels, and the accumulators
    start at the broadcast bias (no separate "+ bias" pass).
    """
    n = a.shape[0]
    ho = a.shape[2] - kh + 1
    wo = a.shape[3] - kw + 1
    ckk = cin * kh * kw
    accs = [jnp.full((n, 1, ho, wo), scal_ref[b_off + co], jnp.float32)
            for co in range(cout)]
    for c in range(cin):
        for i in range(kh):
            for j in range(kw):
                tap = a[:, c:c + 1, i:i + ho, j:j + wo]      # shared across cout
                t = c * kh * kw + i * kw + j
                for co in range(cout):
                    accs[co] = accs[co] + tap * scal_ref[w_off + co * ckk + t]
    return jnp.concatenate([jnp.maximum(acc, 0.0) for acc in accs], axis=1)


def _max_pool_2x2(a):
    """2x2 / stride-2 / floor-mode max pool on (N, C, H, W)."""
    ho = a.shape[2] // 2
    wo = a.shape[3] // 2
    rows = [jnp.maximum(a[:, :, 2 * y:2 * y + 1, :],
                        a[:, :, 2 * y + 1:2 * y + 2, :]) for y in range(ho)]
    q = rows[0] if ho == 1 else jnp.concatenate(rows, axis=2)
    cols = [jnp.maximum(q[:, :, :, 2 * x:2 * x + 1],
                        q[:, :, :, 2 * x + 1:2 * x + 2]) for x in range(wo)]
    return cols[0] if wo == 1 else jnp.concatenate(cols, axis=3)


def _fused_convnet_kernel(x_ref, scal_ref, wl_ref, o_ref, *, cfg):
    """Entire ConvNet forward; everything VMEM/vreg resident, NCHW layout."""
    cin, conv1, conv2, conv3, out_dim, bl_off = cfg
    f1, kh1, kw1, w1_off, b1_off = conv1
    f2, kh2, kw2, w2_off, b2_off = conv2
    f3, kh3, kw3, w3_off, b3_off = conv3

    x = x_ref[...]                                            # (N, cin, H, W)
    y1 = _conv_relu(x, scal_ref, w1_off, b1_off, cin, f1, kh1, kw1)   # conv_1+relu
    y2 = _conv_relu(y1, scal_ref, w2_off, b2_off, f1, f2, kh2, kw2)   # conv_2+relu
    p = _max_pool_2x2(y2)                                             # max_pool
    z = _conv_relu(p, scal_ref, w3_off, b3_off, f2, f3, kh3, kw3)     # conv_3+relu
    # TODO(synk): nn.Dropout(p=0.2) is a train-time stochastic op; eval-mode identity here.

    # flatten + linear, fused: wl_ref is pre-reshaped to (out_dim, f3, h4, w4),
    # i.e. conv_3's output layout in PyTorch NCHW flatten order, so the whole
    # Linear is one broadcast-multiply + lane/sublane/channel reduction per
    # output unit (no tiny MXU dots, no in-kernel flatten relayout).
    wl = wl_ref[...]
    outs = []
    for d in range(out_dim):
        prod = z * wl[d:d + 1]                                # (N, f3, h4, w4)
        s = jnp.sum(prod, axis=3, keepdims=True)              # lane reduce
        s = jnp.sum(s, axis=2, keepdims=True)                 # sublane reduce
        s = jnp.sum(s, axis=1, keepdims=True)                 # channel reduce
        outs.append(s + scal_ref[bl_off + d])                 # (N, 1, 1, 1)
    out = outs[0] if out_dim == 1 else jnp.concatenate(outs, axis=3)
    o_ref[...] = out.astype(o_ref.dtype)                      # (N, 1, 1, out_dim)


# ------------------------------------------------------------ param pack ----

def pack_params(params, n_ts, n_features):
    """One-time repack of PyTorch-layout params into two kernel buffers.

    Returns ((scalars, wl4), cfg):
      scalars: flat f32 (SMEM) = [w1|b1|w2|b2|w3|b3|bl], conv weights in OIHW
               flatten order.
      wl4:     linear weight reshaped to (out_dim, f3, h4, w4) (VMEM).
      cfg:     static layout metadata consumed at trace time.
    """
    w1, b1, w2, b2, w3, b3, wl, bl = params

    pieces, offsets, cursor = [], [], 0
    for t in (w1, b1, w2, b2, w3, b3, bl):
        flat = jnp.asarray(t, jnp.float32).reshape(-1)
        pieces.append(flat)
        offsets.append(cursor)
        cursor += int(flat.shape[0])
    scalars = jnp.concatenate(pieces)
    w1_off, b1_off, w2_off, b2_off, w3_off, b3_off, bl_off = offsets

    f1, cin, kh1, kw1 = (int(s) for s in w1.shape)
    f2, _, kh2, kw2 = (int(s) for s in w2.shape)
    f3, _, kh3, kw3 = (int(s) for s in w3.shape)
    out_dim = int(wl.shape[0])

    # Derive conv_3's output spatial dims from the actual conv/pool arithmetic
    # (not the module's closed-form Linear formula, which is shape-specific).
    h1, w1s = n_ts - kh1 + 1, n_features - kw1 + 1
    h2, w2s = h1 - kh2 + 1, w1s - kw2 + 1
    h3, w3s = h2 // 2, w2s // 2
    h4, w4s = h3 - kh3 + 1, w3s - kw3 + 1
    assert int(wl.shape[1]) == f3 * h4 * w4s, (wl.shape, f3, h4, w4s)

    wl4 = jnp.asarray(wl, jnp.float32).reshape(out_dim, f3, h4, w4s)

    cfg = (cin,
           (f1, kh1, kw1, w1_off, b1_off),
           (f2, kh2, kw2, w2_off, b2_off),
           (f3, kh3, kw3, w3_off, b3_off),
           out_dim, bl_off)
    return (scalars, wl4), cfg


# ----------------------------------------------------------------- wrapper --

def convnet_forward(x_nchw, packed, cfg):
    """Fused Pallas implementation of ConvNet.forward (dropout in eval mode)."""
    scalars, wl4 = packed
    n = x_nchw.shape[0]
    out_dim = cfg[4]
    kernel = functools.partial(_fused_convnet_kernel, cfg=cfg)
    out4 = pl.pallas_call(
        kernel,
        out_shape=jax.ShapeDtypeStruct((n, 1, 1, out_dim), jnp.float32),
        in_specs=[_VMEM, _SMEM, _VMEM],
        out_specs=_VMEM,
    )(x_nchw.astype(jnp.float32), scalars, wl4)
    return out4.reshape(n, out_dim)   # unit-dim drop; free at the XLA level


# ------------------------------------------------------------ params / ref ---

def init_params(key, n_ts, n_features, n_channels, out_dim, n_filters=(8, 8, 8)):
    keys = jax.random.split(key, 8)

    def uniform(k, shape, fan_in):
        bound = 1.0 / np.sqrt(fan_in)
        return jax.random.uniform(k, shape, jnp.float32, -bound, bound)

    w1 = uniform(keys[0], (n_filters[0], n_channels, 2, 1), n_channels * 2)
    b1 = uniform(keys[1], (n_filters[0],), n_channels * 2)
    w2 = uniform(keys[2], (n_filters[1], n_filters[0], 1, 2), n_filters[0] * 2)
    b2 = uniform(keys[3], (n_filters[1],), n_filters[0] * 2)
    w3 = uniform(keys[4], (n_filters[2], n_filters[1], 2, 2), n_filters[1] * 4)
    b3 = uniform(keys[5], (n_filters[2],), n_filters[1] * 4)
    lin_in = n_filters[-1] * (n_features - 7) * ((n_ts - 1) // 2)
    wl = uniform(keys[6], (out_dim, lin_in), lin_in)
    bl = uniform(keys[7], (out_dim,), lin_in)
    return (w1, b1, w2, b2, w3, b3, wl, bl)


def reference_forward(x, params):
    """Pure-JAX (XLA) reference mirroring the PyTorch forward (eval mode)."""
    w1, b1, w2, b2, w3, b3, wl, bl = params

    def conv(x, w, b):
        y = jax.lax.conv_general_dilated(
            x, w, window_strides=(1, 1), padding='VALID',
            dimension_numbers=('NCHW', 'OIHW', 'NCHW'))
        return y + b[None, :, None, None]

    o = jax.nn.relu(conv(x, w1, b1))
    o = jax.nn.relu(conv(o, w2, b2))
    o = jax.lax.reduce_window(o, -jnp.inf, jax.lax.max,
                              (1, 1, 2, 2), (1, 1, 2, 2), 'VALID')
    o = jax.nn.relu(conv(o, w3, b3))
    o = o.reshape(o.shape[0], -1)
    return o @ wl.T + bl


if __name__ == "__main__":
    # Shapes consistent with the module's Linear in_features formula.
    n_ts, n_features, n_channels, out_dim = 7, 9, 1, 1
    batch = 2

    key = jax.random.PRNGKey(0)
    kx, kp = jax.random.split(key)
    # x layout: NCHW = (batch, n_channels, n_ts, n_features) — fed to the
    # kernel untouched (no host-side transpose).
    x = jax.random.normal(kx, (batch, n_channels, n_ts, n_features), jnp.float32)
    params = init_params(kp, n_ts, n_features, n_channels, out_dim)
    packed, cfg = pack_params(params, n_ts, n_features)        # one-time repack

    fwd = jax.jit(lambda xx, pp: convnet_forward(xx, pp, cfg))
    out = jax.block_until_ready(fwd(x, packed))
    assert out.shape == (batch, out_dim), out.shape

    ref = jax.block_until_ready(reference_forward(x, params))
    np.testing.assert_allclose(np.asarray(out), np.asarray(ref), rtol=1e-4, atol=1e-4)
    print("KERNEL_OK")
</pallas_src>

<mosaic_0001>
module attributes {stable_mosaic.version = 11 : i64} {
  func.func @_fused_convnet_kernel(%arg0: memref<2x1x7x9xf32, #tpu.memory_space<vmem>>, %arg1: memref<425xf32, #tpu.memory_space<smem>>, %arg2: memref<1x8x2x3xf32, #tpu.memory_space<vmem>>, %arg3: memref<2x1x1x1xf32, #tpu.memory_space<vmem>>) attributes {dimension_semantics = [], scalar_prefetch = 0 : i64, scratch_operands = 0 : i64, tpu.core_type = #tpu.core_type<tc>} {
    %c0 = arith.constant 0 : index
    %c0_0 = arith.constant 0 : index
    %c0_1 = arith.constant 0 : index
    %c0_2 = arith.constant 0 : index
    %0 = vector.load %arg0[%c0, %c0_0, %c0_1, %c0_2] : memref<2x1x7x9xf32, #tpu.memory_space<vmem>>, vector<2x1x7x9xf32>
    %c16 = arith.constant 16 : index
    %1 = memref.load %arg1[%c16] : memref<425xf32, #tpu.memory_space<smem>>
    %2 = vector.broadcast %1 : f32 to vector<2x1x6x9xf32>
    %c17 = arith.constant 17 : index
    %3 = memref.load %arg1[%c17] : memref<425xf32, #tpu.memory_space<smem>>
    %4 = vector.broadcast %3 : f32 to vector<2x1x6x9xf32>
    %c18 = arith.constant 18 : index
    %5 = memref.load %arg1[%c18] : memref<425xf32, #tpu.memory_space<smem>>
    %6 = vector.broadcast %5 : f32 to vector<2x1x6x9xf32>
    %c19 = arith.constant 19 : index
    %7 = memref.load %arg1[%c19] : memref<425xf32, #tpu.memory_space<smem>>
    %8 = vector.broadcast %7 : f32 to vector<2x1x6x9xf32>
    %c20 = arith.constant 20 : index
    %9 = memref.load %arg1[%c20] : memref<425xf32, #tpu.memory_space<smem>>
    %10 = vector.broadcast %9 : f32 to vector<2x1x6x9xf32>
    %c21 = arith.constant 21 : index
    %11 = memref.load %arg1[%c21] : memref<425xf32, #tpu.memory_space<smem>>
    %12 = vector.broadcast %11 : f32 to vector<2x1x6x9xf32>
    %c22 = arith.constant 22 : index
    %13 = memref.load %arg1[%c22] : memref<425xf32, #tpu.memory_space<smem>>
    %14 = vector.broadcast %13 : f32 to vector<2x1x6x9xf32>
    %c23 = arith.constant 23 : index
    %15 = memref.load %arg1[%c23] : memref<425xf32, #tpu.memory_space<smem>>
    %16 = vector.broadcast %15 : f32 to vector<2x1x6x9xf32>
    %17 = vector.extract_strided_slice %0 {offsets = [0, 0, 0, 0], sizes = [2, 1, 6, 9], strides = [1, 1, 1, 1]} : vector<2x1x7x9xf32> to vector<2x1x6x9xf32>
    %c0_3 = arith.constant 0 : index
    %18 = memref.load %arg1[%c0_3] : memref<425xf32, #tpu.memory_space<smem>>
    %19 = vector.broadcast %18 : f32 to vector<2x1x6x9xf32>
    %20 = arith.mulf %17, %19 : vector<2x1x6x9xf32>
    %21 = arith.addf %2, %20 : vector<2x1x6x9xf32>
    %c2 = arith.constant 2 : index
    %22 = memref.load %arg1[%c2] : memref<425xf32, #tpu.memory_space<smem>>
    %23 = vector.broadcast %22 : f32 to vector<2x1x6x9xf32>
    %24 = arith.mulf %17, %23 : vector<2x1x6x9xf32>
    %25 = arith.addf %4, %24 : vector<2x1x6x9xf32>
    %c4 = arith.constant 4 : index
    %26 = memref.load %arg1[%c4] : memref<425xf32, #tpu.memory_space<smem>>
    %27 = vector.broadcast %26 : f32 to vector<2x1x6x9xf32>
    %28 = arith.mulf %17, %27 : vector<2x1x6x9xf32>
    %29 = arith.addf %6, %28 : vector<2x1x6x9xf32>
    %c6 = arith.constant 6 : index
    %30 = memref.load %arg1[%c6] : memref<425xf32, #tpu.memory_space<smem>>
    %31 = vector.broadcast %30 : f32 to vector<2x1x6x9xf32>
    %32 = arith.mulf %17, %31 : vector<2x1x6x9xf32>
    %33 = arith.addf %8, %32 : vector<2x1x6x9xf32>
    %c8 = arith.constant 8 : index
    %34 = memref.load %arg1[%c8] : memref<425xf32, #tpu.memory_space<smem>>
    %35 = vector.broadcast %34 : f32 to vector<2x1x6x9xf32>
    %36 = arith.mulf %17, %35 : vector<2x1x6x9xf32>
    %37 = arith.addf %10, %36 : vector<2x1x6x9xf32>
    %c10 = arith.constant 10 : index
    %38 = memref.load %arg1[%c10] : memref<425xf32, #tpu.memory_space<smem>>
    %39 = vector.broadcast %38 : f32 to vector<2x1x6x9xf32>
    %40 = arith.mulf %17, %39 : vector<2x1x6x9xf32>
    %41 = arith.addf %12, %40 : vector<2x1x6x9xf32>
    %c12 = arith.constant 12 : index
    %42 = memref.load %arg1[%c12] : memref<425xf32, #tpu.memory_space<smem>>
    %43 = vector.broadcast %42 : f32 to vector<2x1x6x9xf32>
    %44 = arith.mulf %17, %43 : vector<2x1x6x9xf32>
    %45 = arith.addf %14, %44 : vector<2x1x6x9xf32>
    %c14 = arith.constant 14 : index
    %46 = memref.load %arg1[%c14] : memref<425xf32, #tpu.memory_space<smem>>
    %47 = vector.broadcast %46 : f32 to vector<2x1x6x9xf32>
    %48 = arith.mulf %17, %47 : vector<2x1x6x9xf32>
    %49 = arith.addf %16, %48 : vector<2x1x6x9xf32>
    %50 = vector.extract_strided_slice %0 {offsets = [0, 0, 1, 0], sizes = [2, 1, 6, 9], strides = [1, 1, 1, 1]} : vector<2x1x7x9xf32> to vector<2x1x6x9xf32>
    %c1 = arith.constant 1 : index
    %51 = memref.load %arg1[%c1] : memref<425xf32, #tpu.memory_space<smem>>
    %52 = vector.broadcast %51 : f32 to vector<2x1x6x9xf32>
    %53 = arith.mulf %50, %52 : vector<2x1x6x9xf32>
    %54 = arith.addf %21, %53 : vector<2x1x6x9xf32>
    %c3 = arith.constant 3 : index
    %55 = memref.load %arg1[%c3] : memref<425xf32, #tpu.memory_space<smem>>
    %56 = vector.broadcast %55 : f32 to vector<2x1x6x9xf32>
    %57 = arith.mulf %50, %56 : vector<2x1x6x9xf32>
    %58 = arith.addf %25, %57 : vector<2x1x6x9xf32>
    %c5 = arith.constant 5 : index
    %59 = memref.load %arg1[%c5] : memref<425xf32, #tpu.memory_space<smem>>
    %60 = vector.broadcast %59 : f32 to vector<2x1x6x9xf32>
    %61 = arith.mulf %50, %60 : vector<2x1x6x9xf32>
    %62 = arith.addf %29, %61 : vector<2x1x6x9xf32>
    %c7 = arith.constant 7 : index
    %63 = memref.load %arg1[%c7] : memref<425xf32, #tpu.memory_space<smem>>
    %64 = vector.broadcast %63 : f32 to vector<2x1x6x9xf32>
    %65 = arith.mulf %50, %64 : vector<2x1x6x9xf32>
    %66 = arith.addf %33, %65 : vector<2x1x6x9xf32>
    %c9 = arith.constant 9 : index
    %67 = memref.load %arg1[%c9] : memref<425xf32, #tpu.memory_space<smem>>
    %68 = vector.broadcast %67 : f32 to vector<2x1x6x9xf32>
    %69 = arith.mulf %50, %68 : vector<2x1x6x9xf32>
    %70 = arith.addf %37, %69 : vector<2x1x6x9xf32>
    %c11 = arith.constant 11 : index
    %71 = memref.load %arg1[%c11] : memref<425xf32, #tpu.memory_space<smem>>
    %72 = vector.broadcast %71 : f32 to vector<2x1x6x9xf32>
    %73 = arith.mulf %50, %72 : vector<2x1x6x9xf32>
    %74 = arith.addf %41, %73 : vector<2x1x6x9xf32>
    %c13 = arith.constant 13 : index
    %75 = memref.load %arg1[%c13] : memref<425xf32, #tpu.memory_space<smem>>
    %76 = vector.broadcast %75 : f32 to vector<2x1x6x9xf32>
    %77 = arith.mulf %50, %76 : vector<2x1x6x9xf32>
    %78 = arith.addf %45, %77 : vector<2x1x6x9xf32>
    %c15 = arith.constant 15 : index
    %79 = memref.load %arg1[%c15] : memref<425xf32, #tpu.memory_space<smem>>
    %80 = vector.broadcast %79 : f32 to vector<2x1x6x9xf32>
    %81 = arith.mulf %50, %80 : vector<2x1x6x9xf32>
    %82 = arith.addf %49, %81 : vector<2x1x6x9xf32>
    %cst = arith.constant 0.000000e+00 : f32
    %83 = vector.broadcast %cst : f32 to vector<2x1x6x9xf32>
    %84 = arith.maximumf %54, %83 : vector<2x1x6x9xf32>
    %cst_4 = arith.constant 0.000000e+00 : f32
    %85 = vector.broadcast %cst_4 : f32 to vector<2x1x6x9xf32>
    %86 = arith.maximumf %58, %85 : vector<2x1x6x9xf32>
    %cst_5 = arith.constant 0.000000e+00 : f32
    %87 = vector.broadcast %cst_5 : f32 to vector<2x1x6x9xf32>
    %88 = arith.maximumf %62, %87 : vector<2x1x6x9xf32>
    %cst_6 = arith.constant 0.000000e+00 : f32
    %89 = vector.broadcast %cst_6 : f32 to vector<2x1x6x9xf32>
    %90 = arith.maximumf %66, %89 : vector<2x1x6x9xf32>
    %cst_7 = arith.constant 0.000000e+00 : f32
    %91 = vector.broadcast %cst_7 : f32 to vector<2x1x6x9xf32>
    %92 = arith.maximumf %70, %91 : vector<2x1x6x9xf32>
    %cst_8 = arith.constant 0.000000e+00 : f32
    %93 = vector.broadcast %cst_8 : f32 to vector<2x1x6x9xf32>
    %94 = arith.maximumf %74, %93 : vector<2x1x6x9xf32>
    %cst_9 = arith.constant 0.000000e+00 : f32
    %95 = vector.broadcast %cst_9 : f32 to vector<2x1x6x9xf32>
    %96 = arith.maximumf %78, %95 : vector<2x1x6x9xf32>
    %cst_10 = arith.constant 0.000000e+00 : f32
    %97 = vector.broadcast %cst_10 : f32 to vector<2x1x6x9xf32>
    %98 = arith.maximumf %82, %97 : vector<2x1x6x9xf32>
    %99 = tpu.concatenate %84, %86, %88, %90, %92, %94, %96, %98 in 1 : vector<2x1x6x9xf32>, vector<2x1x6x9xf32>, vector<2x1x6x9xf32>, vector<2x1x6x9xf32>, vector<2x1x6x9xf32>, vector<2x1x6x9xf32>, vector<2x1x6x9xf32>, vector<2x1x6x9xf32> -> vector<2x8x6x9xf32>
    %c152 = arith.constant 152 : index
    %100 = memref.load %arg1[%c152] : memref<425xf32, #tpu.memory_space<smem>>
    %101 = vector.broadcast %100 : f32 to vector<2x1x6x8xf32>
    %c153 = arith.constant 153 : index
    %102 = memref.load %arg1[%c153] : memref<425xf32, #tpu.memory_space<smem>>
    %103 = vector.broadcast %102 : f32 to vector<2x1x6x8xf32>
    %c154 = arith.constant 154 : index
    %104 = memref.load %arg1[%c154] : memref<425xf32, #tpu.memory_space<smem>>
    %105 = vector.broadcast %104 : f32 to vector<2x1x6x8xf32>
    %c155 = arith.constant 155 : index
    %106 = memref.load %arg1[%c155] : memref<425xf32, #tpu.memory_space<smem>>
    %107 = vector.broadcast %106 : f32 to vector<2x1x6x8xf32>
    %c156 = arith.constant 156 : index
    %108 = memref.load %arg1[%c156] : memref<425xf32, #tpu.memory_space<smem>>
    %109 = vector.broadcast %108 : f32 to vector<2x1x6x8xf32>
    %c157 = arith.constant 157 : index
    %110 = memref.load %arg1[%c157] : memref<425xf32, #tpu.memory_space<smem>>
    %111 = vector.broadcast %110 : f32 to vector<2x1x6x8xf32>
    %c158 = arith.constant 158 : index
    %112 = memref.load %arg1[%c158] : memref<425xf32, #tpu.memory_space<smem>>
    %113 = vector.broadcast %112 : f32 to vector<2x1x6x8xf32>
    %c159 = arith.constant 159 : index
    %114 = memref.load %arg1[%c159] : memref<425xf32, #tpu.memory_space<smem>>
    %115 = vector.broadcast %114 : f32 to vector<2x1x6x8xf32>
    %116 = vector.extract_strided_slice %99 {offsets = [0, 0, 0, 0], sizes = [2, 1, 6, 8], strides = [1, 1, 1, 1]} : vector<2x8x6x9xf32> to vector<2x1x6x8xf32>
    %c24 = arith.constant 24 : index
    %117 = memref.load %arg1[%c24] : memref<425xf32, #tpu.memory_space<smem>>
    %118 = vector.broadcast %117 : f32 to vector<2x1x6x8xf32>
    %119 = arith.mulf %116, %118 : vector<2x1x6x8xf32>
    %120 = arith.addf %101, %119 : vector<2x1x6x8xf32>
    %c40 = arith.constant 40 : index
    %121 = memref.load %arg1[%c40] : memref<425xf32, #tpu.memory_space<smem>>
    %122 = vector.broadcast %121 : f32 to vector<2x1x6x8xf32>
    %123 = arith.mulf %116, %122 : vector<2x1x6x8xf32>
    %124 = arith.addf %103, %123 : vector<2x1x6x8xf32>
    %c56 = arith.constant 56 : index
    %125 = memref.load %arg1[%c56] : memref<425xf32, #tpu.memory_space<smem>>
    %126 = vector.broadcast %125 : f32 to vector<2x1x6x8xf32>
    %127 = arith.mulf %116, %126 : vector<2x1x6x8xf32>
    %128 = arith.addf %105, %127 : vector<2x1x6x8xf32>
    %c72 = arith.constant 72 : index
    %129 = memref.load %arg1[%c72] : memref<425xf32, #tpu.memory_space<smem>>
    %130 = vector.broadcast %129 : f32 to vector<2x1x6x8xf32>
    %131 = arith.mulf %116, %130 : vector<2x1x6x8xf32>
    %132 = arith.addf %107, %131 : vector<2x1x6x8xf32>
    %c88 = arith.constant 88 : index
    %133 = memref.load %arg1[%c88] : memref<425xf32, #tpu.memory_space<smem>>
    %134 = vector.broadcast %133 : f32 to vector<2x1x6x8xf32>
    %135 = arith.mulf %116, %134 : vector<2x1x6x8xf32>
    %136 = arith.addf %109, %135 : vector<2x1x6x8xf32>
    %c104 = arith.constant 104 : index
    %137 = memref.load %arg1[%c104] : memref<425xf32, #tpu.memory_space<smem>>
    %138 = vector.broadcast %137 : f32 to vector<2x1x6x8xf32>
    %139 = arith.mulf %116, %138 : vector<2x1x6x8xf32>
    %140 = arith.addf %111, %139 : vector<2x1x6x8xf32>
    %c120 = arith.constant 120 : index
    %141 = memref.load %arg1[%c120] : memref<425xf32, #tpu.memory_space<smem>>
    %142 = vector.broadcast %141 : f32 to vector<2x1x6x8xf32>
    %143 = arith.mulf %116, %142 : vector<2x1x6x8xf32>
    %144 = arith.addf %113, %143 : vector<2x1x6x8xf32>
    %c136 = arith.constant 136 : index
    %145 = memref.load %arg1[%c136] : memref<425xf32, #tpu.memory_space<smem>>
    %146 = vector.broadcast %145 : f32 to vector<2x1x6x8xf32>
    %147 = arith.mulf %116, %146 : vector<2x1x6x8xf32>
    %148 = arith.addf %115, %147 : vector<2x1x6x8xf32>
    %149 = vector.extract_strided_slice %99 {offsets = [0, 0, 0, 1], sizes = [2, 1, 6, 8], strides = [1, 1, 1, 1]} : vector<2x8x6x9xf32> to vector<2x1x6x8xf32>
    %c25 = arith.constant 25 : index
    %150 = memref.load %arg1[%c25] : memref<425xf32, #tpu.memory_space<smem>>
    %151 = vector.broadcast %150 : f32 to vector<2x1x6x8xf32>
    %152 = arith.mulf %149, %151 : vector<2x1x6x8xf32>
    %153 = arith.addf %120, %152 : vector<2x1x6x8xf32>
    %c41 = arith.constant 41 : index
    %154 = memref.load %arg1[%c41] : memref<425xf32, #tpu.memory_space<smem>>
    %155 = vector.broadcast %154 : f32 to vector<2x1x6x8xf32>
    %156 = arith.mulf %149, %155 : vector<2x1x6x8xf32>
    %157 = arith.addf %124, %156 : vector<2x1x6x8xf32>
    %c57 = arith.constant 57 : index
    %158 = memref.load %arg1[%c57] : memref<425xf32, #tpu.memory_space<smem>>
    %159 = vector.broadcast %158 : f32 to vector<2x1x6x8xf32>
    %160 = arith.mulf %149, %159 : vector<2x1x6x8xf32>
    %161 = arith.addf %128, %160 : vector<2x1x6x8xf32>
    %c73 = arith.constant 73 : index
    %162 = memref.load %arg1[%c73] : memref<425xf32, #tpu.memory_space<smem>>
    %163 = vector.broadcast %162 : f32 to vector<2x1x6x8xf32>
    %164 = arith.mulf %149, %163 : vector<2x1x6x8xf32>
    %165 = arith.addf %132, %164 : vector<2x1x6x8xf32>
    %c89 = arith.constant 89 : index
    %166 = memref.load %arg1[%c89] : memref<425xf32, #tpu.memory_space<smem>>
    %167 = vector.broadcast %166 : f32 to vector<2x1x6x8xf32>
    %168 = arith.mulf %149, %167 : vector<2x1x6x8xf32>
    %169 = arith.addf %136, %168 : vector<2x1x6x8xf32>
    %c105 = arith.constant 105 : index
    %170 = memref.load %arg1[%c105] : memref<425xf32, #tpu.memory_space<smem>>
    %171 = vector.broadcast %170 : f32 to vector<2x1x6x8xf32>
    %172 = arith.mulf %149, %171 : vector<2x1x6x8xf32>
    %173 = arith.addf %140, %172 : vector<2x1x6x8xf32>
    %c121 = arith.constant 121 : index
    %174 = memref.load %arg1[%c121] : memref<425xf32, #tpu.memory_space<smem>>
    %175 = vector.broadcast %174 : f32 to vector<2x1x6x8xf32>
    %176 = arith.mulf %149, %175 : vector<2x1x6x8xf32>
    %177 = arith.addf %144, %176 : vector<2x1x6x8xf32>
    %c137 = arith.constant 137 : index
    %178 = memref.load %arg1[%c137] : memref<425xf32, #tpu.memory_space<smem>>
    %179 = vector.broadcast %178 : f32 to vector<2x1x6x8xf32>
    %180 = arith.mulf %149, %179 : vector<2x1x6x8xf32>
    %181 = arith.addf %148, %180 : vector<2x1x6x8xf32>
    %182 = vector.extract_strided_slice %99 {offsets = [0, 1, 0, 0], sizes = [2, 1, 6, 8], strides = [1, 1, 1, 1]} : vector<2x8x6x9xf32> to vector<2x1x6x8xf32>
    %c26 = arith.constant 26 : index
    %183 = memref.load %arg1[%c26] : memref<425xf32, #tpu.memory_space<smem>>
    %184 = vector.broadcast %183 : f32 to vector<2x1x6x8xf32>
    %185 = arith.mulf %182, %184 : vector<2x1x6x8xf32>
    %186 = arith.addf %153, %185 : vector<2x1x6x8xf32>
    %c42 = arith.constant 42 : index
    %187 = memref.load %arg1[%c42] : memref<425xf32, #tpu.memory_space<smem>>
    %188 = vector.broadcast %187 : f32 to vector<2x1x6x8xf32>
    %189 = arith.mulf %182, %188 : vector<2x1x6x8xf32>
    %190 = arith.addf %157, %189 : vector<2x1x6x8xf32>
    %c58 = arith.constant 58 : index
    %191 = memref.load %arg1[%c58] : memref<425xf32, #tpu.memory_space<smem>>
    %192 = vector.broadcast %191 : f32 to vector<2x1x6x8xf32>
    %193 = arith.mulf %182, %192 : vector<2x1x6x8xf32>
    %194 = arith.addf %161, %193 : vector<2x1x6x8xf32>
    %c74 = arith.constant 74 : index
    %195 = memref.load %arg1[%c74] : memref<425xf32, #tpu.memory_space<smem>>
    %196 = vector.broadcast %195 : f32 to vector<2x1x6x8xf32>
    %197 = arith.mulf %182, %196 : vector<2x1x6x8xf32>
    %198 = arith.addf %165, %197 : vector<2x1x6x8xf32>
    %c90 = arith.constant 90 : index
    %199 = memref.load %arg1[%c90] : memref<425xf32, #tpu.memory_space<smem>>
    %200 = vector.broadcast %199 : f32 to vector<2x1x6x8xf32>
    %201 = arith.mulf %182, %200 : vector<2x1x6x8xf32>
    %202 = arith.addf %169, %201 : vector<2x1x6x8xf32>
    %c106 = arith.constant 106 : index
    %203 = memref.load %arg1[%c106] : memref<425xf32, #tpu.memory_space<smem>>
    %204 = vector.broadcast %203 : f32 to vector<2x1x6x8xf32>
    %205 = arith.mulf %182, %204 : vector<2x1x6x8xf32>
    %206 = arith.addf %173, %205 : vector<2x1x6x8xf32>
    %c122 = arith.constant 122 : index
    %207 = memref.load %arg1[%c122] : memref<425xf32, #tpu.memory_space<smem>>
    %208 = vector.broadcast %207 : f32 to vector<2x1x6x8xf32>
    %209 = arith.mulf %182, %208 : vector<2x1x6x8xf32>
    %210 = arith.addf %177, %209 : vector<2x1x6x8xf32>
    %c138 = arith.constant 138 : index
    %211 = memref.load %arg1[%c138] : memref<425xf32, #tpu.memory_space<smem>>
    %212 = vector.broadcast %211 : f32 to vector<2x1x6x8xf32>
    %213 = arith.mulf %182, %212 : vector<2x1x6x8xf32>
    %214 = arith.addf %181, %213 : vector<2x1x6x8xf32>
    %215 = vector.extract_strided_slice %99 {offsets = [0, 1, 0, 1], sizes = [2, 1, 6, 8], strides = [1, 1, 1, 1]} : vector<2x8x6x9xf32> to vector<2x1x6x8xf32>
    %c27 = arith.constant 27 : index
    %216 = memref.load %arg1[%c27] : memref<425xf32, #tpu.memory_space<smem>>
    %217 = vector.broadcast %216 : f32 to vector<2x1x6x8xf32>
    %218 = arith.mulf %215, %217 : vector<2x1x6x8xf32>
    %219 = arith.addf %186, %218 : vector<2x1x6x8xf32>
    %c43 = arith.constant 43 : index
    %220 = memref.load %arg1[%c43] : memref<425xf32, #tpu.memory_space<smem>>
    %221 = vector.broadcast %220 : f32 to vector<2x1x6x8xf32>
    %222 = arith.mulf %215, %221 : vector<2x1x6x8xf32>
    %223 = arith.addf %190, %222 : vector<2x1x6x8xf32>
    %c59 = arith.constant 59 : index
    %224 = memref.load %arg1[%c59] : memref<425xf32, #tpu.memory_space<smem>>
    %225 = vector.broadcast %224 : f32 to vector<2x1x6x8xf32>
    %226 = arith.mulf %215, %225 : vector<2x1x6x8xf32>
    %227 = arith.addf %194, %226 : vector<2x1x6x8xf32>
    %c75 = arith.constant 75 : index
    %228 = memref.load %arg1[%c75] : memref<425xf32, #tpu.memory_space<smem>>
    %229 = vector.broadcast %228 : f32 to vector<2x1x6x8xf32>
    %230 = arith.mulf %215, %229 : vector<2x1x6x8xf32>
    %231 = arith.addf %198, %230 : vector<2x1x6x8xf32>
    %c91 = arith.constant 91 : index
    %232 = memref.load %arg1[%c91] : memref<425xf32, #tpu.memory_space<smem>>
    %233 = vector.broadcast %232 : f32 to vector<2x1x6x8xf32>
    %234 = arith.mulf %215, %233 : vector<2x1x6x8xf32>
    %235 = arith.addf %202, %234 : vector<2x1x6x8xf32>
    %c107 = arith.constant 107 : index
    %236 = memref.load %arg1[%c107] : memref<425xf32, #tpu.memory_space<smem>>
    %237 = vector.broadcast %236 : f32 to vector<2x1x6x8xf32>
    %238 = arith.mulf %215, %237 : vector<2x1x6x8xf32>
    %239 = arith.addf %206, %238 : vector<2x1x6x8xf32>
    %c123 = arith.constant 123 : index
    %240 = memref.load %arg1[%c123] : memref<425xf32, #tpu.memory_space<smem>>
    %241 = vector.broadcast %240 : f32 to vector<2x1x6x8xf32>
    %242 = arith.mulf %215, %241 : vector<2x1x6x8xf32>
    %243 = arith.addf %210, %242 : vector<2x1x6x8xf32>
    %c139 = arith.constant 139 : index
    %244 = memref.load %arg1[%c139] : memref<425xf32, #tpu.memory_space<smem>>
    %245 = vector.broadcast %244 : f32 to vector<2x1x6x8xf32>
    %246 = arith.mulf %215, %245 : vector<2x1x6x8xf32>
    %247 = arith.addf %214, %246 : vector<2x1x6x8xf32>
    %248 = vector.extract_strided_slice %99 {offsets = [0, 2, 0, 0], sizes = [2, 1, 6, 8], strides = [1, 1, 1, 1]} : vector<2x8x6x9xf32> to vector<2x1x6x8xf32>
    %c28 = arith.constant 28 : index
    %249 = memref.load %arg1[%c28] : memref<425xf32, #tpu.memory_space<smem>>
    %250 = vector.broadcast %249 : f32 to vector<2x1x6x8xf32>
    %251 = arith.mulf %248, %250 : vector<2x1x6x8xf32>
    %252 = arith.addf %219, %251 : vector<2x1x6x8xf32>
    %c44 = arith.constant 44 : index
    %253 = memref.load %arg1[%c44] : memref<425xf32, #tpu.memory_space<smem>>
    %254 = vector.broadcast %253 : f32 to vector<2x1x6x8xf32>
    %255 = arith.mulf %248, %254 : vector<2x1x6x8xf32>
    %256 = arith.addf %223, %255 : vector<2x1x6x8xf32>
    %c60 = arith.constant 60 : index
    %257 = memref.load %arg1[%c60] : memref<425xf32, #tpu.memory_space<smem>>
    %258 = vector.broadcast %257 : f32 to vector<2x1x6x8xf32>
    %259 = arith.mulf %248, %258 : vector<2x1x6x8xf32>
    %260 = arith.addf %227, %259 : vector<2x1x6x8xf32>
    %c76 = arith.constant 76 : index
    %261 = memref.load %arg1[%c76] : memref<425xf32, #tpu.memory_space<smem>>
    %262 = vector.broadcast %261 : f32 to vector<2x1x6x8xf32>
    %263 = arith.mulf %248, %262 : vector<2x1x6x8xf32>
    %264 = arith.addf %231, %263 : vector<2x1x6x8xf32>
    %c92 = arith.constant 92 : index
    %265 = memref.load %arg1[%c92] : memref<425xf32, #tpu.memory_space<smem>>
    %266 = vector.broadcast %265 : f32 to vector<2x1x6x8xf32>
    %267 = arith.mulf %248, %266 : vector<2x1x6x8xf32>
    %268 = arith.addf %235, %267 : vector<2x1x6x8xf32>
    %c108 = arith.constant 108 : index
    %269 = memref.load %arg1[%c108] : memref<425xf32, #tpu.memory_space<smem>>
    %270 = vector.broadcast %269 : f32 to vector<2x1x6x8xf32>
    %271 = arith.mulf %248, %270 : vector<2x1x6x8xf32>
    %272 = arith.addf %239, %271 : vector<2x1x6x8xf32>
    %c124 = arith.constant 124 : index
    %273 = memref.load %arg1[%c124] : memref<425xf32, #tpu.memory_space<smem>>
    %274 = vector.broadcast %273 : f32 to vector<2x1x6x8xf32>
    %275 = arith.mulf %248, %274 : vector<2x1x6x8xf32>
    %276 = arith.addf %243, %275 : vector<2x1x6x8xf32>
    %c140 = arith.constant 140 : index
    %277 = memref.load %arg1[%c140] : memref<425xf32, #tpu.memory_space<smem>>
    %278 = vector.broadcast %277 : f32 to vector<2x1x6x8xf32>
    %279 = arith.mulf %248, %278 : vector<2x1x6x8xf32>
    %280 = arith.addf %247, %279 : vector<2x1x6x8xf32>
    %281 = vector.extract_strided_slice %99 {offsets = [0, 2, 0, 1], sizes = [2, 1, 6, 8], strides = [1, 1, 1, 1]} : vector<2x8x6x9xf32> to vector<2x1x6x8xf32>
    %c29 = arith.constant 29 : index
    %282 = memref.load %arg1[%c29] : memref<425xf32, #tpu.memory_space<smem>>
    %283 = vector.broadcast %282 : f32 to vector<2x1x6x8xf32>
    %284 = arith.mulf %281, %283 : vector<2x1x6x8xf32>
    %285 = arith.addf %252, %284 : vector<2x1x6x8xf32>
    %c45 = arith.constant 45 : index
    %286 = memref.load %arg1[%c45] : memref<425xf32, #tpu.memory_space<smem>>
    %287 = vector.broadcast %286 : f32 to vector<2x1x6x8xf32>
    %288 = arith.mulf %281, %287 : vector<2x1x6x8xf32>
    %289 = arith.addf %256, %288 : vector<2x1x6x8xf32>
    %c61 = arith.constant 61 : index
    %290 = memref.load %arg1[%c61] : memref<425xf32, #tpu.memory_space<smem>>
    %291 = vector.broadcast %290 : f32 to vector<2x1x6x8xf32>
    %292 = arith.mulf %281, %291 : vector<2x1x6x8xf32>
    %293 = arith.addf %260, %292 : vector<2x1x6x8xf32>
    %c77 = arith.constant 77 : index
    %294 = memref.load %arg1[%c77] : memref<425xf32, #tpu.memory_space<smem>>
    %295 = vector.broadcast %294 : f32 to vector<2x1x6x8xf32>
    %296 = arith.mulf %281, %295 : vector<2x1x6x8xf32>
    %297 = arith.addf %264, %296 : vector<2x1x6x8xf32>
    %c93 = arith.constant 93 : index
    %298 = memref.load %arg1[%c93] : memref<425xf32, #tpu.memory_space<smem>>
    %299 = vector.broadcast %298 : f32 to vector<2x1x6x8xf32>
    %300 = arith.mulf %281, %299 : vector<2x1x6x8xf32>
    %301 = arith.addf %268, %300 : vector<2x1x6x8xf32>
    %c109 = arith.constant 109 : index
    %302 = memref.load %arg1[%c109] : memref<425xf32, #tpu.memory_space<smem>>
    %303 = vector.broadcast %302 : f32 to vector<2x1x6x8xf32>
    %304 = arith.mulf %281, %303 : vector<2x1x6x8xf32>
    %305 = arith.addf %272, %304 : vector<2x1x6x8xf32>
    %c125 = arith.constant 125 : index
    %306 = memref.load %arg1[%c125] : memref<425xf32, #tpu.memory_space<smem>>
    %307 = vector.broadcast %306 : f32 to vector<2x1x6x8xf32>
    %308 = arith.mulf %281, %307 : vector<2x1x6x8xf32>
    %309 = arith.addf %276, %308 : vector<2x1x6x8xf32>
    %c141 = arith.constant 141 : index
    %310 = memref.load %arg1[%c141] : memref<425xf32, #tpu.memory_space<smem>>
    %311 = vector.broadcast %310 : f32 to vector<2x1x6x8xf32>
    %312 = arith.mulf %281, %311 : vector<2x1x6x8xf32>
    %313 = arith.addf %280, %312 : vector<2x1x6x8xf32>
    %314 = vector.extract_strided_slice %99 {offsets = [0, 3, 0, 0], sizes = [2, 1, 6, 8], strides = [1, 1, 1, 1]} : vector<2x8x6x9xf32> to vector<2x1x6x8xf32>
    %c30 = arith.constant 30 : index
    %315 = memref.load %arg1[%c30] : memref<425xf32, #tpu.memory_space<smem>>
    %316 = vector.broadcast %315 : f32 to vector<2x1x6x8xf32>
    %317 = arith.mulf %314, %316 : vector<2x1x6x8xf32>
    %318 = arith.addf %285, %317 : vector<2x1x6x8xf32>
    %c46 = arith.constant 46 : index
    %319 = memref.load %arg1[%c46] : memref<425xf32, #tpu.memory_space<smem>>
    %320 = vector.broadcast %319 : f32 to vector<2x1x6x8xf32>
    %321 = arith.mulf %314, %320 : vector<2x1x6x8xf32>
    %322 = arith.addf %289, %321 : vector<2x1x6x8xf32>
    %c62 = arith.constant 62 : index
    %323 = memref.load %arg1[%c62] : memref<425xf32, #tpu.memory_space<smem>>
    %324 = vector.broadcast %323 : f32 to vector<2x1x6x8xf32>
    %325 = arith.mulf %314, %324 : vector<2x1x6x8xf32>
    %326 = arith.addf %293, %325 : vector<2x1x6x8xf32>
    %c78 = arith.constant 78 : index
    %327 = memref.load %arg1[%c78] : memref<425xf32, #tpu.memory_space<smem>>
    %328 = vector.broadcast %327 : f32 to vector<2x1x6x8xf32>
    %329 = arith.mulf %314, %328 : vector<2x1x6x8xf32>
    %330 = arith.addf %297, %329 : vector<2x1x6x8xf32>
    %c94 = arith.constant 94 : index
    %331 = memref.load %arg1[%c94] : memref<425xf32, #tpu.memory_space<smem>>
    %332 = vector.broadcast %331 : f32 to vector<2x1x6x8xf32>
    %333 = arith.mulf %314, %332 : vector<2x1x6x8xf32>
    %334 = arith.addf %301, %333 : vector<2x1x6x8xf32>
    %c110 = arith.constant 110 : index
    %335 = memref.load %arg1[%c110] : memref<425xf32, #tpu.memory_space<smem>>
    %336 = vector.broadcast %335 : f32 to vector<2x1x6x8xf32>
    %337 = arith.mulf %314, %336 : vector<2x1x6x8xf32>
    %338 = arith.addf %305, %337 : vector<2x1x6x8xf32>
    %c126 = arith.constant 126 : index
    %339 = memref.load %arg1[%c126] : memref<425xf32, #tpu.memory_space<smem>>
    %340 = vector.broadcast %339 : f32 to vector<2x1x6x8xf32>
    %341 = arith.mulf %314, %340 : vector<2x1x6x8xf32>
    %342 = arith.addf %309, %341 : vector<2x1x6x8xf32>
    %c142 = arith.constant 142 : index
    %343 = memref.load %arg1[%c142] : memref<425xf32, #tpu.memory_space<smem>>
    %344 = vector.broadcast %343 : f32 to vector<2x1x6x8xf32>
    %345 = arith.mulf %314, %344 : vector<2x1x6x8xf32>
    %346 = arith.addf %313, %345 : vector<2x1x6x8xf32>
    %347 = vector.extract_strided_slice %99 {offsets = [0, 3, 0, 1], sizes = [2, 1, 6, 8], strides = [1, 1, 1, 1]} : vector<2x8x6x9xf32> to vector<2x1x6x8xf32>
    %c31 = arith.constant 31 : index
    %348 = memref.load %arg1[%c31] : memref<425xf32, #tpu.memory_space<smem>>
    %349 = vector.broadcast %348 : f32 to vector<2x1x6x8xf32>
    %350 = arith.mulf %347, %349 : vector<2x1x6x8xf32>
    %351 = arith.addf %318, %350 : vector<2x1x6x8xf32>
    %c47 = arith.constant 47 : index
    %352 = memref.load %arg1[%c47] : memref<425xf32, #tpu.memory_space<smem>>
    %353 = vector.broadcast %352 : f32 to vector<2x1x6x8xf32>
    %354 = arith.mulf %347, %353 : vector<2x1x6x8xf32>
    %355 = arith.addf %322, %354 : vector<2x1x6x8xf32>
    %c63 = arith.constant 63 : index
    %356 = memref.load %arg1[%c63] : memref<425xf32, #tpu.memory_space<smem>>
    %357 = vector.broadcast %356 : f32 to vector<2x1x6x8xf32>
    %358 = arith.mulf %347, %357 : vector<2x1x6x8xf32>
    %359 = arith.addf %326, %358 : vector<2x1x6x8xf32>
    %c79 = arith.constant 79 : index
    %360 = memref.load %arg1[%c79] : memref<425xf32, #tpu.memory_space<smem>>
    %361 = vector.broadcast %360 : f32 to vector<2x1x6x8xf32>
    %362 = arith.mulf %347, %361 : vector<2x1x6x8xf32>
    %363 = arith.addf %330, %362 : vector<2x1x6x8xf32>
    %c95 = arith.constant 95 : index
    %364 = memref.load %arg1[%c95] : memref<425xf32, #tpu.memory_space<smem>>
    %365 = vector.broadcast %364 : f32 to vector<2x1x6x8xf32>
    %366 = arith.mulf %347, %365 : vector<2x1x6x8xf32>
    %367 = arith.addf %334, %366 : vector<2x1x6x8xf32>
    %c111 = arith.constant 111 : index
    %368 = memref.load %arg1[%c111] : memref<425xf32, #tpu.memory_space<smem>>
    %369 = vector.broadcast %368 : f32 to vector<2x1x6x8xf32>
    %370 = arith.mulf %347, %369 : vector<2x1x6x8xf32>
    %371 = arith.addf %338, %370 : vector<2x1x6x8xf32>
    %c127 = arith.constant 127 : index
    %372 = memref.load %arg1[%c127] : memref<425xf32, #tpu.memory_space<smem>>
    %373 = vector.broadcast %372 : f32 to vector<2x1x6x8xf32>
    %374 = arith.mulf %347, %373 : vector<2x1x6x8xf32>
    %375 = arith.addf %342, %374 : vector<2x1x6x8xf32>
    %c143 = arith.constant 143 : index
    %376 = memref.load %arg1[%c143] : memref<425xf32, #tpu.memory_space<smem>>
    %377 = vector.broadcast %376 : f32 to vector<2x1x6x8xf32>
    %378 = arith.mulf %347, %377 : vector<2x1x6x8xf32>
    %379 = arith.addf %346, %378 : vector<2x1x6x8xf32>
    %380 = vector.extract_strided_slice %99 {offsets = [0, 4, 0, 0], sizes = [2, 1, 6, 8], strides = [1, 1, 1, 1]} : vector<2x8x6x9xf32> to vector<2x1x6x8xf32>
    %c32 = arith.constant 32 : index
    %381 = memref.load %arg1[%c32] : memref<425xf32, #tpu.memory_space<smem>>
    %382 = vector.broadcast %381 : f32 to vector<2x1x6x8xf32>
    %383 = arith.mulf %380, %382 : vector<2x1x6x8xf32>
    %384 = arith.addf %351, %383 : vector<2x1x6x8xf32>
    %c48 = arith.constant 48 : index
    %385 = memref.load %arg1[%c48] : memref<425xf32, #tpu.memory_space<smem>>
    %386 = vector.broadcast %385 : f32 to vector<2x1x6x8xf32>
    %387 = arith.mulf %380, %386 : vector<2x1x6x8xf32>
    %388 = arith.addf %355, %387 : vector<2x1x6x8xf32>
    %c64 = arith.constant 64 : index
    %389 = memref.load %arg1[%c64] : memref<425xf32, #tpu.memory_space<smem>>
    %390 = vector.broadcast %389 : f32 to vector<2x1x6x8xf32>
    %391 = arith.mulf %380, %390 : vector<2x1x6x8xf32>
    %392 = arith.addf %359, %391 : vector<2x1x6x8xf32>
    %c80 = arith.constant 80 : index
    %393 = memref.load %arg1[%c80] : memref<425xf32, #tpu.memory_space<smem>>
    %394 = vector.broadcast %393 : f32 to vector<2x1x6x8xf32>
    %395 = arith.mulf %380, %394 : vector<2x1x6x8xf32>
    %396 = arith.addf %363, %395 : vector<2x1x6x8xf32>
    %c96 = arith.constant 96 : index
    %397 = memref.load %arg1[%c96] : memref<425xf32, #tpu.memory_space<smem>>
    %398 = vector.broadcast %397 : f32 to vector<2x1x6x8xf32>
    %399 = arith.mulf %380, %398 : vector<2x1x6x8xf32>
    %400 = arith.addf %367, %399 : vector<2x1x6x8xf32>
    %c112 = arith.constant 112 : index
    %401 = memref.load %arg1[%c112] : memref<425xf32, #tpu.memory_space<smem>>
    %402 = vector.broadcast %401 : f32 to vector<2x1x6x8xf32>
    %403 = arith.mulf %380, %402 : vector<2x1x6x8xf32>
    %404 = arith.addf %371, %403 : vector<2x1x6x8xf32>
    %c128 = arith.constant 128 : index
    %405 = memref.load %arg1[%c128] : memref<425xf32, #tpu.memory_space<smem>>
    %406 = vector.broadcast %405 : f32 to vector<2x1x6x8xf32>
    %407 = arith.mulf %380, %406 : vector<2x1x6x8xf32>
    %408 = arith.addf %375, %407 : vector<2x1x6x8xf32>
    %c144 = arith.constant 144 : index
    %409 = memref.load %arg1[%c144] : memref<425xf32, #tpu.memory_space<smem>>
    %410 = vector.broadcast %409 : f32 to vector<2x1x6x8xf32>
    %411 = arith.mulf %380, %410 : vector<2x1x6x8xf32>
    %412 = arith.addf %379, %411 : vector<2x1x6x8xf32>
    %413 = vector.extract_strided_slice %99 {offsets = [0, 4, 0, 1], sizes = [2, 1, 6, 8], strides = [1, 1, 1, 1]} : vector<2x8x6x9xf32> to vector<2x1x6x8xf32>
    %c33 = arith.constant 33 : index
    %414 = memref.load %arg1[%c33] : memref<425xf32, #tpu.memory_space<smem>>
    %415 = vector.broadcast %414 : f32 to vector<2x1x6x8xf32>
    %416 = arith.mulf %413, %415 : vector<2x1x6x8xf32>
    %417 = arith.addf %384, %416 : vector<2x1x6x8xf32>
    %c49 = arith.constant 49 : index
    %418 = memref.load %arg1[%c49] : memref<425xf32, #tpu.memory_space<smem>>
    %419 = vector.broadcast %418 : f32 to vector<2x1x6x8xf32>
    %420 = arith.mulf %413, %419 : vector<2x1x6x8xf32>
    %421 = arith.addf %388, %420 : vector<2x1x6x8xf32>
    %c65 = arith.constant 65 : index
    %422 = memref.load %arg1[%c65] : memref<425xf32, #tpu.memory_space<smem>>
    %423 = vector.broadcast %422 : f32 to vector<2x1x6x8xf32>
    %424 = arith.mulf %413, %423 : vector<2x1x6x8xf32>
    %425 = arith.addf %392, %424 : vector<2x1x6x8xf32>
    %c81 = arith.constant 81 : index
    %426 = memref.load %arg1[%c81] : memref<425xf32, #tpu.memory_space<smem>>
    %427 = vector.broadcast %426 : f32 to vector<2x1x6x8xf32>
    %428 = arith.mulf %413, %427 : vector<2x1x6x8xf32>
    %429 = arith.addf %396, %428 : vector<2x1x6x8xf32>
    %c97 = arith.constant 97 : index
    %430 = memref.load %arg1[%c97] : memref<425xf32, #tpu.memory_space<smem>>
    %431 = vector.broadcast %430 : f32 to vector<2x1x6x8xf32>
    %432 = arith.mulf %413, %431 : vector<2x1x6x8xf32>
    %433 = arith.addf %400, %432 : vector<2x1x6x8xf32>
    %c113 = arith.constant 113 : index
    %434 = memref.load %arg1[%c113] : memref<425xf32, #tpu.memory_space<smem>>
    %435 = vector.broadcast %434 : f32 to vector<2x1x6x8xf32>
    %436 = arith.mulf %413, %435 : vector<2x1x6x8xf32>
    %437 = arith.addf %404, %436 : vector<2x1x6x8xf32>
    %c129 = arith.constant 129 : index
    %438 = memref.load %arg1[%c129] : memref<425xf32, #tpu.memory_space<smem>>
    %439 = vector.broadcast %438 : f32 to vector<2x1x6x8xf32>
    %440 = arith.mulf %413, %439 : vector<2x1x6x8xf32>
    %441 = arith.addf %408, %440 : vector<2x1x6x8xf32>
    %c145 = arith.constant 145 : index
    %442 = memref.load %arg1[%c145] : memref<425xf32, #tpu.memory_space<smem>>
    %443 = vector.broadcast %442 : f32 to vector<2x1x6x8xf32>
    %444 = arith.mulf %413, %443 : vector<2x1x6x8xf32>
    %445 = arith.addf %412, %444 : vector<2x1x6x8xf32>
    %446 = vector.extract_strided_slice %99 {offsets = [0, 5, 0, 0], sizes = [2, 1, 6, 8], strides = [1, 1, 1, 1]} : vector<2x8x6x9xf32> to vector<2x1x6x8xf32>
    %c34 = arith.constant 34 : index
    %447 = memref.load %arg1[%c34] : memref<425xf32, #tpu.memory_space<smem>>
    %448 = vector.broadcast %447 : f32 to vector<2x1x6x8xf32>
    %449 = arith.mulf %446, %448 : vector<2x1x6x8xf32>
    %450 = arith.addf %417, %449 : vector<2x1x6x8xf32>
    %c50 = arith.constant 50 : index
    %451 = memref.load %arg1[%c50] : memref<425xf32, #tpu.memory_space<smem>>
    %452 = vector.broadcast %451 : f32 to vector<2x1x6x8xf32>
    %453 = arith.mulf %446, %452 : vector<2x1x6x8xf32>
    %454 = arith.addf %421, %453 : vector<2x1x6x8xf32>
    %c66 = arith.constant 66 : index
    %455 = memref.load %arg1[%c66] : memref<425xf32, #tpu.memory_space<smem>>
    %456 = vector.broadcast %455 : f32 to vector<2x1x6x8xf32>
    %457 = arith.mulf %446, %456 : vector<2x1x6x8xf32>
    %458 = arith.addf %425, %457 : vector<2x1x6x8xf32>
    %c82 = arith.constant 82 : index
    %459 = memref.load %arg1[%c82] : memref<425xf32, #tpu.memory_space<smem>>
    %460 = vector.broadcast %459 : f32 to vector<2x1x6x8xf32>
    %461 = arith.mulf %446, %460 : vector<2x1x6x8xf32>
    %462 = arith.addf %429, %461 : vector<2x1x6x8xf32>
    %c98 = arith.constant 98 : index
    %463 = memref.load %arg1[%c98] : memref<425xf32, #tpu.memory_space<smem>>
    %464 = vector.broadcast %463 : f32 to vector<2x1x6x8xf32>
    %465 = arith.mulf %446, %464 : vector<2x1x6x8xf32>
    %466 = arith.addf %433, %465 : vector<2x1x6x8xf32>
    %c114 = arith.constant 114 : index
    %467 = memref.load %arg1[%c114] : memref<425xf32, #tpu.memory_space<smem>>
    %468 = vector.broadcast %467 : f32 to vector<2x1x6x8xf32>
    %469 = arith.mulf %446, %468 : vector<2x1x6x8xf32>
    %470 = arith.addf %437, %469 : vector<2x1x6x8xf32>
    %c130 = arith.constant 130 : index
    %471 = memref.load %arg1[%c130] : memref<425xf32, #tpu.memory_space<smem>>
    %472 = vector.broadcast %471 : f32 to vector<2x1x6x8xf32>
    %473 = arith.mulf %446, %472 : vector<2x1x6x8xf32>
    %474 = arith.addf %441, %473 : vector<2x1x6x8xf32>
    %c146 = arith.constant 146 : index
    %475 = memref.load %arg1[%c146] : memref<425xf32, #tpu.memory_space<smem>>
    %476 = vector.broadcast %475 : f32 to vector<2x1x6x8xf32>
    %477 = arith.mulf %446, %476 : vector<2x1x6x8xf32>
    %478 = arith.addf %445, %477 : vector<2x1x6x8xf32>
    %479 = vector.extract_strided_slice %99 {offsets = [0, 5, 0, 1], sizes = [2, 1, 6, 8], strides = [1, 1, 1, 1]} : vector<2x8x6x9xf32> to vector<2x1x6x8xf32>
    %c35 = arith.constant 35 : index
    %480 = memref.load %arg1[%c35] : memref<425xf32, #tpu.memory_space<smem>>
    %481 = vector.broadcast %480 : f32 to vector<2x1x6x8xf32>
    %482 = arith.mulf %479, %481 : vector<2x1x6x8xf32>
    %483 = arith.addf %450, %482 : vector<2x1x6x8xf32>
    %c51 = arith.constant 51 : index
    %484 = memref.load %arg1[%c51] : memref<425xf32, #tpu.memory_space<smem>>
    %485 = vector.broadcast %484 : f32 to vector<2x1x6x8xf32>
    %486 = arith.mulf %479, %485 : vector<2x1x6x8xf32>
    %487 = arith.addf %454, %486 : vector<2x1x6x8xf32>
    %c67 = arith.constant 67 : index
    %488 = memref.load %arg1[%c67] : memref<425xf32, #tpu.memory_space<smem>>
    %489 = vector.broadcast %488 : f32 to vector<2x1x6x8xf32>
    %490 = arith.mulf %479, %489 : vector<2x1x6x8xf32>
    %491 = arith.addf %458, %490 : vector<2x1x6x8xf32>
    %c83 = arith.constant 83 : index
    %492 = memref.load %arg1[%c83] : memref<425xf32, #tpu.memory_space<smem>>
    %493 = vector.broadcast %492 : f32 to vector<2x1x6x8xf32>
    %494 = arith.mulf %479, %493 : vector<2x1x6x8xf32>
    %495 = arith.addf %462, %494 : vector<2x1x6x8xf32>
    %c99 = arith.constant 99 : index
    %496 = memref.load %arg1[%c99] : memref<425xf32, #tpu.memory_space<smem>>
    %497 = vector.broadcast %496 : f32 to vector<2x1x6x8xf32>
    %498 = arith.mulf %479, %497 : vector<2x1x6x8xf32>
    %499 = arith.addf %466, %498 : vector<2x1x6x8xf32>
    %c115 = arith.constant 115 : index
    %500 = memref.load %arg1[%c115] : memref<425xf32, #tpu.memory_space<smem>>
    %501 = vector.broadcast %500 : f32 to vector<2x1x6x8xf32>
    %502 = arith.mulf %479, %501 : vector<2x1x6x8xf32>
    %503 = arith.addf %470, %502 : vector<2x1x6x8xf32>
    %c131 = arith.constant 131 : index
    %504 = memref.load %arg1[%c131] : memref<425xf32, #tpu.memory_space<smem>>
    %505 = vector.broadcast %504 : f32 to vector<2x1x6x8xf32>
    %506 = arith.mulf %479, %505 : vector<2x1x6x8xf32>
    %507 = arith.addf %474, %506 : vector<2x1x6x8xf32>
    %c147 = arith.constant 147 : index
    %508 = memref.load %arg1[%c147] : memref<425xf32, #tpu.memory_space<smem>>
    %509 = vector.broadcast %508 : f32 to vector<2x1x6x8xf32>
    %510 = arith.mulf %479, %509 : vector<2x1x6x8xf32>
    %511 = arith.addf %478, %510 : vector<2x1x6x8xf32>
    %512 = vector.extract_strided_slice %99 {offsets = [0, 6, 0, 0], sizes = [2, 1, 6, 8], strides = [1, 1, 1, 1]} : vector<2x8x6x9xf32> to vector<2x1x6x8xf32>
    %c36 = arith.constant 36 : index
    %513 = memref.load %arg1[%c36] : memref<425xf32, #tpu.memory_space<smem>>
    %514 = vector.broadcast %513 : f32 to vector<2x1x6x8xf32>
    %515 = arith.mulf %512, %514 : vector<2x1x6x8xf32>
    %516 = arith.addf %483, %515 : vector<2x1x6x8xf32>
    %c52 = arith.constant 52 : index
    %517 = memref.load %arg1[%c52] : memref<425xf32, #tpu.memory_space<smem>>
    %518 = vector.broadcast %517 : f32 to vector<2x1x6x8xf32>
    %519 = arith.mulf %512, %518 : vector<2x1x6x8xf32>
    %520 = arith.addf %487, %519 : vector<2x1x6x8xf32>
    %c68 = arith.constant 68 : index
    %521 = memref.load %arg1[%c68] : memref<425xf32, #tpu.memory_space<smem>>
    %522 = vector.broadcast %521 : f32 to vector<2x1x6x8xf32>
    %523 = arith.mulf %512, %522 : vector<2x1x6x8xf32>
    %524 = arith.addf %491, %523 : vector<2x1x6x8xf32>
    %c84 = arith.constant 84 : index
    %525 = memref.load %arg1[%c84] : memref<425xf32, #tpu.memory_space<smem>>
    %526 = vector.broadcast %525 : f32 to vector<2x1x6x8xf32>
    %527 = arith.mulf %512, %526 : vector<2x1x6x8xf32>
    %528 = arith.addf %495, %527 : vector<2x1x6x8xf32>
    %c100 = arith.constant 100 : index
    %529 = memref.load %arg1[%c100] : memref<425xf32, #tpu.memory_space<smem>>
    %530 = vector.broadcast %529 : f32 to vector<2x1x6x8xf32>
    %531 = arith.mulf %512, %530 : vector<2x1x6x8xf32>
    %532 = arith.addf %499, %531 : vector<2x1x6x8xf32>
    %c116 = arith.constant 116 : index
    %533 = memref.load %arg1[%c116] : memref<425xf32, #tpu.memory_space<smem>>
    %534 = vector.broadcast %533 : f32 to vector<2x1x6x8xf32>
    %535 = arith.mulf %512, %534 : vector<2x1x6x8xf32>
    %536 = arith.addf %503, %535 : vector<2x1x6x8xf32>
    %c132 = arith.constant 132 : index
    %537 = memref.load %arg1[%c132] : memref<425xf32, #tpu.memory_space<smem>>
    %538 = vector.broadcast %537 : f32 to vector<2x1x6x8xf32>
    %539 = arith.mulf %512, %538 : vector<2x1x6x8xf32>
    %540 = arith.addf %507, %539 : vector<2x1x6x8xf32>
    %c148 = arith.constant 148 : index
    %541 = memref.load %arg1[%c148] : memref<425xf32, #tpu.memory_space<smem>>
    %542 = vector.broadcast %541 : f32 to vector<2x1x6x8xf32>
    %543 = arith.mulf %512, %542 : vector<2x1x6x8xf32>
    %544 = arith.addf %511, %543 : vector<2x1x6x8xf32>
    %545 = vector.extract_strided_slice %99 {offsets = [0, 6, 0, 1], sizes = [2, 1, 6, 8], strides = [1, 1, 1, 1]} : vector<2x8x6x9xf32> to vector<2x1x6x8xf32>
    %c37 = arith.constant 37 : index
    %546 = memref.load %arg1[%c37] : memref<425xf32, #tpu.memory_space<smem>>
    %547 = vector.broadcast %546 : f32 to vector<2x1x6x8xf32>
    %548 = arith.mulf %545, %547 : vector<2x1x6x8xf32>
    %549 = arith.addf %516, %548 : vector<2x1x6x8xf32>
    %c53 = arith.constant 53 : index
    %550 = memref.load %arg1[%c53] : memref<425xf32, #tpu.memory_space<smem>>
    %551 = vector.broadcast %550 : f32 to vector<2x1x6x8xf32>
    %552 = arith.mulf %545, %551 : vector<2x1x6x8xf32>
    %553 = arith.addf %520, %552 : vector<2x1x6x8xf32>
    %c69 = arith.constant 69 : index
    %554 = memref.load %arg1[%c69] : memref<425xf32, #tpu.memory_space<smem>>
    %555 = vector.broadcast %554 : f32 to vector<2x1x6x8xf32>
    %556 = arith.mulf %545, %555 : vector<2x1x6x8xf32>
    %557 = arith.addf %524, %556 : vector<2x1x6x8xf32>
    %c85 = arith.constant 85 : index
    %558 = memref.load %arg1[%c85] : memref<425xf32, #tpu.memory_space<smem>>
    %559 = vector.broadcast %558 : f32 to vector<2x1x6x8xf32>
    %560 = arith.mulf %545, %559 : vector<2x1x6x8xf32>
    %561 = arith.addf %528, %560 : vector<2x1x6x8xf32>
    %c101 = arith.constant 101 : index
    %562 = memref.load %arg1[%c101] : memref<425xf32, #tpu.memory_space<smem>>
    %563 = vector.broadcast %562 : f32 to vector<2x1x6x8xf32>
    %564 = arith.mulf %545, %563 : vector<2x1x6x8xf32>
    %565 = arith.addf %532, %564 : vector<2x1x6x8xf32>
    %c117 = arith.constant 117 : index
    %566 = memref.load %arg1[%c117] : memref<425xf32, #tpu.memory_space<smem>>
    %567 = vector.broadcast %566 : f32 to vector<2x1x6x8xf32>
    %568 = arith.mulf %545, %567 : vector<2x1x6x8xf32>
    %569 = arith.addf %536, %568 : vector<2x1x6x8xf32>
    %c133 = arith.constant 133 : index
    %570 = memref.load %arg1[%c133] : memref<425xf32, #tpu.memory_space<smem>>
    %571 = vector.broadcast %570 : f32 to vector<2x1x6x8xf32>
    %572 = arith.mulf %545, %571 : vector<2x1x6x8xf32>
    %573 = arith.addf %540, %572 : vector<2x1x6x8xf32>
    %c149 = arith.constant 149 : index
    %574 = memref.load %arg1[%c149] : memref<425xf32, #tpu.memory_space<smem>>
    %575 = vector.broadcast %574 : f32 to vector<2x1x6x8xf32>
    %576 = arith.mulf %545, %575 : vector<2x1x6x8xf32>
    %577 = arith.addf %544, %576 : vector<2x1x6x8xf32>
    %578 = vector.extract_strided_slice %99 {offsets = [0, 7, 0, 0], sizes = [2, 1, 6, 8], strides = [1, 1, 1, 1]} : vector<2x8x6x9xf32> to vector<2x1x6x8xf32>
    %c38 = arith.constant 38 : index
    %579 = memref.load %arg1[%c38] : memref<425xf32, #tpu.memory_space<smem>>
    %580 = vector.broadcast %579 : f32 to vector<2x1x6x8xf32>
    %581 = arith.mulf %578, %580 : vector<2x1x6x8xf32>
    %582 = arith.addf %549, %581 : vector<2x1x6x8xf32>
    %c54 = arith.constant 54 : index
    %583 = memref.load %arg1[%c54] : memref<425xf32, #tpu.memory_space<smem>>
    %584 = vector.broadcast %583 : f32 to vector<2x1x6x8xf32>
    %585 = arith.mulf %578, %584 : vector<2x1x6x8xf32>
    %586 = arith.addf %553, %585 : vector<2x1x6x8xf32>
    %c70 = arith.constant 70 : index
    %587 = memref.load %arg1[%c70] : memref<425xf32, #tpu.memory_space<smem>>
    %588 = vector.broadcast %587 : f32 to vector<2x1x6x8xf32>
    %589 = arith.mulf %578, %588 : vector<2x1x6x8xf32>
    %590 = arith.addf %557, %589 : vector<2x1x6x8xf32>
    %c86 = arith.constant 86 : index
    %591 = memref.load %arg1[%c86] : memref<425xf32, #tpu.memory_space<smem>>
    %592 = vector.broadcast %591 : f32 to vector<2x1x6x8xf32>
    %593 = arith.mulf %578, %592 : vector<2x1x6x8xf32>
    %594 = arith.addf %561, %593 : vector<2x1x6x8xf32>
    %c102 = arith.constant 102 : index
    %595 = memref.load %arg1[%c102] : memref<425xf32, #tpu.memory_space<smem>>
    %596 = vector.broadcast %595 : f32 to vector<2x1x6x8xf32>
    %597 = arith.mulf %578, %596 : vector<2x1x6x8xf32>
    %598 = arith.addf %565, %597 : vector<2x1x6x8xf32>
    %c118 = arith.constant 118 : index
    %599 = memref.load %arg1[%c118] : memref<425xf32, #tpu.memory_space<smem>>
    %600 = vector.broadcast %599 : f32 to vector<2x1x6x8xf32>
    %601 = arith.mulf %578, %600 : vector<2x1x6x8xf32>
    %602 = arith.addf %569, %601 : vector<2x1x6x8xf32>
    %c134 = arith.constant 134 : index
    %603 = memref.load %arg1[%c134] : memref<425xf32, #tpu.memory_space<smem>>
    %604 = vector.broadcast %603 : f32 to vector<2x1x6x8xf32>
    %605 = arith.mulf %578, %604 : vector<2x1x6x8xf32>
    %606 = arith.addf %573, %605 : vector<2x1x6x8xf32>
    %c150 = arith.constant 150 : index
    %607 = memref.load %arg1[%c150] : memref<425xf32, #tpu.memory_space<smem>>
    %608 = vector.broadcast %607 : f32 to vector<2x1x6x8xf32>
    %609 = arith.mulf %578, %608 : vector<2x1x6x8xf32>
    %610 = arith.addf %577, %609 : vector<2x1x6x8xf32>
    %611 = vector.extract_strided_slice %99 {offsets = [0, 7, 0, 1], sizes = [2, 1, 6, 8], strides = [1, 1, 1, 1]} : vector<2x8x6x9xf32> to vector<2x1x6x8xf32>
    %c39 = arith.constant 39 : index
    %612 = memref.load %arg1[%c39] : memref<425xf32, #tpu.memory_space<smem>>
    %613 = vector.broadcast %612 : f32 to vector<2x1x6x8xf32>
    %614 = arith.mulf %611, %613 : vector<2x1x6x8xf32>
    %615 = arith.addf %582, %614 : vector<2x1x6x8xf32>
    %c55 = arith.constant 55 : index
    %616 = memref.load %arg1[%c55] : memref<425xf32, #tpu.memory_space<smem>>
    %617 = vector.broadcast %616 : f32 to vector<2x1x6x8xf32>
    %618 = arith.mulf %611, %617 : vector<2x1x6x8xf32>
    %619 = arith.addf %586, %618 : vector<2x1x6x8xf32>
    %c71 = arith.constant 71 : index
    %620 = memref.load %arg1[%c71] : memref<425xf32, #tpu.memory_space<smem>>
    %621 = vector.broadcast %620 : f32 to vector<2x1x6x8xf32>
    %622 = arith.mulf %611, %621 : vector<2x1x6x8xf32>
    %623 = arith.addf %590, %622 : vector<2x1x6x8xf32>
    %c87 = arith.constant 87 : index
    %624 = memref.load %arg1[%c87] : memref<425xf32, #tpu.memory_space<smem>>
    %625 = vector.broadcast %624 : f32 to vector<2x1x6x8xf32>
    %626 = arith.mulf %611, %625 : vector<2x1x6x8xf32>
    %627 = arith.addf %594, %626 : vector<2x1x6x8xf32>
    %c103 = arith.constant 103 : index
    %628 = memref.load %arg1[%c103] : memref<425xf32, #tpu.memory_space<smem>>
    %629 = vector.broadcast %628 : f32 to vector<2x1x6x8xf32>
    %630 = arith.mulf %611, %629 : vector<2x1x6x8xf32>
    %631 = arith.addf %598, %630 : vector<2x1x6x8xf32>
    %c119 = arith.constant 119 : index
    %632 = memref.load %arg1[%c119] : memref<425xf32, #tpu.memory_space<smem>>
    %633 = vector.broadcast %632 : f32 to vector<2x1x6x8xf32>
    %634 = arith.mulf %611, %633 : vector<2x1x6x8xf32>
    %635 = arith.addf %602, %634 : vector<2x1x6x8xf32>
    %c135 = arith.constant 135 : index
    %636 = memref.load %arg1[%c135] : memref<425xf32, #tpu.memory_space<smem>>
    %637 = vector.broadcast %636 : f32 to vector<2x1x6x8xf32>
    %638 = arith.mulf %611, %637 : vector<2x1x6x8xf32>
    %639 = arith.addf %606, %638 : vector<2x1x6x8xf32>
    %c151 = arith.constant 151 : index
    %640 = memref.load %arg1[%c151] : memref<425xf32, #tpu.memory_space<smem>>
    %641 = vector.broadcast %640 : f32 to vector<2x1x6x8xf32>
    %642 = arith.mulf %611, %641 : vector<2x1x6x8xf32>
    %643 = arith.addf %610, %642 : vector<2x1x6x8xf32>
    %cst_11 = arith.constant 0.000000e+00 : f32
    %644 = vector.broadcast %cst_11 : f32 to vector<2x1x6x8xf32>
    %645 = arith.maximumf %615, %644 : vector<2x1x6x8xf32>
    %cst_12 = arith.constant 0.000000e+00 : f32
    %646 = vector.broadcast %cst_12 : f32 to vector<2x1x6x8xf32>
    %647 = arith.maximumf %619, %646 : vector<2x1x6x8xf32>
    %cst_13 = arith.constant 0.000000e+00 : f32
    %648 = vector.broadcast %cst_13 : f32 to vector<2x1x6x8xf32>
    %649 = arith.maximumf %623, %648 : vector<2x1x6x8xf32>
    %cst_14 = arith.constant 0.000000e+00 : f32
    %650 = vector.broadcast %cst_14 : f32 to vector<2x1x6x8xf32>
    %651 = arith.maximumf %627, %650 : vector<2x1x6x8xf32>
    %cst_15 = arith.constant 0.000000e+00 : f32
    %652 = vector.broadcast %cst_15 : f32 to vector<2x1x6x8xf32>
    %653 = arith.maximumf %631, %652 : vector<2x1x6x8xf32>
    %cst_16 = arith.constant 0.000000e+00 : f32
    %654 = vector.broadcast %cst_16 : f32 to vector<2x1x6x8xf32>
    %655 = arith.maximumf %635, %654 : vector<2x1x6x8xf32>
    %cst_17 = arith.constant 0.000000e+00 : f32
    %656 = vector.broadcast %cst_17 : f32 to vector<2x1x6x8xf32>
    %657 = arith.maximumf %639, %656 : vector<2x1x6x8xf32>
    %cst_18 = arith.constant 0.000000e+00 : f32
    %658 = vector.broadcast %cst_18 : f32 to vector<2x1x6x8xf32>
    %659 = arith.maximumf %643, %658 : vector<2x1x6x8xf32>
    %660 = tpu.concatenate %645, %647, %649, %651, %653, %655, %657, %659 in 1 : vector<2x1x6x8xf32>, vector<2x1x6x8xf32>, vector<2x1x6x8xf32>, vector<2x1x6x8xf32>, vector<2x1x6x8xf32>, vector<2x1x6x8xf32>, vector<2x1x6x8xf32>, vector<2x1x6x8xf32> -> vector<2x8x6x8xf32>
    %661 = vector.extract_strided_slice %660 {offsets = [0, 0, 0, 0], sizes = [2, 8, 1, 8], strides = [1, 1, 1, 1]} : vector<2x8x6x8xf32> to vector<2x8x1x8xf32>
    %662 = vector.extract_strided_slice %660 {offsets = [0, 0, 1, 0], sizes = [2, 8, 1, 8], strides = [1, 1, 1, 1]} : vector<2x8x6x8xf32> to vector<2x8x1x8xf32>
    %663 = arith.maximumf %661, %662 : vector<2x8x1x8xf32>
    %664 = vector.extract_strided_slice %660 {offsets = [0, 0, 2, 0], sizes = [2, 8, 1, 8], strides = [1, 1, 1, 1]} : vector<2x8x6x8xf32> to vector<2x8x1x8xf32>
    %665 = vector.extract_strided_slice %660 {offsets = [0, 0, 3, 0], sizes = [2, 8, 1, 8], strides = [1, 1, 1, 1]} : vector<2x8x6x8xf32> to vector<2x8x1x8xf32>
    %666 = arith.maximumf %664, %665 : vector<2x8x1x8xf32>
    %667 = vector.extract_strided_slice %660 {offsets = [0, 0, 4, 0], sizes = [2, 8, 1, 8], strides = [1, 1, 1, 1]} : vector<2x8x6x8xf32> to vector<2x8x1x8xf32>
    %668 = vector.extract_strided_slice %660 {offsets = [0, 0, 5, 0], sizes = [2, 8, 1, 8], strides = [1, 1, 1, 1]} : vector<2x8x6x8xf32> to vector<2x8x1x8xf32>
    %669 = arith.maximumf %667, %668 : vector<2x8x1x8xf32>
    %670 = tpu.concatenate %663, %666, %669 in 2 : vector<2x8x1x8xf32>, vector<2x8x1x8xf32>, vector<2x8x1x8xf32> -> vector<2x8x3x8xf32>
    %671 = vector.extract_strided_slice %670 {offsets = [0, 0, 0, 0], sizes = [2, 8, 3, 1], strides = [1, 1, 1, 1]} : vector<2x8x3x8xf32> to vector<2x8x3x1xf32>
    %672 = vector.extract_strided_slice %670 {offsets = [0, 0, 0, 1], sizes = [2, 8, 3, 1], strides = [1, 1, 1, 1]} : vector<2x8x3x8xf32> to vector<2x8x3x1xf32>
    %673 = arith.maximumf %671, %672 : vector<2x8x3x1xf32>
    %674 = vector.extract_strided_slice %670 {offsets = [0, 0, 0, 2], sizes = [2, 8, 3, 1], strides = [1, 1, 1, 1]} : vector<2x8x3x8xf32> to vector<2x8x3x1xf32>
    %675 = vector.extract_strided_slice %670 {offsets = [0, 0, 0, 3], sizes = [2, 8, 3, 1], strides = [1, 1, 1, 1]} : vector<2x8x3x8xf32> to vector<2x8x3x1xf32>
    %676 = arith.maximumf %674, %675 : vector<2x8x3x1xf32>
    %677 = vector.extract_strided_slice %670 {offsets = [0, 0, 0, 4], sizes = [2, 8, 3, 1], strides = [1, 1, 1, 1]} : vector<2x8x3x8xf32> to vector<2x8x3x1xf32>
    %678 = vector.extract_strided_slice %670 {offsets = [0, 0, 0, 5], sizes = [2, 8, 3, 1], strides = [1, 1, 1, 1]} : vector<2x8x3x8xf32> to vector<2x8x3x1xf32>
    %679 = arith.maximumf %677, %678 : vector<2x8x3x1xf32>
    %680 = vector.extract_strided_slice %670 {offsets = [0, 0, 0, 6], sizes = [2, 8, 3, 1], strides = [1, 1, 1, 1]} : vector<2x8x3x8xf32> to vector<2x8x3x1xf32>
    %681 = vector.extract_strided_slice %670 {offsets = [0, 0, 0, 7], sizes = [2, 8, 3, 1], strides = [1, 1, 1, 1]} : vector<2x8x3x8xf32> to vector<2x8x3x1xf32>
    %682 = arith.maximumf %680, %681 : vector<2x8x3x1xf32>
    %683 = tpu.concatenate %673, %676, %679, %682 in 3 : vector<2x8x3x1xf32>, vector<2x8x3x1xf32>, vector<2x8x3x1xf32>, vector<2x8x3x1xf32> -> vector<2x8x3x4xf32>
    %c416 = arith.constant 416 : index
    %684 = memref.load %arg1[%c416] : memref<425xf32, #tpu.memory_space<smem>>
    %685 = vector.broadcast %684 : f32 to vector<2x1x2x3xf32>
    %c417 = arith.constant 417 : index
    %686 = memref.load %arg1[%c417] : memref<425xf32, #tpu.memory_space<smem>>
    %687 = vector.broadcast %686 : f32 to vector<2x1x2x3xf32>
    %c418 = arith.constant 418 : index
    %688 = memref.load %arg1[%c418] : memref<425xf32, #tpu.memory_space<smem>>
    %689 = vector.broadcast %688 : f32 to vector<2x1x2x3xf32>
    %c419 = arith.constant 419 : index
    %690 = memref.load %arg1[%c419] : memref<425xf32, #tpu.memory_space<smem>>
    %691 = vector.broadcast %690 : f32 to vector<2x1x2x3xf32>
    %c420 = arith.constant 420 : index
    %692 = memref.load %arg1[%c420] : memref<425xf32, #tpu.memory_space<smem>>
    %693 = vector.broadcast %692 : f32 to vector<2x1x2x3xf32>
    %c421 = arith.constant 421 : index
    %694 = memref.load %arg1[%c421] : memref<425xf32, #tpu.memory_space<smem>>
    %695 = vector.broadcast %694 : f32 to vector<2x1x2x3xf32>
    %c422 = arith.constant 422 : index
    %696 = memref.load %arg1[%c422] : memref<425xf32, #tpu.memory_space<smem>>
    %697 = vector.broadcast %696 : f32 to vector<2x1x2x3xf32>
    %c423 = arith.constant 423 : index
    %698 = memref.load %arg1[%c423] : memref<425xf32, #tpu.memory_space<smem>>
    %699 = vector.broadcast %698 : f32 to vector<2x1x2x3xf32>
    %700 = vector.extract_strided_slice %683 {offsets = [0, 0, 0, 0], sizes = [2, 1, 2, 3], strides = [1, 1, 1, 1]} : vector<2x8x3x4xf32> to vector<2x1x2x3xf32>
    %c160 = arith.constant 160 : index
    %701 = memref.load %arg1[%c160] : memref<425xf32, #tpu.memory_space<smem>>
    %702 = vector.broadcast %701 : f32 to vector<2x1x2x3xf32>
    %703 = arith.mulf %700, %702 : vector<2x1x2x3xf32>
    %704 = arith.addf %685, %703 : vector<2x1x2x3xf32>
    %c192 = arith.constant 192 : index
    %705 = memref.load %arg1[%c192] : memref<425xf32, #tpu.memory_space<smem>>
    %706 = vector.broadcast %705 : f32 to vector<2x1x2x3xf32>
    %707 = arith.mulf %700, %706 : vector<2x1x2x3xf32>
    %708 = arith.addf %687, %707 : vector<2x1x2x3xf32>
    %c224 = arith.constant 224 : index
    %709 = memref.load %arg1[%c224] : memref<425xf32, #tpu.memory_space<smem>>
    %710 = vector.broadcast %709 : f32 to vector<2x1x2x3xf32>
    %711 = arith.mulf %700, %710 : vector<2x1x2x3xf32>
    %712 = arith.addf %689, %711 : vector<2x1x2x3xf32>
    %c256 = arith.constant 256 : index
    %713 = memref.load %arg1[%c256] : memref<425xf32, #tpu.memory_space<smem>>
    %714 = vector.broadcast %713 : f32 to vector<2x1x2x3xf32>
    %715 = arith.mulf %700, %714 : vector<2x1x2x3xf32>
    %716 = arith.addf %691, %715 : vector<2x1x2x3xf32>
    %c288 = arith.constant 288 : index
    %717 = memref.load %arg1[%c288] : memref<425xf32, #tpu.memory_space<smem>>
    %718 = vector.broadcast %717 : f32 to vector<2x1x2x3xf32>
    %719 = arith.mulf %700, %718 : vector<2x1x2x3xf32>
    %720 = arith.addf %693, %719 : vector<2x1x2x3xf32>
    %c320 = arith.constant 320 : index
    %721 = memref.load %arg1[%c320] : memref<425xf32, #tpu.memory_space<smem>>
    %722 = vector.broadcast %721 : f32 to vector<2x1x2x3xf32>
    %723 = arith.mulf %700, %722 : vector<2x1x2x3xf32>
    %724 = arith.addf %695, %723 : vector<2x1x2x3xf32>
    %c352 = arith.constant 352 : index
    %725 = memref.load %arg1[%c352] : memref<425xf32, #tpu.memory_space<smem>>
    %726 = vector.broadcast %725 : f32 to vector<2x1x2x3xf32>
    %727 = arith.mulf %700, %726 : vector<2x1x2x3xf32>
    %728 = arith.addf %697, %727 : vector<2x1x2x3xf32>
    %c384 = arith.constant 384 : index
    %729 = memref.load %arg1[%c384] : memref<425xf32, #tpu.memory_space<smem>>
    %730 = vector.broadcast %729 : f32 to vector<2x1x2x3xf32>
    %731 = arith.mulf %700, %730 : vector<2x1x2x3xf32>
    %732 = arith.addf %699, %731 : vector<2x1x2x3xf32>
    %733 = vector.extract_strided_slice %683 {offsets = [0, 0, 0, 1], sizes = [2, 1, 2, 3], strides = [1, 1, 1, 1]} : vector<2x8x3x4xf32> to vector<2x1x2x3xf32>
    %c161 = arith.constant 161 : index
    %734 = memref.load %arg1[%c161] : memref<425xf32, #tpu.memory_space<smem>>
    %735 = vector.broadcast %734 : f32 to vector<2x1x2x3xf32>
    %736 = arith.mulf %733, %735 : vector<2x1x2x3xf32>
    %737 = arith.addf %704, %736 : vector<2x1x2x3xf32>
    %c193 = arith.constant 193 : index
    %738 = memref.load %arg1[%c193] : memref<425xf32, #tpu.memory_space<smem>>
    %739 = vector.broadcast %738 : f32 to vector<2x1x2x3xf32>
    %740 = arith.mulf %733, %739 : vector<2x1x2x3xf32>
    %741 = arith.addf %708, %740 : vector<2x1x2x3xf32>
    %c225 = arith.constant 225 : index
    %742 = memref.load %arg1[%c225] : memref<425xf32, #tpu.memory_space<smem>>
    %743 = vector.broadcast %742 : f32 to vector<2x1x2x3xf32>
    %744 = arith.mulf %733, %743 : vector<2x1x2x3xf32>
    %745 = arith.addf %712, %744 : vector<2x1x2x3xf32>
    %c257 = arith.constant 257 : index
    %746 = memref.load %arg1[%c257] : memref<425xf32, #tpu.memory_space<smem>>
    %747 = vector.broadcast %746 : f32 to vector<2x1x2x3xf32>
    %748 = arith.mulf %733, %747 : vector<2x1x2x3xf32>
    %749 = arith.addf %716, %748 : vector<2x1x2x3xf32>
    %c289 = arith.constant 289 : index
    %750 = memref.load %arg1[%c289] : memref<425xf32, #tpu.memory_space<smem>>
    %751 = vector.broadcast %750 : f32 to vector<2x1x2x3xf32>
    %752 = arith.mulf %733, %751 : vector<2x1x2x3xf32>
    %753 = arith.addf %720, %752 : vector<2x1x2x3xf32>
    %c321 = arith.constant 321 : index
    %754 = memref.load %arg1[%c321] : memref<425xf32, #tpu.memory_space<smem>>
    %755 = vector.broadcast %754 : f32 to vector<2x1x2x3xf32>
    %756 = arith.mulf %733, %755 : vector<2x1x2x3xf32>
    %757 = arith.addf %724, %756 : vector<2x1x2x3xf32>
    %c353 = arith.constant 353 : index
    %758 = memref.load %arg1[%c353] : memref<425xf32, #tpu.memory_space<smem>>
    %759 = vector.broadcast %758 : f32 to vector<2x1x2x3xf32>
    %760 = arith.mulf %733, %759 : vector<2x1x2x3xf32>
    %761 = arith.addf %728, %760 : vector<2x1x2x3xf32>
    %c385 = arith.constant 385 : index
    %762 = memref.load %arg1[%c385] : memref<425xf32, #tpu.memory_space<smem>>
    %763 = vector.broadcast %762 : f32 to vector<2x1x2x3xf32>
    %764 = arith.mulf %733, %763 : vector<2x1x2x3xf32>
    %765 = arith.addf %732, %764 : vector<2x1x2x3xf32>
    %766 = vector.extract_strided_slice %683 {offsets = [0, 0, 1, 0], sizes = [2, 1, 2, 3], strides = [1, 1, 1, 1]} : vector<2x8x3x4xf32> to vector<2x1x2x3xf32>
    %c162 = arith.constant 162 : index
    %767 = memref.load %arg1[%c162] : memref<425xf32, #tpu.memory_space<smem>>
    %768 = vector.broadcast %767 : f32 to vector<2x1x2x3xf32>
    %769 = arith.mulf %766, %768 : vector<2x1x2x3xf32>
    %770 = arith.addf %737, %769 : vector<2x1x2x3xf32>
    %c194 = arith.constant 194 : index
    %771 = memref.load %arg1[%c194] : memref<425xf32, #tpu.memory_space<smem>>
    %772 = vector.broadcast %771 : f32 to vector<2x1x2x3xf32>
    %773 = arith.mulf %766, %772 : vector<2x1x2x3xf32>
    %774 = arith.addf %741, %773 : vector<2x1x2x3xf32>
    %c226 = arith.constant 226 : index
    %775 = memref.load %arg1[%c226] : memref<425xf32, #tpu.memory_space<smem>>
    %776 = vector.broadcast %775 : f32 to vector<2x1x2x3xf32>
    %777 = arith.mulf %766, %776 : vector<2x1x2x3xf32>
    %778 = arith.addf %745, %777 : vector<2x1x2x3xf32>
    %c258 = arith.constant 258 : index
    %779 = memref.load %arg1[%c258] : memref<425xf32, #tpu.memory_space<smem>>
    %780 = vector.broadcast %779 : f32 to vector<2x1x2x3xf32>
    %781 = arith.mulf %766, %780 : vector<2x1x2x3xf32>
    %782 = arith.addf %749, %781 : vector<2x1x2x3xf32>
    %c290 = arith.constant 290 : index
    %783 = memref.load %arg1[%c290] : memref<425xf32, #tpu.memory_space<smem>>
    %784 = vector.broadcast %783 : f32 to vector<2x1x2x3xf32>
    %785 = arith.mulf %766, %784 : vector<2x1x2x3xf32>
    %786 = arith.addf %753, %785 : vector<2x1x2x3xf32>
    %c322 = arith.constant 322 : index
    %787 = memref.load %arg1[%c322] : memref<425xf32, #tpu.memory_space<smem>>
    %788 = vector.broadcast %787 : f32 to vector<2x1x2x3xf32>
    %789 = arith.mulf %766, %788 : vector<2x1x2x3xf32>
    %790 = arith.addf %757, %789 : vector<2x1x2x3xf32>
    %c354 = arith.constant 354 : index
    %791 = memref.load %arg1[%c354] : memref<425xf32, #tpu.memory_space<smem>>
    %792 = vector.broadcast %791 : f32 to vector<2x1x2x3xf32>
    %793 = arith.mulf %766, %792 : vector<2x1x2x3xf32>
    %794 = arith.addf %761, %793 : vector<2x1x2x3xf32>
    %c386 = arith.constant 386 : index
    %795 = memref.load %arg1[%c386] : memref<425xf32, #tpu.memory_space<smem>>
    %796 = vector.broadcast %795 : f32 to vector<2x1x2x3xf32>
    %797 = arith.mulf %766, %796 : vector<2x1x2x3xf32>
    %798 = arith.addf %765, %797 : vector<2x1x2x3xf32>
    %799 = vector.extract_strided_slice %683 {offsets = [0, 0, 1, 1], sizes = [2, 1, 2, 3], strides = [1, 1, 1, 1]} : vector<2x8x3x4xf32> to vector<2x1x2x3xf32>
    %c163 = arith.constant 163 : index
    %800 = memref.load %arg1[%c163] : memref<425xf32, #tpu.memory_space<smem>>
    %801 = vector.broadcast %800 : f32 to vector<2x1x2x3xf32>
    %802 = arith.mulf %799, %801 : vector<2x1x2x3xf32>
    %803 = arith.addf %770, %802 : vector<2x1x2x3xf32>
    %c195 = arith.constant 195 : index
    %804 = memref.load %arg1[%c195] : memref<425xf32, #tpu.memory_space<smem>>
    %805 = vector.broadcast %804 : f32 to vector<2x1x2x3xf32>
    %806 = arith.mulf %799, %805 : vector<2x1x2x3xf32>
    %807 = arith.addf %774, %806 : vector<2x1x2x3xf32>
    %c227 = arith.constant 227 : index
    %808 = memref.load %arg1[%c227] : memref<425xf32, #tpu.memory_space<smem>>
    %809 = vector.broadcast %808 : f32 to vector<2x1x2x3xf32>
    %810 = arith.mulf %799, %809 : vector<2x1x2x3xf32>
    %811 = arith.addf %778, %810 : vector<2x1x2x3xf32>
    %c259 = arith.constant 259 : index
    %812 = memref.load %arg1[%c259] : memref<425xf32, #tpu.memory_space<smem>>
    %813 = vector.broadcast %812 : f32 to vector<2x1x2x3xf32>
    %814 = arith.mulf %799, %813 : vector<2x1x2x3xf32>
    %815 = arith.addf %782, %814 : vector<2x1x2x3xf32>
    %c291 = arith.constant 291 : index
    %816 = memref.load %arg1[%c291] : memref<425xf32, #tpu.memory_space<smem>>
    %817 = vector.broadcast %816 : f32 to vector<2x1x2x3xf32>
    %818 = arith.mulf %799, %817 : vector<2x1x2x3xf32>
    %819 = arith.addf %786, %818 : vector<2x1x2x3xf32>
    %c323 = arith.constant 323 : index
    %820 = memref.load %arg1[%c323] : memref<425xf32, #tpu.memory_space<smem>>
    %821 = vector.broadcast %820 : f32 to vector<2x1x2x3xf32>
    %822 = arith.mulf %799, %821 : vector<2x1x2x3xf32>
    %823 = arith.addf %790, %822 : vector<2x1x2x3xf32>
    %c355 = arith.constant 355 : index
    %824 = memref.load %arg1[%c355] : memref<425xf32, #tpu.memory_space<smem>>
    %825 = vector.broadcast %824 : f32 to vector<2x1x2x3xf32>
    %826 = arith.mulf %799, %825 : vector<2x1x2x3xf32>
    %827 = arith.addf %794, %826 : vector<2x1x2x3xf32>
    %c387 = arith.constant 387 : index
    %828 = memref.load %arg1[%c387] : memref<425xf32, #tpu.memory_space<smem>>
    %829 = vector.broadcast %828 : f32 to vector<2x1x2x3xf32>
    %830 = arith.mulf %799, %829 : vector<2x1x2x3xf32>
    %831 = arith.addf %798, %830 : vector<2x1x2x3xf32>
    %832 = vector.extract_strided_slice %683 {offsets = [0, 1, 0, 0], sizes = [2, 1, 2, 3], strides = [1, 1, 1, 1]} : vector<2x8x3x4xf32> to vector<2x1x2x3xf32>
    %c164 = arith.constant 164 : index
    %833 = memref.load %arg1[%c164] : memref<425xf32, #tpu.memory_space<smem>>
    %834 = vector.broadcast %833 : f32 to vector<2x1x2x3xf32>
    %835 = arith.mulf %832, %834 : vector<2x1x2x3xf32>
    %836 = arith.addf %803, %835 : vector<2x1x2x3xf32>
    %c196 = arith.constant 196 : index
    %837 = memref.load %arg1[%c196] : memref<425xf32, #tpu.memory_space<smem>>
    %838 = vector.broadcast %837 : f32 to vector<2x1x2x3xf32>
    %839 = arith.mulf %832, %838 : vector<2x1x2x3xf32>
    %840 = arith.addf %807, %839 : vector<2x1x2x3xf32>
    %c228 = arith.constant 228 : index
    %841 = memref.load %arg1[%c228] : memref<425xf32, #tpu.memory_space<smem>>
    %842 = vector.broadcast %841 : f32 to vector<2x1x2x3xf32>
    %843 = arith.mulf %832, %842 : vector<2x1x2x3xf32>
    %844 = arith.addf %811, %843 : vector<2x1x2x3xf32>
    %c260 = arith.constant 260 : index
    %845 = memref.load %arg1[%c260] : memref<425xf32, #tpu.memory_space<smem>>
    %846 = vector.broadcast %845 : f32 to vector<2x1x2x3xf32>
    %847 = arith.mulf %832, %846 : vector<2x1x2x3xf32>
    %848 = arith.addf %815, %847 : vector<2x1x2x3xf32>
    %c292 = arith.constant 292 : index
    %849 = memref.load %arg1[%c292] : memref<425xf32, #tpu.memory_space<smem>>
    %850 = vector.broadcast %849 : f32 to vector<2x1x2x3xf32>
    %851 = arith.mulf %832, %850 : vector<2x1x2x3xf32>
    %852 = arith.addf %819, %851 : vector<2x1x2x3xf32>
    %c324 = arith.constant 324 : index
    %853 = memref.load %arg1[%c324] : memref<425xf32, #tpu.memory_space<smem>>
    %854 = vector.broadcast %853 : f32 to vector<2x1x2x3xf32>
    %855 = arith.mulf %832, %854 : vector<2x1x2x3xf32>
    %856 = arith.addf %823, %855 : vector<2x1x2x3xf32>
    %c356 = arith.constant 356 : index
    %857 = memref.load %arg1[%c356] : memref<425xf32, #tpu.memory_space<smem>>
    %858 = vector.broadcast %857 : f32 to vector<2x1x2x3xf32>
    %859 = arith.mulf %832, %858 : vector<2x1x2x3xf32>
    %860 = arith.addf %827, %859 : vector<2x1x2x3xf32>
    %c388 = arith.constant 388 : index
    %861 = memref.load %arg1[%c388] : memref<425xf32, #tpu.memory_space<smem>>
    %862 = vector.broadcast %861 : f32 to vector<2x1x2x3xf32>
    %863 = arith.mulf %832, %862 : vector<2x1x2x3xf32>
    %864 = arith.addf %831, %863 : vector<2x1x2x3xf32>
    %865 = vector.extract_strided_slice %683 {offsets = [0, 1, 0, 1], sizes = [2, 1, 2, 3], strides = [1, 1, 1, 1]} : vector<2x8x3x4xf32> to vector<2x1x2x3xf32>
    %c165 = arith.constant 165 : index
    %866 = memref.load %arg1[%c165] : memref<425xf32, #tpu.memory_space<smem>>
    %867 = vector.broadcast %866 : f32 to vector<2x1x2x3xf32>
    %868 = arith.mulf %865, %867 : vector<2x1x2x3xf32>
    %869 = arith.addf %836, %868 : vector<2x1x2x3xf32>
    %c197 = arith.constant 197 : index
    %870 = memref.load %arg1[%c197] : memref<425xf32, #tpu.memory_space<smem>>
    %871 = vector.broadcast %870 : f32 to vector<2x1x2x3xf32>
    %872 = arith.mulf %865, %871 : vector<2x1x2x3xf32>
    %873 = arith.addf %840, %872 : vector<2x1x2x3xf32>
    %c229 = arith.constant 229 : index
    %874 = memref.load %arg1[%c229] : memref<425xf32, #tpu.memory_space<smem>>
    %875 = vector.broadcast %874 : f32 to vector<2x1x2x3xf32>
    %876 = arith.mulf %865, %875 : vector<2x1x2x3xf32>
    %877 = arith.addf %844, %876 : vector<2x1x2x3xf32>
    %c261 = arith.constant 261 : index
    %878 = memref.load %arg1[%c261] : memref<425xf32, #tpu.memory_space<smem>>
    %879 = vector.broadcast %878 : f32 to vector<2x1x2x3xf32>
    %880 = arith.mulf %865, %879 : vector<2x1x2x3xf32>
    %881 = arith.addf %848, %880 : vector<2x1x2x3xf32>
    %c293 = arith.constant 293 : index
    %882 = memref.load %arg1[%c293] : memref<425xf32, #tpu.memory_space<smem>>
    %883 = vector.broadcast %882 : f32 to vector<2x1x2x3xf32>
    %884 = arith.mulf %865, %883 : vector<2x1x2x3xf32>
    %885 = arith.addf %852, %884 : vector<2x1x2x3xf32>
    %c325 = arith.constant 325 : index
    %886 = memref.load %arg1[%c325] : memref<425xf32, #tpu.memory_space<smem>>
    %887 = vector.broadcast %886 : f32 to vector<2x1x2x3xf32>
    %888 = arith.mulf %865, %887 : vector<2x1x2x3xf32>
    %889 = arith.addf %856, %888 : vector<2x1x2x3xf32>
    %c357 = arith.constant 357 : index
    %890 = memref.load %arg1[%c357] : memref<425xf32, #tpu.memory_space<smem>>
    %891 = vector.broadcast %890 : f32 to vector<2x1x2x3xf32>
    %892 = arith.mulf %865, %891 : vector<2x1x2x3xf32>
    %893 = arith.addf %860, %892 : vector<2x1x2x3xf32>
    %c389 = arith.constant 389 : index
    %894 = memref.load %arg1[%c389] : memref<425xf32, #tpu.memory_space<smem>>
    %895 = vector.broadcast %894 : f32 to vector<2x1x2x3xf32>
    %896 = arith.mulf %865, %895 : vector<2x1x2x3xf32>
    %897 = arith.addf %864, %896 : vector<2x1x2x3xf32>
    %898 = vector.extract_strided_slice %683 {offsets = [0, 1, 1, 0], sizes = [2, 1, 2, 3], strides = [1, 1, 1, 1]} : vector<2x8x3x4xf32> to vector<2x1x2x3xf32>
    %c166 = arith.constant 166 : index
    %899 = memref.load %arg1[%c166] : memref<425xf32, #tpu.memory_space<smem>>
    %900 = vector.broadcast %899 : f32 to vector<2x1x2x3xf32>
    %901 = arith.mulf %898, %900 : vector<2x1x2x3xf32>
    %902 = arith.addf %869, %901 : vector<2x1x2x3xf32>
    %c198 = arith.constant 198 : index
    %903 = memref.load %arg1[%c198] : memref<425xf32, #tpu.memory_space<smem>>
    %904 = vector.broadcast %903 : f32 to vector<2x1x2x3xf32>
    %905 = arith.mulf %898, %904 : vector<2x1x2x3xf32>
    %906 = arith.addf %873, %905 : vector<2x1x2x3xf32>
    %c230 = arith.constant 230 : index
    %907 = memref.load %arg1[%c230] : memref<425xf32, #tpu.memory_space<smem>>
    %908 = vector.broadcast %907 : f32 to vector<2x1x2x3xf32>
    %909 = arith.mulf %898, %908 : vector<2x1x2x3xf32>
    %910 = arith.addf %877, %909 : vector<2x1x2x3xf32>
    %c262 = arith.constant 262 : index
    %911 = memref.load %arg1[%c262] : memref<425xf32, #tpu.memory_space<smem>>
    %912 = vector.broadcast %911 : f32 to vector<2x1x2x3xf32>
    %913 = arith.mulf %898, %912 : vector<2x1x2x3xf32>
    %914 = arith.addf %881, %913 : vector<2x1x2x3xf32>
    %c294 = arith.constant 294 : index
    %915 = memref.load %arg1[%c294] : memref<425xf32, #tpu.memory_space<smem>>
    %916 = vector.broadcast %915 : f32 to vector<2x1x2x3xf32>
    %917 = arith.mulf %898, %916 : vector<2x1x2x3xf32>
    %918 = arith.addf %885, %917 : vector<2x1x2x3xf32>
    %c326 = arith.constant 326 : index
    %919 = memref.load %arg1[%c326] : memref<425xf32, #tpu.memory_space<smem>>
    %920 = vector.broadcast %919 : f32 to vector<2x1x2x3xf32>
    %921 = arith.mulf %898, %920 : vector<2x1x2x3xf32>
    %922 = arith.addf %889, %921 : vector<2x1x2x3xf32>
    %c358 = arith.constant 358 : index
    %923 = memref.load %arg1[%c358] : memref<425xf32, #tpu.memory_space<smem>>
    %924 = vector.broadcast %923 : f32 to vector<2x1x2x3xf32>
    %925 = arith.mulf %898, %924 : vector<2x1x2x3xf32>
    %926 = arith.addf %893, %925 : vector<2x1x2x3xf32>
    %c390 = arith.constant 390 : index
    %927 = memref.load %arg1[%c390] : memref<425xf32, #tpu.memory_space<smem>>
    %928 = vector.broadcast %927 : f32 to vector<2x1x2x3xf32>
    %929 = arith.mulf %898, %928 : vector<2x1x2x3xf32>
    %930 = arith.addf %897, %929 : vector<2x1x2x3xf32>
    %931 = vector.extract_strided_slice %683 {offsets = [0, 1, 1, 1], sizes = [2, 1, 2, 3], strides = [1, 1, 1, 1]} : vector<2x8x3x4xf32> to vector<2x1x2x3xf32>
    %c167 = arith.constant 167 : index
    %932 = memref.load %arg1[%c167] : memref<425xf32, #tpu.memory_space<smem>>
    %933 = vector.broadcast %932 : f32 to vector<2x1x2x3xf32>
    %934 = arith.mulf %931, %933 : vector<2x1x2x3xf32>
    %935 = arith.addf %902, %934 : vector<2x1x2x3xf32>
    %c199 = arith.constant 199 : index
    %936 = memref.load %arg1[%c199] : memref<425xf32, #tpu.memory_space<smem>>
    %937 = vector.broadcast %936 : f32 to vector<2x1x2x3xf32>
    %938 = arith.mulf %931, %937 : vector<2x1x2x3xf32>
    %939 = arith.addf %906, %938 : vector<2x1x2x3xf32>
    %c231 = arith.constant 231 : index
    %940 = memref.load %arg1[%c231] : memref<425xf32, #tpu.memory_space<smem>>
    %941 = vector.broadcast %940 : f32 to vector<2x1x2x3xf32>
    %942 = arith.mulf %931, %941 : vector<2x1x2x3xf32>
    %943 = arith.addf %910, %942 : vector<2x1x2x3xf32>
    %c263 = arith.constant 263 : index
    %944 = memref.load %arg1[%c263] : memref<425xf32, #tpu.memory_space<smem>>
    %945 = vector.broadcast %944 : f32 to vector<2x1x2x3xf32>
    %946 = arith.mulf %931, %945 : vector<2x1x2x3xf32>
    %947 = arith.addf %914, %946 : vector<2x1x2x3xf32>
    %c295 = arith.constant 295 : index
    %948 = memref.load %arg1[%c295] : memref<425xf32, #tpu.memory_space<smem>>
    %949 = vector.broadcast %948 : f32 to vector<2x1x2x3xf32>
    %950 = arith.mulf %931, %949 : vector<2x1x2x3xf32>
    %951 = arith.addf %918, %950 : vector<2x1x2x3xf32>
    %c327 = arith.constant 327 : index
    %952 = memref.load %arg1[%c327] : memref<425xf32, #tpu.memory_space<smem>>
    %953 = vector.broadcast %952 : f32 to vector<2x1x2x3xf32>
    %954 = arith.mulf %931, %953 : vector<2x1x2x3xf32>
    %955 = arith.addf %922, %954 : vector<2x1x2x3xf32>
    %c359 = arith.constant 359 : index
    %956 = memref.load %arg1[%c359] : memref<425xf32, #tpu.memory_space<smem>>
    %957 = vector.broadcast %956 : f32 to vector<2x1x2x3xf32>
    %958 = arith.mulf %931, %957 : vector<2x1x2x3xf32>
    %959 = arith.addf %926, %958 : vector<2x1x2x3xf32>
    %c391 = arith.constant 391 : index
    %960 = memref.load %arg1[%c391] : memref<425xf32, #tpu.memory_space<smem>>
    %961 = vector.broadcast %960 : f32 to vector<2x1x2x3xf32>
    %962 = arith.mulf %931, %961 : vector<2x1x2x3xf32>
    %963 = arith.addf %930, %962 : vector<2x1x2x3xf32>
    %964 = vector.extract_strided_slice %683 {offsets = [0, 2, 0, 0], sizes = [2, 1, 2, 3], strides = [1, 1, 1, 1]} : vector<2x8x3x4xf32> to vector<2x1x2x3xf32>
    %c168 = arith.constant 168 : index
    %965 = memref.load %arg1[%c168] : memref<425xf32, #tpu.memory_space<smem>>
    %966 = vector.broadcast %965 : f32 to vector<2x1x2x3xf32>
    %967 = arith.mulf %964, %966 : vector<2x1x2x3xf32>
    %968 = arith.addf %935, %967 : vector<2x1x2x3xf32>
    %c200 = arith.constant 200 : index
    %969 = memref.load %arg1[%c200] : memref<425xf32, #tpu.memory_space<smem>>
    %970 = vector.broadcast %969 : f32 to vector<2x1x2x3xf32>
    %971 = arith.mulf %964, %970 : vector<2x1x2x3xf32>
    %972 = arith.addf %939, %971 : vector<2x1x2x3xf32>
    %c232 = arith.constant 232 : index
    %973 = memref.load %arg1[%c232] : memref<425xf32, #tpu.memory_space<smem>>
    %974 = vector.broadcast %973 : f32 to vector<2x1x2x3xf32>
    %975 = arith.mulf %964, %974 : vector<2x1x2x3xf32>
    %976 = arith.addf %943, %975 : vector<2x1x2x3xf32>
    %c264 = arith.constant 264 : index
    %977 = memref.load %arg1[%c264] : memref<425xf32, #tpu.memory_space<smem>>
    %978 = vector.broadcast %977 : f32 to vector<2x1x2x3xf32>
    %979 = arith.mulf %964, %978 : vector<2x1x2x3xf32>
    %980 = arith.addf %947, %979 : vector<2x1x2x3xf32>
    %c296 = arith.constant 296 : index
    %981 = memref.load %arg1[%c296] : memref<425xf32, #tpu.memory_space<smem>>
    %982 = vector.broadcast %981 : f32 to vector<2x1x2x3xf32>
    %983 = arith.mulf %964, %982 : vector<2x1x2x3xf32>
    %984 = arith.addf %951, %983 : vector<2x1x2x3xf32>
    %c328 = arith.constant 328 : index
    %985 = memref.load %arg1[%c328] : memref<425xf32, #tpu.memory_space<smem>>
    %986 = vector.broadcast %985 : f32 to vector<2x1x2x3xf32>
    %987 = arith.mulf %964, %986 : vector<2x1x2x3xf32>
    %988 = arith.addf %955, %987 : vector<2x1x2x3xf32>
    %c360 = arith.constant 360 : index
    %989 = memref.load %arg1[%c360] : memref<425xf32, #tpu.memory_space<smem>>
    %990 = vector.broadcast %989 : f32 to vector<2x1x2x3xf32>
    %991 = arith.mulf %964, %990 : vector<2x1x2x3xf32>
    %992 = arith.addf %959, %991 : vector<2x1x2x3xf32>
    %c392 = arith.constant 392 : index
    %993 = memref.load %arg1[%c392] : memref<425xf32, #tpu.memory_space<smem>>
    %994 = vector.broadcast %993 : f32 to vector<2x1x2x3xf32>
    %995 = arith.mulf %964, %994 : vector<2x1x2x3xf32>
    %996 = arith.addf %963, %995 : vector<2x1x2x3xf32>
    %997 = vector.extract_strided_slice %683 {offsets = [0, 2, 0, 1], sizes = [2, 1, 2, 3], strides = [1, 1, 1, 1]} : vector<2x8x3x4xf32> to vector<2x1x2x3xf32>
    %c169 = arith.constant 169 : index
    %998 = memref.load %arg1[%c169] : memref<425xf32, #tpu.memory_space<smem>>
    %999 = vector.broadcast %998 : f32 to vector<2x1x2x3xf32>
    %1000 = arith.mulf %997, %999 : vector<2x1x2x3xf32>
    %1001 = arith.addf %968, %1000 : vector<2x1x2x3xf32>
    %c201 = arith.constant 201 : index
    %1002 = memref.load %arg1[%c201] : memref<425xf32, #tpu.memory_space<smem>>
    %1003 = vector.broadcast %1002 : f32 to vector<2x1x2x3xf32>
    %1004 = arith.mulf %997, %1003 : vector<2x1x2x3xf32>
    %1005 = arith.addf %972, %1004 : vector<2x1x2x3xf32>
    %c233 = arith.constant 233 : index
    %1006 = memref.load %arg1[%c233] : memref<425xf32, #tpu.memory_space<smem>>
    %1007 = vector.broadcast %1006 : f32 to vector<2x1x2x3xf32>
    %1008 = arith.mulf %997, %1007 : vector<2x1x2x3xf32>
    %1009 = arith.addf %976, %1008 : vector<2x1x2x3xf32>
    %c265 = arith.constant 265 : index
    %1010 = memref.load %arg1[%c265] : memref<425xf32, #tpu.memory_space<smem>>
    %1011 = vector.broadcast %1010 : f32 to vector<2x1x2x3xf32>
    %1012 = arith.mulf %997, %1011 : vector<2x1x2x3xf32>
    %1013 = arith.addf %980, %1012 : vector<2x1x2x3xf32>
    %c297 = arith.constant 297 : index
    %1014 = memref.load %arg1[%c297] : memref<425xf32, #tpu.memory_space<smem>>
    %1015 = vector.broadcast %1014 : f32 to vector<2x1x2x3xf32>
    %1016 = arith.mulf %997, %1015 : vector<2x1x2x3xf32>
    %1017 = arith.addf %984, %1016 : vector<2x1x2x3xf32>
    %c329 = arith.constant 329 : index
    %1018 = memref.load %arg1[%c329] : memref<425xf32, #tpu.memory_space<smem>>
    %1019 = vector.broadcast %1018 : f32 to vector<2x1x2x3xf32>
    %1020 = arith.mulf %997, %1019 : vector<2x1x2x3xf32>
    %1021 = arith.addf %988, %1020 : vector<2x1x2x3xf32>
    %c361 = arith.constant 361 : index
    %1022 = memref.load %arg1[%c361] : memref<425xf32, #tpu.memory_space<smem>>
    %1023 = vector.broadcast %1022 : f32 to vector<2x1x2x3xf32>
    %1024 = arith.mulf %997, %1023 : vector<2x1x2x3xf32>
    %1025 = arith.addf %992, %1024 : vector<2x1x2x3xf32>
    %c393 = arith.constant 393 : index
    %1026 = memref.load %arg1[%c393] : memref<425xf32, #tpu.memory_space<smem>>
    %1027 = vector.broadcast %1026 : f32 to vector<2x1x2x3xf32>
    %1028 = arith.mulf %997, %1027 : vector<2x1x2x3xf32>
    %1029 = arith.addf %996, %1028 : vector<2x1x2x3xf32>
    %1030 = vector.extract_strided_slice %683 {offsets = [0, 2, 1, 0], sizes = [2, 1, 2, 3], strides = [1, 1, 1, 1]} : vector<2x8x3x4xf32> to vector<2x1x2x3xf32>
    %c170 = arith.constant 170 : index
    %1031 = memref.load %arg1[%c170] : memref<425xf32, #tpu.memory_space<smem>>
    %1032 = vector.broadcast %1031 : f32 to vector<2x1x2x3xf32>
    %1033 = arith.mulf %1030, %1032 : vector<2x1x2x3xf32>
    %1034 = arith.addf %1001, %1033 : vector<2x1x2x3xf32>
    %c202 = arith.constant 202 : index
    %1035 = memref.load %arg1[%c202] : memref<425xf32, #tpu.memory_space<smem>>
    %1036 = vector.broadcast %1035 : f32 to vector<2x1x2x3xf32>
    %1037 = arith.mulf %1030, %1036 : vector<2x1x2x3xf32>
    %1038 = arith.addf %1005, %1037 : vector<2x1x2x3xf32>
    %c234 = arith.constant 234 : index
    %1039 = memref.load %arg1[%c234] : memref<425xf32, #tpu.memory_space<smem>>
    %1040 = vector.broadcast %1039 : f32 to vector<2x1x2x3xf32>
    %1041 = arith.mulf %1030, %1040 : vector<2x1x2x3xf32>
    %1042 = arith.addf %1009, %1041 : vector<2x1x2x3xf32>
    %c266 = arith.constant 266 : index
    %1043 = memref.load %arg1[%c266] : memref<425xf32, #tpu.memory_space<smem>>
    %1044 = vector.broadcast %1043 : f32 to vector<2x1x2x3xf32>
    %1045 = arith.mulf %1030, %1044 : vector<2x1x2x3xf32>
    %1046 = arith.addf %1013, %1045 : vector<2x1x2x3xf32>
    %c298 = arith.constant 298 : index
    %1047 = memref.load %arg1[%c298] : memref<425xf32, #tpu.memory_space<smem>>
    %1048 = vector.broadcast %1047 : f32 to vector<2x1x2x3xf32>
    %1049 = arith.mulf %1030, %1048 : vector<2x1x2x3xf32>
    %1050 = arith.addf %1017, %1049 : vector<2x1x2x3xf32>
    %c330 = arith.constant 330 : index
    %1051 = memref.load %arg1[%c330] : memref<425xf32, #tpu.memory_space<smem>>
    %1052 = vector.broadcast %1051 : f32 to vector<2x1x2x3xf32>
    %1053 = arith.mulf %1030, %1052 : vector<2x1x2x3xf32>
    %1054 = arith.addf %1021, %1053 : vector<2x1x2x3xf32>
    %c362 = arith.constant 362 : index
    %1055 = memref.load %arg1[%c362] : memref<425xf32, #tpu.memory_space<smem>>
    %1056 = vector.broadcast %1055 : f32 to vector<2x1x2x3xf32>
    %1057 = arith.mulf %1030, %1056 : vector<2x1x2x3xf32>
    %1058 = arith.addf %1025, %1057 : vector<2x1x2x3xf32>
    %c394 = arith.constant 394 : index
    %1059 = memref.load %arg1[%c394] : memref<425xf32, #tpu.memory_space<smem>>
    %1060 = vector.broadcast %1059 : f32 to vector<2x1x2x3xf32>
    %1061 = arith.mulf %1030, %1060 : vector<2x1x2x3xf32>
    %1062 = arith.addf %1029, %1061 : vector<2x1x2x3xf32>
    %1063 = vector.extract_strided_slice %683 {offsets = [0, 2, 1, 1], sizes = [2, 1, 2, 3], strides = [1, 1, 1, 1]} : vector<2x8x3x4xf32> to vector<2x1x2x3xf32>
    %c171 = arith.constant 171 : index
    %1064 = memref.load %arg1[%c171] : memref<425xf32, #tpu.memory_space<smem>>
    %1065 = vector.broadcast %1064 : f32 to vector<2x1x2x3xf32>
    %1066 = arith.mulf %1063, %1065 : vector<2x1x2x3xf32>
    %1067 = arith.addf %1034, %1066 : vector<2x1x2x3xf32>
    %c203 = arith.constant 203 : index
    %1068 = memref.load %arg1[%c203] : memref<425xf32, #tpu.memory_space<smem>>
    %1069 = vector.broadcast %1068 : f32 to vector<2x1x2x3xf32>
    %1070 = arith.mulf %1063, %1069 : vector<2x1x2x3xf32>
    %1071 = arith.addf %1038, %1070 : vector<2x1x2x3xf32>
    %c235 = arith.constant 235 : index
    %1072 = memref.load %arg1[%c235] : memref<425xf32, #tpu.memory_space<smem>>
    %1073 = vector.broadcast %1072 : f32 to vector<2x1x2x3xf32>
    %1074 = arith.mulf %1063, %1073 : vector<2x1x2x3xf32>
    %1075 = arith.addf %1042, %1074 : vector<2x1x2x3xf32>
    %c267 = arith.constant 267 : index
    %1076 = memref.load %arg1[%c267] : memref<425xf32, #tpu.memory_space<smem>>
    %1077 = vector.broadcast %1076 : f32 to vector<2x1x2x3xf32>
    %1078 = arith.mulf %1063, %1077 : vector<2x1x2x3xf32>
    %1079 = arith.addf %1046, %1078 : vector<2x1x2x3xf32>
    %c299 = arith.constant 299 : index
    %1080 = memref.load %arg1[%c299] : memref<425xf32, #tpu.memory_space<smem>>
    %1081 = vector.broadcast %1080 : f32 to vector<2x1x2x3xf32>
    %1082 = arith.mulf %1063, %1081 : vector<2x1x2x3xf32>
    %1083 = arith.addf %1050, %1082 : vector<2x1x2x3xf32>
    %c331 = arith.constant 331 : index
    %1084 = memref.load %arg1[%c331] : memref<425xf32, #tpu.memory_space<smem>>
    %1085 = vector.broadcast %1084 : f32 to vector<2x1x2x3xf32>
    %1086 = arith.mulf %1063, %1085 : vector<2x1x2x3xf32>
    %1087 = arith.addf %1054, %1086 : vector<2x1x2x3xf32>
    %c363 = arith.constant 363 : index
    %1088 = memref.load %arg1[%c363] : memref<425xf32, #tpu.memory_space<smem>>
    %1089 = vector.broadcast %1088 : f32 to vector<2x1x2x3xf32>
    %1090 = arith.mulf %1063, %1089 : vector<2x1x2x3xf32>
    %1091 = arith.addf %1058, %1090 : vector<2x1x2x3xf32>
    %c395 = arith.constant 395 : index
    %1092 = memref.load %arg1[%c395] : memref<425xf32, #tpu.memory_space<smem>>
    %1093 = vector.broadcast %1092 : f32 to vector<2x1x2x3xf32>
    %1094 = arith.mulf %1063, %1093 : vector<2x1x2x3xf32>
    %1095 = arith.addf %1062, %1094 : vector<2x1x2x3xf32>
    %1096 = vector.extract_strided_slice %683 {offsets = [0, 3, 0, 0], sizes = [2, 1, 2, 3], strides = [1, 1, 1, 1]} : vector<2x8x3x4xf32> to vector<2x1x2x3xf32>
    %c172 = arith.constant 172 : index
    %1097 = memref.load %arg1[%c172] : memref<425xf32, #tpu.memory_space<smem>>
    %1098 = vector.broadcast %1097 : f32 to vector<2x1x2x3xf32>
    %1099 = arith.mulf %1096, %1098 : vector<2x1x2x3xf32>
    %1100 = arith.addf %1067, %1099 : vector<2x1x2x3xf32>
    %c204 = arith.constant 204 : index
    %1101 = memref.load %arg1[%c204] : memref<425xf32, #tpu.memory_space<smem>>
    %1102 = vector.broadcast %1101 : f32 to vector<2x1x2x3xf32>
    %1103 = arith.mulf %1096, %1102 : vector<2x1x2x3xf32>
    %1104 = arith.addf %1071, %1103 : vector<2x1x2x3xf32>
    %c236 = arith.constant 236 : index
    %1105 = memref.load %arg1[%c236] : memref<425xf32, #tpu.memory_space<smem>>
    %1106 = vector.broadcast %1105 : f32 to vector<2x1x2x3xf32>
    %1107 = arith.mulf %1096, %1106 : vector<2x1x2x3xf32>
    %1108 = arith.addf %1075, %1107 : vector<2x1x2x3xf32>
    %c268 = arith.constant 268 : index
    %1109 = memref.load %arg1[%c268] : memref<425xf32, #tpu.memory_space<smem>>
    %1110 = vector.broadcast %1109 : f32 to vector<2x1x2x3xf32>
    %1111 = arith.mulf %1096, %1110 : vector<2x1x2x3xf32>
    %1112 = arith.addf %1079, %1111 : vector<2x1x2x3xf32>
    %c300 = arith.constant 300 : index
    %1113 = memref.load %arg1[%c300] : memref<425xf32, #tpu.memory_space<smem>>
    %1114 = vector.broadcast %1113 : f32 to vector<2x1x2x3xf32>
    %1115 = arith.mulf %1096, %1114 : vector<2x1x2x3xf32>
    %1116 = arith.addf %1083, %1115 : vector<2x1x2x3xf32>
    %c332 = arith.constant 332 : index
    %1117 = memref.load %arg1[%c332] : memref<425xf32, #tpu.memory_space<smem>>
    %1118 = vector.broadcast %1117 : f32 to vector<2x1x2x3xf32>
    %1119 = arith.mulf %1096, %1118 : vector<2x1x2x3xf32>
    %1120 = arith.addf %1087, %1119 : vector<2x1x2x3xf32>
    %c364 = arith.constant 364 : index
    %1121 = memref.load %arg1[%c364] : memref<425xf32, #tpu.memory_space<smem>>
    %1122 = vector.broadcast %1121 : f32 to vector<2x1x2x3xf32>
    %1123 = arith.mulf %1096, %1122 : vector<2x1x2x3xf32>
    %1124 = arith.addf %1091, %1123 : vector<2x1x2x3xf32>
    %c396 = arith.constant 396 : index
    %1125 = memref.load %arg1[%c396] : memref<425xf32, #tpu.memory_space<smem>>
    %1126 = vector.broadcast %1125 : f32 to vector<2x1x2x3xf32>
    %1127 = arith.mulf %1096, %1126 : vector<2x1x2x3xf32>
    %1128 = arith.addf %1095, %1127 : vector<2x1x2x3xf32>
    %1129 = vector.extract_strided_slice %683 {offsets = [0, 3, 0, 1], sizes = [2, 1, 2, 3], strides = [1, 1, 1, 1]} : vector<2x8x3x4xf32> to vector<2x1x2x3xf32>
    %c173 = arith.constant 173 : index
    %1130 = memref.load %arg1[%c173] : memref<425xf32, #tpu.memory_space<smem>>
    %1131 = vector.broadcast %1130 : f32 to vector<2x1x2x3xf32>
    %1132 = arith.mulf %1129, %1131 : vector<2x1x2x3xf32>
    %1133 = arith.addf %1100, %1132 : vector<2x1x2x3xf32>
    %c205 = arith.constant 205 : index
    %1134 = memref.load %arg1[%c205] : memref<425xf32, #tpu.memory_space<smem>>
    %1135 = vector.broadcast %1134 : f32 to vector<2x1x2x3xf32>
    %1136 = arith.mulf %1129, %1135 : vector<2x1x2x3xf32>
    %1137 = arith.addf %1104, %1136 : vector<2x1x2x3xf32>
    %c237 = arith.constant 237 : index
    %1138 = memref.load %arg1[%c237] : memref<425xf32, #tpu.memory_space<smem>>
    %1139 = vector.broadcast %1138 : f32 to vector<2x1x2x3xf32>
    %1140 = arith.mulf %1129, %1139 : vector<2x1x2x3xf32>
    %1141 = arith.addf %1108, %1140 : vector<2x1x2x3xf32>
    %c269 = arith.constant 269 : index
    %1142 = memref.load %arg1[%c269] : memref<425xf32, #tpu.memory_space<smem>>
    %1143 = vector.broadcast %1142 : f32 to vector<2x1x2x3xf32>
    %1144 = arith.mulf %1129, %1143 : vector<2x1x2x3xf32>
    %1145 = arith.addf %1112, %1144 : vector<2x1x2x3xf32>
    %c301 = arith.constant 301 : index
    %1146 = memref.load %arg1[%c301] : memref<425xf32, #tpu.memory_space<smem>>
    %1147 = vector.broadcast %1146 : f32 to vector<2x1x2x3xf32>
    %1148 = arith.mulf %1129, %1147 : vector<2x1x2x3xf32>
    %1149 = arith.addf %1116, %1148 : vector<2x1x2x3xf32>
    %c333 = arith.constant 333 : index
    %1150 = memref.load %arg1[%c333] : memref<425xf32, #tpu.memory_space<smem>>
    %1151 = vector.broadcast %1150 : f32 to vector<2x1x2x3xf32>
    %1152 = arith.mulf %1129, %1151 : vector<2x1x2x3xf32>
    %1153 = arith.addf %1120, %1152 : vector<2x1x2x3xf32>
    %c365 = arith.constant 365 : index
    %1154 = memref.load %arg1[%c365] : memref<425xf32, #tpu.memory_space<smem>>
    %1155 = vector.broadcast %1154 : f32 to vector<2x1x2x3xf32>
    %1156 = arith.mulf %1129, %1155 : vector<2x1x2x3xf32>
    %1157 = arith.addf %1124, %1156 : vector<2x1x2x3xf32>
    %c397 = arith.constant 397 : index
    %1158 = memref.load %arg1[%c397] : memref<425xf32, #tpu.memory_space<smem>>
    %1159 = vector.broadcast %1158 : f32 to vector<2x1x2x3xf32>
    %1160 = arith.mulf %1129, %1159 : vector<2x1x2x3xf32>
    %1161 = arith.addf %1128, %1160 : vector<2x1x2x3xf32>
    %1162 = vector.extract_strided_slice %683 {offsets = [0, 3, 1, 0], sizes = [2, 1, 2, 3], strides = [1, 1, 1, 1]} : vector<2x8x3x4xf32> to vector<2x1x2x3xf32>
    %c174 = arith.constant 174 : index
    %1163 = memref.load %arg1[%c174] : memref<425xf32, #tpu.memory_space<smem>>
    %1164 = vector.broadcast %1163 : f32 to vector<2x1x2x3xf32>
    %1165 = arith.mulf %1162, %1164 : vector<2x1x2x3xf32>
    %1166 = arith.addf %1133, %1165 : vector<2x1x2x3xf32>
    %c206 = arith.constant 206 : index
    %1167 = memref.load %arg1[%c206] : memref<425xf32, #tpu.memory_space<smem>>
    %1168 = vector.broadcast %1167 : f32 to vector<2x1x2x3xf32>
    %1169 = arith.mulf %1162, %1168 : vector<2x1x2x3xf32>
    %1170 = arith.addf %1137, %1169 : vector<2x1x2x3xf32>
    %c238 = arith.constant 238 : index
    %1171 = memref.load %arg1[%c238] : memref<425xf32, #tpu.memory_space<smem>>
    %1172 = vector.broadcast %1171 : f32 to vector<2x1x2x3xf32>
    %1173 = arith.mulf %1162, %1172 : vector<2x1x2x3xf32>
    %1174 = arith.addf %1141, %1173 : vector<2x1x2x3xf32>
    %c270 = arith.constant 270 : index
    %1175 = memref.load %arg1[%c270] : memref<425xf32, #tpu.memory_space<smem>>
    %1176 = vector.broadcast %1175 : f32 to vector<2x1x2x3xf32>
    %1177 = arith.mulf %1162, %1176 : vector<2x1x2x3xf32>
    %1178 = arith.addf %1145, %1177 : vector<2x1x2x3xf32>
    %c302 = arith.constant 302 : index
    %1179 = memref.load %arg1[%c302] : memref<425xf32, #tpu.memory_space<smem>>
    %1180 = vector.broadcast %1179 : f32 to vector<2x1x2x3xf32>
    %1181 = arith.mulf %1162, %1180 : vector<2x1x2x3xf32>
    %1182 = arith.addf %1149, %1181 : vector<2x1x2x3xf32>
    %c334 = arith.constant 334 : index
    %1183 = memref.load %arg1[%c334] : memref<425xf32, #tpu.memory_space<smem>>
    %1184 = vector.broadcast %1183 : f32 to vector<2x1x2x3xf32>
    %1185 = arith.mulf %1162, %1184 : vector<2x1x2x3xf32>
    %1186 = arith.addf %1153, %1185 : vector<2x1x2x3xf32>
    %c366 = arith.constant 366 : index
    %1187 = memref.load %arg1[%c366] : memref<425xf32, #tpu.memory_space<smem>>
    %1188 = vector.broadcast %1187 : f32 to vector<2x1x2x3xf32>
    %1189 = arith.mulf %1162, %1188 : vector<2x1x2x3xf32>
    %1190 = arith.addf %1157, %1189 : vector<2x1x2x3xf32>
    %c398 = arith.constant 398 : index
    %1191 = memref.load %arg1[%c398] : memref<425xf32, #tpu.memory_space<smem>>
    %1192 = vector.broadcast %1191 : f32 to vector<2x1x2x3xf32>
    %1193 = arith.mulf %1162, %1192 : vector<2x1x2x3xf32>
    %1194 = arith.addf %1161, %1193 : vector<2x1x2x3xf32>
    %1195 = vector.extract_strided_slice %683 {offsets = [0, 3, 1, 1], sizes = [2, 1, 2, 3], strides = [1, 1, 1, 1]} : vector<2x8x3x4xf32> to vector<2x1x2x3xf32>
    %c175 = arith.constant 175 : index
    %1196 = memref.load %arg1[%c175] : memref<425xf32, #tpu.memory_space<smem>>
    %1197 = vector.broadcast %1196 : f32 to vector<2x1x2x3xf32>
    %1198 = arith.mulf %1195, %1197 : vector<2x1x2x3xf32>
    %1199 = arith.addf %1166, %1198 : vector<2x1x2x3xf32>
    %c207 = arith.constant 207 : index
    %1200 = memref.load %arg1[%c207] : memref<425xf32, #tpu.memory_space<smem>>
    %1201 = vector.broadcast %1200 : f32 to vector<2x1x2x3xf32>
    %1202 = arith.mulf %1195, %1201 : vector<2x1x2x3xf32>
    %1203 = arith.addf %1170, %1202 : vector<2x1x2x3xf32>
    %c239 = arith.constant 239 : index
    %1204 = memref.load %arg1[%c239] : memref<425xf32, #tpu.memory_space<smem>>
    %1205 = vector.broadcast %1204 : f32 to vector<2x1x2x3xf32>
    %1206 = arith.mulf %1195, %1205 : vector<2x1x2x3xf32>
    %1207 = arith.addf %1174, %1206 : vector<2x1x2x3xf32>
    %c271 = arith.constant 271 : index
    %1208 = memref.load %arg1[%c271] : memref<425xf32, #tpu.memory_space<smem>>
    %1209 = vector.broadcast %1208 : f32 to vector<2x1x2x3xf32>
    %1210 = arith.mulf %1195, %1209 : vector<2x1x2x3xf32>
    %1211 = arith.addf %1178, %1210 : vector<2x1x2x3xf32>
    %c303 = arith.constant 303 : index
    %1212 = memref.load %arg1[%c303] : memref<425xf32, #tpu.memory_space<smem>>
    %1213 = vector.broadcast %1212 : f32 to vector<2x1x2x3xf32>
    %1214 = arith.mulf %1195, %1213 : vector<2x1x2x3xf32>
    %1215 = arith.addf %1182, %1214 : vector<2x1x2x3xf32>
    %c335 = arith.constant 335 : index
    %1216 = memref.load %arg1[%c335] : memref<425xf32, #tpu.memory_space<smem>>
    %1217 = vector.broadcast %1216 : f32 to vector<2x1x2x3xf32>
    %1218 = arith.mulf %1195, %1217 : vector<2x1x2x3xf32>
    %1219 = arith.addf %1186, %1218 : vector<2x1x2x3xf32>
    %c367 = arith.constant 367 : index
    %1220 = memref.load %arg1[%c367] : memref<425xf32, #tpu.memory_space<smem>>
    %1221 = vector.broadcast %1220 : f32 to vector<2x1x2x3xf32>
    %1222 = arith.mulf %1195, %1221 : vector<2x1x2x3xf32>
    %1223 = arith.addf %1190, %1222 : vector<2x1x2x3xf32>
    %c399 = arith.constant 399 : index
    %1224 = memref.load %arg1[%c399] : memref<425xf32, #tpu.memory_space<smem>>
    %1225 = vector.broadcast %1224 : f32 to vector<2x1x2x3xf32>
    %1226 = arith.mulf %1195, %1225 : vector<2x1x2x3xf32>
    %1227 = arith.addf %1194, %1226 : vector<2x1x2x3xf32>
    %1228 = vector.extract_strided_slice %683 {offsets = [0, 4, 0, 0], sizes = [2, 1, 2, 3], strides = [1, 1, 1, 1]} : vector<2x8x3x4xf32> to vector<2x1x2x3xf32>
    %c176 = arith.constant 176 : index
    %1229 = memref.load %arg1[%c176] : memref<425xf32, #tpu.memory_space<smem>>
    %1230 = vector.broadcast %1229 : f32 to vector<2x1x2x3xf32>
    %1231 = arith.mulf %1228, %1230 : vector<2x1x2x3xf32>
    %1232 = arith.addf %1199, %1231 : vector<2x1x2x3xf32>
    %c208 = arith.constant 208 : index
    %1233 = memref.load %arg1[%c208] : memref<425xf32, #tpu.memory_space<smem>>
    %1234 = vector.broadcast %1233 : f32 to vector<2x1x2x3xf32>
    %1235 = arith.mulf %1228, %1234 : vector<2x1x2x3xf32>
    %1236 = arith.addf %1203, %1235 : vector<2x1x2x3xf32>
    %c240 = arith.constant 240 : index
    %1237 = memref.load %arg1[%c240] : memref<425xf32, #tpu.memory_space<smem>>
    %1238 = vector.broadcast %1237 : f32 to vector<2x1x2x3xf32>
    %1239 = arith.mulf %1228, %1238 : vector<2x1x2x3xf32>
    %1240 = arith.addf %1207, %1239 : vector<2x1x2x3xf32>
    %c272 = arith.constant 272 : index
    %1241 = memref.load %arg1[%c272] : memref<425xf32, #tpu.memory_space<smem>>
    %1242 = vector.broadcast %1241 : f32 to vector<2x1x2x3xf32>
    %1243 = arith.mulf %1228, %1242 : vector<2x1x2x3xf32>
    %1244 = arith.addf %1211, %1243 : vector<2x1x2x3xf32>
    %c304 = arith.constant 304 : index
    %1245 = memref.load %arg1[%c304] : memref<425xf32, #tpu.memory_space<smem>>
    %1246 = vector.broadcast %1245 : f32 to vector<2x1x2x3xf32>
    %1247 = arith.mulf %1228, %1246 : vector<2x1x2x3xf32>
    %1248 = arith.addf %1215, %1247 : vector<2x1x2x3xf32>
    %c336 = arith.constant 336 : index
    %1249 = memref.load %arg1[%c336] : memref<425xf32, #tpu.memory_space<smem>>
    %1250 = vector.broadcast %1249 : f32 to vector<2x1x2x3xf32>
    %1251 = arith.mulf %1228, %1250 : vector<2x1x2x3xf32>
    %1252 = arith.addf %1219, %1251 : vector<2x1x2x3xf32>
    %c368 = arith.constant 368 : index
    %1253 = memref.load %arg1[%c368] : memref<425xf32, #tpu.memory_space<smem>>
    %1254 = vector.broadcast %1253 : f32 to vector<2x1x2x3xf32>
    %1255 = arith.mulf %1228, %1254 : vector<2x1x2x3xf32>
    %1256 = arith.addf %1223, %1255 : vector<2x1x2x3xf32>
    %c400 = arith.constant 400 : index
    %1257 = memref.load %arg1[%c400] : memref<425xf32, #tpu.memory_space<smem>>
    %1258 = vector.broadcast %1257 : f32 to vector<2x1x2x3xf32>
    %1259 = arith.mulf %1228, %1258 : vector<2x1x2x3xf32>
    %1260 = arith.addf %1227, %1259 : vector<2x1x2x3xf32>
    %1261 = vector.extract_strided_slice %683 {offsets = [0, 4, 0, 1], sizes = [2, 1, 2, 3], strides = [1, 1, 1, 1]} : vector<2x8x3x4xf32> to vector<2x1x2x3xf32>
    %c177 = arith.constant 177 : index
    %1262 = memref.load %arg1[%c177] : memref<425xf32, #tpu.memory_space<smem>>
    %1263 = vector.broadcast %1262 : f32 to vector<2x1x2x3xf32>
    %1264 = arith.mulf %1261, %1263 : vector<2x1x2x3xf32>
    %1265 = arith.addf %1232, %1264 : vector<2x1x2x3xf32>
    %c209 = arith.constant 209 : index
    %1266 = memref.load %arg1[%c209] : memref<425xf32, #tpu.memory_space<smem>>
    %1267 = vector.broadcast %1266 : f32 to vector<2x1x2x3xf32>
    %1268 = arith.mulf %1261, %1267 : vector<2x1x2x3xf32>
    %1269 = arith.addf %1236, %1268 : vector<2x1x2x3xf32>
    %c241 = arith.constant 241 : index
    %1270 = memref.load %arg1[%c241] : memref<425xf32, #tpu.memory_space<smem>>
    %1271 = vector.broadcast %1270 : f32 to vector<2x1x2x3xf32>
    %1272 = arith.mulf %1261, %1271 : vector<2x1x2x3xf32>
    %1273 = arith.addf %1240, %1272 : vector<2x1x2x3xf32>
    %c273 = arith.constant 273 : index
    %1274 = memref.load %arg1[%c273] : memref<425xf32, #tpu.memory_space<smem>>
    %1275 = vector.broadcast %1274 : f32 to vector<2x1x2x3xf32>
    %1276 = arith.mulf %1261, %1275 : vector<2x1x2x3xf32>
    %1277 = arith.addf %1244, %1276 : vector<2x1x2x3xf32>
    %c305 = arith.constant 305 : index
    %1278 = memref.load %arg1[%c305] : memref<425xf32, #tpu.memory_space<smem>>
    %1279 = vector.broadcast %1278 : f32 to vector<2x1x2x3xf32>
    %1280 = arith.mulf %1261, %1279 : vector<2x1x2x3xf32>
    %1281 = arith.addf %1248, %1280 : vector<2x1x2x3xf32>
    %c337 = arith.constant 337 : index
    %1282 = memref.load %arg1[%c337] : memref<425xf32, #tpu.memory_space<smem>>
    %1283 = vector.broadcast %1282 : f32 to vector<2x1x2x3xf32>
    %1284 = arith.mulf %1261, %1283 : vector<2x1x2x3xf32>
    %1285 = arith.addf %1252, %1284 : vector<2x1x2x3xf32>
    %c369 = arith.constant 369 : index
    %1286 = memref.load %arg1[%c369] : memref<425xf32, #tpu.memory_space<smem>>
    %1287 = vector.broadcast %1286 : f32 to vector<2x1x2x3xf32>
    %1288 = arith.mulf %1261, %1287 : vector<2x1x2x3xf32>
    %1289 = arith.addf %1256, %1288 : vector<2x1x2x3xf32>
    %c401 = arith.constant 401 : index
    %1290 = memref.load %arg1[%c401] : memref<425xf32, #tpu.memory_space<smem>>
    %1291 = vector.broadcast %1290 : f32 to vector<2x1x2x3xf32>
    %1292 = arith.mulf %1261, %1291 : vector<2x1x2x3xf32>
    %1293 = arith.addf %1260, %1292 : vector<2x1x2x3xf32>
    %1294 = vector.extract_strided_slice %683 {offsets = [0, 4, 1, 0], sizes = [2, 1, 2, 3], strides = [1, 1, 1, 1]} : vector<2x8x3x4xf32> to vector<2x1x2x3xf32>
    %c178 = arith.constant 178 : index
    %1295 = memref.load %arg1[%c178] : memref<425xf32, #tpu.memory_space<smem>>
    %1296 = vector.broadcast %1295 : f32 to vector<2x1x2x3xf32>
    %1297 = arith.mulf %1294, %1296 : vector<2x1x2x3xf32>
    %1298 = arith.addf %1265, %1297 : vector<2x1x2x3xf32>
    %c210 = arith.constant 210 : index
    %1299 = memref.load %arg1[%c210] : memref<425xf32, #tpu.memory_space<smem>>
    %1300 = vector.broadcast %1299 : f32 to vector<2x1x2x3xf32>
    %1301 = arith.mulf %1294, %1300 : vector<2x1x2x3xf32>
    %1302 = arith.addf %1269, %1301 : vector<2x1x2x3xf32>
    %c242 = arith.constant 242 : index
    %1303 = memref.load %arg1[%c242] : memref<425xf32, #tpu.memory_space<smem>>
    %1304 = vector.broadcast %1303 : f32 to vector<2x1x2x3xf32>
    %1305 = arith.mulf %1294, %1304 : vector<2x1x2x3xf32>
    %1306 = arith.addf %1273, %1305 : vector<2x1x2x3xf32>
    %c274 = arith.constant 274 : index
    %1307 = memref.load %arg1[%c274] : memref<425xf32, #tpu.memory_space<smem>>
    %1308 = vector.broadcast %1307 : f32 to vector<2x1x2x3xf32>
    %1309 = arith.mulf %1294, %1308 : vector<2x1x2x3xf32>
    %1310 = arith.addf %1277, %1309 : vector<2x1x2x3xf32>
    %c306 = arith.constant 306 : index
    %1311 = memref.load %arg1[%c306] : memref<425xf32, #tpu.memory_space<smem>>
    %1312 = vector.broadcast %1311 : f32 to vector<2x1x2x3xf32>
    %1313 = arith.mulf %1294, %1312 : vector<2x1x2x3xf32>
    %1314 = arith.addf %1281, %1313 : vector<2x1x2x3xf32>
    %c338 = arith.constant 338 : index
    %1315 = memref.load %arg1[%c338] : memref<425xf32, #tpu.memory_space<smem>>
    %1316 = vector.broadcast %1315 : f32 to vector<2x1x2x3xf32>
    %1317 = arith.mulf %1294, %1316 : vector<2x1x2x3xf32>
    %1318 = arith.addf %1285, %1317 : vector<2x1x2x3xf32>
    %c370 = arith.constant 370 : index
    %1319 = memref.load %arg1[%c370] : memref<425xf32, #tpu.memory_space<smem>>
    %1320 = vector.broadcast %1319 : f32 to vector<2x1x2x3xf32>
    %1321 = arith.mulf %1294, %1320 : vector<2x1x2x3xf32>
    %1322 = arith.addf %1289, %1321 : vector<2x1x2x3xf32>
    %c402 = arith.constant 402 : index
    %1323 = memref.load %arg1[%c402] : memref<425xf32, #tpu.memory_space<smem>>
    %1324 = vector.broadcast %1323 : f32 to vector<2x1x2x3xf32>
    %1325 = arith.mulf %1294, %1324 : vector<2x1x2x3xf32>
    %1326 = arith.addf %1293, %1325 : vector<2x1x2x3xf32>
    %1327 = vector.extract_strided_slice %683 {offsets = [0, 4, 1, 1], sizes = [2, 1, 2, 3], strides = [1, 1, 1, 1]} : vector<2x8x3x4xf32> to vector<2x1x2x3xf32>
    %c179 = arith.constant 179 : index
    %1328 = memref.load %arg1[%c179] : memref<425xf32, #tpu.memory_space<smem>>
    %1329 = vector.broadcast %1328 : f32 to vector<2x1x2x3xf32>
    %1330 = arith.mulf %1327, %1329 : vector<2x1x2x3xf32>
    %1331 = arith.addf %1298, %1330 : vector<2x1x2x3xf32>
    %c211 = arith.constant 211 : index
    %1332 = memref.load %arg1[%c211] : memref<425xf32, #tpu.memory_space<smem>>
    %1333 = vector.broadcast %1332 : f32 to vector<2x1x2x3xf32>
    %1334 = arith.mulf %1327, %1333 : vector<2x1x2x3xf32>
    %1335 = arith.addf %1302, %1334 : vector<2x1x2x3xf32>
    %c243 = arith.constant 243 : index
    %1336 = memref.load %arg1[%c243] : memref<425xf32, #tpu.memory_space<smem>>
    %1337 = vector.broadcast %1336 : f32 to vector<2x1x2x3xf32>
    %1338 = arith.mulf %1327, %1337 : vector<2x1x2x3xf32>
    %1339 = arith.addf %1306, %1338 : vector<2x1x2x3xf32>
    %c275 = arith.constant 275 : index
    %1340 = memref.load %arg1[%c275] : memref<425xf32, #tpu.memory_space<smem>>
    %1341 = vector.broadcast %1340 : f32 to vector<2x1x2x3xf32>
    %1342 = arith.mulf %1327, %1341 : vector<2x1x2x3xf32>
    %1343 = arith.addf %1310, %1342 : vector<2x1x2x3xf32>
    %c307 = arith.constant 307 : index
    %1344 = memref.load %arg1[%c307] : memref<425xf32, #tpu.memory_space<smem>>
    %1345 = vector.broadcast %1344 : f32 to vector<2x1x2x3xf32>
    %1346 = arith.mulf %1327, %1345 : vector<2x1x2x3xf32>
    %1347 = arith.addf %1314, %1346 : vector<2x1x2x3xf32>
    %c339 = arith.constant 339 : index
    %1348 = memref.load %arg1[%c339] : memref<425xf32, #tpu.memory_space<smem>>
    %1349 = vector.broadcast %1348 : f32 to vector<2x1x2x3xf32>
    %1350 = arith.mulf %1327, %1349 : vector<2x1x2x3xf32>
    %1351 = arith.addf %1318, %1350 : vector<2x1x2x3xf32>
    %c371 = arith.constant 371 : index
    %1352 = memref.load %arg1[%c371] : memref<425xf32, #tpu.memory_space<smem>>
    %1353 = vector.broadcast %1352 : f32 to vector<2x1x2x3xf32>
    %1354 = arith.mulf %1327, %1353 : vector<2x1x2x3xf32>
    %1355 = arith.addf %1322, %1354 : vector<2x1x2x3xf32>
    %c403 = arith.constant 403 : index
    %1356 = memref.load %arg1[%c403] : memref<425xf32, #tpu.memory_space<smem>>
    %1357 = vector.broadcast %1356 : f32 to vector<2x1x2x3xf32>
    %1358 = arith.mulf %1327, %1357 : vector<2x1x2x3xf32>
    %1359 = arith.addf %1326, %1358 : vector<2x1x2x3xf32>
    %1360 = vector.extract_strided_slice %683 {offsets = [0, 5, 0, 0], sizes = [2, 1, 2, 3], strides = [1, 1, 1, 1]} : vector<2x8x3x4xf32> to vector<2x1x2x3xf32>
    %c180 = arith.constant 180 : index
    %1361 = memref.load %arg1[%c180] : memref<425xf32, #tpu.memory_space<smem>>
    %1362 = vector.broadcast %1361 : f32 to vector<2x1x2x3xf32>
    %1363 = arith.mulf %1360, %1362 : vector<2x1x2x3xf32>
    %1364 = arith.addf %1331, %1363 : vector<2x1x2x3xf32>
    %c212 = arith.constant 212 : index
    %1365 = memref.load %arg1[%c212] : memref<425xf32, #tpu.memory_space<smem>>
    %1366 = vector.broadcast %1365 : f32 to vector<2x1x2x3xf32>
    %1367 = arith.mulf %1360, %1366 : vector<2x1x2x3xf32>
    %1368 = arith.addf %1335, %1367 : vector<2x1x2x3xf32>
    %c244 = arith.constant 244 : index
    %1369 = memref.load %arg1[%c244] : memref<425xf32, #tpu.memory_space<smem>>
    %1370 = vector.broadcast %1369 : f32 to vector<2x1x2x3xf32>
    %1371 = arith.mulf %1360, %1370 : vector<2x1x2x3xf32>
    %1372 = arith.addf %1339, %1371 : vector<2x1x2x3xf32>
    %c276 = arith.constant 276 : index
    %1373 = memref.load %arg1[%c276] : memref<425xf32, #tpu.memory_space<smem>>
    %1374 = vector.broadcast %1373 : f32 to vector<2x1x2x3xf32>
    %1375 = arith.mulf %1360, %1374 : vector<2x1x2x3xf32>
    %1376 = arith.addf %1343, %1375 : vector<2x1x2x3xf32>
    %c308 = arith.constant 308 : index
    %1377 = memref.load %arg1[%c308] : memref<425xf32, #tpu.memory_space<smem>>
    %1378 = vector.broadcast %1377 : f32 to vector<2x1x2x3xf32>
    %1379 = arith.mulf %1360, %1378 : vector<2x1x2x3xf32>
    %1380 = arith.addf %1347, %1379 : vector<2x1x2x3xf32>
    %c340 = arith.constant 340 : index
    %1381 = memref.load %arg1[%c340] : memref<425xf32, #tpu.memory_space<smem>>
    %1382 = vector.broadcast %1381 : f32 to vector<2x1x2x3xf32>
    %1383 = arith.mulf %1360, %1382 : vector<2x1x2x3xf32>
    %1384 = arith.addf %1351, %1383 : vector<2x1x2x3xf32>
    %c372 = arith.constant 372 : index
    %1385 = memref.load %arg1[%c372] : memref<425xf32, #tpu.memory_space<smem>>
    %1386 = vector.broadcast %1385 : f32 to vector<2x1x2x3xf32>
    %1387 = arith.mulf %1360, %1386 : vector<2x1x2x3xf32>
    %1388 = arith.addf %1355, %1387 : vector<2x1x2x3xf32>
    %c404 = arith.constant 404 : index
    %1389 = memref.load %arg1[%c404] : memref<425xf32, #tpu.memory_space<smem>>
    %1390 = vector.broadcast %1389 : f32 to vector<2x1x2x3xf32>
    %1391 = arith.mulf %1360, %1390 : vector<2x1x2x3xf32>
    %1392 = arith.addf %1359, %1391 : vector<2x1x2x3xf32>
    %1393 = vector.extract_strided_slice %683 {offsets = [0, 5, 0, 1], sizes = [2, 1, 2, 3], strides = [1, 1, 1, 1]} : vector<2x8x3x4xf32> to vector<2x1x2x3xf32>
    %c181 = arith.constant 181 : index
    %1394 = memref.load %arg1[%c181] : memref<425xf32, #tpu.memory_space<smem>>
    %1395 = vector.broadcast %1394 : f32 to vector<2x1x2x3xf32>
    %1396 = arith.mulf %1393, %1395 : vector<2x1x2x3xf32>
    %1397 = arith.addf %1364, %1396 : vector<2x1x2x3xf32>
    %c213 = arith.constant 213 : index
    %1398 = memref.load %arg1[%c213] : memref<425xf32, #tpu.memory_space<smem>>
    %1399 = vector.broadcast %1398 : f32 to vector<2x1x2x3xf32>
    %1400 = arith.mulf %1393, %1399 : vector<2x1x2x3xf32>
    %1401 = arith.addf %1368, %1400 : vector<2x1x2x3xf32>
    %c245 = arith.constant 245 : index
    %1402 = memref.load %arg1[%c245] : memref<425xf32, #tpu.memory_space<smem>>
    %1403 = vector.broadcast %1402 : f32 to vector<2x1x2x3xf32>
    %1404 = arith.mulf %1393, %1403 : vector<2x1x2x3xf32>
    %1405 = arith.addf %1372, %1404 : vector<2x1x2x3xf32>
    %c277 = arith.constant 277 : index
    %1406 = memref.load %arg1[%c277] : memref<425xf32, #tpu.memory_space<smem>>
    %1407 = vector.broadcast %1406 : f32 to vector<2x1x2x3xf32>
    %1408 = arith.mulf %1393, %1407 : vector<2x1x2x3xf32>
    %1409 = arith.addf %1376, %1408 : vector<2x1x2x3xf32>
    %c309 = arith.constant 309 : index
    %1410 = memref.load %arg1[%c309] : memref<425xf32, #tpu.memory_space<smem>>
    %1411 = vector.broadcast %1410 : f32 to vector<2x1x2x3xf32>
    %1412 = arith.mulf %1393, %1411 : vector<2x1x2x3xf32>
    %1413 = arith.addf %1380, %1412 : vector<2x1x2x3xf32>
    %c341 = arith.constant 341 : index
    %1414 = memref.load %arg1[%c341] : memref<425xf32, #tpu.memory_space<smem>>
    %1415 = vector.broadcast %1414 : f32 to vector<2x1x2x3xf32>
    %1416 = arith.mulf %1393, %1415 : vector<2x1x2x3xf32>
    %1417 = arith.addf %1384, %1416 : vector<2x1x2x3xf32>
    %c373 = arith.constant 373 : index
    %1418 = memref.load %arg1[%c373] : memref<425xf32, #tpu.memory_space<smem>>
    %1419 = vector.broadcast %1418 : f32 to vector<2x1x2x3xf32>
    %1420 = arith.mulf %1393, %1419 : vector<2x1x2x3xf32>
    %1421 = arith.addf %1388, %1420 : vector<2x1x2x3xf32>
    %c405 = arith.constant 405 : index
    %1422 = memref.load %arg1[%c405] : memref<425xf32, #tpu.memory_space<smem>>
    %1423 = vector.broadcast %1422 : f32 to vector<2x1x2x3xf32>
    %1424 = arith.mulf %1393, %1423 : vector<2x1x2x3xf32>
    %1425 = arith.addf %1392, %1424 : vector<2x1x2x3xf32>
    %1426 = vector.extract_strided_slice %683 {offsets = [0, 5, 1, 0], sizes = [2, 1, 2, 3], strides = [1, 1, 1, 1]} : vector<2x8x3x4xf32> to vector<2x1x2x3xf32>
    %c182 = arith.constant 182 : index
    %1427 = memref.load %arg1[%c182] : memref<425xf32, #tpu.memory_space<smem>>
    %1428 = vector.broadcast %1427 : f32 to vector<2x1x2x3xf32>
    %1429 = arith.mulf %1426, %1428 : vector<2x1x2x3xf32>
    %1430 = arith.addf %1397, %1429 : vector<2x1x2x3xf32>
    %c214 = arith.constant 214 : index
    %1431 = memref.load %arg1[%c214] : memref<425xf32, #tpu.memory_space<smem>>
    %1432 = vector.broadcast %1431 : f32 to vector<2x1x2x3xf32>
    %1433 = arith.mulf %1426, %1432 : vector<2x1x2x3xf32>
    %1434 = arith.addf %1401, %1433 : vector<2x1x2x3xf32>
    %c246 = arith.constant 246 : index
    %1435 = memref.load %arg1[%c246] : memref<425xf32, #tpu.memory_space<smem>>
    %1436 = vector.broadcast %1435 : f32 to vector<2x1x2x3xf32>
    %1437 = arith.mulf %1426, %1436 : vector<2x1x2x3xf32>
    %1438 = arith.addf %1405, %1437 : vector<2x1x2x3xf32>
    %c278 = arith.constant 278 : index
    %1439 = memref.load %arg1[%c278] : memref<425xf32, #tpu.memory_space<smem>>
    %1440 = vector.broadcast %1439 : f32 to vector<2x1x2x3xf32>
    %1441 = arith.mulf %1426, %1440 : vector<2x1x2x3xf32>
    %1442 = arith.addf %1409, %1441 : vector<2x1x2x3xf32>
    %c310 = arith.constant 310 : index
    %1443 = memref.load %arg1[%c310] : memref<425xf32, #tpu.memory_space<smem>>
    %1444 = vector.broadcast %1443 : f32 to vector<2x1x2x3xf32>
    %1445 = arith.mulf %1426, %1444 : vector<2x1x2x3xf32>
    %1446 = arith.addf %1413, %1445 : vector<2x1x2x3xf32>
    %c342 = arith.constant 342 : index
    %1447 = memref.load %arg1[%c342] : memref<425xf32, #tpu.memory_space<smem>>
    %1448 = vector.broadcast %1447 : f32 to vector<2x1x2x3xf32>
    %1449 = arith.mulf %1426, %1448 : vector<2x1x2x3xf32>
    %1450 = arith.addf %1417, %1449 : vector<2x1x2x3xf32>
    %c374 = arith.constant 374 : index
    %1451 = memref.load %arg1[%c374] : memref<425xf32, #tpu.memory_space<smem>>
    %1452 = vector.broadcast %1451 : f32 to vector<2x1x2x3xf32>
    %1453 = arith.mulf %1426, %1452 : vector<2x1x2x3xf32>
    %1454 = arith.addf %1421, %1453 : vector<2x1x2x3xf32>
    %c406 = arith.constant 406 : index
    %1455 = memref.load %arg1[%c406] : memref<425xf32, #tpu.memory_space<smem>>
    %1456 = vector.broadcast %1455 : f32 to vector<2x1x2x3xf32>
    %1457 = arith.mulf %1426, %1456 : vector<2x1x2x3xf32>
    %1458 = arith.addf %1425, %1457 : vector<2x1x2x3xf32>
    %1459 = vector.extract_strided_slice %683 {offsets = [0, 5, 1, 1], sizes = [2, 1, 2, 3], strides = [1, 1, 1, 1]} : vector<2x8x3x4xf32> to vector<2x1x2x3xf32>
    %c183 = arith.constant 183 : index
    %1460 = memref.load %arg1[%c183] : memref<425xf32, #tpu.memory_space<smem>>
    %1461 = vector.broadcast %1460 : f32 to vector<2x1x2x3xf32>
    %1462 = arith.mulf %1459, %1461 : vector<2x1x2x3xf32>
    %1463 = arith.addf %1430, %1462 : vector<2x1x2x3xf32>
    %c215 = arith.constant 215 : index
    %1464 = memref.load %arg1[%c215] : memref<425xf32, #tpu.memory_space<smem>>
    %1465 = vector.broadcast %1464 : f32 to vector<2x1x2x3xf32>
    %1466 = arith.mulf %1459, %1465 : vector<2x1x2x3xf32>
    %1467 = arith.addf %1434, %1466 : vector<2x1x2x3xf32>
    %c247 = arith.constant 247 : index
    %1468 = memref.load %arg1[%c247] : memref<425xf32, #tpu.memory_space<smem>>
    %1469 = vector.broadcast %1468 : f32 to vector<2x1x2x3xf32>
    %1470 = arith.mulf %1459, %1469 : vector<2x1x2x3xf32>
    %1471 = arith.addf %1438, %1470 : vector<2x1x2x3xf32>
    %c279 = arith.constant 279 : index
    %1472 = memref.load %arg1[%c279] : memref<425xf32, #tpu.memory_space<smem>>
    %1473 = vector.broadcast %1472 : f32 to vector<2x1x2x3xf32>
    %1474 = arith.mulf %1459, %1473 : vector<2x1x2x3xf32>
    %1475 = arith.addf %1442, %1474 : vector<2x1x2x3xf32>
    %c311 = arith.constant 311 : index
    %1476 = memref.load %arg1[%c311] : memref<425xf32, #tpu.memory_space<smem>>
    %1477 = vector.broadcast %1476 : f32 to vector<2x1x2x3xf32>
    %1478 = arith.mulf %1459, %1477 : vector<2x1x2x3xf32>
    %1479 = arith.addf %1446, %1478 : vector<2x1x2x3xf32>
    %c343 = arith.constant 343 : index
    %1480 = memref.load %arg1[%c343] : memref<425xf32, #tpu.memory_space<smem>>
    %1481 = vector.broadcast %1480 : f32 to vector<2x1x2x3xf32>
    %1482 = arith.mulf %1459, %1481 : vector<2x1x2x3xf32>
    %1483 = arith.addf %1450, %1482 : vector<2x1x2x3xf32>
    %c375 = arith.constant 375 : index
    %1484 = memref.load %arg1[%c375] : memref<425xf32, #tpu.memory_space<smem>>
    %1485 = vector.broadcast %1484 : f32 to vector<2x1x2x3xf32>
    %1486 = arith.mulf %1459, %1485 : vector<2x1x2x3xf32>
    %1487 = arith.addf %1454, %1486 : vector<2x1x2x3xf32>
    %c407 = arith.constant 407 : index
    %1488 = memref.load %arg1[%c407] : memref<425xf32, #tpu.memory_space<smem>>
    %1489 = vector.broadcast %1488 : f32 to vector<2x1x2x3xf32>
    %1490 = arith.mulf %1459, %1489 : vector<2x1x2x3xf32>
    %1491 = arith.addf %1458, %1490 : vector<2x1x2x3xf32>
    %1492 = vector.extract_strided_slice %683 {offsets = [0, 6, 0, 0], sizes = [2, 1, 2, 3], strides = [1, 1, 1, 1]} : vector<2x8x3x4xf32> to vector<2x1x2x3xf32>
    %c184 = arith.constant 184 : index
    %1493 = memref.load %arg1[%c184] : memref<425xf32, #tpu.memory_space<smem>>
    %1494 = vector.broadcast %1493 : f32 to vector<2x1x2x3xf32>
    %1495 = arith.mulf %1492, %1494 : vector<2x1x2x3xf32>
    %1496 = arith.addf %1463, %1495 : vector<2x1x2x3xf32>
    %c216 = arith.constant 216 : index
    %1497 = memref.load %arg1[%c216] : memref<425xf32, #tpu.memory_space<smem>>
    %1498 = vector.broadcast %1497 : f32 to vector<2x1x2x3xf32>
    %1499 = arith.mulf %1492, %1498 : vector<2x1x2x3xf32>
    %1500 = arith.addf %1467, %1499 : vector<2x1x2x3xf32>
    %c248 = arith.constant 248 : index
    %1501 = memref.load %arg1[%c248] : memref<425xf32, #tpu.memory_space<smem>>
    %1502 = vector.broadcast %1501 : f32 to vector<2x1x2x3xf32>
    %1503 = arith.mulf %1492, %1502 : vector<2x1x2x3xf32>
    %1504 = arith.addf %1471, %1503 : vector<2x1x2x3xf32>
    %c280 = arith.constant 280 : index
    %1505 = memref.load %arg1[%c280] : memref<425xf32, #tpu.memory_space<smem>>
    %1506 = vector.broadcast %1505 : f32 to vector<2x1x2x3xf32>
    %1507 = arith.mulf %1492, %1506 : vector<2x1x2x3xf32>
    %1508 = arith.addf %1475, %1507 : vector<2x1x2x3xf32>
    %c312 = arith.constant 312 : index
    %1509 = memref.load %arg1[%c312] : memref<425xf32, #tpu.memory_space<smem>>
    %1510 = vector.broadcast %1509 : f32 to vector<2x1x2x3xf32>
    %1511 = arith.mulf %1492, %1510 : vector<2x1x2x3xf32>
    %1512 = arith.addf %1479, %1511 : vector<2x1x2x3xf32>
    %c344 = arith.constant 344 : index
    %1513 = memref.load %arg1[%c344] : memref<425xf32, #tpu.memory_space<smem>>
    %1514 = vector.broadcast %1513 : f32 to vector<2x1x2x3xf32>
    %1515 = arith.mulf %1492, %1514 : vector<2x1x2x3xf32>
    %1516 = arith.addf %1483, %1515 : vector<2x1x2x3xf32>
    %c376 = arith.constant 376 : index
    %1517 = memref.load %arg1[%c376] : memref<425xf32, #tpu.memory_space<smem>>
    %1518 = vector.broadcast %1517 : f32 to vector<2x1x2x3xf32>
    %1519 = arith.mulf %1492, %1518 : vector<2x1x2x3xf32>
    %1520 = arith.addf %1487, %1519 : vector<2x1x2x3xf32>
    %c408 = arith.constant 408 : index
    %1521 = memref.load %arg1[%c408] : memref<425xf32, #tpu.memory_space<smem>>
    %1522 = vector.broadcast %1521 : f32 to vector<2x1x2x3xf32>
    %1523 = arith.mulf %1492, %1522 : vector<2x1x2x3xf32>
    %1524 = arith.addf %1491, %1523 : vector<2x1x2x3xf32>
    %1525 = vector.extract_strided_slice %683 {offsets = [0, 6, 0, 1], sizes = [2, 1, 2, 3], strides = [1, 1, 1, 1]} : vector<2x8x3x4xf32> to vector<2x1x2x3xf32>
    %c185 = arith.constant 185 : index
    %1526 = memref.load %arg1[%c185] : memref<425xf32, #tpu.memory_space<smem>>
    %1527 = vector.broadcast %1526 : f32 to vector<2x1x2x3xf32>
    %1528 = arith.mulf %1525, %1527 : vector<2x1x2x3xf32>
    %1529 = arith.addf %1496, %1528 : vector<2x1x2x3xf32>
    %c217 = arith.constant 217 : index
    %1530 = memref.load %arg1[%c217] : memref<425xf32, #tpu.memory_space<smem>>
    %1531 = vector.broadcast %1530 : f32 to vector<2x1x2x3xf32>
    %1532 = arith.mulf %1525, %1531 : vector<2x1x2x3xf32>
    %1533 = arith.addf %1500, %1532 : vector<2x1x2x3xf32>
    %c249 = arith.constant 249 : index
    %1534 = memref.load %arg1[%c249] : memref<425xf32, #tpu.memory_space<smem>>
    %1535 = vector.broadcast %1534 : f32 to vector<2x1x2x3xf32>
    %1536 = arith.mulf %1525, %1535 : vector<2x1x2x3xf32>
    %1537 = arith.addf %1504, %1536 : vector<2x1x2x3xf32>
    %c281 = arith.constant 281 : index
    %1538 = memref.load %arg1[%c281] : memref<425xf32, #tpu.memory_space<smem>>
    %1539 = vector.broadcast %1538 : f32 to vector<2x1x2x3xf32>
    %1540 = arith.mulf %1525, %1539 : vector<2x1x2x3xf32>
    %1541 = arith.addf %1508, %1540 : vector<2x1x2x3xf32>
    %c313 = arith.constant 313 : index
    %1542 = memref.load %arg1[%c313] : memref<425xf32, #tpu.memory_space<smem>>
    %1543 = vector.broadcast %1542 : f32 to vector<2x1x2x3xf32>
    %1544 = arith.mulf %1525, %1543 : vector<2x1x2x3xf32>
    %1545 = arith.addf %1512, %1544 : vector<2x1x2x3xf32>
    %c345 = arith.constant 345 : index
    %1546 = memref.load %arg1[%c345] : memref<425xf32, #tpu.memory_space<smem>>
    %1547 = vector.broadcast %1546 : f32 to vector<2x1x2x3xf32>
    %1548 = arith.mulf %1525, %1547 : vector<2x1x2x3xf32>
    %1549 = arith.addf %1516, %1548 : vector<2x1x2x3xf32>
    %c377 = arith.constant 377 : index
    %1550 = memref.load %arg1[%c377] : memref<425xf32, #tpu.memory_space<smem>>
    %1551 = vector.broadcast %1550 : f32 to vector<2x1x2x3xf32>
    %1552 = arith.mulf %1525, %1551 : vector<2x1x2x3xf32>
    %1553 = arith.addf %1520, %1552 : vector<2x1x2x3xf32>
    %c409 = arith.constant 409 : index
    %1554 = memref.load %arg1[%c409] : memref<425xf32, #tpu.memory_space<smem>>
    %1555 = vector.broadcast %1554 : f32 to vector<2x1x2x3xf32>
    %1556 = arith.mulf %1525, %1555 : vector<2x1x2x3xf32>
    %1557 = arith.addf %1524, %1556 : vector<2x1x2x3xf32>
    %1558 = vector.extract_strided_slice %683 {offsets = [0, 6, 1, 0], sizes = [2, 1, 2, 3], strides = [1, 1, 1, 1]} : vector<2x8x3x4xf32> to vector<2x1x2x3xf32>
    %c186 = arith.constant 186 : index
    %1559 = memref.load %arg1[%c186] : memref<425xf32, #tpu.memory_space<smem>>
    %1560 = vector.broadcast %1559 : f32 to vector<2x1x2x3xf32>
    %1561 = arith.mulf %1558, %1560 : vector<2x1x2x3xf32>
    %1562 = arith.addf %1529, %1561 : vector<2x1x2x3xf32>
    %c218 = arith.constant 218 : index
    %1563 = memref.load %arg1[%c218] : memref<425xf32, #tpu.memory_space<smem>>
    %1564 = vector.broadcast %1563 : f32 to vector<2x1x2x3xf32>
    %1565 = arith.mulf %1558, %1564 : vector<2x1x2x3xf32>
    %1566 = arith.addf %1533, %1565 : vector<2x1x2x3xf32>
    %c250 = arith.constant 250 : index
    %1567 = memref.load %arg1[%c250] : memref<425xf32, #tpu.memory_space<smem>>
    %1568 = vector.broadcast %1567 : f32 to vector<2x1x2x3xf32>
    %1569 = arith.mulf %1558, %1568 : vector<2x1x2x3xf32>
    %1570 = arith.addf %1537, %1569 : vector<2x1x2x3xf32>
    %c282 = arith.constant 282 : index
    %1571 = memref.load %arg1[%c282] : memref<425xf32, #tpu.memory_space<smem>>
    %1572 = vector.broadcast %1571 : f32 to vector<2x1x2x3xf32>
    %1573 = arith.mulf %1558, %1572 : vector<2x1x2x3xf32>
    %1574 = arith.addf %1541, %1573 : vector<2x1x2x3xf32>
    %c314 = arith.constant 314 : index
    %1575 = memref.load %arg1[%c314] : memref<425xf32, #tpu.memory_space<smem>>
    %1576 = vector.broadcast %1575 : f32 to vector<2x1x2x3xf32>
    %1577 = arith.mulf %1558, %1576 : vector<2x1x2x3xf32>
    %1578 = arith.addf %1545, %1577 : vector<2x1x2x3xf32>
    %c346 = arith.constant 346 : index
    %1579 = memref.load %arg1[%c346] : memref<425xf32, #tpu.memory_space<smem>>
    %1580 = vector.broadcast %1579 : f32 to vector<2x1x2x3xf32>
    %1581 = arith.mulf %1558, %1580 : vector<2x1x2x3xf32>
    %1582 = arith.addf %1549, %1581 : vector<2x1x2x3xf32>
    %c378 = arith.constant 378 : index
    %1583 = memref.load %arg1[%c378] : memref<425xf32, #tpu.memory_space<smem>>
    %1584 = vector.broadcast %1583 : f32 to vector<2x1x2x3xf32>
    %1585 = arith.mulf %1558, %1584 : vector<2x1x2x3xf32>
    %1586 = arith.addf %1553, %1585 : vector<2x1x2x3xf32>
    %c410 = arith.constant 410 : index
    %1587 = memref.load %arg1[%c410] : memref<425xf32, #tpu.memory_space<smem>>
    %1588 = vector.broadcast %1587 : f32 to vector<2x1x2x3xf32>
    %1589 = arith.mulf %1558, %1588 : vector<2x1x2x3xf32>
    %1590 = arith.addf %1557, %1589 : vector<2x1x2x3xf32>
    %1591 = vector.extract_strided_slice %683 {offsets = [0, 6, 1, 1], sizes = [2, 1, 2, 3], strides = [1, 1, 1, 1]} : vector<2x8x3x4xf32> to vector<2x1x2x3xf32>
    %c187 = arith.constant 187 : index
    %1592 = memref.load %arg1[%c187] : memref<425xf32, #tpu.memory_space<smem>>
    %1593 = vector.broadcast %1592 : f32 to vector<2x1x2x3xf32>
    %1594 = arith.mulf %1591, %1593 : vector<2x1x2x3xf32>
    %1595 = arith.addf %1562, %1594 : vector<2x1x2x3xf32>
    %c219 = arith.constant 219 : index
    %1596 = memref.load %arg1[%c219] : memref<425xf32, #tpu.memory_space<smem>>
    %1597 = vector.broadcast %1596 : f32 to vector<2x1x2x3xf32>
    %1598 = arith.mulf %1591, %1597 : vector<2x1x2x3xf32>
    %1599 = arith.addf %1566, %1598 : vector<2x1x2x3xf32>
    %c251 = arith.constant 251 : index
    %1600 = memref.load %arg1[%c251] : memref<425xf32, #tpu.memory_space<smem>>
    %1601 = vector.broadcast %1600 : f32 to vector<2x1x2x3xf32>
    %1602 = arith.mulf %1591, %1601 : vector<2x1x2x3xf32>
    %1603 = arith.addf %1570, %1602 : vector<2x1x2x3xf32>
    %c283 = arith.constant 283 : index
    %1604 = memref.load %arg1[%c283] : memref<425xf32, #tpu.memory_space<smem>>
    %1605 = vector.broadcast %1604 : f32 to vector<2x1x2x3xf32>
    %1606 = arith.mulf %1591, %1605 : vector<2x1x2x3xf32>
    %1607 = arith.addf %1574, %1606 : vector<2x1x2x3xf32>
    %c315 = arith.constant 315 : index
    %1608 = memref.load %arg1[%c315] : memref<425xf32, #tpu.memory_space<smem>>
    %1609 = vector.broadcast %1608 : f32 to vector<2x1x2x3xf32>
    %1610 = arith.mulf %1591, %1609 : vector<2x1x2x3xf32>
    %1611 = arith.addf %1578, %1610 : vector<2x1x2x3xf32>
    %c347 = arith.constant 347 : index
    %1612 = memref.load %arg1[%c347] : memref<425xf32, #tpu.memory_space<smem>>
    %1613 = vector.broadcast %1612 : f32 to vector<2x1x2x3xf32>
    %1614 = arith.mulf %1591, %1613 : vector<2x1x2x3xf32>
    %1615 = arith.addf %1582, %1614 : vector<2x1x2x3xf32>
    %c379 = arith.constant 379 : index
    %1616 = memref.load %arg1[%c379] : memref<425xf32, #tpu.memory_space<smem>>
    %1617 = vector.broadcast %1616 : f32 to vector<2x1x2x3xf32>
    %1618 = arith.mulf %1591, %1617 : vector<2x1x2x3xf32>
    %1619 = arith.addf %1586, %1618 : vector<2x1x2x3xf32>
    %c411 = arith.constant 411 : index
    %1620 = memref.load %arg1[%c411] : memref<425xf32, #tpu.memory_space<smem>>
    %1621 = vector.broadcast %1620 : f32 to vector<2x1x2x3xf32>
    %1622 = arith.mulf %1591, %1621 : vector<2x1x2x3xf32>
    %1623 = arith.addf %1590, %1622 : vector<2x1x2x3xf32>
    %1624 = vector.extract_strided_slice %683 {offsets = [0, 7, 0, 0], sizes = [2, 1, 2, 3], strides = [1, 1, 1, 1]} : vector<2x8x3x4xf32> to vector<2x1x2x3xf32>
    %c188 = arith.constant 188 : index
    %1625 = memref.load %arg1[%c188] : memref<425xf32, #tpu.memory_space<smem>>
    %1626 = vector.broadcast %1625 : f32 to vector<2x1x2x3xf32>
    %1627 = arith.mulf %1624, %1626 : vector<2x1x2x3xf32>
    %1628 = arith.addf %1595, %1627 : vector<2x1x2x3xf32>
    %c220 = arith.constant 220 : index
    %1629 = memref.load %arg1[%c220] : memref<425xf32, #tpu.memory_space<smem>>
    %1630 = vector.broadcast %1629 : f32 to vector<2x1x2x3xf32>
    %1631 = arith.mulf %1624, %1630 : vector<2x1x2x3xf32>
    %1632 = arith.addf %1599, %1631 : vector<2x1x2x3xf32>
    %c252 = arith.constant 252 : index
    %1633 = memref.load %arg1[%c252] : memref<425xf32, #tpu.memory_space<smem>>
    %1634 = vector.broadcast %1633 : f32 to vector<2x1x2x3xf32>
    %1635 = arith.mulf %1624, %1634 : vector<2x1x2x3xf32>
    %1636 = arith.addf %1603, %1635 : vector<2x1x2x3xf32>
    %c284 = arith.constant 284 : index
    %1637 = memref.load %arg1[%c284] : memref<425xf32, #tpu.memory_space<smem>>
    %1638 = vector.broadcast %1637 : f32 to vector<2x1x2x3xf32>
    %1639 = arith.mulf %1624, %1638 : vector<2x1x2x3xf32>
    %1640 = arith.addf %1607, %1639 : vector<2x1x2x3xf32>
    %c316 = arith.constant 316 : index
    %1641 = memref.load %arg1[%c316] : memref<425xf32, #tpu.memory_space<smem>>
    %1642 = vector.broadcast %1641 : f32 to vector<2x1x2x3xf32>
    %1643 = arith.mulf %1624, %1642 : vector<2x1x2x3xf32>
    %1644 = arith.addf %1611, %1643 : vector<2x1x2x3xf32>
    %c348 = arith.constant 348 : index
    %1645 = memref.load %arg1[%c348] : memref<425xf32, #tpu.memory_space<smem>>
    %1646 = vector.broadcast %1645 : f32 to vector<2x1x2x3xf32>
    %1647 = arith.mulf %1624, %1646 : vector<2x1x2x3xf32>
    %1648 = arith.addf %1615, %1647 : vector<2x1x2x3xf32>
    %c380 = arith.constant 380 : index
    %1649 = memref.load %arg1[%c380] : memref<425xf32, #tpu.memory_space<smem>>
    %1650 = vector.broadcast %1649 : f32 to vector<2x1x2x3xf32>
    %1651 = arith.mulf %1624, %1650 : vector<2x1x2x3xf32>
    %1652 = arith.addf %1619, %1651 : vector<2x1x2x3xf32>
    %c412 = arith.constant 412 : index
    %1653 = memref.load %arg1[%c412] : memref<425xf32, #tpu.memory_space<smem>>
    %1654 = vector.broadcast %1653 : f32 to vector<2x1x2x3xf32>
    %1655 = arith.mulf %1624, %1654 : vector<2x1x2x3xf32>
    %1656 = arith.addf %1623, %1655 : vector<2x1x2x3xf32>
    %1657 = vector.extract_strided_slice %683 {offsets = [0, 7, 0, 1], sizes = [2, 1, 2, 3], strides = [1, 1, 1, 1]} : vector<2x8x3x4xf32> to vector<2x1x2x3xf32>
    %c189 = arith.constant 189 : index
    %1658 = memref.load %arg1[%c189] : memref<425xf32, #tpu.memory_space<smem>>
    %1659 = vector.broadcast %1658 : f32 to vector<2x1x2x3xf32>
    %1660 = arith.mulf %1657, %1659 : vector<2x1x2x3xf32>
    %1661 = arith.addf %1628, %1660 : vector<2x1x2x3xf32>
    %c221 = arith.constant 221 : index
    %1662 = memref.load %arg1[%c221] : memref<425xf32, #tpu.memory_space<smem>>
    %1663 = vector.broadcast %1662 : f32 to vector<2x1x2x3xf32>
    %1664 = arith.mulf %1657, %1663 : vector<2x1x2x3xf32>
    %1665 = arith.addf %1632, %1664 : vector<2x1x2x3xf32>
    %c253 = arith.constant 253 : index
    %1666 = memref.load %arg1[%c253] : memref<425xf32, #tpu.memory_space<smem>>
    %1667 = vector.broadcast %1666 : f32 to vector<2x1x2x3xf32>
    %1668 = arith.mulf %1657, %1667 : vector<2x1x2x3xf32>
    %1669 = arith.addf %1636, %1668 : vector<2x1x2x3xf32>
    %c285 = arith.constant 285 : index
    %1670 = memref.load %arg1[%c285] : memref<425xf32, #tpu.memory_space<smem>>
    %1671 = vector.broadcast %1670 : f32 to vector<2x1x2x3xf32>
    %1672 = arith.mulf %1657, %1671 : vector<2x1x2x3xf32>
    %1673 = arith.addf %1640, %1672 : vector<2x1x2x3xf32>
    %c317 = arith.constant 317 : index
    %1674 = memref.load %arg1[%c317] : memref<425xf32, #tpu.memory_space<smem>>
    %1675 = vector.broadcast %1674 : f32 to vector<2x1x2x3xf32>
    %1676 = arith.mulf %1657, %1675 : vector<2x1x2x3xf32>
    %1677 = arith.addf %1644, %1676 : vector<2x1x2x3xf32>
    %c349 = arith.constant 349 : index
    %1678 = memref.load %arg1[%c349] : memref<425xf32, #tpu.memory_space<smem>>
    %1679 = vector.broadcast %1678 : f32 to vector<2x1x2x3xf32>
    %1680 = arith.mulf %1657, %1679 : vector<2x1x2x3xf32>
    %1681 = arith.addf %1648, %1680 : vector<2x1x2x3xf32>
    %c381 = arith.constant 381 : index
    %1682 = memref.load %arg1[%c381] : memref<425xf32, #tpu.memory_space<smem>>
    %1683 = vector.broadcast %1682 : f32 to vector<2x1x2x3xf32>
    %1684 = arith.mulf %1657, %1683 : vector<2x1x2x3xf32>
    %1685 = arith.addf %1652, %1684 : vector<2x1x2x3xf32>
    %c413 = arith.constant 413 : index
    %1686 = memref.load %arg1[%c413] : memref<425xf32, #tpu.memory_space<smem>>
    %1687 = vector.broadcast %1686 : f32 to vector<2x1x2x3xf32>
    %1688 = arith.mulf %1657, %1687 : vector<2x1x2x3xf32>
    %1689 = arith.addf %1656, %1688 : vector<2x1x2x3xf32>
    %1690 = vector.extract_strided_slice %683 {offsets = [0, 7, 1, 0], sizes = [2, 1, 2, 3], strides = [1, 1, 1, 1]} : vector<2x8x3x4xf32> to vector<2x1x2x3xf32>
    %c190 = arith.constant 190 : index
    %1691 = memref.load %arg1[%c190] : memref<425xf32, #tpu.memory_space<smem>>
    %1692 = vector.broadcast %1691 : f32 to vector<2x1x2x3xf32>
    %1693 = arith.mulf %1690, %1692 : vector<2x1x2x3xf32>
    %1694 = arith.addf %1661, %1693 : vector<2x1x2x3xf32>
    %c222 = arith.constant 222 : index
    %1695 = memref.load %arg1[%c222] : memref<425xf32, #tpu.memory_space<smem>>
    %1696 = vector.broadcast %1695 : f32 to vector<2x1x2x3xf32>
    %1697 = arith.mulf %1690, %1696 : vector<2x1x2x3xf32>
    %1698 = arith.addf %1665, %1697 : vector<2x1x2x3xf32>
    %c254 = arith.constant 254 : index
    %1699 = memref.load %arg1[%c254] : memref<425xf32, #tpu.memory_space<smem>>
    %1700 = vector.broadcast %1699 : f32 to vector<2x1x2x3xf32>
    %1701 = arith.mulf %1690, %1700 : vector<2x1x2x3xf32>
    %1702 = arith.addf %1669, %1701 : vector<2x1x2x3xf32>
    %c286 = arith.constant 286 : index
    %1703 = memref.load %arg1[%c286] : memref<425xf32, #tpu.memory_space<smem>>
    %1704 = vector.broadcast %1703 : f32 to vector<2x1x2x3xf32>
    %1705 = arith.mulf %1690, %1704 : vector<2x1x2x3xf32>
    %1706 = arith.addf %1673, %1705 : vector<2x1x2x3xf32>
    %c318 = arith.constant 318 : index
    %1707 = memref.load %arg1[%c318] : memref<425xf32, #tpu.memory_space<smem>>
    %1708 = vector.broadcast %1707 : f32 to vector<2x1x2x3xf32>
    %1709 = arith.mulf %1690, %1708 : vector<2x1x2x3xf32>
    %1710 = arith.addf %1677, %1709 : vector<2x1x2x3xf32>
    %c350 = arith.constant 350 : index
    %1711 = memref.load %arg1[%c350] : memref<425xf32, #tpu.memory_space<smem>>
    %1712 = vector.broadcast %1711 : f32 to vector<2x1x2x3xf32>
    %1713 = arith.mulf %1690, %1712 : vector<2x1x2x3xf32>
    %1714 = arith.addf %1681, %1713 : vector<2x1x2x3xf32>
    %c382 = arith.constant 382 : index
    %1715 = memref.load %arg1[%c382] : memref<425xf32, #tpu.memory_space<smem>>
    %1716 = vector.broadcast %1715 : f32 to vector<2x1x2x3xf32>
    %1717 = arith.mulf %1690, %1716 : vector<2x1x2x3xf32>
    %1718 = arith.addf %1685, %1717 : vector<2x1x2x3xf32>
    %c414 = arith.constant 414 : index
    %1719 = memref.load %arg1[%c414] : memref<425xf32, #tpu.memory_space<smem>>
    %1720 = vector.broadcast %1719 : f32 to vector<2x1x2x3xf32>
    %1721 = arith.mulf %1690, %1720 : vector<2x1x2x3xf32>
    %1722 = arith.addf %1689, %1721 : vector<2x1x2x3xf32>
    %1723 = vector.extract_strided_slice %683 {offsets = [0, 7, 1, 1], sizes = [2, 1, 2, 3], strides = [1, 1, 1, 1]} : vector<2x8x3x4xf32> to vector<2x1x2x3xf32>
    %c191 = arith.constant 191 : index
    %1724 = memref.load %arg1[%c191] : memref<425xf32, #tpu.memory_space<smem>>
    %1725 = vector.broadcast %1724 : f32 to vector<2x1x2x3xf32>
    %1726 = arith.mulf %1723, %1725 : vector<2x1x2x3xf32>
    %1727 = arith.addf %1694, %1726 : vector<2x1x2x3xf32>
    %c223 = arith.constant 223 : index
    %1728 = memref.load %arg1[%c223] : memref<425xf32, #tpu.memory_space<smem>>
    %1729 = vector.broadcast %1728 : f32 to vector<2x1x2x3xf32>
    %1730 = arith.mulf %1723, %1729 : vector<2x1x2x3xf32>
    %1731 = arith.addf %1698, %1730 : vector<2x1x2x3xf32>
    %c255 = arith.constant 255 : index
    %1732 = memref.load %arg1[%c255] : memref<425xf32, #tpu.memory_space<smem>>
    %1733 = vector.broadcast %1732 : f32 to vector<2x1x2x3xf32>
    %1734 = arith.mulf %1723, %1733 : vector<2x1x2x3xf32>
    %1735 = arith.addf %1702, %1734 : vector<2x1x2x3xf32>
    %c287 = arith.constant 287 : index
    %1736 = memref.load %arg1[%c287] : memref<425xf32, #tpu.memory_space<smem>>
    %1737 = vector.broadcast %1736 : f32 to vector<2x1x2x3xf32>
    %1738 = arith.mulf %1723, %1737 : vector<2x1x2x3xf32>
    %1739 = arith.addf %1706, %1738 : vector<2x1x2x3xf32>
    %c319 = arith.constant 319 : index
    %1740 = memref.load %arg1[%c319] : memref<425xf32, #tpu.memory_space<smem>>
    %1741 = vector.broadcast %1740 : f32 to vector<2x1x2x3xf32>
    %1742 = arith.mulf %1723, %1741 : vector<2x1x2x3xf32>
    %1743 = arith.addf %1710, %1742 : vector<2x1x2x3xf32>
    %c351 = arith.constant 351 : index
    %1744 = memref.load %arg1[%c351] : memref<425xf32, #tpu.memory_space<smem>>
    %1745 = vector.broadcast %1744 : f32 to vector<2x1x2x3xf32>
    %1746 = arith.mulf %1723, %1745 : vector<2x1x2x3xf32>
    %1747 = arith.addf %1714, %1746 : vector<2x1x2x3xf32>
    %c383 = arith.constant 383 : index
    %1748 = memref.load %arg1[%c383] : memref<425xf32, #tpu.memory_space<smem>>
    %1749 = vector.broadcast %1748 : f32 to vector<2x1x2x3xf32>
    %1750 = arith.mulf %1723, %1749 : vector<2x1x2x3xf32>
    %1751 = arith.addf %1718, %1750 : vector<2x1x2x3xf32>
    %c415 = arith.constant 415 : index
    %1752 = memref.load %arg1[%c415] : memref<425xf32, #tpu.memory_space<smem>>
    %1753 = vector.broadcast %1752 : f32 to vector<2x1x2x3xf32>
    %1754 = arith.mulf %1723, %1753 : vector<2x1x2x3xf32>
    %1755 = arith.addf %1722, %1754 : vector<2x1x2x3xf32>
    %cst_19 = arith.constant 0.000000e+00 : f32
    %1756 = vector.broadcast %cst_19 : f32 to vector<2x1x2x3xf32>
    %1757 = arith.maximumf %1727, %1756 : vector<2x1x2x3xf32>
    %cst_20 = arith.constant 0.000000e+00 : f32
    %1758 = vector.broadcast %cst_20 : f32 to vector<2x1x2x3xf32>
    %1759 = arith.maximumf %1731, %1758 : vector<2x1x2x3xf32>
    %cst_21 = arith.constant 0.000000e+00 : f32
    %1760 = vector.broadcast %cst_21 : f32 to vector<2x1x2x3xf32>
    %1761 = arith.maximumf %1735, %1760 : vector<2x1x2x3xf32>
    %cst_22 = arith.constant 0.000000e+00 : f32
    %1762 = vector.broadcast %cst_22 : f32 to vector<2x1x2x3xf32>
    %1763 = arith.maximumf %1739, %1762 : vector<2x1x2x3xf32>
    %cst_23 = arith.constant 0.000000e+00 : f32
    %1764 = vector.broadcast %cst_23 : f32 to vector<2x1x2x3xf32>
    %1765 = arith.maximumf %1743, %1764 : vector<2x1x2x3xf32>
    %cst_24 = arith.constant 0.000000e+00 : f32
    %1766 = vector.broadcast %cst_24 : f32 to vector<2x1x2x3xf32>
    %1767 = arith.maximumf %1747, %1766 : vector<2x1x2x3xf32>
    %cst_25 = arith.constant 0.000000e+00 : f32
    %1768 = vector.broadcast %cst_25 : f32 to vector<2x1x2x3xf32>
    %1769 = arith.maximumf %1751, %1768 : vector<2x1x2x3xf32>
    %cst_26 = arith.constant 0.000000e+00 : f32
    %1770 = vector.broadcast %cst_26 : f32 to vector<2x1x2x3xf32>
    %1771 = arith.maximumf %1755, %1770 : vector<2x1x2x3xf32>
    %1772 = tpu.concatenate %1757, %1759, %1761, %1763, %1765, %1767, %1769, %1771 in 1 : vector<2x1x2x3xf32>, vector<2x1x2x3xf32>, vector<2x1x2x3xf32>, vector<2x1x2x3xf32>, vector<2x1x2x3xf32>, vector<2x1x2x3xf32>, vector<2x1x2x3xf32>, vector<2x1x2x3xf32> -> vector<2x8x2x3xf32>
    %c0_27 = arith.constant 0 : index
    %c0_28 = arith.constant 0 : index
    %c0_29 = arith.constant 0 : index
    %c0_30 = arith.constant 0 : index
    %1773 = vector.load %arg2[%c0_27, %c0_28, %c0_29, %c0_30] : memref<1x8x2x3xf32, #tpu.memory_space<vmem>>, vector<1x8x2x3xf32>
    %1774 = vector.broadcast %1773 : vector<1x8x2x3xf32> to vector<2x8x2x3xf32>
    %1775 = arith.mulf %1772, %1774 : vector<2x8x2x3xf32>
    %cst_31 = arith.constant dense<0.000000e+00> : vector<2x8x2xf32>
    %1776 = vector.multi_reduction <add>, %1775, %cst_31 [3] : vector<2x8x2x3xf32> to vector<2x8x2xf32>
    %1777 = vector.shape_cast %1776 : vector<2x8x2xf32> to vector<2x8x2x1xf32>
    %cst_32 = arith.constant dense<0.000000e+00> : vector<2x8x1xf32>
    %1778 = vector.multi_reduction <add>, %1777, %cst_32 [2] : vector<2x8x2x1xf32> to vector<2x8x1xf32>
    %1779 = vector.shape_cast %1778 : vector<2x8x1xf32> to vector<2x8x1x1xf32>
    %cst_33 = arith.constant dense<0.000000e+00> : vector<2x1x1xf32>
    %1780 = vector.multi_reduction <add>, %1779, %cst_33 [1] : vector<2x8x1x1xf32> to vector<2x1x1xf32>
    %1781 = vector.shape_cast %1780 : vector<2x1x1xf32> to vector<2x1x1x1xf32>
    %c424 = arith.constant 424 : index
    %1782 = memref.load %arg1[%c424] : memref<425xf32, #tpu.memory_space<smem>>
    %1783 = vector.broadcast %1782 : f32 to vector<2x1x1x1xf32>
    %1784 = arith.addf %1781, %1783 : vector<2x1x1x1xf32>
    %c0_34 = arith.constant 0 : index
    %c0_35 = arith.constant 0 : index
    %c0_36 = arith.constant 0 : index
    %c0_37 = arith.constant 0 : index
    %1785 = vector.load %arg3[%c0_34, %c0_35, %c0_36, %c0_37] : memref<2x1x1x1xf32, #tpu.memory_space<vmem>>, vector<2x1x1x1xf32>
    tpu.vector_store %arg3[%c0_34, %c0_35, %c0_36, %c0_37], %1784 {strides = array<i32>} : memref<2x1x1x1xf32, #tpu.memory_space<vmem>>, vector<2x1x1x1xf32>,
    return
  }
}

</mosaic_0001>

<llo_original>
// kernel: _lambda_.1
$region0: #{_lambda_.1}
  #allocation0 [shape = 'u32[]', space=smem, size = 0x4, offset = 0x4, fixed_abs, tag = 'smem constant byte address 0x4 - core index']
  #allocation1 [shape = 'u32[144,128]{1,0:T(1,128)}', space=vmem, size = 0x12000, scoped, tag = 'internal scratch']
  %s0 = inlined_call_operand.vmem [shape: f32[2,1,7,9], index: 0, kind: input, shape index: {}]
  %s1 = inlined_call_operand.vmem [shape: f32[425], index: 1, kind: input, shape index: {}]
  %s2 = inlined_call_operand.vmem [shape: f32[1,8,2,3], index: 2, kind: input, shape index: {}]
  %s3 = inlined_call_operand.vmem [shape: f32[2,1,1,1], index: 3, kind: output, shape index: {}]
  %s4 = sld [smem:[#allocation0]]
  $region26: #{_lambda_.1} parent=0
    _
  %s6 = ssub.s32 1, %s4
  %s7 = scalar_select 0, %s6, %s4
  $region1: #{_lambda_.1} parent=0
    #allocation2 [shape = 'u8[2048]{0}', space=smem, size = 0x800, scoped, tag = 'input window, operand 1, single buffered']
    #allocation3 [shape = 's32[1]{0}', space=sflag, size = 0x4, scoped, tag = 'scoped memory for _lambda_.1']
    %8 = vsyncpa [#allocation3], 0
    // Predicated region
    $region2: #{_lambda_.1} parent=1 // pred_check
      _
    $region3: #{_lambda_.1} parent=1 // pred_check_branch
      %10 = sbr.rel (0) target = $region5
    $region4: #{_lambda_.1} parent=1 // pred_region
      _
    $region5: #{_lambda_.1} parent=1 // pred_fallthru
      _
    // Predicated region
    $region6: #{_lambda_.1} parent=1 // pred_check
      _
    $region7: #{_lambda_.1} parent=1 // pred_check_branch
      %12 = sbr.rel (0) target = $region9
    $region8: #{_lambda_.1} parent=1 // pred_region
      %s14 = ssub.s32 64, 64
      %15 = vsyncadd [#allocation3], %s14
      %s17 = sshll.u32 %s1, 4
      %s18 = int_to_ptr.vmem [resolvable:$true] %s17
      %20 = dma.vmem_to_smem %s18, 64, [#allocation2], [#allocation3]
    $region9: #{_lambda_.1} parent=1 // pred_fallthru
      _
    // Predicated region
    $region10: #{_lambda_.1} parent=1 // pred_check
      _
    $region11: #{_lambda_.1} parent=1 // pred_check_branch
      %22 = sbr.rel (0) target = $region13
    $region12: #{_lambda_.1} parent=1 // pred_region
      _
    $region13: #{_lambda_.1} parent=1 // pred_fallthru
      _
    // Predicated region
    $region14: #{_lambda_.1} parent=1 // pred_check
      _
    $region15: #{_lambda_.1} parent=1 // pred_check_branch
      %24 = sbr.rel (0) target = $region17
    $region16: #{_lambda_.1} parent=1 // pred_region
      %25 = dma.done [#allocation3], 64
    $region17: #{_lambda_.1} parent=1 // pred_fallthru
      _
    %26 = sfence
    %v27 = vld [vmem:[%s0] sm:$0x7f]
    %v28 = vld [vmem:[%s0 + $0x8] sm:$0x7f]
    %s29 = sld [smem:[#allocation2 + $0x10]]
    %v30 = vstv %s29
    %s31 = sld [smem:[#allocation2 + $0x11]]
    %v32 = vstv %s31
    %s33 = sld [smem:[#allocation2 + $0x12]]
    %v34 = vstv %s33
    %s35 = sld [smem:[#allocation2 + $0x13]]
    %v36 = vstv %s35
    %s37 = sld [smem:[#allocation2 + $0x14]]
    %v38 = vstv %s37
    %s39 = sld [smem:[#allocation2 + $0x15]]
    %v40 = vstv %s39
    %s41 = sld [smem:[#allocation2 + $0x16]]
    %v42 = vstv %s41
    %s43 = sld [smem:[#allocation2 + $0x17]]
    %v44 = vstv %s43
    %s45 = sld [smem:[#allocation2]]
    %v46 = vstv %s45
    %v47 = vmul.f32 %v27, %v46
    %v48 = vmul.f32 %v28, %v46
    %v49 = vadd.f32 %v30, %v47
    %v50 = vadd.f32 %v30, %v48
    %s51 = sld [smem:[#allocation2 + $0x2]]
    %v52 = vstv %s51
    %v53 = vmul.f32 %v27, %v52
    %v54 = vmul.f32 %v28, %v52
    %v55 = vadd.f32 %v32, %v53
    %v56 = vadd.f32 %v32, %v54
    %s57 = sld [smem:[#allocation2 + $0x4]]
    %v58 = vstv %s57
    %v59 = vmul.f32 %v27, %v58
    %v60 = vmul.f32 %v28, %v58
    %v61 = vadd.f32 %v34, %v59
    %v62 = vadd.f32 %v34, %v60
    %s63 = sld [smem:[#allocation2 + $0x6]]
    %v64 = vstv %s63
    %v65 = vmul.f32 %v27, %v64
    %v66 = vmul.f32 %v28, %v64
    %v67 = vadd.f32 %v36, %v65
    %v68 = vadd.f32 %v36, %v66
    %s69 = sld [smem:[#allocation2 + $0x8]]
    %v70 = vstv %s69
    %v71 = vmul.f32 %v27, %v70
    %v72 = vmul.f32 %v28, %v70
    %v73 = vadd.f32 %v38, %v71
    %v74 = vadd.f32 %v38, %v72
    %s75 = sld [smem:[#allocation2 + $0xa]]
    %v76 = vstv %s75
    %v77 = vmul.f32 %v27, %v76
    %v78 = vmul.f32 %v28, %v76
    %v79 = vadd.f32 %v40, %v77
    %v80 = vadd.f32 %v40, %v78
    %s81 = sld [smem:[#allocation2 + $0xc]]
    %v82 = vstv %s81
    %v83 = vmul.f32 %v27, %v82
    %v84 = vmul.f32 %v28, %v82
    %v85 = vadd.f32 %v42, %v83
    %v86 = vadd.f32 %v42, %v84
    %s87 = sld [smem:[#allocation2 + $0xe]]
    %v88 = vstv %s87
    %v89 = vmul.f32 %v27, %v88
    %v90 = vmul.f32 %v28, %v88
    %v91 = vadd.f32 %v44, %v89
    %v92 = vadd.f32 %v44, %v90
    %s93 = sld [smem:[#allocation2 + $0x1]]
    %v94 = vstv %s93
    %v95 = vmul.f32 %v27, %v94
    %v96 = vmul.f32 %v28, %v94
    %v99 = vrot.slane %v95, 1
    %v100 = vrot.slane %v96, 1
    %v103 = vadd.f32 %v49, %v99
    %v104 = vadd.f32 %v50, %v100
    %s105 = sld [smem:[#allocation2 + $0x3]]
    %v106 = vstv %s105
    %v107 = vmul.f32 %v27, %v106
    %v108 = vmul.f32 %v28, %v106
    %v111 = vrot.slane %v107, 1
    %v112 = vrot.slane %v108, 1
    %v115 = vadd.f32 %v55, %v111
    %v116 = vadd.f32 %v56, %v112
    %s117 = sld [smem:[#allocation2 + $0x5]]
    %v118 = vstv %s117
    %v119 = vmul.f32 %v27, %v118
    %v120 = vmul.f32 %v28, %v118
    %v123 = vrot.slane %v119, 1
    %v124 = vrot.slane %v120, 1
    %v127 = vadd.f32 %v61, %v123
    %v128 = vadd.f32 %v62, %v124
    %s129 = sld [smem:[#allocation2 + $0x7]]
    %v130 = vstv %s129
    %v131 = vmul.f32 %v27, %v130
    %v132 = vmul.f32 %v28, %v130
    %v135 = vrot.slane %v131, 1
    %v136 = vrot.slane %v132, 1
    %v139 = vadd.f32 %v67, %v135
    %v140 = vadd.f32 %v68, %v136
    %s141 = sld [smem:[#allocation2 + $0x9]]
    %v142 = vstv %s141
    %v143 = vmul.f32 %v27, %v142
    %v144 = vmul.f32 %v28, %v142
    %v147 = vrot.slane %v143, 1
    %v148 = vrot.slane %v144, 1
    %v151 = vadd.f32 %v73, %v147
    %v152 = vadd.f32 %v74, %v148
    %s153 = sld [smem:[#allocation2 + $0xb]]
    %v154 = vstv %s153
    %v155 = vmul.f32 %v27, %v154
    %v156 = vmul.f32 %v28, %v154
    %v159 = vrot.slane %v155, 1
    %v160 = vrot.slane %v156, 1
    %v163 = vadd.f32 %v79, %v159
    %v164 = vadd.f32 %v80, %v160
    %s165 = sld [smem:[#allocation2 + $0xd]]
    %v166 = vstv %s165
    %v167 = vmul.f32 %v27, %v166
    %v168 = vmul.f32 %v28, %v166
    %v171 = vrot.slane %v167, 1
    %v172 = vrot.slane %v168, 1
    %v175 = vadd.f32 %v85, %v171
    %v176 = vadd.f32 %v86, %v172
    %s177 = sld [smem:[#allocation2 + $0xf]]
    %v178 = vstv %s177
    %v179 = vmul.f32 %v27, %v178
    %v180 = vmul.f32 %v28, %v178
    %v183 = vrot.slane %v179, 1
    %v184 = vrot.slane %v180, 1
    %v187 = vadd.f32 %v91, %v183
    %v188 = vadd.f32 %v92, %v184
    %v189 = vmax.f32 %v103, 0.0
    %v190 = vmax.f32 %v104, 0.0
    %v191 = vmax.f32 %v115, 0.0
    %v192 = vmax.f32 %v116, 0.0
    %v193 = vmax.f32 %v127, 0.0
    %v194 = vmax.f32 %v128, 0.0
    %v195 = vmax.f32 %v139, 0.0
    %v196 = vmax.f32 %v140, 0.0
    %v197 = vmax.f32 %v151, 0.0
    %v198 = vmax.f32 %v152, 0.0
    %v199 = vmax.f32 %v163, 0.0
    %v200 = vmax.f32 %v164, 0.0
    %v201 = vmax.f32 %v175, 0.0
    %v202 = vmax.f32 %v176, 0.0
    %v203 = vmax.f32 %v187, 0.0
    %v204 = vmax.f32 %v188, 0.0
    %s205 = sld [smem:[#allocation2 + $0x98]]
    %v206 = vstv %s205
    %s207 = sld [smem:[#allocation2 + $0x99]]
    %v208 = vstv %s207
    %s209 = sld [smem:[#allocation2 + $0x9a]]
    %v210 = vstv %s209
    %s211 = sld [smem:[#allocation2 + $0x9b]]
    %v212 = vstv %s211
    %s213 = sld [smem:[#allocation2 + $0x9c]]
    %v214 = vstv %s213
    %s215 = sld [smem:[#allocation2 + $0x9d]]
    %v216 = vstv %s215
    %s217 = sld [smem:[#allocation2 + $0x9e]]
    %v218 = vstv %s217
    %s219 = sld [smem:[#allocation2 + $0x9f]]
    %v220 = vstv %s219
    %s221 = sld [smem:[#allocation2 + $0x18]]
    %v222 = vstv %s221
    %v223 = vmul.f32 %v189, %v222
    %v224 = vmul.f32 %v190, %v222
    %v225 = vadd.f32 %v206, %v223
    %v226 = vadd.f32 %v206, %v224
    %s227 = sld [smem:[#allocation2 + $0x28]]
    %v228 = vstv %s227
    %v229 = vmul.f32 %v189, %v228
    %v230 = vmul.f32 %v190, %v228
    %v231 = vadd.f32 %v208, %v229
    %v232 = vadd.f32 %v208, %v230
    %s233 = sld [smem:[#allocation2 + $0x38]]
    %v234 = vstv %s233
    %v235 = vmul.f32 %v189, %v234
    %v236 = vmul.f32 %v190, %v234
    %v237 = vadd.f32 %v210, %v235
    %v238 = vadd.f32 %v210, %v236
    %s239 = sld [smem:[#allocation2 + $0x48]]
    %v240 = vstv %s239
    %v241 = vmul.f32 %v189, %v240
    %v242 = vmul.f32 %v190, %v240
    %v243 = vadd.f32 %v212, %v241
    %v244 = vadd.f32 %v212, %v242
    %s245 = sld [smem:[#allocation2 + $0x58]]
    %v246 = vstv %s245
    %v247 = vmul.f32 %v189, %v246
    %v248 = vmul.f32 %v190, %v246
    %v249 = vadd.f32 %v214, %v247
    %v250 = vadd.f32 %v214, %v248
    %s251 = sld [smem:[#allocation2 + $0x68]]
    %v252 = vstv %s251
    %v253 = vmul.f32 %v189, %v252
    %v254 = vmul.f32 %v190, %v252
    %v255 = vadd.f32 %v216, %v253
    %v256 = vadd.f32 %v216, %v254
    %s257 = sld [smem:[#allocation2 + $0x78]]
    %v258 = vstv %s257
    %v259 = vmul.f32 %v189, %v258
    %v260 = vmul.f32 %v190, %v258
    %v261 = vadd.f32 %v218, %v259
    %v262 = vadd.f32 %v218, %v260
    %s263 = sld [smem:[#allocation2 + $0x88]]
    %v264 = vstv %s263
    %v265 = vmul.f32 %v189, %v264
    %v266 = vmul.f32 %v190, %v264
    %v267 = vadd.f32 %v220, %v265
    %v268 = vadd.f32 %v220, %v266
    %s269 = sld [smem:[#allocation2 + $0x19]]
    %v270 = vstv %s269
    %v271 = vmul.f32 %v189, %v270
    %v272 = vmul.f32 %v190, %v270
    %275 = vrot.lane.b32.xlu0 %v271, 127
    %v276 = vpop.permute.xlu0 %275
    %277 = vrot.lane.b32.xlu0 %v272, 127
    %v278 = vpop.permute.xlu0 %277
    %v281 = vadd.f32 %v225, %v276
    %v282 = vadd.f32 %v226, %v278
    %s283 = sld [smem:[#allocation2 + $0x29]]
    %v284 = vstv %s283
    %v285 = vmul.f32 %v189, %v284
    %v286 = vmul.f32 %v190, %v284
    %289 = vrot.lane.b32.xlu0 %v285, 127
    %v290 = vpop.permute.xlu0 %289
    %291 = vrot.lane.b32.xlu0 %v286, 127
    %v292 = vpop.permute.xlu0 %291
    %v295 = vadd.f32 %v231, %v290
    %v296 = vadd.f32 %v232, %v292
    %s297 = sld [smem:[#allocation2 + $0x39]]
    %v298 = vstv %s297
    %v299 = vmul.f32 %v189, %v298
    %v300 = vmul.f32 %v190, %v298
    %303 = vrot.lane.b32.xlu0 %v299, 127
    %v304 = vpop.permute.xlu0 %303
    %305 = vrot.lane.b32.xlu0 %v300, 127
    %v306 = vpop.permute.xlu0 %305
    %v309 = vadd.f32 %v237, %v304
    %v310 = vadd.f32 %v238, %v306
    %s311 = sld [smem:[#allocation2 + $0x49]]
    %v312 = vstv %s311
    %v313 = vmul.f32 %v189, %v312
    %v314 = vmul.f32 %v190, %v312
    %317 = vrot.lane.b32.xlu0 %v313, 127
    %v318 = vpop.permute.xlu0 %317
    %319 = vrot.lane.b32.xlu0 %v314, 127
    %v320 = vpop.permute.xlu0 %319
    %v323 = vadd.f32 %v243, %v318
    %v324 = vadd.f32 %v244, %v320
    %s325 = sld [smem:[#allocation2 + $0x59]]
    %v326 = vstv %s325
    %v327 = vmul.f32 %v189, %v326
    %v328 = vmul.f32 %v190, %v326
    %331 = vrot.lane.b32.xlu0 %v327, 127
    %v332 = vpop.permute.xlu0 %331
    %333 = vrot.lane.b32.xlu0 %v328, 127
    %v334 = vpop.permute.xlu0 %333
    %v337 = vadd.f32 %v249, %v332
    %v338 = vadd.f32 %v250, %v334
    %s339 = sld [smem:[#allocation2 + $0x69]]
    %v340 = vstv %s339
    %v341 = vmul.f32 %v189, %v340
    %v342 = vmul.f32 %v190, %v340
    %345 = vrot.lane.b32.xlu0 %v341, 127
    %v346 = vpop.permute.xlu0 %345
    %347 = vrot.lane.b32.xlu0 %v342, 127
    %v348 = vpop.permute.xlu0 %347
    %v351 = vadd.f32 %v255, %v346
    %v352 = vadd.f32 %v256, %v348
    %s353 = sld [smem:[#allocation2 + $0x79]]
    %v354 = vstv %s353
    %v355 = vmul.f32 %v189, %v354
    %v356 = vmul.f32 %v190, %v354
    %359 = vrot.lane.b32.xlu0 %v355, 127
    %v360 = vpop.permute.xlu0 %359
    %361 = vrot.lane.b32.xlu0 %v356, 127
    %v362 = vpop.permute.xlu0 %361
    %v365 = vadd.f32 %v261, %v360
    %v366 = vadd.f32 %v262, %v362
    %s367 = sld [smem:[#allocation2 + $0x89]]
    %v368 = vstv %s367
    %v369 = vmul.f32 %v189, %v368
    %v370 = vmul.f32 %v190, %v368
    %373 = vrot.lane.b32.xlu0 %v369, 127
    %v374 = vpop.permute.xlu0 %373
    %375 = vrot.lane.b32.xlu0 %v370, 127
    %v376 = vpop.permute.xlu0 %375
    %v379 = vadd.f32 %v267, %v374
    %v380 = vadd.f32 %v268, %v376
    %s381 = sld [smem:[#allocation2 + $0x1a]]
    %v382 = vstv %s381
    %v383 = vmul.f32 %v191, %v382
    %v384 = vmul.f32 %v192, %v382
    %v385 = vadd.f32 %v281, %v383
    %v386 = vadd.f32 %v282, %v384
    %s387 = sld [smem:[#allocation2 + $0x2a]]
    %v388 = vstv %s387
    %v389 = vmul.f32 %v191, %v388
    %v390 = vmul.f32 %v192, %v388
    %v391 = vadd.f32 %v295, %v389
    %v392 = vadd.f32 %v296, %v390
    %s393 = sld [smem:[#allocation2 + $0x3a]]
    %v394 = vstv %s393
    %v395 = vmul.f32 %v191, %v394
    %v396 = vmul.f32 %v192, %v394
    %v397 = vadd.f32 %v309, %v395
    %v398 = vadd.f32 %v310, %v396
    %s399 = sld [smem:[#allocation2 + $0x4a]]
    %v400 = vstv %s399
    %v401 = vmul.f32 %v191, %v400
    %v402 = vmul.f32 %v192, %v400
    %v403 = vadd.f32 %v323, %v401
    %v404 = vadd.f32 %v324, %v402
    %s405 = sld [smem:[#allocation2 + $0x5a]]
    %v406 = vstv %s405
    %v407 = vmul.f32 %v191, %v406
    %v408 = vmul.f32 %v192, %v406
    %v409 = vadd.f32 %v337, %v407
    %v410 = vadd.f32 %v338, %v408
    %s411 = sld [smem:[#allocation2 + $0x6a]]
    %v412 = vstv %s411
    %v413 = vmul.f32 %v191, %v412
    %v414 = vmul.f32 %v192, %v412
    %v415 = vadd.f32 %v351, %v413
    %v416 = vadd.f32 %v352, %v414
    %s417 = sld [smem:[#allocation2 + $0x7a]]
    %v418 = vstv %s417
    %v419 = vmul.f32 %v191, %v418
    %v420 = vmul.f32 %v192, %v418
    %v421 = vadd.f32 %v365, %v419
    %v422 = vadd.f32 %v366, %v420
    %s423 = sld [smem:[#allocation2 + $0x8a]]
    %v424 = vstv %s423
    %v425 = vmul.f32 %v191, %v424
    %v426 = vmul.f32 %v192, %v424
    %v427 = vadd.f32 %v379, %v425
    %v428 = vadd.f32 %v380, %v426
    %s429 = sld [smem:[#allocation2 + $0x1b]]
    %v430 = vstv %s429
    %v431 = vmul.f32 %v191, %v430
    %v432 = vmul.f32 %v192, %v430
    %435 = vrot.lane.b32.xlu0 %v431, 127
    %v436 = vpop.permute.xlu0 %435
    %437 = vrot.lane.b32.xlu0 %v432, 127
    %v438 = vpop.permute.xlu0 %437
    %v441 = vadd.f32 %v385, %v436
    %v442 = vadd.f32 %v386, %v438
    %s443 = sld [smem:[#allocation2 + $0x2b]]
    %v444 = vstv %s443
    %v445 = vmul.f32 %v191, %v444
    %v446 = vmul.f32 %v192, %v444
    %449 = vrot.lane.b32.xlu0 %v445, 127
    %v450 = vpop.permute.xlu0 %449
    %451 = vrot.lane.b32.xlu0 %v446, 127
    %v452 = vpop.permute.xlu0 %451
    %v455 = vadd.f32 %v391, %v450
    %v456 = vadd.f32 %v392, %v452
    %s457 = sld [smem:[#allocation2 + $0x3b]]
    %v458 = vstv %s457
    %v459 = vmul.f32 %v191, %v458
    %v460 = vmul.f32 %v192, %v458
    %463 = vrot.lane.b32.xlu0 %v459, 127
    %v464 = vpop.permute.xlu0 %463
    %465 = vrot.lane.b32.xlu0 %v460, 127
    %v466 = vpop.permute.xlu0 %465
    %v469 = vadd.f32 %v397, %v464
    %v470 = vadd.f32 %v398, %v466
    %s471 = sld [smem:[#allocation2 + $0x4b]]
    %v472 = vstv %s471
    %v473 = vmul.f32 %v191, %v472
    %v474 = vmul.f32 %v192, %v472
    %477 = vrot.lane.b32.xlu0 %v473, 127
    %v478 = vpop.permute.xlu0 %477
    %479 = vrot.lane.b32.xlu0 %v474, 127
    %v480 = vpop.permute.xlu0 %479
    %v483 = vadd.f32 %v403, %v478
    %v484 = vadd.f32 %v404, %v480
    %s485 = sld [smem:[#allocation2 + $0x5b]]
    %v486 = vstv %s485
    %v487 = vmul.f32 %v191, %v486
    %v488 = vmul.f32 %v192, %v486
    %491 = vrot.lane.b32.xlu0 %v487, 127
    %v492 = vpop.permute.xlu0 %491
    %493 = vrot.lane.b32.xlu0 %v488, 127
    %v494 = vpop.permute.xlu0 %493
    %v497 = vadd.f32 %v409, %v492
    %v498 = vadd.f32 %v410, %v494
    %s499 = sld [smem:[#allocation2 + $0x6b]]
    %v500 = vstv %s499
    %v501 = vmul.f32 %v191, %v500
    %v502 = vmul.f32 %v192, %v500
    %505 = vrot.lane.b32.xlu0 %v501, 127
    %v506 = vpop.permute.xlu0 %505
    %507 = vrot.lane.b32.xlu0 %v502, 127
    %v508 = vpop.permute.xlu0 %507
    %v511 = vadd.f32 %v415, %v506
    %v512 = vadd.f32 %v416, %v508
    %s513 = sld [smem:[#allocation2 + $0x7b]]
    %v514 = vstv %s513
    %v515 = vmul.f32 %v191, %v514
    %v516 = vmul.f32 %v192, %v514
    %519 = vrot.lane.b32.xlu0 %v515, 127
    %v520 = vpop.permute.xlu0 %519
    %521 = vrot.lane.b32.xlu0 %v516, 127
    %v522 = vpop.permute.xlu0 %521
    %v525 = vadd.f32 %v421, %v520
    %v526 = vadd.f32 %v422, %v522
    %s527 = sld [smem:[#allocation2 + $0x8b]]
    %v528 = vstv %s527
    %v529 = vmul.f32 %v191, %v528
    %v530 = vmul.f32 %v192, %v528
    %533 = vrot.lane.b32.xlu0 %v529, 127
    %v534 = vpop.permute.xlu0 %533
    %535 = vrot.lane.b32.xlu0 %v530, 127
    %v536 = vpop.permute.xlu0 %535
    %v539 = vadd.f32 %v427, %v534
    %v540 = vadd.f32 %v428, %v536
    %s541 = sld [smem:[#allocation2 + $0x1c]]
    %v542 = vstv %s541
    %v543 = vmul.f32 %v193, %v542
    %v544 = vmul.f32 %v194, %v542
    %v545 = vadd.f32 %v441, %v543
    %v546 = vadd.f32 %v442, %v544
    %s547 = sld [smem:[#allocation2 + $0x2c]]
    %v548 = vstv %s547
    %v549 = vmul.f32 %v193, %v548
    %v550 = vmul.f32 %v194, %v548
    %v551 = vadd.f32 %v455, %v549
    %v552 = vadd.f32 %v456, %v550
    %s553 = sld [smem:[#allocation2 + $0x3c]]
    %v554 = vstv %s553
    %v555 = vmul.f32 %v193, %v554
    %v556 = vmul.f32 %v194, %v554
    %v557 = vadd.f32 %v469, %v555
    %v558 = vadd.f32 %v470, %v556
    %s559 = sld [smem:[#allocation2 + $0x4c]]
    %v560 = vstv %s559
    %v561 = vmul.f32 %v193, %v560
    %v562 = vmul.f32 %v194, %v560
    %v563 = vadd.f32 %v483, %v561
    %v564 = vadd.f32 %v484, %v562
    %s565 = sld [smem:[#allocation2 + $0x5c]]
    %v566 = vstv %s565
    %v567 = vmul.f32 %v193, %v566
    %v568 = vmul.f32 %v194, %v566
    %v569 = vadd.f32 %v497, %v567
    %v570 = vadd.f32 %v498, %v568
    %s571 = sld [smem:[#allocation2 + $0x6c]]
    %v572 = vstv %s571
    %v573 = vmul.f32 %v193, %v572
    %v574 = vmul.f32 %v194, %v572
    %v575 = vadd.f32 %v511, %v573
    %v576 = vadd.f32 %v512, %v574
    %s577 = sld [smem:[#allocation2 + $0x7c]]
    %v578 = vstv %s577
    %v579 = vmul.f32 %v193, %v578
    %v580 = vmul.f32 %v194, %v578
    %v581 = vadd.f32 %v525, %v579
    %v582 = vadd.f32 %v526, %v580
    %s583 = sld [smem:[#allocation2 + $0x8c]]
    %v584 = vstv %s583
    %v585 = vmul.f32 %v193, %v584
    %v586 = vmul.f32 %v194, %v584
    %v587 = vadd.f32 %v539, %v585
    %v588 = vadd.f32 %v540, %v586
    %s589 = sld [smem:[#allocation2 + $0x1d]]
    %v590 = vstv %s589
    %v591 = vmul.f32 %v193, %v590
    %v592 = vmul.f32 %v194, %v590
    %595 = vrot.lane.b32.xlu0 %v591, 127
    %v596 = vpop.permute.xlu0 %595
    %597 = vrot.lane.b32.xlu0 %v592, 127
    %v598 = vpop.permute.xlu0 %597
    %v601 = vadd.f32 %v545, %v596
    %v602 = vadd.f32 %v546, %v598
    %s603 = sld [smem:[#allocation2 + $0x2d]]
    %v604 = vstv %s603
    %v605 = vmul.f32 %v193, %v604
    %v606 = vmul.f32 %v194, %v604
    %609 = vrot.lane.b32.xlu0 %v605, 127
    %v610 = vpop.permute.xlu0 %609
    %611 = vrot.lane.b32.xlu0 %v606, 127
    %v612 = vpop.permute.xlu0 %611
    %v615 = vadd.f32 %v551, %v610
    %v616 = vadd.f32 %v552, %v612
    %s617 = sld [smem:[#allocation2 + $0x3d]]
    %v618 = vstv %s617
    %v619 = vmul.f32 %v193, %v618
    %v620 = vmul.f32 %v194, %v618
    %623 = vrot.lane.b32.xlu0 %v619, 127
    %v624 = vpop.permute.xlu0 %623
    %625 = vrot.lane.b32.xlu0 %v620, 127
    %v626 = vpop.permute.xlu0 %625
    %v629 = vadd.f32 %v557, %v624
    %v630 = vadd.f32 %v558, %v626
    %s631 = sld [smem:[#allocation2 + $0x4d]]
    %v632 = vstv %s631
    %v633 = vmul.f32 %v193, %v632
    %v634 = vmul.f32 %v194, %v632
    %637 = vrot.lane.b32.xlu0 %v633, 127
    %v638 = vpop.permute.xlu0 %637
    %639 = vrot.lane.b32.xlu0 %v634, 127
    %v640 = vpop.permute.xlu0 %639
    %v643 = vadd.f32 %v563, %v638
    %v644 = vadd.f32 %v564, %v640
    %s645 = sld [smem:[#allocation2 + $0x5d]]
    %v646 = vstv %s645
    %v647 = vmul.f32 %v193, %v646
    %v648 = vmul.f32 %v194, %v646
    %651 = vrot.lane.b32.xlu0 %v647, 127
    %v652 = vpop.permute.xlu0 %651
    %653 = vrot.lane.b32.xlu0 %v648, 127
    %v654 = vpop.permute.xlu0 %653
    %v657 = vadd.f32 %v569, %v652
    %v658 = vadd.f32 %v570, %v654
    %s659 = sld [smem:[#allocation2 + $0x6d]]
    %v660 = vstv %s659
    %v661 = vmul.f32 %v193, %v660
    %v662 = vmul.f32 %v194, %v660
    %665 = vrot.lane.b32.xlu0 %v661, 127
    %v666 = vpop.permute.xlu0 %665
    %667 = vrot.lane.b32.xlu0 %v662, 127
    %v668 = vpop.permute.xlu0 %667
    %v671 = vadd.f32 %v575, %v666
    %v672 = vadd.f32 %v576, %v668
    %s673 = sld [smem:[#allocation2 + $0x7d]]
    %v674 = vstv %s673
    %v675 = vmul.f32 %v193, %v674
    %v676 = vmul.f32 %v194, %v674
    %679 = vrot.lane.b32.xlu0 %v675, 127
    %v680 = vpop.permute.xlu0 %679
    %681 = vrot.lane.b32.xlu0 %v676, 127
    %v682 = vpop.permute.xlu0 %681
    %v685 = vadd.f32 %v581, %v680
    %v686 = vadd.f32 %v582, %v682
    %s687 = sld [smem:[#allocation2 + $0x8d]]
    %v688 = vstv %s687
    %v689 = vmul.f32 %v193, %v688
    %v690 = vmul.f32 %v194, %v688
    %693 = vrot.lane.b32.xlu0 %v689, 127
    %v694 = vpop.permute.xlu0 %693
    %695 = vrot.lane.b32.xlu0 %v690, 127
    %v696 = vpop.permute.xlu0 %695
    %v699 = vadd.f32 %v587, %v694
    %v700 = vadd.f32 %v588, %v696
    %s701 = sld [smem:[#allocation2 + $0x1e]]
    %v702 = vstv %s701
    %v703 = vmul.f32 %v195, %v702
    %v704 = vmul.f32 %v196, %v702
    %v705 = vadd.f32 %v601, %v703
    %v706 = vadd.f32 %v602, %v704
    %s707 = sld [smem:[#allocation2 + $0x2e]]
    %v708 = vstv %s707
    %v709 = vmul.f32 %v195, %v708
    %v710 = vmul.f32 %v196, %v708
    %v711 = vadd.f32 %v615, %v709
    %v712 = vadd.f32 %v616, %v710
    %s713 = sld [smem:[#allocation2 + $0x3e]]
    %v714 = vstv %s713
    %v715 = vmul.f32 %v195, %v714
    %v716 = vmul.f32 %v196, %v714
    %v717 = vadd.f32 %v629, %v715
    %v718 = vadd.f32 %v630, %v716
    %s719 = sld [smem:[#allocation2 + $0x4e]]
    %v720 = vstv %s719
    %v721 = vmul.f32 %v195, %v720
    %v722 = vmul.f32 %v196, %v720
    %v723 = vadd.f32 %v643, %v721
    %v724 = vadd.f32 %v644, %v722
    %s725 = sld [smem:[#allocation2 + $0x5e]]
    %v726 = vstv %s725
    %v727 = vmul.f32 %v195, %v726
    %v728 = vmul.f32 %v196, %v726
    %v729 = vadd.f32 %v657, %v727
    %v730 = vadd.f32 %v658, %v728
    %s731 = sld [smem:[#allocation2 + $0x6e]]
    %v732 = vstv %s731
    %v733 = vmul.f32 %v195, %v732
    %v734 = vmul.f32 %v196, %v732
    %v735 = vadd.f32 %v671, %v733
    %v736 = vadd.f32 %v672, %v734
    %s737 = sld [smem:[#allocation2 + $0x7e]]
    %v738 = vstv %s737
    %v739 = vmul.f32 %v195, %v738
    %v740 = vmul.f32 %v196, %v738
    %v741 = vadd.f32 %v685, %v739
    %v742 = vadd.f32 %v686, %v740
    %s743 = sld [smem:[#allocation2 + $0x8e]]
    %v744 = vstv %s743
    %v745 = vmul.f32 %v195, %v744
    %v746 = vmul.f32 %v196, %v744
    %v747 = vadd.f32 %v699, %v745
    %v748 = vadd.f32 %v700, %v746
    %s749 = sld [smem:[#allocation2 + $0x1f]]
    %v750 = vstv %s749
    %v751 = vmul.f32 %v195, %v750
    %v752 = vmul.f32 %v196, %v750
    %755 = vrot.lane.b32.xlu0 %v751, 127
    %v756 = vpop.permute.xlu0 %755
    %757 = vrot.lane.b32.xlu0 %v752, 127
    %v758 = vpop.permute.xlu0 %757
    %v761 = vadd.f32 %v705, %v756
    %v762 = vadd.f32 %v706, %v758
    %s763 = sld [smem:[#allocation2 + $0x2f]]
    %v764 = vstv %s763
    %v765 = vmul.f32 %v195, %v764
    %v766 = vmul.f32 %v196, %v764
    %769 = vrot.lane.b32.xlu0 %v765, 127
    %v770 = vpop.permute.xlu0 %769
    %771 = vrot.lane.b32.xlu0 %v766, 127
    %v772 = vpop.permute.xlu0 %771
    %v775 = vadd.f32 %v711, %v770
    %v776 = vadd.f32 %v712, %v772
    %s777 = sld [smem:[#allocation2 + $0x3f]]
    %v778 = vstv %s777
    %v779 = vmul.f32 %v195, %v778
    %v780 = vmul.f32 %v196, %v778
    %783 = vrot.lane.b32.xlu0 %v779, 127
    %v784 = vpop.permute.xlu0 %783
    %785 = vrot.lane.b32.xlu0 %v780, 127
    %v786 = vpop.permute.xlu0 %785
    %v789 = vadd.f32 %v717, %v784
    %v790 = vadd.f32 %v718, %v786
    %s791 = sld [smem:[#allocation2 + $0x4f]]
    %v792 = vstv %s791
    %v793 = vmul.f32 %v195, %v792
    %v794 = vmul.f32 %v196, %v792
    %797 = vrot.lane.b32.xlu0 %v793, 127
    %v798 = vpop.permute.xlu0 %797
    %799 = vrot.lane.b32.xlu0 %v794, 127
    %v800 = vpop.permute.xlu0 %799
    %v803 = vadd.f32 %v723, %v798
    %v804 = vadd.f32 %v724, %v800
    %s805 = sld [smem:[#allocation2 + $0x5f]]
    %v806 = vstv %s805
    %v807 = vmul.f32 %v195, %v806
    %v808 = vmul.f32 %v196, %v806
    %811 = vrot.lane.b32.xlu0 %v807, 127
    %v812 = vpop.permute.xlu0 %811
    %813 = vrot.lane.b32.xlu0 %v808, 127
    %v814 = vpop.permute.xlu0 %813
    %v817 = vadd.f32 %v729, %v812
    %v818 = vadd.f32 %v730, %v814
    %s819 = sld [smem:[#allocation2 + $0x6f]]
    %v820 = vstv %s819
    %v821 = vmul.f32 %v195, %v820
    %v822 = vmul.f32 %v196, %v820
    %825 = vrot.lane.b32.xlu0 %v821, 127
    %v826 = vpop.permute.xlu0 %825
    %827 = vrot.lane.b32.xlu0 %v822, 127
    %v828 = vpop.permute.xlu0 %827
    %v831 = vadd.f32 %v735, %v826
    %v832 = vadd.f32 %v736, %v828
    %s833 = sld [smem:[#allocation2 + $0x7f]]
    %v834 = vstv %s833
    %v835 = vmul.f32 %v195, %v834
    %v836 = vmul.f32 %v196, %v834
    %839 = vrot.lane.b32.xlu0 %v835, 127
    %v840 = vpop.permute.xlu0 %839
    %841 = vrot.lane.b32.xlu0 %v836, 127
    %v842 = vpop.permute.xlu0 %841
    %v845 = vadd.f32 %v741, %v840
    %v846 = vadd.f32 %v742, %v842
    %s847 = sld [smem:[#allocation2 + $0x8f]]
    %v848 = vstv %s847
    %v849 = vmul.f32 %v195, %v848
    %v850 = vmul.f32 %v196, %v848
    %853 = vrot.lane.b32.xlu0 %v849, 127
    %v854 = vpop.permute.xlu0 %853
    %855 = vrot.lane.b32.xlu0 %v850, 127
    %v856 = vpop.permute.xlu0 %855
    %v859 = vadd.f32 %v747, %v854
    %v860 = vadd.f32 %v748, %v856
    %s861 = sld [smem:[#allocation2 + $0x20]]
    %v862 = vstv %s861
    %v863 = vmul.f32 %v197, %v862
    %v864 = vmul.f32 %v198, %v862
    %v865 = vadd.f32 %v761, %v863
    %v866 = vadd.f32 %v762, %v864
    %s867 = sld [smem:[#allocation2 + $0x30]]
    %v868 = vstv %s867
    %v869 = vmul.f32 %v197, %v868
    %v870 = vmul.f32 %v198, %v868
    %v871 = vadd.f32 %v775, %v869
    %v872 = vadd.f32 %v776, %v870
    %s873 = sld [smem:[#allocation2 + $0x40]]
    %v874 = vstv %s873
    %v875 = vmul.f32 %v197, %v874
    %v876 = vmul.f32 %v198, %v874
    %v877 = vadd.f32 %v789, %v875
    %v878 = vadd.f32 %v790, %v876
    %s879 = sld [smem:[#allocation2 + $0x50]]
    %v880 = vstv %s879
    %v881 = vmul.f32 %v197, %v880
    %v882 = vmul.f32 %v198, %v880
    %v883 = vadd.f32 %v803, %v881
    %v884 = vadd.f32 %v804, %v882
    %s885 = sld [smem:[#allocation2 + $0x60]]
    %v886 = vstv %s885
    %v887 = vmul.f32 %v197, %v886
    %v888 = vmul.f32 %v198, %v886
    %v889 = vadd.f32 %v817, %v887
    %v890 = vadd.f32 %v818, %v888
    %s891 = sld [smem:[#allocation2 + $0x70]]
    %v892 = vstv %s891
    %v893 = vmul.f32 %v197, %v892
    %v894 = vmul.f32 %v198, %v892
    %v895 = vadd.f32 %v831, %v893
    %v896 = vadd.f32 %v832, %v894
    %s897 = sld [smem:[#allocation2 + $0x80]]
    %v898 = vstv %s897
    %v899 = vmul.f32 %v197, %v898
    %v900 = vmul.f32 %v198, %v898
    %v901 = vadd.f32 %v845, %v899
    %v902 = vadd.f32 %v846, %v900
    %s903 = sld [smem:[#allocation2 + $0x90]]
    %v904 = vstv %s903
    %v905 = vmul.f32 %v197, %v904
    %v906 = vmul.f32 %v198, %v904
    %v907 = vadd.f32 %v859, %v905
    %v908 = vadd.f32 %v860, %v906
    %s909 = sld [smem:[#allocation2 + $0x21]]
    %v910 = vstv %s909
    %v911 = vmul.f32 %v197, %v910
    %v912 = vmul.f32 %v198, %v910
    %915 = vrot.lane.b32.xlu0 %v911, 127
    %v916 = vpop.permute.xlu0 %915
    %917 = vrot.lane.b32.xlu0 %v912, 127
    %v918 = vpop.permute.xlu0 %917
    %v921 = vadd.f32 %v865, %v916
    %v922 = vadd.f32 %v866, %v918
    %s923 = sld [smem:[#allocation2 + $0x31]]
    %v924 = vstv %s923
    %v925 = vmul.f32 %v197, %v924
    %v926 = vmul.f32 %v198, %v924
    %929 = vrot.lane.b32.xlu0 %v925, 127
    %v930 = vpop.permute.xlu0 %929
    %931 = vrot.lane.b32.xlu0 %v926, 127
    %v932 = vpop.permute.xlu0 %931
    %v935 = vadd.f32 %v871, %v930
    %v936 = vadd.f32 %v872, %v932
    %s937 = sld [smem:[#allocation2 + $0x41]]
    %v938 = vstv %s937
    %v939 = vmul.f32 %v197, %v938
    %v940 = vmul.f32 %v198, %v938
    %943 = vrot.lane.b32.xlu0 %v939, 127
    %v944 = vpop.permute.xlu0 %943
    %945 = vrot.lane.b32.xlu0 %v940, 127
    %v946 = vpop.permute.xlu0 %945
    %v949 = vadd.f32 %v877, %v944
    %v950 = vadd.f32 %v878, %v946
    %s951 = sld [smem:[#allocation2 + $0x51]]
    %v952 = vstv %s951
    %v953 = vmul.f32 %v197, %v952
    %v954 = vmul.f32 %v198, %v952
    %957 = vrot.lane.b32.xlu0 %v953, 127
    %v958 = vpop.permute.xlu0 %957
    %959 = vrot.lane.b32.xlu0 %v954, 127
    %v960 = vpop.permute.xlu0 %959
    %v963 = vadd.f32 %v883, %v958
    %v964 = vadd.f32 %v884, %v960
    %s965 = sld [smem:[#allocation2 + $0x61]]
    %v966 = vstv %s965
    %v967 = vmul.f32 %v197, %v966
    %v968 = vmul.f32 %v198, %v966
    %971 = vrot.lane.b32.xlu0 %v967, 127
    %v972 = vpop.permute.xlu0 %971
    %973 = vrot.lane.b32.xlu0 %v968, 127
    %v974 = vpop.permute.xlu0 %973
    %v977 = vadd.f32 %v889, %v972
    %v978 = vadd.f32 %v890, %v974
    %s979 = sld [smem:[#allocation2 + $0x71]]
    %v980 = vstv %s979
    %v981 = vmul.f32 %v197, %v980
    %v982 = vmul.f32 %v198, %v980
    %985 = vrot.lane.b32.xlu0 %v981, 127
    %v986 = vpop.permute.xlu0 %985
    %987 = vrot.lane.b32.xlu0 %v982, 127
    %v988 = vpop.permute.xlu0 %987
    %v991 = vadd.f32 %v895, %v986
    %v992 = vadd.f32 %v896, %v988
    %s993 = sld [smem:[#allocation2 + $0x81]]
    %v994 = vstv %s993
    %v995 = vmul.f32 %v197, %v994
    %v996 = vmul.f32 %v198, %v994
    %999 = vrot.lane.b32.xlu0 %v995, 127
    %v1000 = vpop.permute.xlu0 %999
    %1001 = vrot.lane.b32.xlu0 %v996, 127
    %v1002 = vpop.permute.xlu0 %1001
    %v1005 = vadd.f32 %v901, %v1000
    %v1006 = vadd.f32 %v902, %v1002
    %s1007 = sld [smem:[#allocation2 + $0x91]]
    %v1008 = vstv %s1007
    %v1009 = vmul.f32 %v197, %v1008
    %v1010 = vmul.f32 %v198, %v1008
    %1013 = vrot.lane.b32.xlu0 %v1009, 127
    %v1014 = vpop.permute.xlu0 %1013
    %1015 = vrot.lane.b32.xlu0 %v1010, 127
    %v1016 = vpop.permute.xlu0 %1015
    %v1019 = vadd.f32 %v907, %v1014
    %v1020 = vadd.f32 %v908, %v1016
    %s1021 = sld [smem:[#allocation2 + $0x22]]
    %v1022 = vstv %s1021
    %v1023 = vmul.f32 %v199, %v1022
    %v1024 = vmul.f32 %v200, %v1022
    %v1025 = vadd.f32 %v921, %v1023
    %v1026 = vadd.f32 %v922, %v1024
    %s1027 = sld [smem:[#allocation2 + $0x32]]
    %v1028 = vstv %s1027
    %v1029 = vmul.f32 %v199, %v1028
    %v1030 = vmul.f32 %v200, %v1028
    %v1031 = vadd.f32 %v935, %v1029
    %v1032 = vadd.f32 %v936, %v1030
    %s1033 = sld [smem:[#allocation2 + $0x42]]
    %v1034 = vstv %s1033
    %v1035 = vmul.f32 %v199, %v1034
    %v1036 = vmul.f32 %v200, %v1034
    %v1037 = vadd.f32 %v949, %v1035
    %v1038 = vadd.f32 %v950, %v1036
    %s1039 = sld [smem:[#allocation2 + $0x52]]
    %v1040 = vstv %s1039
    %v1041 = vmul.f32 %v199, %v1040
    %v1042 = vmul.f32 %v200, %v1040
    %v1043 = vadd.f32 %v963, %v1041
    %v1044 = vadd.f32 %v964, %v1042
    %s1045 = sld [smem:[#allocation2 + $0x62]]
    %v1046 = vstv %s1045
    %v1047 = vmul.f32 %v199, %v1046
    %v1048 = vmul.f32 %v200, %v1046
    %v1049 = vadd.f32 %v977, %v1047
    %v1050 = vadd.f32 %v978, %v1048
    %s1051 = sld [smem:[#allocation2 + $0x72]]
    %v1052 = vstv %s1051
    %v1053 = vmul.f32 %v199, %v1052
    %v1054 = vmul.f32 %v200, %v1052
    %v1055 = vadd.f32 %v991, %v1053
    %v1056 = vadd.f32 %v992, %v1054
    %s1057 = sld [smem:[#allocation2 + $0x82]]
    %v1058 = vstv %s1057
    %v1059 = vmul.f32 %v199, %v1058
    %v1060 = vmul.f32 %v200, %v1058
    %v1061 = vadd.f32 %v1005, %v1059
    %v1062 = vadd.f32 %v1006, %v1060
    %s1063 = sld [smem:[#allocation2 + $0x92]]
    %v1064 = vstv %s1063
    %v1065 = vmul.f32 %v199, %v1064
    %v1066 = vmul.f32 %v200, %v1064
    %v1067 = vadd.f32 %v1019, %v1065
    %v1068 = vadd.f32 %v1020, %v1066
    %s1069 = sld [smem:[#allocation2 + $0x23]]
    %v1070 = vstv %s1069
    %v1071 = vmul.f32 %v199, %v1070
    %v1072 = vmul.f32 %v200, %v1070
    %1075 = vrot.lane.b32.xlu0 %v1071, 127
    %v1076 = vpop.permute.xlu0 %1075
    %1077 = vrot.lane.b32.xlu0 %v1072, 127
    %v1078 = vpop.permute.xlu0 %1077
    %v1081 = vadd.f32 %v1025, %v1076
    %v1082 = vadd.f32 %v1026, %v1078
    %s1083 = sld [smem:[#allocation2 + $0x33]]
    %v1084 = vstv %s1083
    %v1085 = vmul.f32 %v199, %v1084
    %v1086 = vmul.f32 %v200, %v1084
    %1089 = vrot.lane.b32.xlu0 %v1085, 127
    %v1090 = vpop.permute.xlu0 %1089
    %1091 = vrot.lane.b32.xlu0 %v1086, 127
    %v1092 = vpop.permute.xlu0 %1091
    %v1095 = vadd.f32 %v1031, %v1090
    %v1096 = vadd.f32 %v1032, %v1092
    %s1097 = sld [smem:[#allocation2 + $0x43]]
    %v1098 = vstv %s1097
    %v1099 = vmul.f32 %v199, %v1098
    %v1100 = vmul.f32 %v200, %v1098
    %1103 = vrot.lane.b32.xlu0 %v1099, 127
    %v1104 = vpop.permute.xlu0 %1103
    %1105 = vrot.lane.b32.xlu0 %v1100, 127
    %v1106 = vpop.permute.xlu0 %1105
    %v1109 = vadd.f32 %v1037, %v1104
    %v1110 = vadd.f32 %v1038, %v1106
    %s1111 = sld [smem:[#allocation2 + $0x53]]
    %v1112 = vstv %s1111
    %v1113 = vmul.f32 %v199, %v1112
    %v1114 = vmul.f32 %v200, %v1112
    %1117 = vrot.lane.b32.xlu0 %v1113, 127
    %v1118 = vpop.permute.xlu0 %1117
    %1119 = vrot.lane.b32.xlu0 %v1114, 127
    %v1120 = vpop.permute.xlu0 %1119
    %v1123 = vadd.f32 %v1043, %v1118
    %v1124 = vadd.f32 %v1044, %v1120
    %s1125 = sld [smem:[#allocation2 + $0x63]]
    %v1126 = vstv %s1125
    %v1127 = vmul.f32 %v199, %v1126
    %v1128 = vmul.f32 %v200, %v1126
    %1131 = vrot.lane.b32.xlu0 %v1127, 127
    %v1132 = vpop.permute.xlu0 %1131
    %1133 = vrot.lane.b32.xlu0 %v1128, 127
    %v1134 = vpop.permute.xlu0 %1133
    %v1137 = vadd.f32 %v1049, %v1132
    %v1138 = vadd.f32 %v1050, %v1134
    %s1139 = sld [smem:[#allocation2 + $0x73]]
    %v1140 = vstv %s1139
    %v1141 = vmul.f32 %v199, %v1140
    %v1142 = vmul.f32 %v200, %v1140
    %1145 = vrot.lane.b32.xlu0 %v1141, 127
    %v1146 = vpop.permute.xlu0 %1145
    %1147 = vrot.lane.b32.xlu0 %v1142, 127
    %v1148 = vpop.permute.xlu0 %1147
    %v1151 = vadd.f32 %v1055, %v1146
    %v1152 = vadd.f32 %v1056, %v1148
    %s1153 = sld [smem:[#allocation2 + $0x83]]
    %v1154 = vstv %s1153
    %v1155 = vmul.f32 %v199, %v1154
    %v1156 = vmul.f32 %v200, %v1154
    %1159 = vrot.lane.b32.xlu0 %v1155, 127
    %v1160 = vpop.permute.xlu0 %1159
    %1161 = vrot.lane.b32.xlu0 %v1156, 127
    %v1162 = vpop.permute.xlu0 %1161
    %v1165 = vadd.f32 %v1061, %v1160
    %v1166 = vadd.f32 %v1062, %v1162
    %s1167 = sld [smem:[#allocation2 + $0x93]]
    %v1168 = vstv %s1167
    %v1169 = vmul.f32 %v199, %v1168
    %v1170 = vmul.f32 %v200, %v1168
    %1173 = vrot.lane.b32.xlu0 %v1169, 127
    %v1174 = vpop.permute.xlu0 %1173
    %1175 = vrot.lane.b32.xlu0 %v1170, 127
    %v1176 = vpop.permute.xlu0 %1175
    %v1179 = vadd.f32 %v1067, %v1174
    %v1180 = vadd.f32 %v1068, %v1176
    %s1181 = sld [smem:[#allocation2 + $0x24]]
    %v1182 = vstv %s1181
    %v1183 = vmul.f32 %v201, %v1182
    %v1184 = vmul.f32 %v202, %v1182
    %v1185 = vadd.f32 %v1081, %v1183
    %v1186 = vadd.f32 %v1082, %v1184
    %s1187 = sld [smem:[#allocation2 + $0x34]]
    %v1188 = vstv %s1187
    %v1189 = vmul.f32 %v201, %v1188
    %v1190 = vmul.f32 %v202, %v1188
    %v1191 = vadd.f32 %v1095, %v1189
    %v1192 = vadd.f32 %v1096, %v1190
    %s1193 = sld [smem:[#allocation2 + $0x44]]
    %v1194 = vstv %s1193
    %v1195 = vmul.f32 %v201, %v1194
    %v1196 = vmul.f32 %v202, %v1194
    %v1197 = vadd.f32 %v1109, %v1195
    %v1198 = vadd.f32 %v1110, %v1196
    %s1199 = sld [smem:[#allocation2 + $0x54]]
    %v1200 = vstv %s1199
    %v1201 = vmul.f32 %v201, %v1200
    %v1202 = vmul.f32 %v202, %v1200
    %v1203 = vadd.f32 %v1123, %v1201
    %v1204 = vadd.f32 %v1124, %v1202
    %s1205 = sld [smem:[#allocation2 + $0x64]]
    %v1206 = vstv %s1205
    %v1207 = vmul.f32 %v201, %v1206
    %v1208 = vmul.f32 %v202, %v1206
    %v1209 = vadd.f32 %v1137, %v1207
    %v1210 = vadd.f32 %v1138, %v1208
    %s1211 = sld [smem:[#allocation2 + $0x74]]
    %v1212 = vstv %s1211
    %v1213 = vmul.f32 %v201, %v1212
    %v1214 = vmul.f32 %v202, %v1212
    %v1215 = vadd.f32 %v1151, %v1213
    %v1216 = vadd.f32 %v1152, %v1214
    %s1217 = sld [smem:[#allocation2 + $0x84]]
    %v1218 = vstv %s1217
    %v1219 = vmul.f32 %v201, %v1218
    %v1220 = vmul.f32 %v202, %v1218
    %v1221 = vadd.f32 %v1165, %v1219
    %v1222 = vadd.f32 %v1166, %v1220
    %s1223 = sld [smem:[#allocation2 + $0x94]]
    %v1224 = vstv %s1223
    %v1225 = vmul.f32 %v201, %v1224
    %v1226 = vmul.f32 %v202, %v1224
    %v1227 = vadd.f32 %v1179, %v1225
    %v1228 = vadd.f32 %v1180, %v1226
    %s1229 = sld [smem:[#allocation2 + $0x25]]
    %v1230 = vstv %s1229
    %v1231 = vmul.f32 %v201, %v1230
    %v1232 = vmul.f32 %v202, %v1230
    %1235 = vrot.lane.b32.xlu0 %v1231, 127
    %v1236 = vpop.permute.xlu0 %1235
    %1237 = vrot.lane.b32.xlu0 %v1232, 127
    %v1238 = vpop.permute.xlu0 %1237
    %v1241 = vadd.f32 %v1185, %v1236
    %v1242 = vadd.f32 %v1186, %v1238
    %s1243 = sld [smem:[#allocation2 + $0x35]]
    %v1244 = vstv %s1243
    %v1245 = vmul.f32 %v201, %v1244
    %v1246 = vmul.f32 %v202, %v1244
    %1249 = vrot.lane.b32.xlu0 %v1245, 127
    %v1250 = vpop.permute.xlu0 %1249
    %1251 = vrot.lane.b32.xlu0 %v1246, 127
    %v1252 = vpop.permute.xlu0 %1251
    %v1255 = vadd.f32 %v1191, %v1250
    %v1256 = vadd.f32 %v1192, %v1252
    %s1257 = sld [smem:[#allocation2 + $0x45]]
    %v1258 = vstv %s1257
    %v1259 = vmul.f32 %v201, %v1258
    %v1260 = vmul.f32 %v202, %v1258
    %1263 = vrot.lane.b32.xlu0 %v1259, 127
    %v1264 = vpop.permute.xlu0 %1263
    %1265 = vrot.lane.b32.xlu0 %v1260, 127
    %v1266 = vpop.permute.xlu0 %1265
    %v1269 = vadd.f32 %v1197, %v1264
    %v1270 = vadd.f32 %v1198, %v1266
    %s1271 = sld [smem:[#allocation2 + $0x55]]
    %v1272 = vstv %s1271
    %v1273 = vmul.f32 %v201, %v1272
    %v1274 = vmul.f32 %v202, %v1272
    %1277 = vrot.lane.b32.xlu0 %v1273, 127
    %v1278 = vpop.permute.xlu0 %1277
    %1279 = vrot.lane.b32.xlu0 %v1274, 127
    %v1280 = vpop.permute.xlu0 %1279
    %v1283 = vadd.f32 %v1203, %v1278
    %v1284 = vadd.f32 %v1204, %v1280
    %s1285 = sld [smem:[#allocation2 + $0x65]]
    %v1286 = vstv %s1285
    %v1287 = vmul.f32 %v201, %v1286
    %v1288 = vmul.f32 %v202, %v1286
    %1291 = vrot.lane.b32.xlu0 %v1287, 127
    %v1292 = vpop.permute.xlu0 %1291
    %1293 = vrot.lane.b32.xlu0 %v1288, 127
    %v1294 = vpop.permute.xlu0 %1293
    %v1297 = vadd.f32 %v1209, %v1292
    %v1298 = vadd.f32 %v1210, %v1294
    %s1299 = sld [smem:[#allocation2 + $0x75]]
    %v1300 = vstv %s1299
    %v1301 = vmul.f32 %v201, %v1300
    %v1302 = vmul.f32 %v202, %v1300
    %1305 = vrot.lane.b32.xlu0 %v1301, 127
    %v1306 = vpop.permute.xlu0 %1305
    %1307 = vrot.lane.b32.xlu0 %v1302, 127
    %v1308 = vpop.permute.xlu0 %1307
    %v1311 = vadd.f32 %v1215, %v1306
    %v1312 = vadd.f32 %v1216, %v1308
    %s1313 = sld [smem:[#allocation2 + $0x85]]
    %v1314 = vstv %s1313
    %v1315 = vmul.f32 %v201, %v1314
    %v1316 = vmul.f32 %v202, %v1314
    %1319 = vrot.lane.b32.xlu0 %v1315, 127
    %v1320 = vpop.permute.xlu0 %1319
    %1321 = vrot.lane.b32.xlu0 %v1316, 127
    %v1322 = vpop.permute.xlu0 %1321
    %v1325 = vadd.f32 %v1221, %v1320
    %v1326 = vadd.f32 %v1222, %v1322
    %s1327 = sld [smem:[#allocation2 + $0x95]]
    %v1328 = vstv %s1327
    %v1329 = vmul.f32 %v201, %v1328
    %v1330 = vmul.f32 %v202, %v1328
    %1333 = vrot.lane.b32.xlu0 %v1329, 127
    %v1334 = vpop.permute.xlu0 %1333
    %1335 = vrot.lane.b32.xlu0 %v1330, 127
    %v1336 = vpop.permute.xlu0 %1335
    %v1339 = vadd.f32 %v1227, %v1334
    %v1340 = vadd.f32 %v1228, %v1336
    %s1341 = sld [smem:[#allocation2 + $0x26]]
    %v1342 = vstv %s1341
    %v1343 = vmul.f32 %v203, %v1342
    %v1344 = vmul.f32 %v204, %v1342
    %v1345 = vadd.f32 %v1241, %v1343
    %v1346 = vadd.f32 %v1242, %v1344
    %s1347 = sld [smem:[#allocation2 + $0x36]]
    %v1348 = vstv %s1347
    %v1349 = vmul.f32 %v203, %v1348
    %v1350 = vmul.f32 %v204, %v1348
    %v1351 = vadd.f32 %v1255, %v1349
    %v1352 = vadd.f32 %v1256, %v1350
    %s1353 = sld [smem:[#allocation2 + $0x46]]
    %v1354 = vstv %s1353
    %v1355 = vmul.f32 %v203, %v1354
    %v1356 = vmul.f32 %v204, %v1354
    %v1357 = vadd.f32 %v1269, %v1355
    %v1358 = vadd.f32 %v1270, %v1356
    %s1359 = sld [smem:[#allocation2 + $0x56]]
    %v1360 = vstv %s1359
    %v1361 = vmul.f32 %v203, %v1360
    %v1362 = vmul.f32 %v204, %v1360
    %v1363 = vadd.f32 %v1283, %v1361
    %v1364 = vadd.f32 %v1284, %v1362
    %s1365 = sld [smem:[#allocation2 + $0x66]]
    %v1366 = vstv %s1365
    %v1367 = vmul.f32 %v203, %v1366
    %v1368 = vmul.f32 %v204, %v1366
    %v1369 = vadd.f32 %v1297, %v1367
    %v1370 = vadd.f32 %v1298, %v1368
    %s1371 = sld [smem:[#allocation2 + $0x76]]
    %v1372 = vstv %s1371
    %v1373 = vmul.f32 %v203, %v1372
    %v1374 = vmul.f32 %v204, %v1372
    %v1375 = vadd.f32 %v1311, %v1373
    %v1376 = vadd.f32 %v1312, %v1374
    %s1377 = sld [smem:[#allocation2 + $0x86]]
    %v1378 = vstv %s1377
    %v1379 = vmul.f32 %v203, %v1378
    %v1380 = vmul.f32 %v204, %v1378
    %v1381 = vadd.f32 %v1325, %v1379
    %v1382 = vadd.f32 %v1326, %v1380
    %s1383 = sld [smem:[#allocation2 + $0x96]]
    %v1384 = vstv %s1383
    %v1385 = vmul.f32 %v203, %v1384
    %v1386 = vmul.f32 %v204, %v1384
    %v1387 = vadd.f32 %v1339, %v1385
    %v1388 = vadd.f32 %v1340, %v1386
    %s1389 = sld [smem:[#allocation2 + $0x27]]
    %v1390 = vstv %s1389
    %v1391 = vmul.f32 %v203, %v1390
    %v1392 = vmul.f32 %v204, %v1390
    %1395 = vrot.lane.b32.xlu0 %v1391, 127
    %v1396 = vpop.permute.xlu0 %1395
    %1397 = vrot.lane.b32.xlu0 %v1392, 127
    %v1398 = vpop.permute.xlu0 %1397
    %v1401 = vadd.f32 %v1345, %v1396
    %v1402 = vadd.f32 %v1346, %v1398
    %s1403 = sld [smem:[#allocation2 + $0x37]]
    %v1404 = vstv %s1403
    %v1405 = vmul.f32 %v203, %v1404
    %v1406 = vmul.f32 %v204, %v1404
    %1409 = vrot.lane.b32.xlu0 %v1405, 127
    %v1410 = vpop.permute.xlu0 %1409
    %1411 = vrot.lane.b32.xlu0 %v1406, 127
    %v1412 = vpop.permute.xlu0 %1411
    %v1415 = vadd.f32 %v1351, %v1410
    %v1416 = vadd.f32 %v1352, %v1412
    %s1417 = sld [smem:[#allocation2 + $0x47]]
    %v1418 = vstv %s1417
    %v1419 = vmul.f32 %v203, %v1418
    %v1420 = vmul.f32 %v204, %v1418
    %1423 = vrot.lane.b32.xlu0 %v1419, 127
    %v1424 = vpop.permute.xlu0 %1423
    %1425 = vrot.lane.b32.xlu0 %v1420, 127
    %v1426 = vpop.permute.xlu0 %1425
    %v1429 = vadd.f32 %v1357, %v1424
    %v1430 = vadd.f32 %v1358, %v1426
    %s1431 = sld [smem:[#allocation2 + $0x57]]
    %v1432 = vstv %s1431
    %v1433 = vmul.f32 %v203, %v1432
    %v1434 = vmul.f32 %v204, %v1432
    %1437 = vrot.lane.b32.xlu0 %v1433, 127
    %v1438 = vpop.permute.xlu0 %1437
    %1439 = vrot.lane.b32.xlu0 %v1434, 127
    %v1440 = vpop.permute.xlu0 %1439
    %v1443 = vadd.f32 %v1363, %v1438
    %v1444 = vadd.f32 %v1364, %v1440
    %s1445 = sld [smem:[#allocation2 + $0x67]]
    %v1446 = vstv %s1445
    %v1447 = vmul.f32 %v203, %v1446
    %v1448 = vmul.f32 %v204, %v1446
    %1451 = vrot.lane.b32.xlu0 %v1447, 127
    %v1452 = vpop.permute.xlu0 %1451
    %1453 = vrot.lane.b32.xlu0 %v1448, 127
    %v1454 = vpop.permute.xlu0 %1453
    %v1457 = vadd.f32 %v1369, %v1452
    %v1458 = vadd.f32 %v1370, %v1454
    %s1459 = sld [smem:[#allocation2 + $0x77]]
    %v1460 = vstv %s1459
    %v1461 = vmul.f32 %v203, %v1460
    %v1462 = vmul.f32 %v204, %v1460
    %1465 = vrot.lane.b32.xlu0 %v1461, 127
    %v1466 = vpop.permute.xlu0 %1465
    %1467 = vrot.lane.b32.xlu0 %v1462, 127
    %v1468 = vpop.permute.xlu0 %1467
    %v1471 = vadd.f32 %v1375, %v1466
    %v1472 = vadd.f32 %v1376, %v1468
    %s1473 = sld [smem:[#allocation2 + $0x87]]
    %v1474 = vstv %s1473
    %v1475 = vmul.f32 %v203, %v1474
    %v1476 = vmul.f32 %v204, %v1474
    %1479 = vrot.lane.b32.xlu0 %v1475, 127
    %v1480 = vpop.permute.xlu0 %1479
    %1481 = vrot.lane.b32.xlu0 %v1476, 127
    %v1482 = vpop.permute.xlu0 %1481
    %v1485 = vadd.f32 %v1381, %v1480
    %v1486 = vadd.f32 %v1382, %v1482
    %s1487 = sld [smem:[#allocation2 + $0x97]]
    %v1488 = vstv %s1487
    %v1489 = vmul.f32 %v203, %v1488
    %v1490 = vmul.f32 %v204, %v1488
    %1493 = vrot.lane.b32.xlu0 %v1489, 127
    %v1494 = vpop.permute.xlu0 %1493
    %1495 = vrot.lane.b32.xlu0 %v1490, 127
    %v1496 = vpop.permute.xlu0 %1495
    %v1499 = vadd.f32 %v1387, %v1494
    %v1500 = vadd.f32 %v1388, %v1496
    %v1501 = vmax.f32 %v1401, 0.0
    %v1502 = vmax.f32 %v1402, 0.0
    %v1503 = vmax.f32 %v1415, 0.0
    %v1504 = vmax.f32 %v1416, 0.0
    %v1505 = vmax.f32 %v1429, 0.0
    %v1506 = vmax.f32 %v1430, 0.0
    %v1507 = vmax.f32 %v1443, 0.0
    %v1508 = vmax.f32 %v1444, 0.0
    %v1509 = vmax.f32 %v1457, 0.0
    %v1510 = vmax.f32 %v1458, 0.0
    %v1511 = vmax.f32 %v1471, 0.0
    %v1512 = vmax.f32 %v1472, 0.0
    %v1513 = vmax.f32 %v1485, 0.0
    %v1514 = vmax.f32 %v1486, 0.0
    %v1515 = vmax.f32 %v1499, 0.0
    %v1516 = vmax.f32 %v1500, 0.0
    %v1533 = vrot.slane %v1501, 1
    %v1534 = vrot.slane %v1503, 1
    %v1535 = vrot.slane %v1505, 1
    %v1536 = vrot.slane %v1507, 1
    %v1537 = vrot.slane %v1509, 1
    %v1538 = vrot.slane %v1511, 1
    %v1539 = vrot.slane %v1513, 1
    %v1540 = vrot.slane %v1515, 1
    %v1541 = vrot.slane %v1502, 1
    %v1542 = vrot.slane %v1504, 1
    %v1543 = vrot.slane %v1506, 1
    %v1544 = vrot.slane %v1508, 1
    %v1545 = vrot.slane %v1510, 1
    %v1546 = vrot.slane %v1512, 1
    %v1547 = vrot.slane %v1514, 1
    %v1548 = vrot.slane %v1516, 1
    %v1565 = vmax.f32 %v1501, %v1533
    %v1566 = vmax.f32 %v1503, %v1534
    %v1567 = vmax.f32 %v1505, %v1535
    %v1568 = vmax.f32 %v1507, %v1536
    %v1569 = vmax.f32 %v1509, %v1537
    %v1570 = vmax.f32 %v1511, %v1538
    %v1571 = vmax.f32 %v1513, %v1539
    %v1572 = vmax.f32 %v1515, %v1540
    %v1573 = vmax.f32 %v1502, %v1541
    %v1574 = vmax.f32 %v1504, %v1542
    %v1575 = vmax.f32 %v1506, %v1543
    %v1576 = vmax.f32 %v1508, %v1544
    %v1577 = vmax.f32 %v1510, %v1545
    %v1578 = vmax.f32 %v1512, %v1546
    %v1579 = vmax.f32 %v1514, %v1547
    %v1580 = vmax.f32 %v1516, %v1548
    %v1597 = vrot.slane %v1565, 1
    %v1598 = vrot.slane %v1566, 1
    %v1599 = vrot.slane %v1567, 1
    %v1600 = vrot.slane %v1568, 1
    %v1601 = vrot.slane %v1569, 1
    %v1602 = vrot.slane %v1570, 1
    %v1603 = vrot.slane %v1571, 1
    %v1604 = vrot.slane %v1572, 1
    %v1605 = vrot.slane %v1573, 1
    %v1606 = vrot.slane %v1574, 1
    %v1607 = vrot.slane %v1575, 1
    %v1608 = vrot.slane %v1576, 1
    %v1609 = vrot.slane %v1577, 1
    %v1610 = vrot.slane %v1578, 1
    %v1611 = vrot.slane %v1579, 1
    %v1612 = vrot.slane %v1580, 1
    %v1629 = vrot.slane %v1565, 2
    %v1630 = vrot.slane %v1566, 2
    %v1631 = vrot.slane %v1567, 2
    %v1632 = vrot.slane %v1568, 2
    %v1633 = vrot.slane %v1569, 2
    %v1634 = vrot.slane %v1570, 2
    %v1635 = vrot.slane %v1571, 2
    %v1636 = vrot.slane %v1572, 2
    %v1637 = vrot.slane %v1573, 2
    %v1638 = vrot.slane %v1574, 2
    %v1639 = vrot.slane %v1575, 2
    %v1640 = vrot.slane %v1576, 2
    %v1641 = vrot.slane %v1577, 2
    %v1642 = vrot.slane %v1578, 2
    %v1643 = vrot.slane %v1579, 2
    %v1644 = vrot.slane %v1580, 2
    %vm1661 = vcmask 1040384
    %v1662 = vsel %vm1661, %v1565, %v1597
    %v1663 = vsel %vm1661, %v1566, %v1598
    %v1664 = vsel %vm1661, %v1567, %v1599
    %v1665 = vsel %vm1661, %v1568, %v1600
    %v1666 = vsel %vm1661, %v1569, %v1601
    %v1667 = vsel %vm1661, %v1570, %v1602
    %v1668 = vsel %vm1661, %v1571, %v1603
    %v1669 = vsel %vm1661, %v1572, %v1604
    %v1670 = vsel %vm1661, %v1573, %v1605
    %v1671 = vsel %vm1661, %v1574, %v1606
    %v1672 = vsel %vm1661, %v1575, %v1607
    %v1673 = vsel %vm1661, %v1576, %v1608
    %v1674 = vsel %vm1661, %v1577, %v1609
    %v1675 = vsel %vm1661, %v1578, %v1610
    %v1676 = vsel %vm1661, %v1579, %v1611
    %v1677 = vsel %vm1661, %v1580, %v1612
    %vm1678 = vcmask 1041408
    %v1679 = vsel %vm1678, %v1662, %v1629
    %v1680 = vsel %vm1678, %v1663, %v1630
    %v1681 = vsel %vm1678, %v1664, %v1631
    %v1682 = vsel %vm1678, %v1665, %v1632
    %v1683 = vsel %vm1678, %v1666, %v1633
    %v1684 = vsel %vm1678, %v1667, %v1634
    %v1685 = vsel %vm1678, %v1668, %v1635
    %v1686 = vsel %vm1678, %v1669, %v1636
    %v1687 = vsel %vm1678, %v1670, %v1637
    %v1688 = vsel %vm1678, %v1671, %v1638
    %v1689 = vsel %vm1678, %v1672, %v1639
    %v1690 = vsel %vm1678, %v1673, %v1640
    %v1691 = vsel %vm1678, %v1674, %v1641
    %v1692 = vsel %vm1678, %v1675, %v1642
    %v1693 = vsel %vm1678, %v1676, %v1643
    %v1694 = vsel %vm1678, %v1677, %v1644
    %1711 = vrot.lane.b32.xlu0 %v1679, 127
    %v1712 = vpop.permute.xlu0 %1711
    %1713 = vrot.lane.b32.xlu0 %v1680, 127
    %v1714 = vpop.permute.xlu0 %1713
    %1715 = vrot.lane.b32.xlu0 %v1681, 127
    %v1716 = vpop.permute.xlu0 %1715
    %1717 = vrot.lane.b32.xlu0 %v1682, 127
    %v1718 = vpop.permute.xlu0 %1717
    %1719 = vrot.lane.b32.xlu0 %v1683, 127
    %v1720 = vpop.permute.xlu0 %1719
    %1721 = vrot.lane.b32.xlu0 %v1684, 127
    %v1722 = vpop.permute.xlu0 %1721
    %1723 = vrot.lane.b32.xlu0 %v1685, 127
    %v1724 = vpop.permute.xlu0 %1723
    %1725 = vrot.lane.b32.xlu0 %v1686, 127
    %v1726 = vpop.permute.xlu0 %1725
    %1727 = vrot.lane.b32.xlu0 %v1687, 127
    %v1728 = vpop.permute.xlu0 %1727
    %1729 = vrot.lane.b32.xlu0 %v1688, 127
    %v1730 = vpop.permute.xlu0 %1729
    %1731 = vrot.lane.b32.xlu0 %v1689, 127
    %v1732 = vpop.permute.xlu0 %1731
    %1733 = vrot.lane.b32.xlu0 %v1690, 127
    %v1734 = vpop.permute.xlu0 %1733
    %1735 = vrot.lane.b32.xlu0 %v1691, 127
    %v1736 = vpop.permute.xlu0 %1735
    %1737 = vrot.lane.b32.xlu0 %v1692, 127
    %v1738 = vpop.permute.xlu0 %1737
    %1739 = vrot.lane.b32.xlu0 %v1693, 127
    %v1740 = vpop.permute.xlu0 %1739
    %1741 = vrot.lane.b32.xlu0 %v1694, 127
    %v1742 = vpop.permute.xlu0 %1741
    %v1759 = vmax.f32 %v1679, %v1712
    %v1760 = vmax.f32 %v1680, %v1714
    %v1761 = vmax.f32 %v1681, %v1716
    %v1762 = vmax.f32 %v1682, %v1718
    %v1763 = vmax.f32 %v1683, %v1720
    %v1764 = vmax.f32 %v1684, %v1722
    %v1765 = vmax.f32 %v1685, %v1724
    %v1766 = vmax.f32 %v1686, %v1726
    %v1767 = vmax.f32 %v1687, %v1728
    %v1768 = vmax.f32 %v1688, %v1730
    %v1769 = vmax.f32 %v1689, %v1732
    %v1770 = vmax.f32 %v1690, %v1734
    %v1771 = vmax.f32 %v1691, %v1736
    %v1772 = vmax.f32 %v1692, %v1738
    %v1773 = vmax.f32 %v1693, %v1740
    %v1774 = vmax.f32 %v1694, %v1742
    %1791 = vrot.lane.b32.xlu0 %v1759, 127
    %v1792 = vpop.permute.xlu0 %1791
    %1793 = vrot.lane.b32.xlu0 %v1760, 127
    %v1794 = vpop.permute.xlu0 %1793
    %1795 = vrot.lane.b32.xlu0 %v1761, 127
    %v1796 = vpop.permute.xlu0 %1795
    %1797 = vrot.lane.b32.xlu0 %v1762, 127
    %v1798 = vpop.permute.xlu0 %1797
    %1799 = vrot.lane.b32.xlu0 %v1763, 127
    %v1800 = vpop.permute.xlu0 %1799
    %1801 = vrot.lane.b32.xlu0 %v1764, 127
    %v1802 = vpop.permute.xlu0 %1801
    %1803 = vrot.lane.b32.xlu0 %v1765, 127
    %v1804 = vpop.permute.xlu0 %1803
    %1805 = vrot.lane.b32.xlu0 %v1766, 127
    %v1806 = vpop.permute.xlu0 %1805
    %1807 = vrot.lane.b32.xlu0 %v1767, 127
    %v1808 = vpop.permute.xlu0 %1807
    %1809 = vrot.lane.b32.xlu0 %v1768, 127
    %v1810 = vpop.permute.xlu0 %1809
    %1811 = vrot.lane.b32.xlu0 %v1769, 127
    %v1812 = vpop.permute.xlu0 %1811
    %1813 = vrot.lane.b32.xlu0 %v1770, 127
    %v1814 = vpop.permute.xlu0 %1813
    %1815 = vrot.lane.b32.xlu0 %v1771, 127
    %v1816 = vpop.permute.xlu0 %1815
    %1817 = vrot.lane.b32.xlu0 %v1772, 127
    %v1818 = vpop.permute.xlu0 %1817
    %1819 = vrot.lane.b32.xlu0 %v1773, 127
    %v1820 = vpop.permute.xlu0 %1819
    %1821 = vrot.lane.b32.xlu0 %v1774, 127
    %v1822 = vpop.permute.xlu0 %1821
    %1839 = vrot.lane.b32.xlu0 %v1759, 126
    %v1840 = vpop.permute.xlu0 %1839
    %1841 = vrot.lane.b32.xlu0 %v1760, 126
    %v1842 = vpop.permute.xlu0 %1841
    %1843 = vrot.lane.b32.xlu0 %v1761, 126
    %v1844 = vpop.permute.xlu0 %1843
    %1845 = vrot.lane.b32.xlu0 %v1762, 126
    %v1846 = vpop.permute.xlu0 %1845
    %1847 = vrot.lane.b32.xlu0 %v1763, 126
    %v1848 = vpop.permute.xlu0 %1847
    %1849 = vrot.lane.b32.xlu0 %v1764, 126
    %v1850 = vpop.permute.xlu0 %1849
    %1851 = vrot.lane.b32.xlu0 %v1765, 126
    %v1852 = vpop.permute.xlu0 %1851
    %1853 = vrot.lane.b32.xlu0 %v1766, 126
    %v1854 = vpop.permute.xlu0 %1853
    %1855 = vrot.lane.b32.xlu0 %v1767, 126
    %v1856 = vpop.permute.xlu0 %1855
    %1857 = vrot.lane.b32.xlu0 %v1768, 126
    %v1858 = vpop.permute.xlu0 %1857
    %1859 = vrot.lane.b32.xlu0 %v1769, 126
    %v1860 = vpop.permute.xlu0 %1859
    %1861 = vrot.lane.b32.xlu0 %v1770, 126
    %v1862 = vpop.permute.xlu0 %1861
    %1863 = vrot.lane.b32.xlu0 %v1771, 126
    %v1864 = vpop.permute.xlu0 %1863
    %1865 = vrot.lane.b32.xlu0 %v1772, 126
    %v1866 = vpop.permute.xlu0 %1865
    %1867 = vrot.lane.b32.xlu0 %v1773, 126
    %v1868 = vpop.permute.xlu0 %1867
    %1869 = vrot.lane.b32.xlu0 %v1774, 126
    %v1870 = vpop.permute.xlu0 %1869
    %1887 = vrot.lane.b32.xlu0 %v1759, 125
    %v1888 = vpop.permute.xlu0 %1887
    %1889 = vrot.lane.b32.xlu0 %v1760, 125
    %v1890 = vpop.permute.xlu0 %1889
    %1891 = vrot.lane.b32.xlu0 %v1761, 125
    %v1892 = vpop.permute.xlu0 %1891
    %1893 = vrot.lane.b32.xlu0 %v1762, 125
    %v1894 = vpop.permute.xlu0 %1893
    %1895 = vrot.lane.b32.xlu0 %v1763, 125
    %v1896 = vpop.permute.xlu0 %1895
    %1897 = vrot.lane.b32.xlu0 %v1764, 125
    %v1898 = vpop.permute.xlu0 %1897
    %1899 = vrot.lane.b32.xlu0 %v1765, 125
    %v1900 = vpop.permute.xlu0 %1899
    %1901 = vrot.lane.b32.xlu0 %v1766, 125
    %v1902 = vpop.permute.xlu0 %1901
    %1903 = vrot.lane.b32.xlu0 %v1767, 125
    %v1904 = vpop.permute.xlu0 %1903
    %1905 = vrot.lane.b32.xlu0 %v1768, 125
    %v1906 = vpop.permute.xlu0 %1905
    %1907 = vrot.lane.b32.xlu0 %v1769, 125
    %v1908 = vpop.permute.xlu0 %1907
    %1909 = vrot.lane.b32.xlu0 %v1770, 125
    %v1910 = vpop.permute.xlu0 %1909
    %1911 = vrot.lane.b32.xlu0 %v1771, 125
    %v1912 = vpop.permute.xlu0 %1911
    %1913 = vrot.lane.b32.xlu0 %v1772, 125
    %v1914 = vpop.permute.xlu0 %1913
    %1915 = vrot.lane.b32.xlu0 %v1773, 125
    %v1916 = vpop.permute.xlu0 %1915
    %1917 = vrot.lane.b32.xlu0 %v1774, 125
    %v1918 = vpop.permute.xlu0 %1917
    %vm1935 = vcmask 7168
    %v1936 = vsel %vm1935, %v1759, %v1792
    %v1937 = vsel %vm1935, %v1760, %v1794
    %v1938 = vsel %vm1935, %v1761, %v1796
    %v1939 = vsel %vm1935, %v1762, %v1798
    %v1940 = vsel %vm1935, %v1763, %v1800
    %v1941 = vsel %vm1935, %v1764, %v1802
    %v1942 = vsel %vm1935, %v1765, %v1804
    %v1943 = vsel %vm1935, %v1766, %v1806
    %v1944 = vsel %vm1935, %v1767, %v1808
    %v1945 = vsel %vm1935, %v1768, %v1810
    %v1946 = vsel %vm1935, %v1769, %v1812
    %v1947 = vsel %vm1935, %v1770, %v1814
    %v1948 = vsel %vm1935, %v1771, %v1816
    %v1949 = vsel %vm1935, %v1772, %v1818
    %v1950 = vsel %vm1935, %v1773, %v1820
    %v1951 = vsel %vm1935, %v1774, %v1822
    %vm1952 = vcmask 15360
    %v1953 = vsel %vm1952, %v1936, %v1840
    %v1954 = vsel %vm1952, %v1937, %v1842
    %v1955 = vsel %vm1952, %v1938, %v1844
    %v1956 = vsel %vm1952, %v1939, %v1846
    %v1957 = vsel %vm1952, %v1940, %v1848
    %v1958 = vsel %vm1952, %v1941, %v1850
    %v1959 = vsel %vm1952, %v1942, %v1852
    %v1960 = vsel %vm1952, %v1943, %v1854
    %v1961 = vsel %vm1952, %v1944, %v1856
    %v1962 = vsel %vm1952, %v1945, %v1858
    %v1963 = vsel %vm1952, %v1946, %v1860
    %v1964 = vsel %vm1952, %v1947, %v1862
    %v1965 = vsel %vm1952, %v1948, %v1864
    %v1966 = vsel %vm1952, %v1949, %v1866
    %v1967 = vsel %vm1952, %v1950, %v1868
    %v1968 = vsel %vm1952, %v1951, %v1870
    %vm1969 = vcmask 23552
    %v1970 = vsel %vm1969, %v1953, %v1888
    %v1971 = vsel %vm1969, %v1954, %v1890
    %v1972 = vsel %vm1969, %v1955, %v1892
    %v1973 = vsel %vm1969, %v1956, %v1894
    %v1974 = vsel %vm1969, %v1957, %v1896
    %v1975 = vsel %vm1969, %v1958, %v1898
    %v1976 = vsel %vm1969, %v1959, %v1900
    %v1977 = vsel %vm1969, %v1960, %v1902
    %v1978 = vsel %vm1969, %v1961, %v1904
    %v1979 = vsel %vm1969, %v1962, %v1906
    %v1980 = vsel %vm1969, %v1963, %v1908
    %v1981 = vsel %vm1969, %v1964, %v1910
    %v1982 = vsel %vm1969, %v1965, %v1912
    %v1983 = vsel %vm1969, %v1966, %v1914
    %v1984 = vsel %vm1969, %v1967, %v1916
    %v1985 = vsel %vm1969, %v1968, %v1918
    %s1986 = sld [smem:[#allocation2 + $0x1a0]]
    %v1987 = vstv %s1986
    %s1988 = sld [smem:[#allocation2 + $0x1a1]]
    %v1989 = vstv %s1988
    %s1990 = sld [smem:[#allocation2 + $0x1a2]]
    %v1991 = vstv %s1990
    %s1992 = sld [smem:[#allocation2 + $0x1a3]]
    %v1993 = vstv %s1992
    %s1994 = sld [smem:[#allocation2 + $0x1a4]]
    %v1995 = vstv %s1994
    %s1996 = sld [smem:[#allocation2 + $0x1a5]]
    %v1997 = vstv %s1996
    %s1998 = sld [smem:[#allocation2 + $0x1a6]]
    %v1999 = vstv %s1998
    %s2000 = sld [smem:[#allocation2 + $0x1a7]]
    %v2001 = vstv %s2000
    %s2002 = sld [smem:[#allocation2 + $0xa0]]
    %v2003 = vstv %s2002
    %v2004 = vmul.f32 %v1970, %v2003
    %v2005 = vmul.f32 %v1978, %v2003
    %v2006 = vadd.f32 %v1987, %v2004
    %v2007 = vadd.f32 %v1987, %v2005
    %s2008 = sld [smem:[#allocation2 + $0xc0]]
    %v2009 = vstv %s2008
    %v2010 = vmul.f32 %v1970, %v2009
    %v2011 = vmul.f32 %v1978, %v2009
    %v2012 = vadd.f32 %v1989, %v2010
    %v2013 = vadd.f32 %v1989, %v2011
    %s2014 = sld [smem:[#allocation2 + $0xe0]]
    %v2015 = vstv %s2014
    %v2016 = vmul.f32 %v1970, %v2015
    %v2017 = vmul.f32 %v1978, %v2015
    %v2018 = vadd.f32 %v1991, %v2016
    %v2019 = vadd.f32 %v1991, %v2017
    %s2020 = sld [smem:[#allocation2 + $0x100]]
    %v2021 = vstv %s2020
    %v2022 = vmul.f32 %v1970, %v2021
    %v2023 = vmul.f32 %v1978, %v2021
    %v2024 = vadd.f32 %v1993, %v2022
    %v2025 = vadd.f32 %v1993, %v2023
    %s2026 = sld [smem:[#allocation2 + $0x120]]
    %v2027 = vstv %s2026
    %v2028 = vmul.f32 %v1970, %v2027
    %v2029 = vmul.f32 %v1978, %v2027
    %v2030 = vadd.f32 %v1995, %v2028
    %v2031 = vadd.f32 %v1995, %v2029
    %s2032 = sld [smem:[#allocation2 + $0x140]]
    %v2033 = vstv %s2032
    %v2034 = vmul.f32 %v1970, %v2033
    %v2035 = vmul.f32 %v1978, %v2033
    %v2036 = vadd.f32 %v1997, %v2034
    %v2037 = vadd.f32 %v1997, %v2035
    %s2038 = sld [smem:[#allocation2 + $0x160]]
    %v2039 = vstv %s2038
    %v2040 = vmul.f32 %v1970, %v2039
    %v2041 = vmul.f32 %v1978, %v2039
    %v2042 = vadd.f32 %v1999, %v2040
    %v2043 = vadd.f32 %v1999, %v2041
    %s2044 = sld [smem:[#allocation2 + $0x180]]
    %v2045 = vstv %s2044
    %v2046 = vmul.f32 %v1970, %v2045
    %v2047 = vmul.f32 %v1978, %v2045
    %v2048 = vadd.f32 %v2001, %v2046
    %v2049 = vadd.f32 %v2001, %v2047
    %s2050 = sld [smem:[#allocation2 + $0xa1]]
    %v2051 = vstv %s2050
    %v2052 = vmul.f32 %v1970, %v2051
    %v2053 = vmul.f32 %v1978, %v2051
    %2056 = vrot.lane.b32.xlu0 %v2052, 127
    %v2057 = vpop.permute.xlu0 %2056
    %2058 = vrot.lane.b32.xlu0 %v2053, 127
    %v2059 = vpop.permute.xlu0 %2058
    %v2062 = vadd.f32 %v2006, %v2057
    %v2063 = vadd.f32 %v2007, %v2059
    %s2064 = sld [smem:[#allocation2 + $0xc1]]
    %v2065 = vstv %s2064
    %v2066 = vmul.f32 %v1970, %v2065
    %v2067 = vmul.f32 %v1978, %v2065
    %2070 = vrot.lane.b32.xlu0 %v2066, 127
    %v2071 = vpop.permute.xlu0 %2070
    %2072 = vrot.lane.b32.xlu0 %v2067, 127
    %v2073 = vpop.permute.xlu0 %2072
    %v2076 = vadd.f32 %v2012, %v2071
    %v2077 = vadd.f32 %v2013, %v2073
    %s2078 = sld [smem:[#allocation2 + $0xe1]]
    %v2079 = vstv %s2078
    %v2080 = vmul.f32 %v1970, %v2079
    %v2081 = vmul.f32 %v1978, %v2079
    %2084 = vrot.lane.b32.xlu0 %v2080, 127
    %v2085 = vpop.permute.xlu0 %2084
    %2086 = vrot.lane.b32.xlu0 %v2081, 127
    %v2087 = vpop.permute.xlu0 %2086
    %v2090 = vadd.f32 %v2018, %v2085
    %v2091 = vadd.f32 %v2019, %v2087
    %s2092 = sld [smem:[#allocation2 + $0x101]]
    %v2093 = vstv %s2092
    %v2094 = vmul.f32 %v1970, %v2093
    %v2095 = vmul.f32 %v1978, %v2093
    %2098 = vrot.lane.b32.xlu0 %v2094, 127
    %v2099 = vpop.permute.xlu0 %2098
    %2100 = vrot.lane.b32.xlu0 %v2095, 127
    %v2101 = vpop.permute.xlu0 %2100
    %v2104 = vadd.f32 %v2024, %v2099
    %v2105 = vadd.f32 %v2025, %v2101
    %s2106 = sld [smem:[#allocation2 + $0x121]]
    %v2107 = vstv %s2106
    %v2108 = vmul.f32 %v1970, %v2107
    %v2109 = vmul.f32 %v1978, %v2107
    %2112 = vrot.lane.b32.xlu0 %v2108, 127
    %v2113 = vpop.permute.xlu0 %2112
    %2114 = vrot.lane.b32.xlu0 %v2109, 127
    %v2115 = vpop.permute.xlu0 %2114
    %v2118 = vadd.f32 %v2030, %v2113
    %v2119 = vadd.f32 %v2031, %v2115
    %s2120 = sld [smem:[#allocation2 + $0x141]]
    %v2121 = vstv %s2120
    %v2122 = vmul.f32 %v1970, %v2121
    %v2123 = vmul.f32 %v1978, %v2121
    %2126 = vrot.lane.b32.xlu0 %v2122, 127
    %v2127 = vpop.permute.xlu0 %2126
    %2128 = vrot.lane.b32.xlu0 %v2123, 127
    %v2129 = vpop.permute.xlu0 %2128
    %v2132 = vadd.f32 %v2036, %v2127
    %v2133 = vadd.f32 %v2037, %v2129
    %s2134 = sld [smem:[#allocation2 + $0x161]]
    %v2135 = vstv %s2134
    %v2136 = vmul.f32 %v1970, %v2135
    %v2137 = vmul.f32 %v1978, %v2135
    %2140 = vrot.lane.b32.xlu0 %v2136, 127
    %v2141 = vpop.permute.xlu0 %2140
    %2142 = vrot.lane.b32.xlu0 %v2137, 127
    %v2143 = vpop.permute.xlu0 %2142
    %v2146 = vadd.f32 %v2042, %v2141
    %v2147 = vadd.f32 %v2043, %v2143
    %s2148 = sld [smem:[#allocation2 + $0x181]]
    %v2149 = vstv %s2148
    %v2150 = vmul.f32 %v1970, %v2149
    %v2151 = vmul.f32 %v1978, %v2149
    %2154 = vrot.lane.b32.xlu0 %v2150, 127
    %v2155 = vpop.permute.xlu0 %2154
    %2156 = vrot.lane.b32.xlu0 %v2151, 127
    %v2157 = vpop.permute.xlu0 %2156
    %v2160 = vadd.f32 %v2048, %v2155
    %v2161 = vadd.f32 %v2049, %v2157
    %s2162 = sld [smem:[#allocation2 + $0xa2]]
    %v2163 = vstv %s2162
    %v2164 = vmul.f32 %v1970, %v2163
    %v2165 = vmul.f32 %v1978, %v2163
    %v2168 = vrot.slane %v2164, 1
    %v2169 = vrot.slane %v2165, 1
    %v2172 = vadd.f32 %v2062, %v2168
    %v2173 = vadd.f32 %v2063, %v2169
    %s2174 = sld [smem:[#allocation2 + $0xc2]]
    %v2175 = vstv %s2174
    %v2176 = vmul.f32 %v1970, %v2175
    %v2177 = vmul.f32 %v1978, %v2175
    %v2180 = vrot.slane %v2176, 1
    %v2181 = vrot.slane %v2177, 1
    %v2184 = vadd.f32 %v2076, %v2180
    %v2185 = vadd.f32 %v2077, %v2181
    %s2186 = sld [smem:[#allocation2 + $0xe2]]
    %v2187 = vstv %s2186
    %v2188 = vmul.f32 %v1970, %v2187
    %v2189 = vmul.f32 %v1978, %v2187
    %v2192 = vrot.slane %v2188, 1
    %v2193 = vrot.slane %v2189, 1
    %v2196 = vadd.f32 %v2090, %v2192
    %v2197 = vadd.f32 %v2091, %v2193
    %s2198 = sld [smem:[#allocation2 + $0x102]]
    %v2199 = vstv %s2198
    %v2200 = vmul.f32 %v1970, %v2199
    %v2201 = vmul.f32 %v1978, %v2199
    %v2204 = vrot.slane %v2200, 1
    %v2205 = vrot.slane %v2201, 1
    %v2208 = vadd.f32 %v2104, %v2204
    %v2209 = vadd.f32 %v2105, %v2205
    %s2210 = sld [smem:[#allocation2 + $0x122]]
    %v2211 = vstv %s2210
    %v2212 = vmul.f32 %v1970, %v2211
    %v2213 = vmul.f32 %v1978, %v2211
    %v2216 = vrot.slane %v2212, 1
    %v2217 = vrot.slane %v2213, 1
    %v2220 = vadd.f32 %v2118, %v2216
    %v2221 = vadd.f32 %v2119, %v2217
    %s2222 = sld [smem:[#allocation2 + $0x142]]
    %v2223 = vstv %s2222
    %v2224 = vmul.f32 %v1970, %v2223
    %v2225 = vmul.f32 %v1978, %v2223
    %v2228 = vrot.slane %v2224, 1
    %v2229 = vrot.slane %v2225, 1
    %v2232 = vadd.f32 %v2132, %v2228
    %v2233 = vadd.f32 %v2133, %v2229
    %s2234 = sld [smem:[#allocation2 + $0x162]]
    %v2235 = vstv %s2234
    %v2236 = vmul.f32 %v1970, %v2235
    %v2237 = vmul.f32 %v1978, %v2235
    %v2240 = vrot.slane %v2236, 1
    %v2241 = vrot.slane %v2237, 1
    %v2244 = vadd.f32 %v2146, %v2240
    %v2245 = vadd.f32 %v2147, %v2241
    %s2246 = sld [smem:[#allocation2 + $0x182]]
    %v2247 = vstv %s2246
    %v2248 = vmul.f32 %v1970, %v2247
    %v2249 = vmul.f32 %v1978, %v2247
    %v2252 = vrot.slane %v2248, 1
    %v2253 = vrot.slane %v2249, 1
    %v2256 = vadd.f32 %v2160, %v2252
    %v2257 = vadd.f32 %v2161, %v2253
    %s2258 = sld [smem:[#allocation2 + $0xa3]]
    %v2259 = vstv %s2258
    %v2260 = vmul.f32 %v1970, %v2259
    %v2261 = vmul.f32 %v1978, %v2259
    %v2264 = vrot.slane %v2260, 1
    %v2265 = vrot.slane %v2261, 1
    %2266 = vrot.lane.b32.xlu0 %v2264, 127
    %v2267 = vpop.permute.xlu0 %2266
    %2268 = vrot.lane.b32.xlu0 %v2265, 127
    %v2269 = vpop.permute.xlu0 %2268
    %v2272 = vadd.f32 %v2172, %v2267
    %v2273 = vadd.f32 %v2173, %v2269
    %s2274 = sld [smem:[#allocation2 + $0xc3]]
    %v2275 = vstv %s2274
    %v2276 = vmul.f32 %v1970, %v2275
    %v2277 = vmul.f32 %v1978, %v2275
    %v2280 = vrot.slane %v2276, 1
    %v2281 = vrot.slane %v2277, 1
    %2282 = vrot.lane.b32.xlu0 %v2280, 127
    %v2283 = vpop.permute.xlu0 %2282
    %2284 = vrot.lane.b32.xlu0 %v2281, 127
    %v2285 = vpop.permute.xlu0 %2284
    %v2288 = vadd.f32 %v2184, %v2283
    %v2289 = vadd.f32 %v2185, %v2285
    %s2290 = sld [smem:[#allocation2 + $0xe3]]
    %v2291 = vstv %s2290
    %v2292 = vmul.f32 %v1970, %v2291
    %v2293 = vmul.f32 %v1978, %v2291
    %v2296 = vrot.slane %v2292, 1
    %v2297 = vrot.slane %v2293, 1
    %2298 = vrot.lane.b32.xlu0 %v2296, 127
    %v2299 = vpop.permute.xlu0 %2298
    %2300 = vrot.lane.b32.xlu0 %v2297, 127
    %v2301 = vpop.permute.xlu0 %2300
    %v2304 = vadd.f32 %v2196, %v2299
    %v2305 = vadd.f32 %v2197, %v2301
    %s2306 = sld [smem:[#allocation2 + $0x103]]
    %v2307 = vstv %s2306
    %v2308 = vmul.f32 %v1970, %v2307
    %v2309 = vmul.f32 %v1978, %v2307
    %v2312 = vrot.slane %v2308, 1
    %v2313 = vrot.slane %v2309, 1
    %2314 = vrot.lane.b32.xlu0 %v2312, 127
    %v2315 = vpop.permute.xlu0 %2314
    %2316 = vrot.lane.b32.xlu0 %v2313, 127
    %v2317 = vpop.permute.xlu0 %2316
    %v2320 = vadd.f32 %v2208, %v2315
    %v2321 = vadd.f32 %v2209, %v2317
    %s2322 = sld [smem:[#allocation2 + $0x123]]
    %v2323 = vstv %s2322
    %v2324 = vmul.f32 %v1970, %v2323
    %v2325 = vmul.f32 %v1978, %v2323
    %v2328 = vrot.slane %v2324, 1
    %v2329 = vrot.slane %v2325, 1
    %2330 = vrot.lane.b32.xlu0 %v2328, 127
    %v2331 = vpop.permute.xlu0 %2330
    %2332 = vrot.lane.b32.xlu0 %v2329, 127
    %v2333 = vpop.permute.xlu0 %2332
    %v2336 = vadd.f32 %v2220, %v2331
    %v2337 = vadd.f32 %v2221, %v2333
    %s2338 = sld [smem:[#allocation2 + $0x143]]
    %v2339 = vstv %s2338
    %v2340 = vmul.f32 %v1970, %v2339
    %v2341 = vmul.f32 %v1978, %v2339
    %v2344 = vrot.slane %v2340, 1
    %v2345 = vrot.slane %v2341, 1
    %2346 = vrot.lane.b32.xlu0 %v2344, 127
    %v2347 = vpop.permute.xlu0 %2346
    %2348 = vrot.lane.b32.xlu0 %v2345, 127
    %v2349 = vpop.permute.xlu0 %2348
    %v2352 = vadd.f32 %v2232, %v2347
    %v2353 = vadd.f32 %v2233, %v2349
    %s2354 = sld [smem:[#allocation2 + $0x163]]
    %v2355 = vstv %s2354
    %v2356 = vmul.f32 %v1970, %v2355
    %v2357 = vmul.f32 %v1978, %v2355
    %v2360 = vrot.slane %v2356, 1
    %v2361 = vrot.slane %v2357, 1
    %2362 = vrot.lane.b32.xlu0 %v2360, 127
    %v2363 = vpop.permute.xlu0 %2362
    %2364 = vrot.lane.b32.xlu0 %v2361, 127
    %v2365 = vpop.permute.xlu0 %2364
    %v2368 = vadd.f32 %v2244, %v2363
    %v2369 = vadd.f32 %v2245, %v2365
    %s2370 = sld [smem:[#allocation2 + $0x183]]
    %v2371 = vstv %s2370
    %v2372 = vmul.f32 %v1970, %v2371
    %v2373 = vmul.f32 %v1978, %v2371
    %v2376 = vrot.slane %v2372, 1
    %v2377 = vrot.slane %v2373, 1
    %2378 = vrot.lane.b32.xlu0 %v2376, 127
    %v2379 = vpop.permute.xlu0 %2378
    %2380 = vrot.lane.b32.xlu0 %v2377, 127
    %v2381 = vpop.permute.xlu0 %2380
    %v2384 = vadd.f32 %v2256, %v2379
    %v2385 = vadd.f32 %v2257, %v2381
    %s2386 = sld [smem:[#allocation2 + $0xa4]]
    %v2387 = vstv %s2386
    %v2388 = vmul.f32 %v1971, %v2387
    %v2389 = vmul.f32 %v1979, %v2387
    %v2390 = vadd.f32 %v2272, %v2388
    %v2391 = vadd.f32 %v2273, %v2389
    %s2392 = sld [smem:[#allocation2 + $0xc4]]
    %v2393 = vstv %s2392
    %v2394 = vmul.f32 %v1971, %v2393
    %v2395 = vmul.f32 %v1979, %v2393
    %v2396 = vadd.f32 %v2288, %v2394
    %v2397 = vadd.f32 %v2289, %v2395
    %s2398 = sld [smem:[#allocation2 + $0xe4]]
    %v2399 = vstv %s2398
    %v2400 = vmul.f32 %v1971, %v2399
    %v2401 = vmul.f32 %v1979, %v2399
    %v2402 = vadd.f32 %v2304, %v2400
    %v2403 = vadd.f32 %v2305, %v2401
    %s2404 = sld [smem:[#allocation2 + $0x104]]
    %v2405 = vstv %s2404
    %v2406 = vmul.f32 %v1971, %v2405
    %v2407 = vmul.f32 %v1979, %v2405
    %v2408 = vadd.f32 %v2320, %v2406
    %v2409 = vadd.f32 %v2321, %v2407
    %s2410 = sld [smem:[#allocation2 + $0x124]]
    %v2411 = vstv %s2410
    %v2412 = vmul.f32 %v1971, %v2411
    %v2413 = vmul.f32 %v1979, %v2411
    %v2414 = vadd.f32 %v2336, %v2412
    %v2415 = vadd.f32 %v2337, %v2413
    %s2416 = sld [smem:[#allocation2 + $0x144]]
    %v2417 = vstv %s2416
    %v2418 = vmul.f32 %v1971, %v2417
    %v2419 = vmul.f32 %v1979, %v2417
    %v2420 = vadd.f32 %v2352, %v2418
    %v2421 = vadd.f32 %v2353, %v2419
    %s2422 = sld [smem:[#allocation2 + $0x164]]
    %v2423 = vstv %s2422
    %v2424 = vmul.f32 %v1971, %v2423
    %v2425 = vmul.f32 %v1979, %v2423
    %v2426 = vadd.f32 %v2368, %v2424
    %v2427 = vadd.f32 %v2369, %v2425
    %s2428 = sld [smem:[#allocation2 + $0x184]]
    %v2429 = vstv %s2428
    %v2430 = vmul.f32 %v1971, %v2429
    %v2431 = vmul.f32 %v1979, %v2429
    %v2432 = vadd.f32 %v2384, %v2430
    %v2433 = vadd.f32 %v2385, %v2431
    %s2434 = sld [smem:[#allocation2 + $0xa5]]
    %v2435 = vstv %s2434
    %v2436 = vmul.f32 %v1971, %v2435
    %v2437 = vmul.f32 %v1979, %v2435
    %2440 = vrot.lane.b32.xlu0 %v2436, 127
    %v2441 = vpop.permute.xlu0 %2440
    %2442 = vrot.lane.b32.xlu0 %v2437, 127
    %v2443 = vpop.permute.xlu0 %2442
    %v2446 = vadd.f32 %v2390, %v2441
    %v2447 = vadd.f32 %v2391, %v2443
    %s2448 = sld [smem:[#allocation2 + $0xc5]]
    %v2449 = vstv %s2448
    %v2450 = vmul.f32 %v1971, %v2449
    %v2451 = vmul.f32 %v1979, %v2449
    %2454 = vrot.lane.b32.xlu0 %v2450, 127
    %v2455 = vpop.permute.xlu0 %2454
    %2456 = vrot.lane.b32.xlu0 %v2451, 127
    %v2457 = vpop.permute.xlu0 %2456
    %v2460 = vadd.f32 %v2396, %v2455
    %v2461 = vadd.f32 %v2397, %v2457
    %s2462 = sld [smem:[#allocation2 + $0xe5]]
    %v2463 = vstv %s2462
    %v2464 = vmul.f32 %v1971, %v2463
    %v2465 = vmul.f32 %v1979, %v2463
    %2468 = vrot.lane.b32.xlu0 %v2464, 127
    %v2469 = vpop.permute.xlu0 %2468
    %2470 = vrot.lane.b32.xlu0 %v2465, 127
    %v2471 = vpop.permute.xlu0 %2470
    %v2474 = vadd.f32 %v2402, %v2469
    %v2475 = vadd.f32 %v2403, %v2471
    %s2476 = sld [smem:[#allocation2 + $0x105]]
    %v2477 = vstv %s2476
    %v2478 = vmul.f32 %v1971, %v2477
    %v2479 = vmul.f32 %v1979, %v2477
    %2482 = vrot.lane.b32.xlu0 %v2478, 127
    %v2483 = vpop.permute.xlu0 %2482
    %2484 = vrot.lane.b32.xlu0 %v2479, 127
    %v2485 = vpop.permute.xlu0 %2484
    %v2488 = vadd.f32 %v2408, %v2483
    %v2489 = vadd.f32 %v2409, %v2485
    %s2490 = sld [smem:[#allocation2 + $0x125]]
    %v2491 = vstv %s2490
    %v2492 = vmul.f32 %v1971, %v2491
    %v2493 = vmul.f32 %v1979, %v2491
    %2496 = vrot.lane.b32.xlu0 %v2492, 127
    %v2497 = vpop.permute.xlu0 %2496
    %2498 = vrot.lane.b32.xlu0 %v2493, 127
    %v2499 = vpop.permute.xlu0 %2498
    %v2502 = vadd.f32 %v2414, %v2497
    %v2503 = vadd.f32 %v2415, %v2499
    %s2504 = sld [smem:[#allocation2 + $0x145]]
    %v2505 = vstv %s2504
    %v2506 = vmul.f32 %v1971, %v2505
    %v2507 = vmul.f32 %v1979, %v2505
    %2510 = vrot.lane.b32.xlu0 %v2506, 127
    %v2511 = vpop.permute.xlu0 %2510
    %2512 = vrot.lane.b32.xlu0 %v2507, 127
    %v2513 = vpop.permute.xlu0 %2512
    %v2516 = vadd.f32 %v2420, %v2511
    %v2517 = vadd.f32 %v2421, %v2513
    %s2518 = sld [smem:[#allocation2 + $0x165]]
    %v2519 = vstv %s2518
    %v2520 = vmul.f32 %v1971, %v2519
    %v2521 = vmul.f32 %v1979, %v2519
    %2524 = vrot.lane.b32.xlu0 %v2520, 127
    %v2525 = vpop.permute.xlu0 %2524
    %2526 = vrot.lane.b32.xlu0 %v2521, 127
    %v2527 = vpop.permute.xlu0 %2526
    %v2530 = vadd.f32 %v2426, %v2525
    %v2531 = vadd.f32 %v2427, %v2527
    %s2532 = sld [smem:[#allocation2 + $0x185]]
    %v2533 = vstv %s2532
    %v2534 = vmul.f32 %v1971, %v2533
    %v2535 = vmul.f32 %v1979, %v2533
    %2538 = vrot.lane.b32.xlu0 %v2534, 127
    %v2539 = vpop.permute.xlu0 %2538
    %2540 = vrot.lane.b32.xlu0 %v2535, 127
    %v2541 = vpop.permute.xlu0 %2540
    %v2544 = vadd.f32 %v2432, %v2539
    %v2545 = vadd.f32 %v2433, %v2541
    %s2546 = sld [smem:[#allocation2 + $0xa6]]
    %v2547 = vstv %s2546
    %v2548 = vmul.f32 %v1971, %v2547
    %v2549 = vmul.f32 %v1979, %v2547
    %v2552 = vrot.slane %v2548, 1
    %v2553 = vrot.slane %v2549, 1
    %v2556 = vadd.f32 %v2446, %v2552
    %v2557 = vadd.f32 %v2447, %v2553
    %s2558 = sld [smem:[#allocation2 + $0xc6]]
    %v2559 = vstv %s2558
    %v2560 = vmul.f32 %v1971, %v2559
    %v2561 = vmul.f32 %v1979, %v2559
    %v2564 = vrot.slane %v2560, 1
    %v2565 = vrot.slane %v2561, 1
    %v2568 = vadd.f32 %v2460, %v2564
    %v2569 = vadd.f32 %v2461, %v2565
    %s2570 = sld [smem:[#allocation2 + $0xe6]]
    %v2571 = vstv %s2570
    %v2572 = vmul.f32 %v1971, %v2571
    %v2573 = vmul.f32 %v1979, %v2571
    %v2576 = vrot.slane %v2572, 1
    %v2577 = vrot.slane %v2573, 1
    %v2580 = vadd.f32 %v2474, %v2576
    %v2581 = vadd.f32 %v2475, %v2577
    %s2582 = sld [smem:[#allocation2 + $0x106]]
    %v2583 = vstv %s2582
    %v2584 = vmul.f32 %v1971, %v2583
    %v2585 = vmul.f32 %v1979, %v2583
    %v2588 = vrot.slane %v2584, 1
    %v2589 = vrot.slane %v2585, 1
    %v2592 = vadd.f32 %v2488, %v2588
    %v2593 = vadd.f32 %v2489, %v2589
    %s2594 = sld [smem:[#allocation2 + $0x126]]
    %v2595 = vstv %s2594
    %v2596 = vmul.f32 %v1971, %v2595
    %v2597 = vmul.f32 %v1979, %v2595
    %v2600 = vrot.slane %v2596, 1
    %v2601 = vrot.slane %v2597, 1
    %v2604 = vadd.f32 %v2502, %v2600
    %v2605 = vadd.f32 %v2503, %v2601
    %s2606 = sld [smem:[#allocation2 + $0x146]]
    %v2607 = vstv %s2606
    %v2608 = vmul.f32 %v1971, %v2607
    %v2609 = vmul.f32 %v1979, %v2607
    %v2612 = vrot.slane %v2608, 1
    %v2613 = vrot.slane %v2609, 1
    %v2616 = vadd.f32 %v2516, %v2612
    %v2617 = vadd.f32 %v2517, %v2613
    %s2618 = sld [smem:[#allocation2 + $0x166]]
    %v2619 = vstv %s2618
    %v2620 = vmul.f32 %v1971, %v2619
    %v2621 = vmul.f32 %v1979, %v2619
    %v2624 = vrot.slane %v2620, 1
    %v2625 = vrot.slane %v2621, 1
    %v2628 = vadd.f32 %v2530, %v2624
    %v2629 = vadd.f32 %v2531, %v2625
    %s2630 = sld [smem:[#allocation2 + $0x186]]
    %v2631 = vstv %s2630
    %v2632 = vmul.f32 %v1971, %v2631
    %v2633 = vmul.f32 %v1979, %v2631
    %v2636 = vrot.slane %v2632, 1
    %v2637 = vrot.slane %v2633, 1
    %v2640 = vadd.f32 %v2544, %v2636
    %v2641 = vadd.f32 %v2545, %v2637
    %s2642 = sld [smem:[#allocation2 + $0xa7]]
    %v2643 = vstv %s2642
    %v2644 = vmul.f32 %v1971, %v2643
    %v2645 = vmul.f32 %v1979, %v2643
    %v2648 = vrot.slane %v2644, 1
    %v2649 = vrot.slane %v2645, 1
    %2650 = vrot.lane.b32.xlu0 %v2648, 127
    %v2651 = vpop.permute.xlu0 %2650
    %2652 = vrot.lane.b32.xlu0 %v2649, 127
    %v2653 = vpop.permute.xlu0 %2652
    %v2656 = vadd.f32 %v2556, %v2651
    %v2657 = vadd.f32 %v2557, %v2653
    %s2658 = sld [smem:[#allocation2 + $0xc7]]
    %v2659 = vstv %s2658
    %v2660 = vmul.f32 %v1971, %v2659
    %v2661 = vmul.f32 %v1979, %v2659
    %v2664 = vrot.slane %v2660, 1
    %v2665 = vrot.slane %v2661, 1
    %2666 = vrot.lane.b32.xlu0 %v2664, 127
    %v2667 = vpop.permute.xlu0 %2666
    %2668 = vrot.lane.b32.xlu0 %v2665, 127
    %v2669 = vpop.permute.xlu0 %2668
    %v2672 = vadd.f32 %v2568, %v2667
    %v2673 = vadd.f32 %v2569, %v2669
    %s2674 = sld [smem:[#allocation2 + $0xe7]]
    %v2675 = vstv %s2674
    %v2676 = vmul.f32 %v1971, %v2675
    %v2677 = vmul.f32 %v1979, %v2675
    %v2680 = vrot.slane %v2676, 1
    %v2681 = vrot.slane %v2677, 1
    %2682 = vrot.lane.b32.xlu0 %v2680, 127
    %v2683 = vpop.permute.xlu0 %2682
    %2684 = vrot.lane.b32.xlu0 %v2681, 127
    %v2685 = vpop.permute.xlu0 %2684
    %v2688 = vadd.f32 %v2580, %v2683
    %v2689 = vadd.f32 %v2581, %v2685
    %s2690 = sld [smem:[#allocation2 + $0x107]]
    %v2691 = vstv %s2690
    %v2692 = vmul.f32 %v1971, %v2691
    %v2693 = vmul.f32 %v1979, %v2691
    %v2696 = vrot.slane %v2692, 1
    %v2697 = vrot.slane %v2693, 1
    %2698 = vrot.lane.b32.xlu0 %v2696, 127
    %v2699 = vpop.permute.xlu0 %2698
    %2700 = vrot.lane.b32.xlu0 %v2697, 127
    %v2701 = vpop.permute.xlu0 %2700
    %v2704 = vadd.f32 %v2592, %v2699
    %v2705 = vadd.f32 %v2593, %v2701
    %s2706 = sld [smem:[#allocation2 + $0x127]]
    %v2707 = vstv %s2706
    %v2708 = vmul.f32 %v1971, %v2707
    %v2709 = vmul.f32 %v1979, %v2707
    %v2712 = vrot.slane %v2708, 1
    %v2713 = vrot.slane %v2709, 1
    %2714 = vrot.lane.b32.xlu0 %v2712, 127
    %v2715 = vpop.permute.xlu0 %2714
    %2716 = vrot.lane.b32.xlu0 %v2713, 127
    %v2717 = vpop.permute.xlu0 %2716
    %v2720 = vadd.f32 %v2604, %v2715
    %v2721 = vadd.f32 %v2605, %v2717
    %s2722 = sld [smem:[#allocation2 + $0x147]]
    %v2723 = vstv %s2722
    %v2724 = vmul.f32 %v1971, %v2723
    %v2725 = vmul.f32 %v1979, %v2723
    %v2728 = vrot.slane %v2724, 1
    %v2729 = vrot.slane %v2725, 1
    %2730 = vrot.lane.b32.xlu0 %v2728, 127
    %v2731 = vpop.permute.xlu0 %2730
    %2732 = vrot.lane.b32.xlu0 %v2729, 127
    %v2733 = vpop.permute.xlu0 %2732
    %v2736 = vadd.f32 %v2616, %v2731
    %v2737 = vadd.f32 %v2617, %v2733
    %s2738 = sld [smem:[#allocation2 + $0x167]]
    %v2739 = vstv %s2738
    %v2740 = vmul.f32 %v1971, %v2739
    %v2741 = vmul.f32 %v1979, %v2739
    %v2744 = vrot.slane %v2740, 1
    %v2745 = vrot.slane %v2741, 1
    %2746 = vrot.lane.b32.xlu0 %v2744, 127
    %v2747 = vpop.permute.xlu0 %2746
    %2748 = vrot.lane.b32.xlu0 %v2745, 127
    %v2749 = vpop.permute.xlu0 %2748
    %v2752 = vadd.f32 %v2628, %v2747
    %v2753 = vadd.f32 %v2629, %v2749
    %s2754 = sld [smem:[#allocation2 + $0x187]]
    %v2755 = vstv %s2754
    %v2756 = vmul.f32 %v1971, %v2755
    %v2757 = vmul.f32 %v1979, %v2755
    %v2760 = vrot.slane %v2756, 1
    %v2761 = vrot.slane %v2757, 1
    %2762 = vrot.lane.b32.xlu0 %v2760, 127
    %v2763 = vpop.permute.xlu0 %2762
    %2764 = vrot.lane.b32.xlu0 %v2761, 127
    %v2765 = vpop.permute.xlu0 %2764
    %v2768 = vadd.f32 %v2640, %v2763
    %v2769 = vadd.f32 %v2641, %v2765
    %s2770 = sld [smem:[#allocation2 + $0xa8]]
    %v2771 = vstv %s2770
    %v2772 = vmul.f32 %v1972, %v2771
    %v2773 = vmul.f32 %v1980, %v2771
    %v2774 = vadd.f32 %v2656, %v2772
    %v2775 = vadd.f32 %v2657, %v2773
    %s2776 = sld [smem:[#allocation2 + $0xc8]]
    %v2777 = vstv %s2776
    %v2778 = vmul.f32 %v1972, %v2777
    %v2779 = vmul.f32 %v1980, %v2777
    %v2780 = vadd.f32 %v2672, %v2778
    %v2781 = vadd.f32 %v2673, %v2779
    %s2782 = sld [smem:[#allocation2 + $0xe8]]
    %v2783 = vstv %s2782
    %v2784 = vmul.f32 %v1972, %v2783
    %v2785 = vmul.f32 %v1980, %v2783
    %v2786 = vadd.f32 %v2688, %v2784
    %v2787 = vadd.f32 %v2689, %v2785
    %s2788 = sld [smem:[#allocation2 + $0x108]]
    %v2789 = vstv %s2788
    %v2790 = vmul.f32 %v1972, %v2789
    %v2791 = vmul.f32 %v1980, %v2789
    %v2792 = vadd.f32 %v2704, %v2790
    %v2793 = vadd.f32 %v2705, %v2791
    %s2794 = sld [smem:[#allocation2 + $0x128]]
    %v2795 = vstv %s2794
    %v2796 = vmul.f32 %v1972, %v2795
    %v2797 = vmul.f32 %v1980, %v2795
    %v2798 = vadd.f32 %v2720, %v2796
    %v2799 = vadd.f32 %v2721, %v2797
    %s2800 = sld [smem:[#allocation2 + $0x148]]
    %v2801 = vstv %s2800
    %v2802 = vmul.f32 %v1972, %v2801
    %v2803 = vmul.f32 %v1980, %v2801
    %v2804 = vadd.f32 %v2736, %v2802
    %v2805 = vadd.f32 %v2737, %v2803
    %s2806 = sld [smem:[#allocation2 + $0x168]]
    %v2807 = vstv %s2806
    %v2808 = vmul.f32 %v1972, %v2807
    %v2809 = vmul.f32 %v1980, %v2807
    %v2810 = vadd.f32 %v2752, %v2808
    %v2811 = vadd.f32 %v2753, %v2809
    %s2812 = sld [smem:[#allocation2 + $0x188]]
    %v2813 = vstv %s2812
    %v2814 = vmul.f32 %v1972, %v2813
    %v2815 = vmul.f32 %v1980, %v2813
    %v2816 = vadd.f32 %v2768, %v2814
    %v2817 = vadd.f32 %v2769, %v2815
    %s2818 = sld [smem:[#allocation2 + $0xa9]]
    %v2819 = vstv %s2818
    %v2820 = vmul.f32 %v1972, %v2819
    %v2821 = vmul.f32 %v1980, %v2819
    %2824 = vrot.lane.b32.xlu0 %v2820, 127
    %v2825 = vpop.permute.xlu0 %2824
    %2826 = vrot.lane.b32.xlu0 %v2821, 127
    %v2827 = vpop.permute.xlu0 %2826
    %v2830 = vadd.f32 %v2774, %v2825
    %v2831 = vadd.f32 %v2775, %v2827
    %s2832 = sld [smem:[#allocation2 + $0xc9]]
    %v2833 = vstv %s2832
    %v2834 = vmul.f32 %v1972, %v2833
    %v2835 = vmul.f32 %v1980, %v2833
    %2838 = vrot.lane.b32.xlu0 %v2834, 127
    %v2839 = vpop.permute.xlu0 %2838
    %2840 = vrot.lane.b32.xlu0 %v2835, 127
    %v2841 = vpop.permute.xlu0 %2840
    %v2844 = vadd.f32 %v2780, %v2839
    %v2845 = vadd.f32 %v2781, %v2841
    %s2846 = sld [smem:[#allocation2 + $0xe9]]
    %v2847 = vstv %s2846
    %v2848 = vmul.f32 %v1972, %v2847
    %v2849 = vmul.f32 %v1980, %v2847
    %2852 = vrot.lane.b32.xlu0 %v2848, 127
    %v2853 = vpop.permute.xlu0 %2852
    %2854 = vrot.lane.b32.xlu0 %v2849, 127
    %v2855 = vpop.permute.xlu0 %2854
    %v2858 = vadd.f32 %v2786, %v2853
    %v2859 = vadd.f32 %v2787, %v2855
    %s2860 = sld [smem:[#allocation2 + $0x109]]
    %v2861 = vstv %s2860
    %v2862 = vmul.f32 %v1972, %v2861
    %v2863 = vmul.f32 %v1980, %v2861
    %2866 = vrot.lane.b32.xlu0 %v2862, 127
    %v2867 = vpop.permute.xlu0 %2866
    %2868 = vrot.lane.b32.xlu0 %v2863, 127
    %v2869 = vpop.permute.xlu0 %2868
    %v2872 = vadd.f32 %v2792, %v2867
    %v2873 = vadd.f32 %v2793, %v2869
    %s2874 = sld [smem:[#allocation2 + $0x129]]
    %v2875 = vstv %s2874
    %v2876 = vmul.f32 %v1972, %v2875
    %v2877 = vmul.f32 %v1980, %v2875
    %2880 = vrot.lane.b32.xlu0 %v2876, 127
    %v2881 = vpop.permute.xlu0 %2880
    %2882 = vrot.lane.b32.xlu0 %v2877, 127
    %v2883 = vpop.permute.xlu0 %2882
    %v2886 = vadd.f32 %v2798, %v2881
    %v2887 = vadd.f32 %v2799, %v2883
    %s2888 = sld [smem:[#allocation2 + $0x149]]
    %v2889 = vstv %s2888
    %v2890 = vmul.f32 %v1972, %v2889
    %v2891 = vmul.f32 %v1980, %v2889
    %2894 = vrot.lane.b32.xlu0 %v2890, 127
    %v2895 = vpop.permute.xlu0 %2894
    %2896 = vrot.lane.b32.xlu0 %v2891, 127
    %v2897 = vpop.permute.xlu0 %2896
    %v2900 = vadd.f32 %v2804, %v2895
    %v2901 = vadd.f32 %v2805, %v2897
    %s2902 = sld [smem:[#allocation2 + $0x169]]
    %v2903 = vstv %s2902
    %v2904 = vmul.f32 %v1972, %v2903
    %v2905 = vmul.f32 %v1980, %v2903
    %2908 = vrot.lane.b32.xlu0 %v2904, 127
    %v2909 = vpop.permute.xlu0 %2908
    %2910 = vrot.lane.b32.xlu0 %v2905, 127
    %v2911 = vpop.permute.xlu0 %2910
    %v2914 = vadd.f32 %v2810, %v2909
    %v2915 = vadd.f32 %v2811, %v2911
    %s2916 = sld [smem:[#allocation2 + $0x189]]
    %v2917 = vstv %s2916
    %v2918 = vmul.f32 %v1972, %v2917
    %v2919 = vmul.f32 %v1980, %v2917
    %2922 = vrot.lane.b32.xlu0 %v2918, 127
    %v2923 = vpop.permute.xlu0 %2922
    %2924 = vrot.lane.b32.xlu0 %v2919, 127
    %v2925 = vpop.permute.xlu0 %2924
    %v2928 = vadd.f32 %v2816, %v2923
    %v2929 = vadd.f32 %v2817, %v2925
    %s2930 = sld [smem:[#allocation2 + $0xaa]]
    %v2931 = vstv %s2930
    %v2932 = vmul.f32 %v1972, %v2931
    %v2933 = vmul.f32 %v1980, %v2931
    %v2936 = vrot.slane %v2932, 1
    %v2937 = vrot.slane %v2933, 1
    %v2940 = vadd.f32 %v2830, %v2936
    %v2941 = vadd.f32 %v2831, %v2937
    %s2942 = sld [smem:[#allocation2 + $0xca]]
    %v2943 = vstv %s2942
    %v2944 = vmul.f32 %v1972, %v2943
    %v2945 = vmul.f32 %v1980, %v2943
    %v2948 = vrot.slane %v2944, 1
    %v2949 = vrot.slane %v2945, 1
    %v2952 = vadd.f32 %v2844, %v2948
    %v2953 = vadd.f32 %v2845, %v2949
    %s2954 = sld [smem:[#allocation2 + $0xea]]
    %v2955 = vstv %s2954
    %v2956 = vmul.f32 %v1972, %v2955
    %v2957 = vmul.f32 %v1980, %v2955
    %v2960 = vrot.slane %v2956, 1
    %v2961 = vrot.slane %v2957, 1
    %v2964 = vadd.f32 %v2858, %v2960
    %v2965 = vadd.f32 %v2859, %v2961
    %s2966 = sld [smem:[#allocation2 + $0x10a]]
    %v2967 = vstv %s2966
    %v2968 = vmul.f32 %v1972, %v2967
    %v2969 = vmul.f32 %v1980, %v2967
    %v2972 = vrot.slane %v2968, 1
    %v2973 = vrot.slane %v2969, 1
    %v2976 = vadd.f32 %v2872, %v2972
    %v2977 = vadd.f32 %v2873, %v2973
    %s2978 = sld [smem:[#allocation2 + $0x12a]]
    %v2979 = vstv %s2978
    %v2980 = vmul.f32 %v1972, %v2979
    %v2981 = vmul.f32 %v1980, %v2979
    %v2984 = vrot.slane %v2980, 1
    %v2985 = vrot.slane %v2981, 1
    %v2988 = vadd.f32 %v2886, %v2984
    %v2989 = vadd.f32 %v2887, %v2985
    %s2990 = sld [smem:[#allocation2 + $0x14a]]
    %v2991 = vstv %s2990
    %v2992 = vmul.f32 %v1972, %v2991
    %v2993 = vmul.f32 %v1980, %v2991
    %v2996 = vrot.slane %v2992, 1
    %v2997 = vrot.slane %v2993, 1
    %v3000 = vadd.f32 %v2900, %v2996
    %v3001 = vadd.f32 %v2901, %v2997
    %s3002 = sld [smem:[#allocation2 + $0x16a]]
    %v3003 = vstv %s3002
    %v3004 = vmul.f32 %v1972, %v3003
    %v3005 = vmul.f32 %v1980, %v3003
    %v3008 = vrot.slane %v3004, 1
    %v3009 = vrot.slane %v3005, 1
    %v3012 = vadd.f32 %v2914, %v3008
    %v3013 = vadd.f32 %v2915, %v3009
    %s3014 = sld [smem:[#allocation2 + $0x18a]]
    %v3015 = vstv %s3014
    %v3016 = vmul.f32 %v1972, %v3015
    %v3017 = vmul.f32 %v1980, %v3015
    %v3020 = vrot.slane %v3016, 1
    %v3021 = vrot.slane %v3017, 1
    %v3024 = vadd.f32 %v2928, %v3020
    %v3025 = vadd.f32 %v2929, %v3021
    %s3026 = sld [smem:[#allocation2 + $0xab]]
    %v3027 = vstv %s3026
    %v3028 = vmul.f32 %v1972, %v3027
    %v3029 = vmul.f32 %v1980, %v3027
    %v3032 = vrot.slane %v3028, 1
    %v3033 = vrot.slane %v3029, 1
    %3034 = vrot.lane.b32.xlu0 %v3032, 127
    %v3035 = vpop.permute.xlu0 %3034
    %3036 = vrot.lane.b32.xlu0 %v3033, 127
    %v3037 = vpop.permute.xlu0 %3036
    %v3040 = vadd.f32 %v2940, %v3035
    %v3041 = vadd.f32 %v2941, %v3037
    %s3042 = sld [smem:[#allocation2 + $0xcb]]
    %v3043 = vstv %s3042
    %v3044 = vmul.f32 %v1972, %v3043
    %v3045 = vmul.f32 %v1980, %v3043
    %v3048 = vrot.slane %v3044, 1
    %v3049 = vrot.slane %v3045, 1
    %3050 = vrot.lane.b32.xlu0 %v3048, 127
    %v3051 = vpop.permute.xlu0 %3050
    %3052 = vrot.lane.b32.xlu0 %v3049, 127
    %v3053 = vpop.permute.xlu0 %3052
    %v3056 = vadd.f32 %v2952, %v3051
    %v3057 = vadd.f32 %v2953, %v3053
    %s3058 = sld [smem:[#allocation2 + $0xeb]]
    %v3059 = vstv %s3058
    %v3060 = vmul.f32 %v1972, %v3059
    %v3061 = vmul.f32 %v1980, %v3059
    %v3064 = vrot.slane %v3060, 1
    %v3065 = vrot.slane %v3061, 1
    %3066 = vrot.lane.b32.xlu0 %v3064, 127
    %v3067 = vpop.permute.xlu0 %3066
    %3068 = vrot.lane.b32.xlu0 %v3065, 127
    %v3069 = vpop.permute.xlu0 %3068
    %v3072 = vadd.f32 %v2964, %v3067
    %v3073 = vadd.f32 %v2965, %v3069
    %s3074 = sld [smem:[#allocation2 + $0x10b]]
    %v3075 = vstv %s3074
    %v3076 = vmul.f32 %v1972, %v3075
    %v3077 = vmul.f32 %v1980, %v3075
    %v3080 = vrot.slane %v3076, 1
    %v3081 = vrot.slane %v3077, 1
    %3082 = vrot.lane.b32.xlu0 %v3080, 127
    %v3083 = vpop.permute.xlu0 %3082
    %3084 = vrot.lane.b32.xlu0 %v3081, 127
    %v3085 = vpop.permute.xlu0 %3084
    %v3088 = vadd.f32 %v2976, %v3083
    %v3089 = vadd.f32 %v2977, %v3085
    %s3090 = sld [smem:[#allocation2 + $0x12b]]
    %v3091 = vstv %s3090
    %v3092 = vmul.f32 %v1972, %v3091
    %v3093 = vmul.f32 %v1980, %v3091
    %v3096 = vrot.slane %v3092, 1
    %v3097 = vrot.slane %v3093, 1
    %3098 = vrot.lane.b32.xlu0 %v3096, 127
    %v3099 = vpop.permute.xlu0 %3098
    %3100 = vrot.lane.b32.xlu0 %v3097, 127
    %v3101 = vpop.permute.xlu0 %3100
    %v3104 = vadd.f32 %v2988, %v3099
    %v3105 = vadd.f32 %v2989, %v3101
    %s3106 = sld [smem:[#allocation2 + $0x14b]]
    %v3107 = vstv %s3106
    %v3108 = vmul.f32 %v1972, %v3107
    %v3109 = vmul.f32 %v1980, %v3107
    %v3112 = vrot.slane %v3108, 1
    %v3113 = vrot.slane %v3109, 1
    %3114 = vrot.lane.b32.xlu0 %v3112, 127
    %v3115 = vpop.permute.xlu0 %3114
    %3116 = vrot.lane.b32.xlu0 %v3113, 127
    %v3117 = vpop.permute.xlu0 %3116
    %v3120 = vadd.f32 %v3000, %v3115
    %v3121 = vadd.f32 %v3001, %v3117
    %s3122 = sld [smem:[#allocation2 + $0x16b]]
    %v3123 = vstv %s3122
    %v3124 = vmul.f32 %v1972, %v3123
    %v3125 = vmul.f32 %v1980, %v3123
    %v3128 = vrot.slane %v3124, 1
    %v3129 = vrot.slane %v3125, 1
    %3130 = vrot.lane.b32.xlu0 %v3128, 127
    %v3131 = vpop.permute.xlu0 %3130
    %3132 = vrot.lane.b32.xlu0 %v3129, 127
    %v3133 = vpop.permute.xlu0 %3132
    %v3136 = vadd.f32 %v3012, %v3131
    %v3137 = vadd.f32 %v3013, %v3133
    %s3138 = sld [smem:[#allocation2 + $0x18b]]
    %v3139 = vstv %s3138
    %v3140 = vmul.f32 %v1972, %v3139
    %v3141 = vmul.f32 %v1980, %v3139
    %v3144 = vrot.slane %v3140, 1
    %v3145 = vrot.slane %v3141, 1
    %3146 = vrot.lane.b32.xlu0 %v3144, 127
    %v3147 = vpop.permute.xlu0 %3146
    %3148 = vrot.lane.b32.xlu0 %v3145, 127
    %v3149 = vpop.permute.xlu0 %3148
    %v3152 = vadd.f32 %v3024, %v3147
    %v3153 = vadd.f32 %v3025, %v3149
    %s3154 = sld [smem:[#allocation2 + $0xac]]
    %v3155 = vstv %s3154
    %v3156 = vmul.f32 %v1973, %v3155
    %v3157 = vmul.f32 %v1981, %v3155
    %v3158 = vadd.f32 %v3040, %v3156
    %v3159 = vadd.f32 %v3041, %v3157
    %s3160 = sld [smem:[#allocation2 + $0xcc]]
    %v3161 = vstv %s3160
    %v3162 = vmul.f32 %v1973, %v3161
    %v3163 = vmul.f32 %v1981, %v3161
    %v3164 = vadd.f32 %v3056, %v3162
    %v3165 = vadd.f32 %v3057, %v3163
    %s3166 = sld [smem:[#allocation2 + $0xec]]
    %v3167 = vstv %s3166
    %v3168 = vmul.f32 %v1973, %v3167
    %v3169 = vmul.f32 %v1981, %v3167
    %v3170 = vadd.f32 %v3072, %v3168
    %v3171 = vadd.f32 %v3073, %v3169
    %s3172 = sld [smem:[#allocation2 + $0x10c]]
    %v3173 = vstv %s3172
    %v3174 = vmul.f32 %v1973, %v3173
    %v3175 = vmul.f32 %v1981, %v3173
    %v3176 = vadd.f32 %v3088, %v3174
    %v3177 = vadd.f32 %v3089, %v3175
    %s3178 = sld [smem:[#allocation2 + $0x12c]]
    %v3179 = vstv %s3178
    %v3180 = vmul.f32 %v1973, %v3179
    %v3181 = vmul.f32 %v1981, %v3179
    %v3182 = vadd.f32 %v3104, %v3180
    %v3183 = vadd.f32 %v3105, %v3181
    %s3184 = sld [smem:[#allocation2 + $0x14c]]
    %v3185 = vstv %s3184
    %v3186 = vmul.f32 %v1973, %v3185
    %v3187 = vmul.f32 %v1981, %v3185
    %v3188 = vadd.f32 %v3120, %v3186
    %v3189 = vadd.f32 %v3121, %v3187
    %s3190 = sld [smem:[#allocation2 + $0x16c]]
    %v3191 = vstv %s3190
    %v3192 = vmul.f32 %v1973, %v3191
    %v3193 = vmul.f32 %v1981, %v3191
    %v3194 = vadd.f32 %v3136, %v3192
    %v3195 = vadd.f32 %v3137, %v3193
    %s3196 = sld [smem:[#allocation2 + $0x18c]]
    %v3197 = vstv %s3196
    %v3198 = vmul.f32 %v1973, %v3197
    %v3199 = vmul.f32 %v1981, %v3197
    %v3200 = vadd.f32 %v3152, %v3198
    %v3201 = vadd.f32 %v3153, %v3199
    %s3202 = sld [smem:[#allocation2 + $0xad]]
    %v3203 = vstv %s3202
    %v3204 = vmul.f32 %v1973, %v3203
    %v3205 = vmul.f32 %v1981, %v3203
    %3208 = vrot.lane.b32.xlu0 %v3204, 127
    %v3209 = vpop.permute.xlu0 %3208
    %3210 = vrot.lane.b32.xlu0 %v3205, 127
    %v3211 = vpop.permute.xlu0 %3210
    %v3214 = vadd.f32 %v3158, %v3209
    %v3215 = vadd.f32 %v3159, %v3211
    %s3216 = sld [smem:[#allocation2 + $0xcd]]
    %v3217 = vstv %s3216
    %v3218 = vmul.f32 %v1973, %v3217
    %v3219 = vmul.f32 %v1981, %v3217
    %3222 = vrot.lane.b32.xlu0 %v3218, 127
    %v3223 = vpop.permute.xlu0 %3222
    %3224 = vrot.lane.b32.xlu0 %v3219, 127
    %v3225 = vpop.permute.xlu0 %3224
    %v3228 = vadd.f32 %v3164, %v3223
    %v3229 = vadd.f32 %v3165, %v3225
    %s3230 = sld [smem:[#allocation2 + $0xed]]
    %v3231 = vstv %s3230
    %v3232 = vmul.f32 %v1973, %v3231
    %v3233 = vmul.f32 %v1981, %v3231
    %3236 = vrot.lane.b32.xlu0 %v3232, 127
    %v3237 = vpop.permute.xlu0 %3236
    %3238 = vrot.lane.b32.xlu0 %v3233, 127
    %v3239 = vpop.permute.xlu0 %3238
    %v3242 = vadd.f32 %v3170, %v3237
    %v3243 = vadd.f32 %v3171, %v3239
    %s3244 = sld [smem:[#allocation2 + $0x10d]]
    %v3245 = vstv %s3244
    %v3246 = vmul.f32 %v1973, %v3245
    %v3247 = vmul.f32 %v1981, %v3245
    %3250 = vrot.lane.b32.xlu0 %v3246, 127
    %v3251 = vpop.permute.xlu0 %3250
    %3252 = vrot.lane.b32.xlu0 %v3247, 127
    %v3253 = vpop.permute.xlu0 %3252
    %v3256 = vadd.f32 %v3176, %v3251
    %v3257 = vadd.f32 %v3177, %v3253
    %s3258 = sld [smem:[#allocation2 + $0x12d]]
    %v3259 = vstv %s3258
    %v3260 = vmul.f32 %v1973, %v3259
    %v3261 = vmul.f32 %v1981, %v3259
    %3264 = vrot.lane.b32.xlu0 %v3260, 127
    %v3265 = vpop.permute.xlu0 %3264
    %3266 = vrot.lane.b32.xlu0 %v3261, 127
    %v3267 = vpop.permute.xlu0 %3266
    %v3270 = vadd.f32 %v3182, %v3265
    %v3271 = vadd.f32 %v3183, %v3267
    %s3272 = sld [smem:[#allocation2 + $0x14d]]
    %v3273 = vstv %s3272
    %v3274 = vmul.f32 %v1973, %v3273
    %v3275 = vmul.f32 %v1981, %v3273
    %3278 = vrot.lane.b32.xlu0 %v3274, 127
    %v3279 = vpop.permute.xlu0 %3278
    %3280 = vrot.lane.b32.xlu0 %v3275, 127
    %v3281 = vpop.permute.xlu0 %3280
    %v3284 = vadd.f32 %v3188, %v3279
    %v3285 = vadd.f32 %v3189, %v3281
    %s3286 = sld [smem:[#allocation2 + $0x16d]]
    %v3287 = vstv %s3286
    %v3288 = vmul.f32 %v1973, %v3287
    %v3289 = vmul.f32 %v1981, %v3287
    %3292 = vrot.lane.b32.xlu0 %v3288, 127
    %v3293 = vpop.permute.xlu0 %3292
    %3294 = vrot.lane.b32.xlu0 %v3289, 127
    %v3295 = vpop.permute.xlu0 %3294
    %v3298 = vadd.f32 %v3194, %v3293
    %v3299 = vadd.f32 %v3195, %v3295
    %s3300 = sld [smem:[#allocation2 + $0x18d]]
    %v3301 = vstv %s3300
    %v3302 = vmul.f32 %v1973, %v3301
    %v3303 = vmul.f32 %v1981, %v3301
    %3306 = vrot.lane.b32.xlu0 %v3302, 127
    %v3307 = vpop.permute.xlu0 %3306
    %3308 = vrot.lane.b32.xlu0 %v3303, 127
    %v3309 = vpop.permute.xlu0 %3308
    %v3312 = vadd.f32 %v3200, %v3307
    %v3313 = vadd.f32 %v3201, %v3309
    %s3314 = sld [smem:[#allocation2 + $0xae]]
    %v3315 = vstv %s3314
    %v3316 = vmul.f32 %v1973, %v3315
    %v3317 = vmul.f32 %v1981, %v3315
    %v3320 = vrot.slane %v3316, 1
    %v3321 = vrot.slane %v3317, 1
    %v3324 = vadd.f32 %v3214, %v3320
    %v3325 = vadd.f32 %v3215, %v3321
    %s3326 = sld [smem:[#allocation2 + $0xce]]
    %v3327 = vstv %s3326
    %v3328 = vmul.f32 %v1973, %v3327
    %v3329 = vmul.f32 %v1981, %v3327
    %v3332 = vrot.slane %v3328, 1
    %v3333 = vrot.slane %v3329, 1
    %v3336 = vadd.f32 %v3228, %v3332
    %v3337 = vadd.f32 %v3229, %v3333
    %s3338 = sld [smem:[#allocation2 + $0xee]]
    %v3339 = vstv %s3338
    %v3340 = vmul.f32 %v1973, %v3339
    %v3341 = vmul.f32 %v1981, %v3339
    %v3344 = vrot.slane %v3340, 1
    %v3345 = vrot.slane %v3341, 1
    %v3348 = vadd.f32 %v3242, %v3344
    %v3349 = vadd.f32 %v3243, %v3345
    %s3350 = sld [smem:[#allocation2 + $0x10e]]
    %v3351 = vstv %s3350
    %v3352 = vmul.f32 %v1973, %v3351
    %v3353 = vmul.f32 %v1981, %v3351
    %v3356 = vrot.slane %v3352, 1
    %v3357 = vrot.slane %v3353, 1
    %v3360 = vadd.f32 %v3256, %v3356
    %v3361 = vadd.f32 %v3257, %v3357
    %s3362 = sld [smem:[#allocation2 + $0x12e]]
    %v3363 = vstv %s3362
    %v3364 = vmul.f32 %v1973, %v3363
    %v3365 = vmul.f32 %v1981, %v3363
    %v3368 = vrot.slane %v3364, 1
    %v3369 = vrot.slane %v3365, 1
    %v3372 = vadd.f32 %v3270, %v3368
    %v3373 = vadd.f32 %v3271, %v3369
    %s3374 = sld [smem:[#allocation2 + $0x14e]]
    %v3375 = vstv %s3374
    %v3376 = vmul.f32 %v1973, %v3375
    %v3377 = vmul.f32 %v1981, %v3375
    %v3380 = vrot.slane %v3376, 1
    %v3381 = vrot.slane %v3377, 1
    %v3384 = vadd.f32 %v3284, %v3380
    %v3385 = vadd.f32 %v3285, %v3381
    %s3386 = sld [smem:[#allocation2 + $0x16e]]
    %v3387 = vstv %s3386
    %v3388 = vmul.f32 %v1973, %v3387
    %v3389 = vmul.f32 %v1981, %v3387
    %v3392 = vrot.slane %v3388, 1
    %v3393 = vrot.slane %v3389, 1
    %v3396 = vadd.f32 %v3298, %v3392
    %v3397 = vadd.f32 %v3299, %v3393
    %s3398 = sld [smem:[#allocation2 + $0x18e]]
    %v3399 = vstv %s3398
    %v3400 = vmul.f32 %v1973, %v3399
    %v3401 = vmul.f32 %v1981, %v3399
    %v3404 = vrot.slane %v3400, 1
    %v3405 = vrot.slane %v3401, 1
    %v3408 = vadd.f32 %v3312, %v3404
    %v3409 = vadd.f32 %v3313, %v3405
    %s3410 = sld [smem:[#allocation2 + $0xaf]]
    %v3411 = vstv %s3410
    %v3412 = vmul.f32 %v1973, %v3411
    %v3413 = vmul.f32 %v1981, %v3411
    %v3416 = vrot.slane %v3412, 1
    %v3417 = vrot.slane %v3413, 1
    %3418 = vrot.lane.b32.xlu0 %v3416, 127
    %v3419 = vpop.permute.xlu0 %3418
    %3420 = vrot.lane.b32.xlu0 %v3417, 127
    %v3421 = vpop.permute.xlu0 %3420
    %v3424 = vadd.f32 %v3324, %v3419
    %v3425 = vadd.f32 %v3325, %v3421
    %s3426 = sld [smem:[#allocation2 + $0xcf]]
    %v3427 = vstv %s3426
    %v3428 = vmul.f32 %v1973, %v3427
    %v3429 = vmul.f32 %v1981, %v3427
    %v3432 = vrot.slane %v3428, 1
    %v3433 = vrot.slane %v3429, 1
    %3434 = vrot.lane.b32.xlu0 %v3432, 127
    %v3435 = vpop.permute.xlu0 %3434
    %3436 = vrot.lane.b32.xlu0 %v3433, 127
    %v3437 = vpop.permute.xlu0 %3436
    %v3440 = vadd.f32 %v3336, %v3435
    %v3441 = vadd.f32 %v3337, %v3437
    %s3442 = sld [smem:[#allocation2 + $0xef]]
    %v3443 = vstv %s3442
    %v3444 = vmul.f32 %v1973, %v3443
    %v3445 = vmul.f32 %v1981, %v3443
    %v3448 = vrot.slane %v3444, 1
    %v3449 = vrot.slane %v3445, 1
    %3450 = vrot.lane.b32.xlu0 %v3448, 127
    %v3451 = vpop.permute.xlu0 %3450
    %3452 = vrot.lane.b32.xlu0 %v3449, 127
    %v3453 = vpop.permute.xlu0 %3452
    %v3456 = vadd.f32 %v3348, %v3451
    %v3457 = vadd.f32 %v3349, %v3453
    %s3458 = sld [smem:[#allocation2 + $0x10f]]
    %v3459 = vstv %s3458
    %v3460 = vmul.f32 %v1973, %v3459
    %v3461 = vmul.f32 %v1981, %v3459
    %v3464 = vrot.slane %v3460, 1
    %v3465 = vrot.slane %v3461, 1
    %3466 = vrot.lane.b32.xlu0 %v3464, 127
    %v3467 = vpop.permute.xlu0 %3466
    %3468 = vrot.lane.b32.xlu0 %v3465, 127
    %v3469 = vpop.permute.xlu0 %3468
    %v3472 = vadd.f32 %v3360, %v3467
    %v3473 = vadd.f32 %v3361, %v3469
    %s3474 = sld [smem:[#allocation2 + $0x12f]]
    %v3475 = vstv %s3474
    %v3476 = vmul.f32 %v1973, %v3475
    %v3477 = vmul.f32 %v1981, %v3475
    %v3480 = vrot.slane %v3476, 1
    %v3481 = vrot.slane %v3477, 1
    %3482 = vrot.lane.b32.xlu0 %v3480, 127
    %v3483 = vpop.permute.xlu0 %3482
    %3484 = vrot.lane.b32.xlu0 %v3481, 127
    %v3485 = vpop.permute.xlu0 %3484
    %v3488 = vadd.f32 %v3372, %v3483
    %v3489 = vadd.f32 %v3373, %v3485
    %s3490 = sld [smem:[#allocation2 + $0x14f]]
    %v3491 = vstv %s3490
    %v3492 = vmul.f32 %v1973, %v3491
    %v3493 = vmul.f32 %v1981, %v3491
    %v3496 = vrot.slane %v3492, 1
    %v3497 = vrot.slane %v3493, 1
    %3498 = vrot.lane.b32.xlu0 %v3496, 127
    %v3499 = vpop.permute.xlu0 %3498
    %3500 = vrot.lane.b32.xlu0 %v3497, 127
    %v3501 = vpop.permute.xlu0 %3500
    %v3504 = vadd.f32 %v3384, %v3499
    %v3505 = vadd.f32 %v3385, %v3501
    %s3506 = sld [smem:[#allocation2 + $0x16f]]
    %v3507 = vstv %s3506
    %v3508 = vmul.f32 %v1973, %v3507
    %v3509 = vmul.f32 %v1981, %v3507
    %v3512 = vrot.slane %v3508, 1
    %v3513 = vrot.slane %v3509, 1
    %3514 = vrot.lane.b32.xlu0 %v3512, 127
    %v3515 = vpop.permute.xlu0 %3514
    %3516 = vrot.lane.b32.xlu0 %v3513, 127
    %v3517 = vpop.permute.xlu0 %3516
    %v3520 = vadd.f32 %v3396, %v3515
    %v3521 = vadd.f32 %v3397, %v3517
    %s3522 = sld [smem:[#allocation2 + $0x18f]]
    %v3523 = vstv %s3522
    %v3524 = vmul.f32 %v1973, %v3523
    %v3525 = vmul.f32 %v1981, %v3523
    %v3528 = vrot.slane %v3524, 1
    %v3529 = vrot.slane %v3525, 1
    %3530 = vrot.lane.b32.xlu0 %v3528, 127
    %v3531 = vpop.permute.xlu0 %3530
    %3532 = vrot.lane.b32.xlu0 %v3529, 127
    %v3533 = vpop.permute.xlu0 %3532
    %v3536 = vadd.f32 %v3408, %v3531
    %v3537 = vadd.f32 %v3409, %v3533
    %s3538 = sld [smem:[#allocation2 + $0xb0]]
    %v3539 = vstv %s3538
    %v3540 = vmul.f32 %v1974, %v3539
    %v3541 = vmul.f32 %v1982, %v3539
    %v3542 = vadd.f32 %v3424, %v3540
    %v3543 = vadd.f32 %v3425, %v3541
    %s3544 = sld [smem:[#allocation2 + $0xd0]]
    %v3545 = vstv %s3544
    %v3546 = vmul.f32 %v1974, %v3545
    %v3547 = vmul.f32 %v1982, %v3545
    %v3548 = vadd.f32 %v3440, %v3546
    %v3549 = vadd.f32 %v3441, %v3547
    %s3550 = sld [smem:[#allocation2 + $0xf0]]
    %v3551 = vstv %s3550
    %v3552 = vmul.f32 %v1974, %v3551
    %v3553 = vmul.f32 %v1982, %v3551
    %v3554 = vadd.f32 %v3456, %v3552
    %v3555 = vadd.f32 %v3457, %v3553
    %s3556 = sld [smem:[#allocation2 + $0x110]]
    %v3557 = vstv %s3556
    %v3558 = vmul.f32 %v1974, %v3557
    %v3559 = vmul.f32 %v1982, %v3557
    %v3560 = vadd.f32 %v3472, %v3558
    %v3561 = vadd.f32 %v3473, %v3559
    %s3562 = sld [smem:[#allocation2 + $0x130]]
    %v3563 = vstv %s3562
    %v3564 = vmul.f32 %v1974, %v3563
    %v3565 = vmul.f32 %v1982, %v3563
    %v3566 = vadd.f32 %v3488, %v3564
    %v3567 = vadd.f32 %v3489, %v3565
    %s3568 = sld [smem:[#allocation2 + $0x150]]
    %v3569 = vstv %s3568
    %v3570 = vmul.f32 %v1974, %v3569
    %v3571 = vmul.f32 %v1982, %v3569
    %v3572 = vadd.f32 %v3504, %v3570
    %v3573 = vadd.f32 %v3505, %v3571
    %s3574 = sld [smem:[#allocation2 + $0x170]]
    %v3575 = vstv %s3574
    %v3576 = vmul.f32 %v1974, %v3575
    %v3577 = vmul.f32 %v1982, %v3575
    %v3578 = vadd.f32 %v3520, %v3576
    %v3579 = vadd.f32 %v3521, %v3577
    %s3580 = sld [smem:[#allocation2 + $0x190]]
    %v3581 = vstv %s3580
    %v3582 = vmul.f32 %v1974, %v3581
    %v3583 = vmul.f32 %v1982, %v3581
    %v3584 = vadd.f32 %v3536, %v3582
    %v3585 = vadd.f32 %v3537, %v3583
    %s3586 = sld [smem:[#allocation2 + $0xb1]]
    %v3587 = vstv %s3586
    %v3588 = vmul.f32 %v1974, %v3587
    %v3589 = vmul.f32 %v1982, %v3587
    %3592 = vrot.lane.b32.xlu0 %v3588, 127
    %v3593 = vpop.permute.xlu0 %3592
    %3594 = vrot.lane.b32.xlu0 %v3589, 127
    %v3595 = vpop.permute.xlu0 %3594
    %v3598 = vadd.f32 %v3542, %v3593
    %v3599 = vadd.f32 %v3543, %v3595
    %s3600 = sld [smem:[#allocation2 + $0xd1]]
    %v3601 = vstv %s3600
    %v3602 = vmul.f32 %v1974, %v3601
    %v3603 = vmul.f32 %v1982, %v3601
    %3606 = vrot.lane.b32.xlu0 %v3602, 127
    %v3607 = vpop.permute.xlu0 %3606
    %3608 = vrot.lane.b32.xlu0 %v3603, 127
    %v3609 = vpop.permute.xlu0 %3608
    %v3612 = vadd.f32 %v3548, %v3607
    %v3613 = vadd.f32 %v3549, %v3609
    %s3614 = sld [smem:[#allocation2 + $0xf1]]
    %v3615 = vstv %s3614
    %v3616 = vmul.f32 %v1974, %v3615
    %v3617 = vmul.f32 %v1982, %v3615
    %3620 = vrot.lane.b32.xlu0 %v3616, 127
    %v3621 = vpop.permute.xlu0 %3620
    %3622 = vrot.lane.b32.xlu0 %v3617, 127
    %v3623 = vpop.permute.xlu0 %3622
    %v3626 = vadd.f32 %v3554, %v3621
    %v3627 = vadd.f32 %v3555, %v3623
    %s3628 = sld [smem:[#allocation2 + $0x111]]
    %v3629 = vstv %s3628
    %v3630 = vmul.f32 %v1974, %v3629
    %v3631 = vmul.f32 %v1982, %v3629
    %3634 = vrot.lane.b32.xlu0 %v3630, 127
    %v3635 = vpop.permute.xlu0 %3634
    %3636 = vrot.lane.b32.xlu0 %v3631, 127
    %v3637 = vpop.permute.xlu0 %3636
    %v3640 = vadd.f32 %v3560, %v3635
    %v3641 = vadd.f32 %v3561, %v3637
    %s3642 = sld [smem:[#allocation2 + $0x131]]
    %v3643 = vstv %s3642
    %v3644 = vmul.f32 %v1974, %v3643
    %v3645 = vmul.f32 %v1982, %v3643
    %3648 = vrot.lane.b32.xlu0 %v3644, 127
    %v3649 = vpop.permute.xlu0 %3648
    %3650 = vrot.lane.b32.xlu0 %v3645, 127
    %v3651 = vpop.permute.xlu0 %3650
    %v3654 = vadd.f32 %v3566, %v3649
    %v3655 = vadd.f32 %v3567, %v3651
    %s3656 = sld [smem:[#allocation2 + $0x151]]
    %v3657 = vstv %s3656
    %v3658 = vmul.f32 %v1974, %v3657
    %v3659 = vmul.f32 %v1982, %v3657
    %3662 = vrot.lane.b32.xlu0 %v3658, 127
    %v3663 = vpop.permute.xlu0 %3662
    %3664 = vrot.lane.b32.xlu0 %v3659, 127
    %v3665 = vpop.permute.xlu0 %3664
    %v3668 = vadd.f32 %v3572, %v3663
    %v3669 = vadd.f32 %v3573, %v3665
    %s3670 = sld [smem:[#allocation2 + $0x171]]
    %v3671 = vstv %s3670
    %v3672 = vmul.f32 %v1974, %v3671
    %v3673 = vmul.f32 %v1982, %v3671
    %3676 = vrot.lane.b32.xlu0 %v3672, 127
    %v3677 = vpop.permute.xlu0 %3676
    %3678 = vrot.lane.b32.xlu0 %v3673, 127
    %v3679 = vpop.permute.xlu0 %3678
    %v3682 = vadd.f32 %v3578, %v3677
    %v3683 = vadd.f32 %v3579, %v3679
    %s3684 = sld [smem:[#allocation2 + $0x191]]
    %v3685 = vstv %s3684
    %v3686 = vmul.f32 %v1974, %v3685
    %v3687 = vmul.f32 %v1982, %v3685
    %3690 = vrot.lane.b32.xlu0 %v3686, 127
    %v3691 = vpop.permute.xlu0 %3690
    %3692 = vrot.lane.b32.xlu0 %v3687, 127
    %v3693 = vpop.permute.xlu0 %3692
    %v3696 = vadd.f32 %v3584, %v3691
    %v3697 = vadd.f32 %v3585, %v3693
    %s3698 = sld [smem:[#allocation2 + $0xb2]]
    %v3699 = vstv %s3698
    %v3700 = vmul.f32 %v1974, %v3699
    %v3701 = vmul.f32 %v1982, %v3699
    %v3704 = vrot.slane %v3700, 1
    %v3705 = vrot.slane %v3701, 1
    %v3708 = vadd.f32 %v3598, %v3704
    %v3709 = vadd.f32 %v3599, %v3705
    %s3710 = sld [smem:[#allocation2 + $0xd2]]
    %v3711 = vstv %s3710
    %v3712 = vmul.f32 %v1974, %v3711
    %v3713 = vmul.f32 %v1982, %v3711
    %v3716 = vrot.slane %v3712, 1
    %v3717 = vrot.slane %v3713, 1
    %v3720 = vadd.f32 %v3612, %v3716
    %v3721 = vadd.f32 %v3613, %v3717
    %s3722 = sld [smem:[#allocation2 + $0xf2]]
    %v3723 = vstv %s3722
    %v3724 = vmul.f32 %v1974, %v3723
    %v3725 = vmul.f32 %v1982, %v3723
    %v3728 = vrot.slane %v3724, 1
    %v3729 = vrot.slane %v3725, 1
    %v3732 = vadd.f32 %v3626, %v3728
    %v3733 = vadd.f32 %v3627, %v3729
    %s3734 = sld [smem:[#allocation2 + $0x112]]
    %v3735 = vstv %s3734
    %v3736 = vmul.f32 %v1974, %v3735
    %v3737 = vmul.f32 %v1982, %v3735
    %v3740 = vrot.slane %v3736, 1
    %v3741 = vrot.slane %v3737, 1
    %v3744 = vadd.f32 %v3640, %v3740
    %v3745 = vadd.f32 %v3641, %v3741
    %s3746 = sld [smem:[#allocation2 + $0x132]]
    %v3747 = vstv %s3746
    %v3748 = vmul.f32 %v1974, %v3747
    %v3749 = vmul.f32 %v1982, %v3747
    %v3752 = vrot.slane %v3748, 1
    %v3753 = vrot.slane %v3749, 1
    %v3756 = vadd.f32 %v3654, %v3752
    %v3757 = vadd.f32 %v3655, %v3753
    %s3758 = sld [smem:[#allocation2 + $0x152]]
    %v3759 = vstv %s3758
    %v3760 = vmul.f32 %v1974, %v3759
    %v3761 = vmul.f32 %v1982, %v3759
    %v3764 = vrot.slane %v3760, 1
    %v3765 = vrot.slane %v3761, 1
    %v3768 = vadd.f32 %v3668, %v3764
    %v3769 = vadd.f32 %v3669, %v3765
    %s3770 = sld [smem:[#allocation2 + $0x172]]
    %v3771 = vstv %s3770
    %v3772 = vmul.f32 %v1974, %v3771
    %v3773 = vmul.f32 %v1982, %v3771
    %v3776 = vrot.slane %v3772, 1
    %v3777 = vrot.slane %v3773, 1
    %v3780 = vadd.f32 %v3682, %v3776
    %v3781 = vadd.f32 %v3683, %v3777
    %s3782 = sld [smem:[#allocation2 + $0x192]]
    %v3783 = vstv %s3782
    %v3784 = vmul.f32 %v1974, %v3783
    %v3785 = vmul.f32 %v1982, %v3783
    %v3788 = vrot.slane %v3784, 1
    %v3789 = vrot.slane %v3785, 1
    %v3792 = vadd.f32 %v3696, %v3788
    %v3793 = vadd.f32 %v3697, %v3789
    %s3794 = sld [smem:[#allocation2 + $0xb3]]
    %v3795 = vstv %s3794
    %v3796 = vmul.f32 %v1974, %v3795
    %v3797 = vmul.f32 %v1982, %v3795
    %v3800 = vrot.slane %v3796, 1
    %v3801 = vrot.slane %v3797, 1
    %3802 = vrot.lane.b32.xlu0 %v3800, 127
    %v3803 = vpop.permute.xlu0 %3802
    %3804 = vrot.lane.b32.xlu0 %v3801, 127
    %v3805 = vpop.permute.xlu0 %3804
    %v3808 = vadd.f32 %v3708, %v3803
    %v3809 = vadd.f32 %v3709, %v3805
    %s3810 = sld [smem:[#allocation2 + $0xd3]]
    %v3811 = vstv %s3810
    %v3812 = vmul.f32 %v1974, %v3811
    %v3813 = vmul.f32 %v1982, %v3811
    %v3816 = vrot.slane %v3812, 1
    %v3817 = vrot.slane %v3813, 1
    %3818 = vrot.lane.b32.xlu0 %v3816, 127
    %v3819 = vpop.permute.xlu0 %3818
    %3820 = vrot.lane.b32.xlu0 %v3817, 127
    %v3821 = vpop.permute.xlu0 %3820
    %v3824 = vadd.f32 %v3720, %v3819
    %v3825 = vadd.f32 %v3721, %v3821
    %s3826 = sld [smem:[#allocation2 + $0xf3]]
    %v3827 = vstv %s3826
    %v3828 = vmul.f32 %v1974, %v3827
    %v3829 = vmul.f32 %v1982, %v3827
    %v3832 = vrot.slane %v3828, 1
    %v3833 = vrot.slane %v3829, 1
    %3834 = vrot.lane.b32.xlu0 %v3832, 127
    %v3835 = vpop.permute.xlu0 %3834
    %3836 = vrot.lane.b32.xlu0 %v3833, 127
    %v3837 = vpop.permute.xlu0 %3836
    %v3840 = vadd.f32 %v3732, %v3835
    %v3841 = vadd.f32 %v3733, %v3837
    %s3842 = sld [smem:[#allocation2 + $0x113]]
    %v3843 = vstv %s3842
    %v3844 = vmul.f32 %v1974, %v3843
    %v3845 = vmul.f32 %v1982, %v3843
    %v3848 = vrot.slane %v3844, 1
    %v3849 = vrot.slane %v3845, 1
    %3850 = vrot.lane.b32.xlu0 %v3848, 127
    %v3851 = vpop.permute.xlu0 %3850
    %3852 = vrot.lane.b32.xlu0 %v3849, 127
    %v3853 = vpop.permute.xlu0 %3852
    %v3856 = vadd.f32 %v3744, %v3851
    %v3857 = vadd.f32 %v3745, %v3853
    %s3858 = sld [smem:[#allocation2 + $0x133]]
    %v3859 = vstv %s3858
    %v3860 = vmul.f32 %v1974, %v3859
    %v3861 = vmul.f32 %v1982, %v3859
    %v3864 = vrot.slane %v3860, 1
    %v3865 = vrot.slane %v3861, 1
    %3866 = vrot.lane.b32.xlu0 %v3864, 127
    %v3867 = vpop.permute.xlu0 %3866
    %3868 = vrot.lane.b32.xlu0 %v3865, 127
    %v3869 = vpop.permute.xlu0 %3868
    %v3872 = vadd.f32 %v3756, %v3867
    %v3873 = vadd.f32 %v3757, %v3869
    %s3874 = sld [smem:[#allocation2 + $0x153]]
    %v3875 = vstv %s3874
    %v3876 = vmul.f32 %v1974, %v3875
    %v3877 = vmul.f32 %v1982, %v3875
    %v3880 = vrot.slane %v3876, 1
    %v3881 = vrot.slane %v3877, 1
    %3882 = vrot.lane.b32.xlu0 %v3880, 127
    %v3883 = vpop.permute.xlu0 %3882
    %3884 = vrot.lane.b32.xlu0 %v3881, 127
    %v3885 = vpop.permute.xlu0 %3884
    %v3888 = vadd.f32 %v3768, %v3883
    %v3889 = vadd.f32 %v3769, %v3885
    %s3890 = sld [smem:[#allocation2 + $0x173]]
    %v3891 = vstv %s3890
    %v3892 = vmul.f32 %v1974, %v3891
    %v3893 = vmul.f32 %v1982, %v3891
    %v3896 = vrot.slane %v3892, 1
    %v3897 = vrot.slane %v3893, 1
    %3898 = vrot.lane.b32.xlu0 %v3896, 127
    %v3899 = vpop.permute.xlu0 %3898
    %3900 = vrot.lane.b32.xlu0 %v3897, 127
    %v3901 = vpop.permute.xlu0 %3900
    %v3904 = vadd.f32 %v3780, %v3899
    %v3905 = vadd.f32 %v3781, %v3901
    %s3906 = sld [smem:[#allocation2 + $0x193]]
    %v3907 = vstv %s3906
    %v3908 = vmul.f32 %v1974, %v3907
    %v3909 = vmul.f32 %v1982, %v3907
    %v3912 = vrot.slane %v3908, 1
    %v3913 = vrot.slane %v3909, 1
    %3914 = vrot.lane.b32.xlu0 %v3912, 127
    %v3915 = vpop.permute.xlu0 %3914
    %3916 = vrot.lane.b32.xlu0 %v3913, 127
    %v3917 = vpop.permute.xlu0 %3916
    %v3920 = vadd.f32 %v3792, %v3915
    %v3921 = vadd.f32 %v3793, %v3917
    %s3922 = sld [smem:[#allocation2 + $0xb4]]
    %v3923 = vstv %s3922
    %v3924 = vmul.f32 %v1975, %v3923
    %v3925 = vmul.f32 %v1983, %v3923
    %v3926 = vadd.f32 %v3808, %v3924
    %v3927 = vadd.f32 %v3809, %v3925
    %s3928 = sld [smem:[#allocation2 + $0xd4]]
    %v3929 = vstv %s3928
    %v3930 = vmul.f32 %v1975, %v3929
    %v3931 = vmul.f32 %v1983, %v3929
    %v3932 = vadd.f32 %v3824, %v3930
    %v3933 = vadd.f32 %v3825, %v3931
    %s3934 = sld [smem:[#allocation2 + $0xf4]]
    %v3935 = vstv %s3934
    %v3936 = vmul.f32 %v1975, %v3935
    %v3937 = vmul.f32 %v1983, %v3935
    %v3938 = vadd.f32 %v3840, %v3936
    %v3939 = vadd.f32 %v3841, %v3937
    %s3940 = sld [smem:[#allocation2 + $0x114]]
    %v3941 = vstv %s3940
    %v3942 = vmul.f32 %v1975, %v3941
    %v3943 = vmul.f32 %v1983, %v3941
    %v3944 = vadd.f32 %v3856, %v3942
    %v3945 = vadd.f32 %v3857, %v3943
    %s3946 = sld [smem:[#allocation2 + $0x134]]
    %v3947 = vstv %s3946
    %v3948 = vmul.f32 %v1975, %v3947
    %v3949 = vmul.f32 %v1983, %v3947
    %v3950 = vadd.f32 %v3872, %v3948
    %v3951 = vadd.f32 %v3873, %v3949
    %s3952 = sld [smem:[#allocation2 + $0x154]]
    %v3953 = vstv %s3952
    %v3954 = vmul.f32 %v1975, %v3953
    %v3955 = vmul.f32 %v1983, %v3953
    %v3956 = vadd.f32 %v3888, %v3954
    %v3957 = vadd.f32 %v3889, %v3955
    %s3958 = sld [smem:[#allocation2 + $0x174]]
    %v3959 = vstv %s3958
    %v3960 = vmul.f32 %v1975, %v3959
    %v3961 = vmul.f32 %v1983, %v3959
    %v3962 = vadd.f32 %v3904, %v3960
    %v3963 = vadd.f32 %v3905, %v3961
    %s3964 = sld [smem:[#allocation2 + $0x194]]
    %v3965 = vstv %s3964
    %v3966 = vmul.f32 %v1975, %v3965
    %v3967 = vmul.f32 %v1983, %v3965
    %v3968 = vadd.f32 %v3920, %v3966
    %v3969 = vadd.f32 %v3921, %v3967
    %s3970 = sld [smem:[#allocation2 + $0xb5]]
    %v3971 = vstv %s3970
    %v3972 = vmul.f32 %v1975, %v3971
    %v3973 = vmul.f32 %v1983, %v3971
    %3976 = vrot.lane.b32.xlu0 %v3972, 127
    %v3977 = vpop.permute.xlu0 %3976
    %3978 = vrot.lane.b32.xlu0 %v3973, 127
    %v3979 = vpop.permute.xlu0 %3978
    %v3982 = vadd.f32 %v3926, %v3977
    %v3983 = vadd.f32 %v3927, %v3979
    %s3984 = sld [smem:[#allocation2 + $0xd5]]
    %v3985 = vstv %s3984
    %v3986 = vmul.f32 %v1975, %v3985
    %v3987 = vmul.f32 %v1983, %v3985
    %3990 = vrot.lane.b32.xlu0 %v3986, 127
    %v3991 = vpop.permute.xlu0 %3990
    %3992 = vrot.lane.b32.xlu0 %v3987, 127
    %v3993 = vpop.permute.xlu0 %3992
    %v3996 = vadd.f32 %v3932, %v3991
    %v3997 = vadd.f32 %v3933, %v3993
    %s3998 = sld [smem:[#allocation2 + $0xf5]]
    %v3999 = vstv %s3998
    %v4000 = vmul.f32 %v1975, %v3999
    %v4001 = vmul.f32 %v1983, %v3999
    %4004 = vrot.lane.b32.xlu0 %v4000, 127
    %v4005 = vpop.permute.xlu0 %4004
    %4006 = vrot.lane.b32.xlu0 %v4001, 127
    %v4007 = vpop.permute.xlu0 %4006
    %v4010 = vadd.f32 %v3938, %v4005
    %v4011 = vadd.f32 %v3939, %v4007
    %s4012 = sld [smem:[#allocation2 + $0x115]]
    %v4013 = vstv %s4012
    %v4014 = vmul.f32 %v1975, %v4013
    %v4015 = vmul.f32 %v1983, %v4013
    %4018 = vrot.lane.b32.xlu0 %v4014, 127
    %v4019 = vpop.permute.xlu0 %4018
    %4020 = vrot.lane.b32.xlu0 %v4015, 127
    %v4021 = vpop.permute.xlu0 %4020
    %v4024 = vadd.f32 %v3944, %v4019
    %v4025 = vadd.f32 %v3945, %v4021
    %s4026 = sld [smem:[#allocation2 + $0x135]]
    %v4027 = vstv %s4026
    %v4028 = vmul.f32 %v1975, %v4027
    %v4029 = vmul.f32 %v1983, %v4027
    %4032 = vrot.lane.b32.xlu0 %v4028, 127
    %v4033 = vpop.permute.xlu0 %4032
    %4034 = vrot.lane.b32.xlu0 %v4029, 127
    %v4035 = vpop.permute.xlu0 %4034
    %v4038 = vadd.f32 %v3950, %v4033
    %v4039 = vadd.f32 %v3951, %v4035
    %s4040 = sld [smem:[#allocation2 + $0x155]]
    %v4041 = vstv %s4040
    %v4042 = vmul.f32 %v1975, %v4041
    %v4043 = vmul.f32 %v1983, %v4041
    %4046 = vrot.lane.b32.xlu0 %v4042, 127
    %v4047 = vpop.permute.xlu0 %4046
    %4048 = vrot.lane.b32.xlu0 %v4043, 127
    %v4049 = vpop.permute.xlu0 %4048
    %v4052 = vadd.f32 %v3956, %v4047
    %v4053 = vadd.f32 %v3957, %v4049
    %s4054 = sld [smem:[#allocation2 + $0x175]]
    %v4055 = vstv %s4054
    %v4056 = vmul.f32 %v1975, %v4055
    %v4057 = vmul.f32 %v1983, %v4055
    %4060 = vrot.lane.b32.xlu0 %v4056, 127
    %v4061 = vpop.permute.xlu0 %4060
    %4062 = vrot.lane.b32.xlu0 %v4057, 127
    %v4063 = vpop.permute.xlu0 %4062
    %v4066 = vadd.f32 %v3962, %v4061
    %v4067 = vadd.f32 %v3963, %v4063
    %s4068 = sld [smem:[#allocation2 + $0x195]]
    %v4069 = vstv %s4068
    %v4070 = vmul.f32 %v1975, %v4069
    %v4071 = vmul.f32 %v1983, %v4069
    %4074 = vrot.lane.b32.xlu0 %v4070, 127
    %v4075 = vpop.permute.xlu0 %4074
    %4076 = vrot.lane.b32.xlu0 %v4071, 127
    %v4077 = vpop.permute.xlu0 %4076
    %v4080 = vadd.f32 %v3968, %v4075
    %v4081 = vadd.f32 %v3969, %v4077
    %s4082 = sld [smem:[#allocation2 + $0xb6]]
    %v4083 = vstv %s4082
    %v4084 = vmul.f32 %v1975, %v4083
    %v4085 = vmul.f32 %v1983, %v4083
    %v4088 = vrot.slane %v4084, 1
    %v4089 = vrot.slane %v4085, 1
    %v4092 = vadd.f32 %v3982, %v4088
    %v4093 = vadd.f32 %v3983, %v4089
    %s4094 = sld [smem:[#allocation2 + $0xd6]]
    %v4095 = vstv %s4094
    %v4096 = vmul.f32 %v1975, %v4095
    %v4097 = vmul.f32 %v1983, %v4095
    %v4100 = vrot.slane %v4096, 1
    %v4101 = vrot.slane %v4097, 1
    %v4104 = vadd.f32 %v3996, %v4100
    %v4105 = vadd.f32 %v3997, %v4101
    %s4106 = sld [smem:[#allocation2 + $0xf6]]
    %v4107 = vstv %s4106
    %v4108 = vmul.f32 %v1975, %v4107
    %v4109 = vmul.f32 %v1983, %v4107
    %v4112 = vrot.slane %v4108, 1
    %v4113 = vrot.slane %v4109, 1
    %v4116 = vadd.f32 %v4010, %v4112
    %v4117 = vadd.f32 %v4011, %v4113
    %s4118 = sld [smem:[#allocation2 + $0x116]]
    %v4119 = vstv %s4118
    %v4120 = vmul.f32 %v1975, %v4119
    %v4121 = vmul.f32 %v1983, %v4119
    %v4124 = vrot.slane %v4120, 1
    %v4125 = vrot.slane %v4121, 1
    %v4128 = vadd.f32 %v4024, %v4124
    %v4129 = vadd.f32 %v4025, %v4125
    %s4130 = sld [smem:[#allocation2 + $0x136]]
    %v4131 = vstv %s4130
    %v4132 = vmul.f32 %v1975, %v4131
    %v4133 = vmul.f32 %v1983, %v4131
    %v4136 = vrot.slane %v4132, 1
    %v4137 = vrot.slane %v4133, 1
    %v4140 = vadd.f32 %v4038, %v4136
    %v4141 = vadd.f32 %v4039, %v4137
    %s4142 = sld [smem:[#allocation2 + $0x156]]
    %v4143 = vstv %s4142
    %v4144 = vmul.f32 %v1975, %v4143
    %v4145 = vmul.f32 %v1983, %v4143
    %v4148 = vrot.slane %v4144, 1
    %v4149 = vrot.slane %v4145, 1
    %v4152 = vadd.f32 %v4052, %v4148
    %v4153 = vadd.f32 %v4053, %v4149
    %s4154 = sld [smem:[#allocation2 + $0x176]]
    %v4155 = vstv %s4154
    %v4156 = vmul.f32 %v1975, %v4155
    %v4157 = vmul.f32 %v1983, %v4155
    %v4160 = vrot.slane %v4156, 1
    %v4161 = vrot.slane %v4157, 1
    %v4164 = vadd.f32 %v4066, %v4160
    %v4165 = vadd.f32 %v4067, %v4161
    %s4166 = sld [smem:[#allocation2 + $0x196]]
    %v4167 = vstv %s4166
    %v4168 = vmul.f32 %v1975, %v4167
    %v4169 = vmul.f32 %v1983, %v4167
    %v4172 = vrot.slane %v4168, 1
    %v4173 = vrot.slane %v4169, 1
    %v4176 = vadd.f32 %v4080, %v4172
    %v4177 = vadd.f32 %v4081, %v4173
    %s4178 = sld [smem:[#allocation2 + $0xb7]]
    %v4179 = vstv %s4178
    %v4180 = vmul.f32 %v1975, %v4179
    %v4181 = vmul.f32 %v1983, %v4179
    %v4184 = vrot.slane %v4180, 1
    %v4185 = vrot.slane %v4181, 1
    %4186 = vrot.lane.b32.xlu0 %v4184, 127
    %v4187 = vpop.permute.xlu0 %4186
    %4188 = vrot.lane.b32.xlu0 %v4185, 127
    %v4189 = vpop.permute.xlu0 %4188
    %v4192 = vadd.f32 %v4092, %v4187
    %v4193 = vadd.f32 %v4093, %v4189
    %s4194 = sld [smem:[#allocation2 + $0xd7]]
    %v4195 = vstv %s4194
    %v4196 = vmul.f32 %v1975, %v4195
    %v4197 = vmul.f32 %v1983, %v4195
    %v4200 = vrot.slane %v4196, 1
    %v4201 = vrot.slane %v4197, 1
    %4202 = vrot.lane.b32.xlu0 %v4200, 127
    %v4203 = vpop.permute.xlu0 %4202
    %4204 = vrot.lane.b32.xlu0 %v4201, 127
    %v4205 = vpop.permute.xlu0 %4204
    %v4208 = vadd.f32 %v4104, %v4203
    %v4209 = vadd.f32 %v4105, %v4205
    %s4210 = sld [smem:[#allocation2 + $0xf7]]
    %v4211 = vstv %s4210
    %v4212 = vmul.f32 %v1975, %v4211
    %v4213 = vmul.f32 %v1983, %v4211
    %v4216 = vrot.slane %v4212, 1
    %v4217 = vrot.slane %v4213, 1
    %4218 = vrot.lane.b32.xlu0 %v4216, 127
    %v4219 = vpop.permute.xlu0 %4218
    %4220 = vrot.lane.b32.xlu0 %v4217, 127
    %v4221 = vpop.permute.xlu0 %4220
    %v4224 = vadd.f32 %v4116, %v4219
    %v4225 = vadd.f32 %v4117, %v4221
    %s4226 = sld [smem:[#allocation2 + $0x117]]
    %v4227 = vstv %s4226
    %v4228 = vmul.f32 %v1975, %v4227
    %v4229 = vmul.f32 %v1983, %v4227
    %v4232 = vrot.slane %v4228, 1
    %v4233 = vrot.slane %v4229, 1
    %4234 = vrot.lane.b32.xlu0 %v4232, 127
    %v4235 = vpop.permute.xlu0 %4234
    %4236 = vrot.lane.b32.xlu0 %v4233, 127
    %v4237 = vpop.permute.xlu0 %4236
    %v4240 = vadd.f32 %v4128, %v4235
    %v4241 = vadd.f32 %v4129, %v4237
    %s4242 = sld [smem:[#allocation2 + $0x137]]
    %v4243 = vstv %s4242
    %v4244 = vmul.f32 %v1975, %v4243
    %v4245 = vmul.f32 %v1983, %v4243
    %v4248 = vrot.slane %v4244, 1
    %v4249 = vrot.slane %v4245, 1
    %4250 = vrot.lane.b32.xlu0 %v4248, 127
    %v4251 = vpop.permute.xlu0 %4250
    %4252 = vrot.lane.b32.xlu0 %v4249, 127
    %v4253 = vpop.permute.xlu0 %4252
    %v4256 = vadd.f32 %v4140, %v4251
    %v4257 = vadd.f32 %v4141, %v4253
    %s4258 = sld [smem:[#allocation2 + $0x157]]
    %v4259 = vstv %s4258
    %v4260 = vmul.f32 %v1975, %v4259
    %v4261 = vmul.f32 %v1983, %v4259
    %v4264 = vrot.slane %v4260, 1
    %v4265 = vrot.slane %v4261, 1
    %4266 = vrot.lane.b32.xlu0 %v4264, 127
    %v4267 = vpop.permute.xlu0 %4266
    %4268 = vrot.lane.b32.xlu0 %v4265, 127
    %v4269 = vpop.permute.xlu0 %4268
    %v4272 = vadd.f32 %v4152, %v4267
    %v4273 = vadd.f32 %v4153, %v4269
    %s4274 = sld [smem:[#allocation2 + $0x177]]
    %v4275 = vstv %s4274
    %v4276 = vmul.f32 %v1975, %v4275
    %v4277 = vmul.f32 %v1983, %v4275
    %v4280 = vrot.slane %v4276, 1
    %v4281 = vrot.slane %v4277, 1
    %4282 = vrot.lane.b32.xlu0 %v4280, 127
    %v4283 = vpop.permute.xlu0 %4282
    %4284 = vrot.lane.b32.xlu0 %v4281, 127
    %v4285 = vpop.permute.xlu0 %4284
    %v4288 = vadd.f32 %v4164, %v4283
    %v4289 = vadd.f32 %v4165, %v4285
    %s4290 = sld [smem:[#allocation2 + $0x197]]
    %v4291 = vstv %s4290
    %v4292 = vmul.f32 %v1975, %v4291
    %v4293 = vmul.f32 %v1983, %v4291
    %v4296 = vrot.slane %v4292, 1
    %v4297 = vrot.slane %v4293, 1
    %4298 = vrot.lane.b32.xlu0 %v4296, 127
    %v4299 = vpop.permute.xlu0 %4298
    %4300 = vrot.lane.b32.xlu0 %v4297, 127
    %v4301 = vpop.permute.xlu0 %4300
    %v4304 = vadd.f32 %v4176, %v4299
    %v4305 = vadd.f32 %v4177, %v4301
    %s4306 = sld [smem:[#allocation2 + $0xb8]]
    %v4307 = vstv %s4306
    %v4308 = vmul.f32 %v1976, %v4307
    %v4309 = vmul.f32 %v1984, %v4307
    %v4310 = vadd.f32 %v4192, %v4308
    %v4311 = vadd.f32 %v4193, %v4309
    %s4312 = sld [smem:[#allocation2 + $0xd8]]
    %v4313 = vstv %s4312
    %v4314 = vmul.f32 %v1976, %v4313
    %v4315 = vmul.f32 %v1984, %v4313
    %v4316 = vadd.f32 %v4208, %v4314
    %v4317 = vadd.f32 %v4209, %v4315
    %s4318 = sld [smem:[#allocation2 + $0xf8]]
    %v4319 = vstv %s4318
    %v4320 = vmul.f32 %v1976, %v4319
    %v4321 = vmul.f32 %v1984, %v4319
    %v4322 = vadd.f32 %v4224, %v4320
    %v4323 = vadd.f32 %v4225, %v4321
    %s4324 = sld [smem:[#allocation2 + $0x118]]
    %v4325 = vstv %s4324
    %v4326 = vmul.f32 %v1976, %v4325
    %v4327 = vmul.f32 %v1984, %v4325
    %v4328 = vadd.f32 %v4240, %v4326
    %v4329 = vadd.f32 %v4241, %v4327
    %s4330 = sld [smem:[#allocation2 + $0x138]]
    %v4331 = vstv %s4330
    %v4332 = vmul.f32 %v1976, %v4331
    %v4333 = vmul.f32 %v1984, %v4331
    %v4334 = vadd.f32 %v4256, %v4332
    %v4335 = vadd.f32 %v4257, %v4333
    %s4336 = sld [smem:[#allocation2 + $0x158]]
    %v4337 = vstv %s4336
    %v4338 = vmul.f32 %v1976, %v4337
    %v4339 = vmul.f32 %v1984, %v4337
    %v4340 = vadd.f32 %v4272, %v4338
    %v4341 = vadd.f32 %v4273, %v4339
    %s4342 = sld [smem:[#allocation2 + $0x178]]
    %v4343 = vstv %s4342
    %v4344 = vmul.f32 %v1976, %v4343
    %v4345 = vmul.f32 %v1984, %v4343
    %v4346 = vadd.f32 %v4288, %v4344
    %v4347 = vadd.f32 %v4289, %v4345
    %s4348 = sld [smem:[#allocation2 + $0x198]]
    %v4349 = vstv %s4348
    %v4350 = vmul.f32 %v1976, %v4349
    %v4351 = vmul.f32 %v1984, %v4349
    %v4352 = vadd.f32 %v4304, %v4350
    %v4353 = vadd.f32 %v4305, %v4351
    %s4354 = sld [smem:[#allocation2 + $0xb9]]
    %v4355 = vstv %s4354
    %v4356 = vmul.f32 %v1976, %v4355
    %v4357 = vmul.f32 %v1984, %v4355
    %4360 = vrot.lane.b32.xlu0 %v4356, 127
    %v4361 = vpop.permute.xlu0 %4360
    %4362 = vrot.lane.b32.xlu0 %v4357, 127
    %v4363 = vpop.permute.xlu0 %4362
    %v4366 = vadd.f32 %v4310, %v4361
    %v4367 = vadd.f32 %v4311, %v4363
    %s4368 = sld [smem:[#allocation2 + $0xd9]]
    %v4369 = vstv %s4368
    %v4370 = vmul.f32 %v1976, %v4369
    %v4371 = vmul.f32 %v1984, %v4369
    %4374 = vrot.lane.b32.xlu0 %v4370, 127
    %v4375 = vpop.permute.xlu0 %4374
    %4376 = vrot.lane.b32.xlu0 %v4371, 127
    %v4377 = vpop.permute.xlu0 %4376
    %v4380 = vadd.f32 %v4316, %v4375
    %v4381 = vadd.f32 %v4317, %v4377
    %s4382 = sld [smem:[#allocation2 + $0xf9]]
    %v4383 = vstv %s4382
    %v4384 = vmul.f32 %v1976, %v4383
    %v4385 = vmul.f32 %v1984, %v4383
    %4388 = vrot.lane.b32.xlu0 %v4384, 127
    %v4389 = vpop.permute.xlu0 %4388
    %4390 = vrot.lane.b32.xlu0 %v4385, 127
    %v4391 = vpop.permute.xlu0 %4390
    %v4394 = vadd.f32 %v4322, %v4389
    %v4395 = vadd.f32 %v4323, %v4391
    %s4396 = sld [smem:[#allocation2 + $0x119]]
    %v4397 = vstv %s4396
    %v4398 = vmul.f32 %v1976, %v4397
    %v4399 = vmul.f32 %v1984, %v4397
    %4402 = vrot.lane.b32.xlu0 %v4398, 127
    %v4403 = vpop.permute.xlu0 %4402
    %4404 = vrot.lane.b32.xlu0 %v4399, 127
    %v4405 = vpop.permute.xlu0 %4404
    %v4408 = vadd.f32 %v4328, %v4403
    %v4409 = vadd.f32 %v4329, %v4405
    %s4410 = sld [smem:[#allocation2 + $0x139]]
    %v4411 = vstv %s4410
    %v4412 = vmul.f32 %v1976, %v4411
    %v4413 = vmul.f32 %v1984, %v4411
    %4416 = vrot.lane.b32.xlu0 %v4412, 127
    %v4417 = vpop.permute.xlu0 %4416
    %4418 = vrot.lane.b32.xlu0 %v4413, 127
    %v4419 = vpop.permute.xlu0 %4418
    %v4422 = vadd.f32 %v4334, %v4417
    %v4423 = vadd.f32 %v4335, %v4419
    %s4424 = sld [smem:[#allocation2 + $0x159]]
    %v4425 = vstv %s4424
    %v4426 = vmul.f32 %v1976, %v4425
    %v4427 = vmul.f32 %v1984, %v4425
    %4430 = vrot.lane.b32.xlu0 %v4426, 127
    %v4431 = vpop.permute.xlu0 %4430
    %4432 = vrot.lane.b32.xlu0 %v4427, 127
    %v4433 = vpop.permute.xlu0 %4432
    %v4436 = vadd.f32 %v4340, %v4431
    %v4437 = vadd.f32 %v4341, %v4433
    %s4438 = sld [smem:[#allocation2 + $0x179]]
    %v4439 = vstv %s4438
    %v4440 = vmul.f32 %v1976, %v4439
    %v4441 = vmul.f32 %v1984, %v4439
    %4444 = vrot.lane.b32.xlu0 %v4440, 127
    %v4445 = vpop.permute.xlu0 %4444
    %4446 = vrot.lane.b32.xlu0 %v4441, 127
    %v4447 = vpop.permute.xlu0 %4446
    %v4450 = vadd.f32 %v4346, %v4445
    %v4451 = vadd.f32 %v4347, %v4447
    %s4452 = sld [smem:[#allocation2 + $0x199]]
    %v4453 = vstv %s4452
    %v4454 = vmul.f32 %v1976, %v4453
    %v4455 = vmul.f32 %v1984, %v4453
    %4458 = vrot.lane.b32.xlu0 %v4454, 127
    %v4459 = vpop.permute.xlu0 %4458
    %4460 = vrot.lane.b32.xlu0 %v4455, 127
    %v4461 = vpop.permute.xlu0 %4460
    %v4464 = vadd.f32 %v4352, %v4459
    %v4465 = vadd.f32 %v4353, %v4461
    %s4466 = sld [smem:[#allocation2 + $0xba]]
    %v4467 = vstv %s4466
    %v4468 = vmul.f32 %v1976, %v4467
    %v4469 = vmul.f32 %v1984, %v4467
    %v4472 = vrot.slane %v4468, 1
    %v4473 = vrot.slane %v4469, 1
    %v4476 = vadd.f32 %v4366, %v4472
    %v4477 = vadd.f32 %v4367, %v4473
    %s4478 = sld [smem:[#allocation2 + $0xda]]
    %v4479 = vstv %s4478
    %v4480 = vmul.f32 %v1976, %v4479
    %v4481 = vmul.f32 %v1984, %v4479
    %v4484 = vrot.slane %v4480, 1
    %v4485 = vrot.slane %v4481, 1
    %v4488 = vadd.f32 %v4380, %v4484
    %v4489 = vadd.f32 %v4381, %v4485
    %s4490 = sld [smem:[#allocation2 + $0xfa]]
    %v4491 = vstv %s4490
    %v4492 = vmul.f32 %v1976, %v4491
    %v4493 = vmul.f32 %v1984, %v4491
    %v4496 = vrot.slane %v4492, 1
    %v4497 = vrot.slane %v4493, 1
    %v4500 = vadd.f32 %v4394, %v4496
    %v4501 = vadd.f32 %v4395, %v4497
    %s4502 = sld [smem:[#allocation2 + $0x11a]]
    %v4503 = vstv %s4502
    %v4504 = vmul.f32 %v1976, %v4503
    %v4505 = vmul.f32 %v1984, %v4503
    %v4508 = vrot.slane %v4504, 1
    %v4509 = vrot.slane %v4505, 1
    %v4512 = vadd.f32 %v4408, %v4508
    %v4513 = vadd.f32 %v4409, %v4509
    %s4514 = sld [smem:[#allocation2 + $0x13a]]
    %v4515 = vstv %s4514
    %v4516 = vmul.f32 %v1976, %v4515
    %v4517 = vmul.f32 %v1984, %v4515
    %v4520 = vrot.slane %v4516, 1
    %v4521 = vrot.slane %v4517, 1
    %v4524 = vadd.f32 %v4422, %v4520
    %v4525 = vadd.f32 %v4423, %v4521
    %s4526 = sld [smem:[#allocation2 + $0x15a]]
    %v4527 = vstv %s4526
    %v4528 = vmul.f32 %v1976, %v4527
    %v4529 = vmul.f32 %v1984, %v4527
    %v4532 = vrot.slane %v4528, 1
    %v4533 = vrot.slane %v4529, 1
    %v4536 = vadd.f32 %v4436, %v4532
    %v4537 = vadd.f32 %v4437, %v4533
    %s4538 = sld [smem:[#allocation2 + $0x17a]]
    %v4539 = vstv %s4538
    %v4540 = vmul.f32 %v1976, %v4539
    %v4541 = vmul.f32 %v1984, %v4539
    %v4544 = vrot.slane %v4540, 1
    %v4545 = vrot.slane %v4541, 1
    %v4548 = vadd.f32 %v4450, %v4544
    %v4549 = vadd.f32 %v4451, %v4545
    %s4550 = sld [smem:[#allocation2 + $0x19a]]
    %v4551 = vstv %s4550
    %v4552 = vmul.f32 %v1976, %v4551
    %v4553 = vmul.f32 %v1984, %v4551
    %v4556 = vrot.slane %v4552, 1
    %v4557 = vrot.slane %v4553, 1
    %v4560 = vadd.f32 %v4464, %v4556
    %v4561 = vadd.f32 %v4465, %v4557
    %s4562 = sld [smem:[#allocation2 + $0xbb]]
    %v4563 = vstv %s4562
    %v4564 = vmul.f32 %v1976, %v4563
    %v4565 = vmul.f32 %v1984, %v4563
    %v4568 = vrot.slane %v4564, 1
    %v4569 = vrot.slane %v4565, 1
    %4570 = vrot.lane.b32.xlu0 %v4568, 127
    %v4571 = vpop.permute.xlu0 %4570
    %4572 = vrot.lane.b32.xlu0 %v4569, 127
    %v4573 = vpop.permute.xlu0 %4572
    %v4576 = vadd.f32 %v4476, %v4571
    %v4577 = vadd.f32 %v4477, %v4573
    %s4578 = sld [smem:[#allocation2 + $0xdb]]
    %v4579 = vstv %s4578
    %v4580 = vmul.f32 %v1976, %v4579
    %v4581 = vmul.f32 %v1984, %v4579
    %v4584 = vrot.slane %v4580, 1
    %v4585 = vrot.slane %v4581, 1
    %4586 = vrot.lane.b32.xlu0 %v4584, 127
    %v4587 = vpop.permute.xlu0 %4586
    %4588 = vrot.lane.b32.xlu0 %v4585, 127
    %v4589 = vpop.permute.xlu0 %4588
    %v4592 = vadd.f32 %v4488, %v4587
    %v4593 = vadd.f32 %v4489, %v4589
    %s4594 = sld [smem:[#allocation2 + $0xfb]]
    %v4595 = vstv %s4594
    %v4596 = vmul.f32 %v1976, %v4595
    %v4597 = vmul.f32 %v1984, %v4595
    %v4600 = vrot.slane %v4596, 1
    %v4601 = vrot.slane %v4597, 1
    %4602 = vrot.lane.b32.xlu0 %v4600, 127
    %v4603 = vpop.permute.xlu0 %4602
    %4604 = vrot.lane.b32.xlu0 %v4601, 127
    %v4605 = vpop.permute.xlu0 %4604
    %v4608 = vadd.f32 %v4500, %v4603
    %v4609 = vadd.f32 %v4501, %v4605
    %s4610 = sld [smem:[#allocation2 + $0x11b]]
    %v4611 = vstv %s4610
    %v4612 = vmul.f32 %v1976, %v4611
    %v4613 = vmul.f32 %v1984, %v4611
    %v4616 = vrot.slane %v4612, 1
    %v4617 = vrot.slane %v4613, 1
    %4618 = vrot.lane.b32.xlu0 %v4616, 127
    %v4619 = vpop.permute.xlu0 %4618
    %4620 = vrot.lane.b32.xlu0 %v4617, 127
    %v4621 = vpop.permute.xlu0 %4620
    %v4624 = vadd.f32 %v4512, %v4619
    %v4625 = vadd.f32 %v4513, %v4621
    %s4626 = sld [smem:[#allocation2 + $0x13b]]
    %v4627 = vstv %s4626
    %v4628 = vmul.f32 %v1976, %v4627
    %v4629 = vmul.f32 %v1984, %v4627
    %v4632 = vrot.slane %v4628, 1
    %v4633 = vrot.slane %v4629, 1
    %4634 = vrot.lane.b32.xlu0 %v4632, 127
    %v4635 = vpop.permute.xlu0 %4634
    %4636 = vrot.lane.b32.xlu0 %v4633, 127
    %v4637 = vpop.permute.xlu0 %4636
    %v4640 = vadd.f32 %v4524, %v4635
    %v4641 = vadd.f32 %v4525, %v4637
    %s4642 = sld [smem:[#allocation2 + $0x15b]]
    %v4643 = vstv %s4642
    %v4644 = vmul.f32 %v1976, %v4643
    %v4645 = vmul.f32 %v1984, %v4643
    %v4648 = vrot.slane %v4644, 1
    %v4649 = vrot.slane %v4645, 1
    %4650 = vrot.lane.b32.xlu0 %v4648, 127
    %v4651 = vpop.permute.xlu0 %4650
    %4652 = vrot.lane.b32.xlu0 %v4649, 127
    %v4653 = vpop.permute.xlu0 %4652
    %v4656 = vadd.f32 %v4536, %v4651
    %v4657 = vadd.f32 %v4537, %v4653
    %s4658 = sld [smem:[#allocation2 + $0x17b]]
    %v4659 = vstv %s4658
    %v4660 = vmul.f32 %v1976, %v4659
    %v4661 = vmul.f32 %v1984, %v4659
    %v4664 = vrot.slane %v4660, 1
    %v4665 = vrot.slane %v4661, 1
    %4666 = vrot.lane.b32.xlu0 %v4664, 127
    %v4667 = vpop.permute.xlu0 %4666
    %4668 = vrot.lane.b32.xlu0 %v4665, 127
    %v4669 = vpop.permute.xlu0 %4668
    %v4672 = vadd.f32 %v4548, %v4667
    %v4673 = vadd.f32 %v4549, %v4669
    %s4674 = sld [smem:[#allocation2 + $0x19b]]
    %v4675 = vstv %s4674
    %v4676 = vmul.f32 %v1976, %v4675
    %v4677 = vmul.f32 %v1984, %v4675
    %v4680 = vrot.slane %v4676, 1
    %v4681 = vrot.slane %v4677, 1
    %4682 = vrot.lane.b32.xlu0 %v4680, 127
    %v4683 = vpop.permute.xlu0 %4682
    %4684 = vrot.lane.b32.xlu0 %v4681, 127
    %v4685 = vpop.permute.xlu0 %4684
    %v4688 = vadd.f32 %v4560, %v4683
    %v4689 = vadd.f32 %v4561, %v4685
    %s4690 = sld [smem:[#allocation2 + $0xbc]]
    %v4691 = vstv %s4690
    %v4692 = vmul.f32 %v1977, %v4691
    %v4693 = vmul.f32 %v1985, %v4691
    %v4694 = vadd.f32 %v4576, %v4692
    %v4695 = vadd.f32 %v4577, %v4693
    %s4696 = sld [smem:[#allocation2 + $0xdc]]
    %v4697 = vstv %s4696
    %v4698 = vmul.f32 %v1977, %v4697
    %v4699 = vmul.f32 %v1985, %v4697
    %v4700 = vadd.f32 %v4592, %v4698
    %v4701 = vadd.f32 %v4593, %v4699
    %s4702 = sld [smem:[#allocation2 + $0xfc]]
    %v4703 = vstv %s4702
    %v4704 = vmul.f32 %v1977, %v4703
    %v4705 = vmul.f32 %v1985, %v4703
    %v4706 = vadd.f32 %v4608, %v4704
    %v4707 = vadd.f32 %v4609, %v4705
    %s4708 = sld [smem:[#allocation2 + $0x11c]]
    %v4709 = vstv %s4708
    %v4710 = vmul.f32 %v1977, %v4709
    %v4711 = vmul.f32 %v1985, %v4709
    %v4712 = vadd.f32 %v4624, %v4710
    %v4713 = vadd.f32 %v4625, %v4711
    %s4714 = sld [smem:[#allocation2 + $0x13c]]
    %v4715 = vstv %s4714
    %v4716 = vmul.f32 %v1977, %v4715
    %v4717 = vmul.f32 %v1985, %v4715
    %v4718 = vadd.f32 %v4640, %v4716
    %v4719 = vadd.f32 %v4641, %v4717
    %s4720 = sld [smem:[#allocation2 + $0x15c]]
    %v4721 = vstv %s4720
    %v4722 = vmul.f32 %v1977, %v4721
    %v4723 = vmul.f32 %v1985, %v4721
    %v4724 = vadd.f32 %v4656, %v4722
    %v4725 = vadd.f32 %v4657, %v4723
    %s4726 = sld [smem:[#allocation2 + $0x17c]]
    %v4727 = vstv %s4726
    %v4728 = vmul.f32 %v1977, %v4727
    %v4729 = vmul.f32 %v1985, %v4727
    %v4730 = vadd.f32 %v4672, %v4728
    %v4731 = vadd.f32 %v4673, %v4729
    %s4732 = sld [smem:[#allocation2 + $0x19c]]
    %v4733 = vstv %s4732
    %v4734 = vmul.f32 %v1977, %v4733
    %v4735 = vmul.f32 %v1985, %v4733
    %v4736 = vadd.f32 %v4688, %v4734
    %v4737 = vadd.f32 %v4689, %v4735
    %s4738 = sld [smem:[#allocation2 + $0xbd]]
    %v4739 = vstv %s4738
    %v4740 = vmul.f32 %v1977, %v4739
    %v4741 = vmul.f32 %v1985, %v4739
    %4744 = vrot.lane.b32.xlu0 %v4740, 127
    %v4745 = vpop.permute.xlu0 %4744
    %4746 = vrot.lane.b32.xlu0 %v4741, 127
    %v4747 = vpop.permute.xlu0 %4746
    %v4750 = vadd.f32 %v4694, %v4745
    %v4751 = vadd.f32 %v4695, %v4747
    %s4752 = sld [smem:[#allocation2 + $0xdd]]
    %v4753 = vstv %s4752
    %v4754 = vmul.f32 %v1977, %v4753
    %v4755 = vmul.f32 %v1985, %v4753
    %4758 = vrot.lane.b32.xlu0 %v4754, 127
    %v4759 = vpop.permute.xlu0 %4758
    %4760 = vrot.lane.b32.xlu0 %v4755, 127
    %v4761 = vpop.permute.xlu0 %4760
    %v4764 = vadd.f32 %v4700, %v4759
    %v4765 = vadd.f32 %v4701, %v4761
    %s4766 = sld [smem:[#allocation2 + $0xfd]]
    %v4767 = vstv %s4766
    %v4768 = vmul.f32 %v1977, %v4767
    %v4769 = vmul.f32 %v1985, %v4767
    %4772 = vrot.lane.b32.xlu0 %v4768, 127
    %v4773 = vpop.permute.xlu0 %4772
    %4774 = vrot.lane.b32.xlu0 %v4769, 127
    %v4775 = vpop.permute.xlu0 %4774
    %v4778 = vadd.f32 %v4706, %v4773
    %v4779 = vadd.f32 %v4707, %v4775
    %s4780 = sld [smem:[#allocation2 + $0x11d]]
    %v4781 = vstv %s4780
    %v4782 = vmul.f32 %v1977, %v4781
    %v4783 = vmul.f32 %v1985, %v4781
    %4786 = vrot.lane.b32.xlu0 %v4782, 127
    %v4787 = vpop.permute.xlu0 %4786
    %4788 = vrot.lane.b32.xlu0 %v4783, 127
    %v4789 = vpop.permute.xlu0 %4788
    %v4792 = vadd.f32 %v4712, %v4787
    %v4793 = vadd.f32 %v4713, %v4789
    %s4794 = sld [smem:[#allocation2 + $0x13d]]
    %v4795 = vstv %s4794
    %v4796 = vmul.f32 %v1977, %v4795
    %v4797 = vmul.f32 %v1985, %v4795
    %4800 = vrot.lane.b32.xlu0 %v4796, 127
    %v4801 = vpop.permute.xlu0 %4800
    %4802 = vrot.lane.b32.xlu0 %v4797, 127
    %v4803 = vpop.permute.xlu0 %4802
    %v4806 = vadd.f32 %v4718, %v4801
    %v4807 = vadd.f32 %v4719, %v4803
    %s4808 = sld [smem:[#allocation2 + $0x15d]]
    %v4809 = vstv %s4808
    %v4810 = vmul.f32 %v1977, %v4809
    %v4811 = vmul.f32 %v1985, %v4809
    %4814 = vrot.lane.b32.xlu0 %v4810, 127
    %v4815 = vpop.permute.xlu0 %4814
    %4816 = vrot.lane.b32.xlu0 %v4811, 127
    %v4817 = vpop.permute.xlu0 %4816
    %v4820 = vadd.f32 %v4724, %v4815
    %v4821 = vadd.f32 %v4725, %v4817
    %s4822 = sld [smem:[#allocation2 + $0x17d]]
    %v4823 = vstv %s4822
    %v4824 = vmul.f32 %v1977, %v4823
    %v4825 = vmul.f32 %v1985, %v4823
    %4828 = vrot.lane.b32.xlu0 %v4824, 127
    %v4829 = vpop.permute.xlu0 %4828
    %4830 = vrot.lane.b32.xlu0 %v4825, 127
    %v4831 = vpop.permute.xlu0 %4830
    %v4834 = vadd.f32 %v4730, %v4829
    %v4835 = vadd.f32 %v4731, %v4831
    %s4836 = sld [smem:[#allocation2 + $0x19d]]
    %v4837 = vstv %s4836
    %v4838 = vmul.f32 %v1977, %v4837
    %v4839 = vmul.f32 %v1985, %v4837
    %4842 = vrot.lane.b32.xlu0 %v4838, 127
    %v4843 = vpop.permute.xlu0 %4842
    %4844 = vrot.lane.b32.xlu0 %v4839, 127
    %v4845 = vpop.permute.xlu0 %4844
    %v4848 = vadd.f32 %v4736, %v4843
    %v4849 = vadd.f32 %v4737, %v4845
    %s4850 = sld [smem:[#allocation2 + $0xbe]]
    %v4851 = vstv %s4850
    %v4852 = vmul.f32 %v1977, %v4851
    %v4853 = vmul.f32 %v1985, %v4851
    %v4856 = vrot.slane %v4852, 1
    %v4857 = vrot.slane %v4853, 1
    %v4860 = vadd.f32 %v4750, %v4856
    %v4861 = vadd.f32 %v4751, %v4857
    %s4862 = sld [smem:[#allocation2 + $0xde]]
    %v4863 = vstv %s4862
    %v4864 = vmul.f32 %v1977, %v4863
    %v4865 = vmul.f32 %v1985, %v4863
    %v4868 = vrot.slane %v4864, 1
    %v4869 = vrot.slane %v4865, 1
    %v4872 = vadd.f32 %v4764, %v4868
    %v4873 = vadd.f32 %v4765, %v4869
    %s4874 = sld [smem:[#allocation2 + $0xfe]]
    %v4875 = vstv %s4874
    %v4876 = vmul.f32 %v1977, %v4875
    %v4877 = vmul.f32 %v1985, %v4875
    %v4880 = vrot.slane %v4876, 1
    %v4881 = vrot.slane %v4877, 1
    %v4884 = vadd.f32 %v4778, %v4880
    %v4885 = vadd.f32 %v4779, %v4881
    %s4886 = sld [smem:[#allocation2 + $0x11e]]
    %v4887 = vstv %s4886
    %v4888 = vmul.f32 %v1977, %v4887
    %v4889 = vmul.f32 %v1985, %v4887
    %v4892 = vrot.slane %v4888, 1
    %v4893 = vrot.slane %v4889, 1
    %v4896 = vadd.f32 %v4792, %v4892
    %v4897 = vadd.f32 %v4793, %v4893
    %s4898 = sld [smem:[#allocation2 + $0x13e]]
    %v4899 = vstv %s4898
    %v4900 = vmul.f32 %v1977, %v4899
    %v4901 = vmul.f32 %v1985, %v4899
    %v4904 = vrot.slane %v4900, 1
    %v4905 = vrot.slane %v4901, 1
    %v4908 = vadd.f32 %v4806, %v4904
    %v4909 = vadd.f32 %v4807, %v4905
    %s4910 = sld [smem:[#allocation2 + $0x15e]]
    %v4911 = vstv %s4910
    %v4912 = vmul.f32 %v1977, %v4911
    %v4913 = vmul.f32 %v1985, %v4911
    %v4916 = vrot.slane %v4912, 1
    %v4917 = vrot.slane %v4913, 1
    %v4920 = vadd.f32 %v4820, %v4916
    %v4921 = vadd.f32 %v4821, %v4917
    %s4922 = sld [smem:[#allocation2 + $0x17e]]
    %v4923 = vstv %s4922
    %v4924 = vmul.f32 %v1977, %v4923
    %v4925 = vmul.f32 %v1985, %v4923
    %v4928 = vrot.slane %v4924, 1
    %v4929 = vrot.slane %v4925, 1
    %v4932 = vadd.f32 %v4834, %v4928
    %v4933 = vadd.f32 %v4835, %v4929
    %s4934 = sld [smem:[#allocation2 + $0x19e]]
    %v4935 = vstv %s4934
    %v4936 = vmul.f32 %v1977, %v4935
    %v4937 = vmul.f32 %v1985, %v4935
    %v4940 = vrot.slane %v4936, 1
    %v4941 = vrot.slane %v4937, 1
    %v4944 = vadd.f32 %v4848, %v4940
    %v4945 = vadd.f32 %v4849, %v4941
    %s4946 = sld [smem:[#allocation2 + $0xbf]]
    %v4947 = vstv %s4946
    %v4948 = vmul.f32 %v1977, %v4947
    %v4949 = vmul.f32 %v1985, %v4947
    %v4952 = vrot.slane %v4948, 1
    %v4953 = vrot.slane %v4949, 1
    %4954 = vrot.lane.b32.xlu0 %v4952, 127
    %v4955 = vpop.permute.xlu0 %4954
    %4956 = vrot.lane.b32.xlu0 %v4953, 127
    %v4957 = vpop.permute.xlu0 %4956
    %v4960 = vadd.f32 %v4860, %v4955
    %v4961 = vadd.f32 %v4861, %v4957
    %s4962 = sld [smem:[#allocation2 + $0xdf]]
    %v4963 = vstv %s4962
    %v4964 = vmul.f32 %v1977, %v4963
    %v4965 = vmul.f32 %v1985, %v4963
    %v4968 = vrot.slane %v4964, 1
    %v4969 = vrot.slane %v4965, 1
    %4970 = vrot.lane.b32.xlu0 %v4968, 127
    %v4971 = vpop.permute.xlu0 %4970
    %4972 = vrot.lane.b32.xlu0 %v4969, 127
    %v4973 = vpop.permute.xlu0 %4972
    %v4976 = vadd.f32 %v4872, %v4971
    %v4977 = vadd.f32 %v4873, %v4973
    %s4978 = sld [smem:[#allocation2 + $0xff]]
    %v4979 = vstv %s4978
    %v4980 = vmul.f32 %v1977, %v4979
    %v4981 = vmul.f32 %v1985, %v4979
    %v4984 = vrot.slane %v4980, 1
    %v4985 = vrot.slane %v4981, 1
    %4986 = vrot.lane.b32.xlu0 %v4984, 127
    %v4987 = vpop.permute.xlu0 %4986
    %4988 = vrot.lane.b32.xlu0 %v4985, 127
    %v4989 = vpop.permute.xlu0 %4988
    %v4992 = vadd.f32 %v4884, %v4987
    %v4993 = vadd.f32 %v4885, %v4989
    %s4994 = sld [smem:[#allocation2 + $0x11f]]
    %v4995 = vstv %s4994
    %v4996 = vmul.f32 %v1977, %v4995
    %v4997 = vmul.f32 %v1985, %v4995
    %v5000 = vrot.slane %v4996, 1
    %v5001 = vrot.slane %v4997, 1
    %5002 = vrot.lane.b32.xlu0 %v5000, 127
    %v5003 = vpop.permute.xlu0 %5002
    %5004 = vrot.lane.b32.xlu0 %v5001, 127
    %v5005 = vpop.permute.xlu0 %5004
    %v5008 = vadd.f32 %v4896, %v5003
    %v5009 = vadd.f32 %v4897, %v5005
    %s5010 = sld [smem:[#allocation2 + $0x13f]]
    %v5011 = vstv %s5010
    %v5012 = vmul.f32 %v1977, %v5011
    %v5013 = vmul.f32 %v1985, %v5011
    %v5016 = vrot.slane %v5012, 1
    %v5017 = vrot.slane %v5013, 1
    %5018 = vrot.lane.b32.xlu0 %v5016, 127
    %v5019 = vpop.permute.xlu0 %5018
    %5020 = vrot.lane.b32.xlu0 %v5017, 127
    %v5021 = vpop.permute.xlu0 %5020
    %v5024 = vadd.f32 %v4908, %v5019
    %v5025 = vadd.f32 %v4909, %v5021
    %s5026 = sld [smem:[#allocation2 + $0x15f]]
    %v5027 = vstv %s5026
    %v5028 = vmul.f32 %v1977, %v5027
    %v5029 = vmul.f32 %v1985, %v5027
    %v5032 = vrot.slane %v5028, 1
    %v5033 = vrot.slane %v5029, 1
    %5034 = vrot.lane.b32.xlu0 %v5032, 127
    %v5035 = vpop.permute.xlu0 %5034
    %5036 = vrot.lane.b32.xlu0 %v5033, 127
    %v5037 = vpop.permute.xlu0 %5036
    %v5040 = vadd.f32 %v4920, %v5035
    %v5041 = vadd.f32 %v4921, %v5037
    %s5042 = sld [smem:[#allocation2 + $0x17f]]
    %v5043 = vstv %s5042
    %v5044 = vmul.f32 %v1977, %v5043
    %v5045 = vmul.f32 %v1985, %v5043
    %v5048 = vrot.slane %v5044, 1
    %v5049 = vrot.slane %v5045, 1
    %5050 = vrot.lane.b32.xlu0 %v5048, 127
    %v5051 = vpop.permute.xlu0 %5050
    %5052 = vrot.lane.b32.xlu0 %v5049, 127
    %v5053 = vpop.permute.xlu0 %5052
    %v5056 = vadd.f32 %v4932, %v5051
    %v5057 = vadd.f32 %v4933, %v5053
    %s5058 = sld [smem:[#allocation2 + $0x19f]]
    %v5059 = vstv %s5058
    %v5060 = vmul.f32 %v1977, %v5059
    %v5061 = vmul.f32 %v1985, %v5059
    %v5064 = vrot.slane %v5060, 1
    %v5065 = vrot.slane %v5061, 1
    %5066 = vrot.lane.b32.xlu0 %v5064, 127
    %v5067 = vpop.permute.xlu0 %5066
    %5068 = vrot.lane.b32.xlu0 %v5065, 127
    %v5069 = vpop.permute.xlu0 %5068
    %v5072 = vadd.f32 %v4944, %v5067
    %v5073 = vadd.f32 %v4945, %v5069
    %v5074 = vmax.f32 %v4960, 0.0
    %v5075 = vmax.f32 %v4961, 0.0
    %v5076 = vmax.f32 %v4976, 0.0
    %v5077 = vmax.f32 %v4977, 0.0
    %v5078 = vmax.f32 %v4992, 0.0
    %v5079 = vmax.f32 %v4993, 0.0
    %v5080 = vmax.f32 %v5008, 0.0
    %v5081 = vmax.f32 %v5009, 0.0
    %v5082 = vmax.f32 %v5024, 0.0
    %v5083 = vmax.f32 %v5025, 0.0
    %v5084 = vmax.f32 %v5040, 0.0
    %v5085 = vmax.f32 %v5041, 0.0
    %v5086 = vmax.f32 %v5056, 0.0
    %v5087 = vmax.f32 %v5057, 0.0
    %v5088 = vmax.f32 %v5072, 0.0
    %v5089 = vmax.f32 %v5073, 0.0
    %v5090 = vld [vmem:[%s2] sm:$0x3]
    %v5091 = vld [vmem:[%s2 + $0x2] sm:$0x3]
    %v5092 = vld [vmem:[%s2 + $0x4] sm:$0x3]
    %v5093 = vld [vmem:[%s2 + $0x6] sm:$0x3]
    %v5094 = vld [vmem:[%s2 + $0x8] sm:$0x3]
    %v5095 = vld [vmem:[%s2 + $0xa] sm:$0x3]
    %v5096 = vld [vmem:[%s2 + $0xc] sm:$0x3]
    %v5097 = vld [vmem:[%s2 + $0xe] sm:$0x3]
    %v5098 = vmul.f32 %v5074, %v5090
    %v5099 = vmul.f32 %v5076, %v5091
    %v5100 = vmul.f32 %v5078, %v5092
    %v5101 = vmul.f32 %v5080, %v5093
    %v5102 = vmul.f32 %v5082, %v5094
    %v5103 = vmul.f32 %v5084, %v5095
    %v5104 = vmul.f32 %v5086, %v5096
    %v5105 = vmul.f32 %v5088, %v5097
    %v5106 = vmul.f32 %v5075, %v5090
    %v5107 = vmul.f32 %v5077, %v5091
    %v5108 = vmul.f32 %v5079, %v5092
    %v5109 = vmul.f32 %v5081, %v5093
    %v5110 = vmul.f32 %v5083, %v5094
    %v5111 = vmul.f32 %v5085, %v5095
    %v5112 = vmul.f32 %v5087, %v5096
    %v5113 = vmul.f32 %v5089, %v5097
    %vm5114 = vcmask 17408
    %v5115 = vsel %vm5114, %v5098, 0.0
    %5116 = vadd.xlane.f32.xlu0 %v5115
    %v5117 = vpop.xlane.xlu0 %5116
    %v5118 = vsel %vm5114, %v5099, 0.0
    %5119 = vadd.xlane.f32.xlu0 %v5118
    %v5120 = vpop.xlane.xlu0 %5119
    %v5121 = vsel %vm5114, %v5100, 0.0
    %5122 = vadd.xlane.f32.xlu0 %v5121
    %v5123 = vpop.xlane.xlu0 %5122
    %v5124 = vsel %vm5114, %v5101, 0.0
    %5125 = vadd.xlane.f32.xlu0 %v5124
    %v5126 = vpop.xlane.xlu0 %5125
    %v5127 = vsel %vm5114, %v5102, 0.0
    %5128 = vadd.xlane.f32.xlu0 %v5127
    %v5129 = vpop.xlane.xlu0 %5128
    %v5130 = vsel %vm5114, %v5103, 0.0
    %5131 = vadd.xlane.f32.xlu0 %v5130
    %v5132 = vpop.xlane.xlu0 %5131
    %v5133 = vsel %vm5114, %v5104, 0.0
    %5134 = vadd.xlane.f32.xlu0 %v5133
    %v5135 = vpop.xlane.xlu0 %5134
    %v5136 = vsel %vm5114, %v5105, 0.0
    %5137 = vadd.xlane.f32.xlu0 %v5136
    %v5138 = vpop.xlane.xlu0 %5137
    %v5139 = vsel %vm5114, %v5106, 0.0
    %5140 = vadd.xlane.f32.xlu0 %v5139
    %v5141 = vpop.xlane.xlu0 %5140
    %v5142 = vsel %vm5114, %v5107, 0.0
    %5143 = vadd.xlane.f32.xlu0 %v5142
    %v5144 = vpop.xlane.xlu0 %5143
    %v5145 = vsel %vm5114, %v5108, 0.0
    %5146 = vadd.xlane.f32.xlu0 %v5145
    %v5147 = vpop.xlane.xlu0 %5146
    %v5148 = vsel %vm5114, %v5109, 0.0
    %5149 = vadd.xlane.f32.xlu0 %v5148
    %v5150 = vpop.xlane.xlu0 %5149
    %v5151 = vsel %vm5114, %v5110, 0.0
    %5152 = vadd.xlane.f32.xlu0 %v5151
    %v5153 = vpop.xlane.xlu0 %5152
    %v5154 = vsel %vm5114, %v5111, 0.0
    %5155 = vadd.xlane.f32.xlu0 %v5154
    %v5156 = vpop.xlane.xlu0 %5155
    %v5157 = vsel %vm5114, %v5112, 0.0
    %5158 = vadd.xlane.f32.xlu0 %v5157
    %v5159 = vpop.xlane.xlu0 %5158
    %v5160 = vsel %vm5114, %v5113, 0.0
    %5161 = vadd.xlane.f32.xlu0 %v5160
    %v5162 = vpop.xlane.xlu0 %5161
    %v5163 = vsel %vm1678, %v5117, 0.0
    %v5164 = vrot.slane %v5163, 4
    %v5165 = vadd.f32 %v5163, %v5164
    %v5166 = vrot.slane %v5165, 2
    %v5167 = vadd.f32 %v5165, %v5166
    %v5168 = vrot.slane %v5167, 1
    %v5169 = vadd.f32 %v5167, %v5168
    %v5170 = vsel %vm1678, %v5120, 0.0
    %v5171 = vrot.slane %v5170, 4
    %v5172 = vadd.f32 %v5170, %v5171
    %v5173 = vrot.slane %v5172, 2
    %v5174 = vadd.f32 %v5172, %v5173
    %v5175 = vrot.slane %v5174, 1
    %v5176 = vadd.f32 %v5174, %v5175
    %v5177 = vsel %vm1678, %v5123, 0.0
    %v5178 = vrot.slane %v5177, 4
    %v5179 = vadd.f32 %v5177, %v5178
    %v5180 = vrot.slane %v5179, 2
    %v5181 = vadd.f32 %v5179, %v5180
    %v5182 = vrot.slane %v5181, 1
    %v5183 = vadd.f32 %v5181, %v5182
    %v5184 = vsel %vm1678, %v5126, 0.0
    %v5185 = vrot.slane %v5184, 4
    %v5186 = vadd.f32 %v5184, %v5185
    %v5187 = vrot.slane %v5186, 2
    %v5188 = vadd.f32 %v5186, %v5187
    %v5189 = vrot.slane %v5188, 1
    %v5190 = vadd.f32 %v5188, %v5189
    %v5191 = vsel %vm1678, %v5129, 0.0
    %v5192 = vrot.slane %v5191, 4
    %v5193 = vadd.f32 %v5191, %v5192
    %v5194 = vrot.slane %v5193, 2
    %v5195 = vadd.f32 %v5193, %v5194
    %v5196 = vrot.slane %v5195, 1
    %v5197 = vadd.f32 %v5195, %v5196
    %v5198 = vsel %vm1678, %v5132, 0.0
    %v5199 = vrot.slane %v5198, 4
    %v5200 = vadd.f32 %v5198, %v5199
    %v5201 = vrot.slane %v5200, 2
    %v5202 = vadd.f32 %v5200, %v5201
    %v5203 = vrot.slane %v5202, 1
    %v5204 = vadd.f32 %v5202, %v5203
    %v5205 = vsel %vm1678, %v5135, 0.0
    %v5206 = vrot.slane %v5205, 4
    %v5207 = vadd.f32 %v5205, %v5206
    %v5208 = vrot.slane %v5207, 2
    %v5209 = vadd.f32 %v5207, %v5208
    %v5210 = vrot.slane %v5209, 1
    %v5211 = vadd.f32 %v5209, %v5210
    %v5212 = vsel %vm1678, %v5138, 0.0
    %v5213 = vrot.slane %v5212, 4
    %v5214 = vadd.f32 %v5212, %v5213
    %v5215 = vrot.slane %v5214, 2
    %v5216 = vadd.f32 %v5214, %v5215
    %v5217 = vrot.slane %v5216, 1
    %v5218 = vadd.f32 %v5216, %v5217
    %v5219 = vsel %vm1678, %v5141, 0.0
    %v5220 = vrot.slane %v5219, 4
    %v5221 = vadd.f32 %v5219, %v5220
    %v5222 = vrot.slane %v5221, 2
    %v5223 = vadd.f32 %v5221, %v5222
    %v5224 = vrot.slane %v5223, 1
    %v5225 = vadd.f32 %v5223, %v5224
    %v5226 = vsel %vm1678, %v5144, 0.0
    %v5227 = vrot.slane %v5226, 4
    %v5228 = vadd.f32 %v5226, %v5227
    %v5229 = vrot.slane %v5228, 2
    %v5230 = vadd.f32 %v5228, %v5229
    %v5231 = vrot.slane %v5230, 1
    %v5232 = vadd.f32 %v5230, %v5231
    %v5233 = vsel %vm1678, %v5147, 0.0
    %v5234 = vrot.slane %v5233, 4
    %v5235 = vadd.f32 %v5233, %v5234
    %v5236 = vrot.slane %v5235, 2
    %v5237 = vadd.f32 %v5235, %v5236
    %v5238 = vrot.slane %v5237, 1
    %v5239 = vadd.f32 %v5237, %v5238
    %v5240 = vsel %vm1678, %v5150, 0.0
    %v5241 = vrot.slane %v5240, 4
    %v5242 = vadd.f32 %v5240, %v5241
    %v5243 = vrot.slane %v5242, 2
    %v5244 = vadd.f32 %v5242, %v5243
    %v5245 = vrot.slane %v5244, 1
    %v5246 = vadd.f32 %v5244, %v5245
    %v5247 = vsel %vm1678, %v5153, 0.0
    %v5248 = vrot.slane %v5247, 4
    %v5249 = vadd.f32 %v5247, %v5248
    %v5250 = vrot.slane %v5249, 2
    %v5251 = vadd.f32 %v5249, %v5250
    %v5252 = vrot.slane %v5251, 1
    %v5253 = vadd.f32 %v5251, %v5252
    %v5254 = vsel %vm1678, %v5156, 0.0
    %v5255 = vrot.slane %v5254, 4
    %v5256 = vadd.f32 %v5254, %v5255
    %v5257 = vrot.slane %v5256, 2
    %v5258 = vadd.f32 %v5256, %v5257
    %v5259 = vrot.slane %v5258, 1
    %v5260 = vadd.f32 %v5258, %v5259
    %v5261 = vsel %vm1678, %v5159, 0.0
    %v5262 = vrot.slane %v5261, 4
    %v5263 = vadd.f32 %v5261, %v5262
    %v5264 = vrot.slane %v5263, 2
    %v5265 = vadd.f32 %v5263, %v5264
    %v5266 = vrot.slane %v5265, 1
    %v5267 = vadd.f32 %v5265, %v5266
    %v5268 = vsel %vm1678, %v5162, 0.0
    %v5269 = vrot.slane %v5268, 4
    %v5270 = vadd.f32 %v5268, %v5269
    %v5271 = vrot.slane %v5270, 2
    %v5272 = vadd.f32 %v5270, %v5271
    %v5273 = vrot.slane %v5272, 1
    %v5274 = vadd.f32 %v5272, %v5273
    %v5275 = vadd.f32 %v5169, %v5176
    %v5276 = vadd.f32 %v5275, %v5183
    %v5277 = vadd.f32 %v5276, %v5190
    %v5278 = vadd.f32 %v5277, %v5197
    %v5279 = vadd.f32 %v5278, %v5204
    %v5280 = vadd.f32 %v5279, %v5211
    %v5281 = vadd.f32 %v5280, %v5218
    %v5282 = vadd.f32 %v5225, %v5232
    %v5283 = vadd.f32 %v5282, %v5239
    %v5284 = vadd.f32 %v5283, %v5246
    %v5285 = vadd.f32 %v5284, %v5253
    %v5286 = vadd.f32 %v5285, %v5260
    %v5287 = vadd.f32 %v5286, %v5267
    %v5288 = vadd.f32 %v5287, %v5274
    %s5289 = sld [smem:[#allocation2 + $0x1a8]]
    %v5290 = vstv %s5289
    %v5291 = vadd.f32 %v5281, %v5290
    %v5292 = vadd.f32 %v5288, %v5290
    %vm5293 = vcmask 0
    %5294 = vst.msk [vmem:[%s3] sm:$0x1] %vm5293, %v5291
    %5295 = vst.msk [vmem:[%s3 + $0x1] sm:$0x1] %vm5293, %v5292
    // Predicated region
    $region18: #{_lambda_.1} parent=1 // pred_check
      _
    $region19: #{_lambda_.1} parent=1 // pred_check_branch
      %5297 = sbr.rel (0) target = $region21
    $region20: #{_lambda_.1} parent=1 // pred_region
      _
    $region21: #{_lambda_.1} parent=1 // pred_fallthru
      _
    // Predicated region
    $region22: #{_lambda_.1} parent=1 // pred_check
      _
    $region23: #{_lambda_.1} parent=1 // pred_check_branch
      %5299 = sbr.rel (0) target = $region25
    $region24: #{_lambda_.1} parent=1 // pred_region
      _
    $region25: #{_lambda_.1} parent=1 // pred_fallthru
      _
    %5300 = vsyncpa [#allocation3], 1

</llo_original>
